<compile_context>
chip_gen: v7x
topology: tpu7x:2x2x1
jax: 0.10.0
libtpu: 0.0.40
codegen_flags: <defaults>
</compile_context>

<pallas_src>
import math
import functools

import numpy as np
import jax
import jax.numpy as jnp
from jax import lax
from jax.experimental import pallas as pl
from jax.experimental.pallas import tpu as pltpu

SAMPLE_RATE = 2000
LOWPASS_HZ = 400
N_FFT = 512
HOP = 128
N_MELS = 64
N_MFCC = 13

FREQ_PAD = 384      # 257 -> 384 (zero pad; exact)
MEL_PAD = 128       # 64  -> 128
MFCC_PAD = 128      # 13  -> 128
BQ_BLOCK = 256      # samples handled per sequential biquad step


def _vmem():
    return pl.BlockSpec(memory_space=pltpu.MemorySpace.VMEM)


# ----------------------------------------------------------------------------------
# Pallas kernel 1: blocked biquad IIR recurrence
#   y[n] = f[n] - a1*y[n-1] - a2*y[n-2]
#   For a block of L samples: y_blk = f_blk @ M + y[-1]*c1 + y[-2]*c2
#   with M[j,k] = h[k-j] (impulse response), c1/c2 the homogeneous responses.
# ----------------------------------------------------------------------------------
def _biquad_kernel(fir_ref, mt_ref, c1_ref, c2_ref, o_ref, *, block):
    bc = fir_ref.shape[0]
    nb = fir_ref.shape[1] // block
    mt = mt_ref[...]
    c1 = c1_ref[...]
    c2 = c2_ref[...]
    y1 = jnp.zeros((bc, 1), jnp.float32)     # y[-1] (unclamped carry)
    y2 = jnp.zeros((bc, 1), jnp.float32)     # y[-2]
    for i in range(nb):                      # static unroll; matmuls overlap in the MXU
        f = fir_ref[:, i * block:(i + 1) * block]
        y = (jnp.dot(f, mt, preferred_element_type=jnp.float32)
             + y1 * c1 + y2 * c2)
        # torchaudio lfilter(clamp=True) clamps the *output* only; carry stays unclamped.
        o_ref[:, i * block:(i + 1) * block] = jnp.clip(y, -1.0, 1.0)
        y1 = y[:, block - 1:block]
        y2 = y[:, block - 2:block - 1]


def _biquad_consts(a1, a2, L):
    h = np.zeros(L, np.float64)
    h[0] = 1.0
    if L > 1:
        h[1] = -a1
    for m in range(2, L):
        h[m] = -a1 * h[m - 1] - a2 * h[m - 2]
    idx = np.arange(L)
    d = idx[None, :] - idx[:, None]                     # M[j,k] = h[k-j] for k>=j
    mt = np.where(d >= 0, h[np.clip(d, 0, L - 1)], 0.0).astype(np.float32)
    g1 = np.zeros(L, np.float64)
    g2 = np.zeros(L, np.float64)
    p1a, p1b = 1.0, 0.0                                 # (y[-1], y[-2]) = (1, 0)
    p2a, p2b = 0.0, 1.0                                 # (y[-1], y[-2]) = (0, 1)
    for k in range(L):
        g1[k] = -a1 * p1a - a2 * p1b; p1b, p1a = p1a, g1[k]
        g2[k] = -a1 * p2a - a2 * p2b; p2b, p2a = p2a, g2[k]
    return (jnp.asarray(mt),
            jnp.asarray(g1.astype(np.float32)).reshape(1, L),
            jnp.asarray(g2.astype(np.float32)).reshape(1, L))


def lowpass_biquad_pallas(x, sr, cutoff, Q=0.707):
    w0 = 2.0 * math.pi * cutoff / sr
    alpha = math.sin(w0) / (2.0 * Q)
    cosw0 = math.cos(w0)
    b0, b1, b2 = (1 - cosw0) / 2, 1 - cosw0, (1 - cosw0) / 2
    a0, a1, a2 = 1 + alpha, -2 * cosw0, 1 - alpha
    b0, b1, b2, a1, a2 = b0 / a0, b1 / a0, b2 / a0, a1 / a0, a2 / a0

    B, C, T = x.shape
    BC = B * C
    xf = x.reshape(BC, T)
    x1 = jnp.pad(xf, ((0, 0), (1, 0)))[:, :T]
    x2 = jnp.pad(xf, ((0, 0), (2, 0)))[:, :T]
    fir = b0 * xf + b1 * x1 + b2 * x2                   # vectorized FIR part (XLA glue)

    nb = -(-T // BQ_BLOCK)
    Tp = nb * BQ_BLOCK
    fir = jnp.pad(fir, ((0, 0), (0, Tp - T)))
    mt, c1, c2 = _biquad_consts(a1, a2, BQ_BLOCK)

    y = pl.pallas_call(
        functools.partial(_biquad_kernel, block=BQ_BLOCK),
        out_shape=jax.ShapeDtypeStruct((BC, Tp), jnp.float32),
        in_specs=[_vmem(), _vmem(), _vmem(), _vmem()],
        out_specs=_vmem(),
    )(fir, mt, c1, c2)
    return y[:, :T].reshape(B, C, T)


# ----------------------------------------------------------------------------------
# Pallas kernel 2: fused STFT(power) + mel + amplitude_to_dB + DCT  (grid over batch)
# ----------------------------------------------------------------------------------
def _mfcc_kernel(frames_ref, dftc_ref, fbp_ref, dctp_ref, o_ref,
                 *, n_freq_pad, n_mels, top_db):
    f = frames_ref[0]                                                # (n_frames, N_FFT) bf16
    spec = jnp.dot(f, dftc_ref[...], preferred_element_type=jnp.float32)
    re = spec[:, :n_freq_pad]
    im = spec[:, n_freq_pad:]
    power = re * re + im * im                                        # (n_frames, FREQ_PAD)
    mel = jnp.dot(power, fbp_ref[...], preferred_element_type=jnp.float32)
    x_db = 10.0 * jnp.log10(jnp.maximum(mel, 1e-10))
    # per-batch-item amax over (channel, mel, time); this block is exactly one (b, c=1)
    mx = jnp.max(x_db[:, :n_mels])
    x_db = jnp.maximum(x_db, mx - top_db)
    o_ref[0] = jnp.dot(x_db, dctp_ref[...], preferred_element_type=jnp.float32)


def _mel_fbanks_np(n_freqs, f_min, f_max, n_mels, sr):
    # torchaudio melscale_fbanks, mel_scale='htk', norm=None
    def hz_to_mel(f): return 2595.0 * np.log10(1.0 + f / 700.0)
    def mel_to_hz(m): return 700.0 * (10.0 ** (m / 2595.0) - 1.0)
    all_freqs = np.linspace(0.0, sr / 2.0, n_freqs)
    m_pts = np.linspace(hz_to_mel(f_min), hz_to_mel(f_max), n_mels + 2)
    f_pts = mel_to_hz(m_pts)
    f_diff = f_pts[1:] - f_pts[:-1]
    slopes = f_pts[None, :] - all_freqs[:, None]
    down = -slopes[:, :-2] / f_diff[:-1]
    up = slopes[:, 2:] / f_diff[1:]
    return np.maximum(0.0, np.minimum(down, up)).astype(np.float32)   # (n_freqs, n_mels)


def _dct_mat_np(n_mfcc, n_mels):
    # torchaudio create_dct, norm='ortho'
    n = np.arange(n_mels, dtype=np.float64)
    k = np.arange(n_mfcc, dtype=np.float64)[:, None]
    dct = np.cos(np.pi / n_mels * (n + 0.5) * k)
    dct[0] *= 1.0 / np.sqrt(2.0)
    dct *= np.sqrt(2.0 / n_mels)
    return dct.T.astype(np.float32)                                   # (n_mels, n_mfcc)


def make_frontend_consts():
    n_freqs = N_FFT // 2 + 1
    win = 0.5 - 0.5 * np.cos(2.0 * np.pi * np.arange(N_FFT) / N_FFT)  # periodic hann
    k = np.arange(N_FFT)[:, None]
    fr = np.arange(n_freqs)[None, :]
    ang = 2.0 * np.pi * k * fr / N_FFT
    dft_r = (win[:, None] * np.cos(ang)).astype(np.float32)
    dft_i = (-win[:, None] * np.sin(ang)).astype(np.float32)
    dftc = np.zeros((N_FFT, 2 * FREQ_PAD), np.float32)                # [real | imag] concat
    dftc[:, :n_freqs] = dft_r
    dftc[:, FREQ_PAD:FREQ_PAD + n_freqs] = dft_i
    fbp = np.zeros((FREQ_PAD, MEL_PAD), np.float32)
    fbp[:n_freqs, :N_MELS] = _mel_fbanks_np(n_freqs, 0.0, SAMPLE_RATE / 2.0, N_MELS, SAMPLE_RATE)
    dctp = np.zeros((MEL_PAD, MFCC_PAD), np.float32)
    dctp[:N_MELS, :N_MFCC] = _dct_mat_np(N_MFCC, N_MELS)
    return (jnp.asarray(dftc, jnp.bfloat16),   # bf16 operand: MXU-native on v6e/v7x
            jnp.asarray(fbp), jnp.asarray(dctp))


# ----------------------------------------------------------------------------------
# Pallas kernel 3: lane-dense conv matmul (BN of the *input* folded in) + bias + ReLU
#   out(Cout, B*Ho*Wo) = W(Cout, Cin*9) @ patches^T
# ----------------------------------------------------------------------------------
def _convmm_kernel(w_ref, p_ref, b_ref, o_ref):
    acc = jnp.dot(w_ref[...], p_ref[...], preferred_element_type=jnp.float32)
    o_ref[...] = jnp.maximum(acc + b_ref[...], 0.0)


def conv_relu_T(x, w, b, bn=None):
    # bn = (scale, shift) per input channel (eval-mode BatchNorm applied *before* this conv);
    # folded into w, b at trace time (exact).
    w = jnp.asarray(w, jnp.float32)
    b = jnp.asarray(b, jnp.float32)
    if bn is not None:
        scale, shift = bn
        b = b + jnp.einsum('oikl,i->o', w, shift)
        w = w * scale[None, :, None, None]
    B, Cin, H, W = x.shape
    Cout = w.shape[0]
    Ho, Wo = H - 2, W - 2
    # TODO(synk): im2col patch extraction + maxpool remain XLA glue; the fully in-kernel
    # CNN fusion needs lane-axis reshapes with no clean/robust Mosaic lowering at these shapes.
    cols = [x[:, :, di:di + Ho, dj:dj + Wo] for di in range(3) for dj in range(3)]
    patches = jnp.stack(cols, axis=2)                               # (B, Cin, 9, Ho, Wo)
    pT = patches.transpose(1, 2, 0, 3, 4).reshape(Cin * 9, B * Ho * Wo)
    wmat = w.reshape(Cout, Cin * 9)
    out_T = pl.pallas_call(
        _convmm_kernel,
        out_shape=jax.ShapeDtypeStruct((Cout, B * Ho * Wo), jnp.float32),
        in_specs=[_vmem(), _vmem(), _vmem()],
        out_specs=_vmem(),
    )(wmat.astype(jnp.bfloat16), pT.astype(jnp.bfloat16), b.reshape(Cout, 1))
    return out_T.reshape(Cout, B, Ho, Wo).transpose(1, 0, 2, 3)


# ----------------------------------------------------------------------------------
# Pallas kernel 4: fused 2-layer LSTM + mean pool + fc1 + (dropout=id) + fc2
# ----------------------------------------------------------------------------------
def _lstm_head_kernel(x_ref, w0_ref, b0_ref, w1_ref, b1_ref,
                      f1w_ref, f1b_ref, f2w_ref, f2b_ref, o_ref):
    L, B, _ = x_ref.shape
    H = w0_ref.shape[1] // 4
    w0 = w0_ref[...]; b0 = b0_ref[...]
    w1 = w1_ref[...]; b1 = b1_ref[...]

    def cell(xh, w, b, c_prev):
        g = jnp.dot(xh, w, preferred_element_type=jnp.float32) + b
        i = jax.nn.sigmoid(g[:, 0 * H:1 * H])
        f = jax.nn.sigmoid(g[:, 1 * H:2 * H])
        gg = jnp.tanh(g[:, 2 * H:3 * H])
        o = jax.nn.sigmoid(g[:, 3 * H:4 * H])
        c_new = f * c_prev + i * gg
        h_new = o * jnp.tanh(c_new)
        return h_new, c_new

    h0 = jnp.zeros((B, H), jnp.float32); c0 = jnp.zeros((B, H), jnp.float32)
    h1 = jnp.zeros((B, H), jnp.float32); c1 = jnp.zeros((B, H), jnp.float32)
    acc = jnp.zeros((B, H), jnp.float32)
    for t in range(L):                                   # L=4, static unroll
        x_t = x_ref[t]
        h0, c0 = cell(jnp.concatenate([x_t, h0], axis=1), w0, b0, c0)
        h1, c1 = cell(jnp.concatenate([h0, h1], axis=1), w1, b1, c1)
        acc = acc + h1
    pooled = acc * (1.0 / L)                             # 'b h c -> b c' mean
    z = jnp.dot(pooled, f1w_ref[...], preferred_element_type=jnp.float32) + f1b_ref[...]
    # Dropout(0.5): identity in eval mode
    o_ref[...] = jnp.dot(z, f2w_ref[...], preferred_element_type=jnp.float32) + f2b_ref[...]


def pallas_lstm_head(seq_lbd, p):
    L, B, D = seq_lbd.shape
    H = p['lstm_whh0'].shape[1]
    # fold BN3 (applied to the CNN output, feature index = w_idx*C + c) into layer-0 W_ih
    scale3, shift3 = _bn_affine(p['bn3_g'], p['bn3_b'], p['bn3_m'], p['bn3_v'])
    s_feat = jnp.tile(scale3, D // scale3.shape[0])
    t_feat = jnp.tile(shift3, D // shift3.shape[0])
    wih0_t = p['lstm_wih0'].T * s_feat[:, None]                         # (D, 4H)
    w0 = jnp.concatenate([wih0_t, p['lstm_whh0'].T], axis=0)            # (D+H, 4H)
    b0 = (p['lstm_bih0'] + p['lstm_bhh0'] + t_feat @ p['lstm_wih0'].T).reshape(1, 4 * H)
    w1 = jnp.concatenate([p['lstm_wih1'].T, p['lstm_whh1'].T], axis=0)  # (2H, 4H)
    b1 = (p['lstm_bih1'] + p['lstm_bhh1']).reshape(1, 4 * H)
    f1w = p['fc1_w'].T; f1b = p['fc1_b'].reshape(1, -1)
    f2w = p['fc2_w'].T; f2b = p['fc2_b'].reshape(1, -1)
    n_out = f2w.shape[1]
    return pl.pallas_call(
        _lstm_head_kernel,
        out_shape=jax.ShapeDtypeStruct((B, n_out), jnp.float32),
        in_specs=[_vmem()] * 9,
        out_specs=_vmem(),
    )(seq_lbd, w0, b0, w1, b1, f1w, f1b, f2w, f2b)


# ----------------------------------------------------------------------------------
# Plain-JAX glue: preemphasis, framing, deltas, maxpool, BN-affine helper
# ----------------------------------------------------------------------------------
def _bn_affine(g, b, m, v, eps=1e-5):
    s = g / jnp.sqrt(v + eps)
    return s, b - m * s


def preemphasis(x, coeff=0.97):
    return jnp.concatenate([x[..., :1], x[..., 1:] - coeff * x[..., :-1]], axis=-1)


def compute_deltas(x, win_length=5):
    n = (win_length - 1) // 2
    denom = n * (n + 1) * (2 * n + 1) / 3.0
    T = x.shape[-1]
    xp = jnp.concatenate([jnp.repeat(x[..., :1], n, axis=-1), x,
                          jnp.repeat(x[..., -1:], n, axis=-1)], axis=-1)
    out = jnp.zeros_like(x)
    for j in range(-n, n + 1):
        out = out + j * xp[..., n + j:n + j + T]
    return out / denom


def maxpool2d(x, k, s):
    # TODO(synk): MaxPool2d kept as lax.reduce_window glue (window op, tiny tensors).
    return lax.reduce_window(x, -jnp.inf, lax.max, (1, 1, k, k), (1, 1, s, s), 'VALID')


# ----------------------------------------------------------------------------------
# Model forward
# ----------------------------------------------------------------------------------
def mfcc_features(x, consts):
    dftc, fbp, dctp = consts
    B, C, T = x.shape
    x = lowpass_biquad_pallas(x, SAMPLE_RATE, LOWPASS_HZ)
    x = preemphasis(x, 0.97)
    n_frames = 1 + (T - N_FFT) // HOP
    # TODO(synk): overlapping STFT framing kept as an XLA gather.
    idx = np.arange(n_frames)[:, None] * HOP + np.arange(N_FFT)[None, :]
    frames = x.reshape(B * C, T)[:, idx].astype(jnp.bfloat16)        # (B*C, n_frames, N_FFT)

    mfcc_p = pl.pallas_call(
        functools.partial(_mfcc_kernel, n_freq_pad=FREQ_PAD, n_mels=N_MELS, top_db=80.0),
        out_shape=jax.ShapeDtypeStruct((B * C, n_frames, MFCC_PAD), jnp.float32),
        grid=(B * C,),
        in_specs=[pl.BlockSpec((1, n_frames, N_FFT), lambda b: (b, 0, 0)),
                  pl.BlockSpec((N_FFT, 2 * FREQ_PAD), lambda b: (0, 0)),
                  pl.BlockSpec((FREQ_PAD, MEL_PAD), lambda b: (0, 0)),
                  pl.BlockSpec((MEL_PAD, MFCC_PAD), lambda b: (0, 0))],
        out_specs=pl.BlockSpec((1, n_frames, MFCC_PAD), lambda b: (b, 0, 0)),
        compiler_params=pltpu.CompilerParams(dimension_semantics=("parallel",)),
    )(frames, dftc, fbp, dctp)

    mfcc = mfcc_p[:, :, :N_MFCC].reshape(B, C, n_frames, N_MFCC).transpose(0, 1, 3, 2)
    d1 = compute_deltas(mfcc)
    d2 = compute_deltas(d1)
    return jnp.concatenate([mfcc, d1, d2], axis=2)                   # (B, 1, 39, n_frames)


def crnn_forward(feat, p):
    bn1 = _bn_affine(p['bn1_g'], p['bn1_b'], p['bn1_m'], p['bn1_v'])
    bn2 = _bn_affine(p['bn2_g'], p['bn2_b'], p['bn2_m'], p['bn2_v'])
    x = conv_relu_T(feat, p['conv1_w'], p['conv1_b'], bn=None)
    x = maxpool2d(x, 2, 2)
    x = conv_relu_T(x, p['conv2_w'], p['conv2_b'], bn=bn1)           # BN1 folded into conv2
    x = maxpool2d(x, 2, 2)
    x = conv_relu_T(x, p['conv3_w'], p['conv3_b'], bn=bn2)           # BN2 folded into conv3
    x = maxpool2d(x, 4, 2)
    # BN3 is folded into the LSTM layer-0 input weights inside pallas_lstm_head.
    B, C, W, H = x.shape
    seq = x.transpose(0, 3, 2, 1).reshape(B, H, W * C)               # 'b c w h -> b h (w c)'
    return pallas_lstm_head(seq.transpose(1, 0, 2), p)               # time-major (L, B, D)


def mfcc_crnn_forward(x, params, consts):
    feat = mfcc_features(x, consts)
    return crnn_forward(feat, params)


# ----------------------------------------------------------------------------------
# Deterministic parameter init (shapes from the module's __init__)
# ----------------------------------------------------------------------------------
def init_params(key):
    ks = jax.random.split(key, 16)

    def u(k, shape, fan_in):
        bound = 1.0 / math.sqrt(fan_in)
        return jax.random.uniform(k, shape, jnp.float32, -bound, bound)

    p = {}
    p['conv1_w'] = u(ks[0], (16, 1, 3, 3), 9);    p['conv1_b'] = u(ks[1], (16,), 9)
    p['conv2_w'] = u(ks[2], (32, 16, 3, 3), 144); p['conv2_b'] = u(ks[3], (32,), 144)
    p['conv3_w'] = u(ks[4], (64, 32, 3, 3), 288); p['conv3_b'] = u(ks[5], (64,), 288)
    for i, c in ((1, 16), (2, 32), (3, 64)):
        p[f'bn{i}_g'] = jnp.ones((c,), jnp.float32)
        p[f'bn{i}_b'] = jnp.zeros((c,), jnp.float32)
        p[f'bn{i}_m'] = jnp.zeros((c,), jnp.float32)
        p[f'bn{i}_v'] = jnp.ones((c,), jnp.float32)
    H = 64
    p['lstm_wih0'] = u(ks[6], (4 * H, 128), H); p['lstm_whh0'] = u(ks[7], (4 * H, H), H)
    p['lstm_bih0'] = u(ks[8], (4 * H,), H);     p['lstm_bhh0'] = u(ks[9], (4 * H,), H)
    p['lstm_wih1'] = u(ks[10], (4 * H, H), H);  p['lstm_whh1'] = u(ks[11], (4 * H, H), H)
    p['lstm_bih1'] = u(ks[12], (4 * H,), H);    p['lstm_bhh1'] = u(ks[13], (4 * H,), H)
    p['fc1_w'] = u(ks[14], (32, 64), 64);       p['fc1_b'] = jnp.zeros((32,), jnp.float32)
    p['fc2_w'] = u(ks[15], (2, 32), 32);        p['fc2_b'] = jnp.zeros((2,), jnp.float32)
    return p


if __name__ == "__main__":
    key = jax.random.PRNGKey(0)
    k_x, k_p = jax.random.split(key)

    B = 2
    T = 512 + 53 * 128        # -> 54 STFT frames -> CNN output (B, 64, 2, 4) -> LSTM seq len 4
    x = 0.1 * jax.random.normal(k_x, (B, 1, T), jnp.float32)

    params = init_params(k_p)
    consts = make_frontend_consts()

    fwd = jax.jit(mfcc_crnn_forward)
    out = jax.block_until_ready(fwd(x, params, consts))
    assert out.shape == (B, 2), out.shape
    assert bool(jnp.all(jnp.isfinite(out)))
    print("KERNEL_OK")
</pallas_src>

<mosaic_0001>
module attributes {stable_mosaic.version = 11 : i64} {
  func.func @_biquad_kernel(%arg0: memref<2x7424xf32, #tpu.memory_space<vmem>>, %arg1: memref<256x256xf32, #tpu.memory_space<vmem>>, %arg2: memref<1x256xf32, #tpu.memory_space<vmem>>, %arg3: memref<1x256xf32, #tpu.memory_space<vmem>>, %arg4: memref<2x7424xf32, #tpu.memory_space<vmem>>) attributes {dimension_semantics = [], scalar_prefetch = 0 : i64, scratch_operands = 0 : i64, tpu.core_type = #tpu.core_type<tc>} {
    %c0 = arith.constant 0 : index
    %c0_0 = arith.constant 0 : index
    %0 = vector.load %arg1[%c0, %c0_0] : memref<256x256xf32, #tpu.memory_space<vmem>>, vector<256x256xf32>
    %c0_1 = arith.constant 0 : index
    %c0_2 = arith.constant 0 : index
    %1 = vector.load %arg2[%c0_1, %c0_2] : memref<1x256xf32, #tpu.memory_space<vmem>>, vector<1x256xf32>
    %c0_3 = arith.constant 0 : index
    %c0_4 = arith.constant 0 : index
    %2 = vector.load %arg3[%c0_3, %c0_4] : memref<1x256xf32, #tpu.memory_space<vmem>>, vector<1x256xf32>
    %cst = arith.constant 0.000000e+00 : f32
    %3 = vector.broadcast %cst : f32 to vector<2x1xf32>
    %cst_5 = arith.constant 0.000000e+00 : f32
    %4 = vector.broadcast %cst_5 : f32 to vector<2x1xf32>
    %c0_6 = arith.constant 0 : index
    %c0_7 = arith.constant 0 : index
    %5 = vector.load %arg0[%c0_6, %c0_7] : memref<2x7424xf32, #tpu.memory_space<vmem>>, vector<2x256xf32>
    %cst_8 = arith.constant dense<0.000000e+00> : vector<2x256xf32>
    %6 = tpu.matmul %5, %0, %cst_8 {dimension_numbers = #tpu.dot_dimension_numbers<[1], [0], [0], [1], [0, 0, 1, 1], [], []>} : vector<2x256xf32>, vector<256x256xf32>, vector<2x256xf32> -> vector<2x256xf32>
    %7 = vector.broadcast %3 : vector<2x1xf32> to vector<2x256xf32>
    %8 = vector.broadcast %1 : vector<1x256xf32> to vector<2x256xf32>
    %9 = arith.mulf %7, %8 : vector<2x256xf32>
    %10 = arith.addf %6, %9 : vector<2x256xf32>
    %11 = vector.broadcast %4 : vector<2x1xf32> to vector<2x256xf32>
    %12 = vector.broadcast %2 : vector<1x256xf32> to vector<2x256xf32>
    %13 = arith.mulf %11, %12 : vector<2x256xf32>
    %14 = arith.addf %10, %13 : vector<2x256xf32>
    %cst_9 = arith.constant -1.000000e+00 : f32
    %cst_10 = arith.constant 1.000000e+00 : f32
    %15 = vector.broadcast %cst_9 : f32 to vector<2x256xf32>
    %16 = arith.maximumf %15, %14 : vector<2x256xf32>
    %17 = vector.broadcast %cst_10 : f32 to vector<2x256xf32>
    %18 = arith.minimumf %17, %16 : vector<2x256xf32>
    %c0_11 = arith.constant 0 : index
    %c0_12 = arith.constant 0 : index
    %19 = vector.load %arg4[%c0_11, %c0_12] : memref<2x7424xf32, #tpu.memory_space<vmem>>, vector<2x256xf32>
    tpu.vector_store %arg4[%c0_11, %c0_12], %18 {strides = array<i32>} : memref<2x7424xf32, #tpu.memory_space<vmem>>, vector<2x256xf32>,
    %20 = vector.extract_strided_slice %14 {offsets = [0, 255], sizes = [2, 1], strides = [1, 1]} : vector<2x256xf32> to vector<2x1xf32>
    %21 = vector.extract_strided_slice %14 {offsets = [0, 254], sizes = [2, 1], strides = [1, 1]} : vector<2x256xf32> to vector<2x1xf32>
    %c0_13 = arith.constant 0 : index
    %c256 = arith.constant 256 : index
    %22 = vector.load %arg0[%c0_13, %c256] : memref<2x7424xf32, #tpu.memory_space<vmem>>, vector<2x256xf32>
    %cst_14 = arith.constant dense<0.000000e+00> : vector<2x256xf32>
    %23 = tpu.matmul %22, %0, %cst_14 {dimension_numbers = #tpu.dot_dimension_numbers<[1], [0], [0], [1], [0, 0, 1, 1], [], []>} : vector<2x256xf32>, vector<256x256xf32>, vector<2x256xf32> -> vector<2x256xf32>
    %24 = vector.broadcast %20 : vector<2x1xf32> to vector<2x256xf32>
    %25 = vector.broadcast %1 : vector<1x256xf32> to vector<2x256xf32>
    %26 = arith.mulf %24, %25 : vector<2x256xf32>
    %27 = arith.addf %23, %26 : vector<2x256xf32>
    %28 = vector.broadcast %21 : vector<2x1xf32> to vector<2x256xf32>
    %29 = vector.broadcast %2 : vector<1x256xf32> to vector<2x256xf32>
    %30 = arith.mulf %28, %29 : vector<2x256xf32>
    %31 = arith.addf %27, %30 : vector<2x256xf32>
    %cst_15 = arith.constant -1.000000e+00 : f32
    %cst_16 = arith.constant 1.000000e+00 : f32
    %32 = vector.broadcast %cst_15 : f32 to vector<2x256xf32>
    %33 = arith.maximumf %32, %31 : vector<2x256xf32>
    %34 = vector.broadcast %cst_16 : f32 to vector<2x256xf32>
    %35 = arith.minimumf %34, %33 : vector<2x256xf32>
    %c0_17 = arith.constant 0 : index
    %c256_18 = arith.constant 256 : index
    %36 = vector.load %arg4[%c0_17, %c256_18] : memref<2x7424xf32, #tpu.memory_space<vmem>>, vector<2x256xf32>
    tpu.vector_store %arg4[%c0_17, %c256_18], %35 {strides = array<i32>} : memref<2x7424xf32, #tpu.memory_space<vmem>>, vector<2x256xf32>,
    %37 = vector.extract_strided_slice %31 {offsets = [0, 255], sizes = [2, 1], strides = [1, 1]} : vector<2x256xf32> to vector<2x1xf32>
    %38 = vector.extract_strided_slice %31 {offsets = [0, 254], sizes = [2, 1], strides = [1, 1]} : vector<2x256xf32> to vector<2x1xf32>
    %c0_19 = arith.constant 0 : index
    %c512 = arith.constant 512 : index
    %39 = vector.load %arg0[%c0_19, %c512] : memref<2x7424xf32, #tpu.memory_space<vmem>>, vector<2x256xf32>
    %cst_20 = arith.constant dense<0.000000e+00> : vector<2x256xf32>
    %40 = tpu.matmul %39, %0, %cst_20 {dimension_numbers = #tpu.dot_dimension_numbers<[1], [0], [0], [1], [0, 0, 1, 1], [], []>} : vector<2x256xf32>, vector<256x256xf32>, vector<2x256xf32> -> vector<2x256xf32>
    %41 = vector.broadcast %37 : vector<2x1xf32> to vector<2x256xf32>
    %42 = vector.broadcast %1 : vector<1x256xf32> to vector<2x256xf32>
    %43 = arith.mulf %41, %42 : vector<2x256xf32>
    %44 = arith.addf %40, %43 : vector<2x256xf32>
    %45 = vector.broadcast %38 : vector<2x1xf32> to vector<2x256xf32>
    %46 = vector.broadcast %2 : vector<1x256xf32> to vector<2x256xf32>
    %47 = arith.mulf %45, %46 : vector<2x256xf32>
    %48 = arith.addf %44, %47 : vector<2x256xf32>
    %cst_21 = arith.constant -1.000000e+00 : f32
    %cst_22 = arith.constant 1.000000e+00 : f32
    %49 = vector.broadcast %cst_21 : f32 to vector<2x256xf32>
    %50 = arith.maximumf %49, %48 : vector<2x256xf32>
    %51 = vector.broadcast %cst_22 : f32 to vector<2x256xf32>
    %52 = arith.minimumf %51, %50 : vector<2x256xf32>
    %c0_23 = arith.constant 0 : index
    %c512_24 = arith.constant 512 : index
    %53 = vector.load %arg4[%c0_23, %c512_24] : memref<2x7424xf32, #tpu.memory_space<vmem>>, vector<2x256xf32>
    tpu.vector_store %arg4[%c0_23, %c512_24], %52 {strides = array<i32>} : memref<2x7424xf32, #tpu.memory_space<vmem>>, vector<2x256xf32>,
    %54 = vector.extract_strided_slice %48 {offsets = [0, 255], sizes = [2, 1], strides = [1, 1]} : vector<2x256xf32> to vector<2x1xf32>
    %55 = vector.extract_strided_slice %48 {offsets = [0, 254], sizes = [2, 1], strides = [1, 1]} : vector<2x256xf32> to vector<2x1xf32>
    %c0_25 = arith.constant 0 : index
    %c768 = arith.constant 768 : index
    %56 = vector.load %arg0[%c0_25, %c768] : memref<2x7424xf32, #tpu.memory_space<vmem>>, vector<2x256xf32>
    %cst_26 = arith.constant dense<0.000000e+00> : vector<2x256xf32>
    %57 = tpu.matmul %56, %0, %cst_26 {dimension_numbers = #tpu.dot_dimension_numbers<[1], [0], [0], [1], [0, 0, 1, 1], [], []>} : vector<2x256xf32>, vector<256x256xf32>, vector<2x256xf32> -> vector<2x256xf32>
    %58 = vector.broadcast %54 : vector<2x1xf32> to vector<2x256xf32>
    %59 = vector.broadcast %1 : vector<1x256xf32> to vector<2x256xf32>
    %60 = arith.mulf %58, %59 : vector<2x256xf32>
    %61 = arith.addf %57, %60 : vector<2x256xf32>
    %62 = vector.broadcast %55 : vector<2x1xf32> to vector<2x256xf32>
    %63 = vector.broadcast %2 : vector<1x256xf32> to vector<2x256xf32>
    %64 = arith.mulf %62, %63 : vector<2x256xf32>
    %65 = arith.addf %61, %64 : vector<2x256xf32>
    %cst_27 = arith.constant -1.000000e+00 : f32
    %cst_28 = arith.constant 1.000000e+00 : f32
    %66 = vector.broadcast %cst_27 : f32 to vector<2x256xf32>
    %67 = arith.maximumf %66, %65 : vector<2x256xf32>
    %68 = vector.broadcast %cst_28 : f32 to vector<2x256xf32>
    %69 = arith.minimumf %68, %67 : vector<2x256xf32>
    %c0_29 = arith.constant 0 : index
    %c768_30 = arith.constant 768 : index
    %70 = vector.load %arg4[%c0_29, %c768_30] : memref<2x7424xf32, #tpu.memory_space<vmem>>, vector<2x256xf32>
    tpu.vector_store %arg4[%c0_29, %c768_30], %69 {strides = array<i32>} : memref<2x7424xf32, #tpu.memory_space<vmem>>, vector<2x256xf32>,
    %71 = vector.extract_strided_slice %65 {offsets = [0, 255], sizes = [2, 1], strides = [1, 1]} : vector<2x256xf32> to vector<2x1xf32>
    %72 = vector.extract_strided_slice %65 {offsets = [0, 254], sizes = [2, 1], strides = [1, 1]} : vector<2x256xf32> to vector<2x1xf32>
    %c0_31 = arith.constant 0 : index
    %c1024 = arith.constant 1024 : index
    %73 = vector.load %arg0[%c0_31, %c1024] : memref<2x7424xf32, #tpu.memory_space<vmem>>, vector<2x256xf32>
    %cst_32 = arith.constant dense<0.000000e+00> : vector<2x256xf32>
    %74 = tpu.matmul %73, %0, %cst_32 {dimension_numbers = #tpu.dot_dimension_numbers<[1], [0], [0], [1], [0, 0, 1, 1], [], []>} : vector<2x256xf32>, vector<256x256xf32>, vector<2x256xf32> -> vector<2x256xf32>
    %75 = vector.broadcast %71 : vector<2x1xf32> to vector<2x256xf32>
    %76 = vector.broadcast %1 : vector<1x256xf32> to vector<2x256xf32>
    %77 = arith.mulf %75, %76 : vector<2x256xf32>
    %78 = arith.addf %74, %77 : vector<2x256xf32>
    %79 = vector.broadcast %72 : vector<2x1xf32> to vector<2x256xf32>
    %80 = vector.broadcast %2 : vector<1x256xf32> to vector<2x256xf32>
    %81 = arith.mulf %79, %80 : vector<2x256xf32>
    %82 = arith.addf %78, %81 : vector<2x256xf32>
    %cst_33 = arith.constant -1.000000e+00 : f32
    %cst_34 = arith.constant 1.000000e+00 : f32
    %83 = vector.broadcast %cst_33 : f32 to vector<2x256xf32>
    %84 = arith.maximumf %83, %82 : vector<2x256xf32>
    %85 = vector.broadcast %cst_34 : f32 to vector<2x256xf32>
    %86 = arith.minimumf %85, %84 : vector<2x256xf32>
    %c0_35 = arith.constant 0 : index
    %c1024_36 = arith.constant 1024 : index
    %87 = vector.load %arg4[%c0_35, %c1024_36] : memref<2x7424xf32, #tpu.memory_space<vmem>>, vector<2x256xf32>
    tpu.vector_store %arg4[%c0_35, %c1024_36], %86 {strides = array<i32>} : memref<2x7424xf32, #tpu.memory_space<vmem>>, vector<2x256xf32>,
    %88 = vector.extract_strided_slice %82 {offsets = [0, 255], sizes = [2, 1], strides = [1, 1]} : vector<2x256xf32> to vector<2x1xf32>
    %89 = vector.extract_strided_slice %82 {offsets = [0, 254], sizes = [2, 1], strides = [1, 1]} : vector<2x256xf32> to vector<2x1xf32>
    %c0_37 = arith.constant 0 : index
    %c1280 = arith.constant 1280 : index
    %90 = vector.load %arg0[%c0_37, %c1280] : memref<2x7424xf32, #tpu.memory_space<vmem>>, vector<2x256xf32>
    %cst_38 = arith.constant dense<0.000000e+00> : vector<2x256xf32>
    %91 = tpu.matmul %90, %0, %cst_38 {dimension_numbers = #tpu.dot_dimension_numbers<[1], [0], [0], [1], [0, 0, 1, 1], [], []>} : vector<2x256xf32>, vector<256x256xf32>, vector<2x256xf32> -> vector<2x256xf32>
    %92 = vector.broadcast %88 : vector<2x1xf32> to vector<2x256xf32>
    %93 = vector.broadcast %1 : vector<1x256xf32> to vector<2x256xf32>
    %94 = arith.mulf %92, %93 : vector<2x256xf32>
    %95 = arith.addf %91, %94 : vector<2x256xf32>
    %96 = vector.broadcast %89 : vector<2x1xf32> to vector<2x256xf32>
    %97 = vector.broadcast %2 : vector<1x256xf32> to vector<2x256xf32>
    %98 = arith.mulf %96, %97 : vector<2x256xf32>
    %99 = arith.addf %95, %98 : vector<2x256xf32>
    %cst_39 = arith.constant -1.000000e+00 : f32
    %cst_40 = arith.constant 1.000000e+00 : f32
    %100 = vector.broadcast %cst_39 : f32 to vector<2x256xf32>
    %101 = arith.maximumf %100, %99 : vector<2x256xf32>
    %102 = vector.broadcast %cst_40 : f32 to vector<2x256xf32>
    %103 = arith.minimumf %102, %101 : vector<2x256xf32>
    %c0_41 = arith.constant 0 : index
    %c1280_42 = arith.constant 1280 : index
    %104 = vector.load %arg4[%c0_41, %c1280_42] : memref<2x7424xf32, #tpu.memory_space<vmem>>, vector<2x256xf32>
    tpu.vector_store %arg4[%c0_41, %c1280_42], %103 {strides = array<i32>} : memref<2x7424xf32, #tpu.memory_space<vmem>>, vector<2x256xf32>,
    %105 = vector.extract_strided_slice %99 {offsets = [0, 255], sizes = [2, 1], strides = [1, 1]} : vector<2x256xf32> to vector<2x1xf32>
    %106 = vector.extract_strided_slice %99 {offsets = [0, 254], sizes = [2, 1], strides = [1, 1]} : vector<2x256xf32> to vector<2x1xf32>
    %c0_43 = arith.constant 0 : index
    %c1536 = arith.constant 1536 : index
    %107 = vector.load %arg0[%c0_43, %c1536] : memref<2x7424xf32, #tpu.memory_space<vmem>>, vector<2x256xf32>
    %cst_44 = arith.constant dense<0.000000e+00> : vector<2x256xf32>
    %108 = tpu.matmul %107, %0, %cst_44 {dimension_numbers = #tpu.dot_dimension_numbers<[1], [0], [0], [1], [0, 0, 1, 1], [], []>} : vector<2x256xf32>, vector<256x256xf32>, vector<2x256xf32> -> vector<2x256xf32>
    %109 = vector.broadcast %105 : vector<2x1xf32> to vector<2x256xf32>
    %110 = vector.broadcast %1 : vector<1x256xf32> to vector<2x256xf32>
    %111 = arith.mulf %109, %110 : vector<2x256xf32>
    %112 = arith.addf %108, %111 : vector<2x256xf32>
    %113 = vector.broadcast %106 : vector<2x1xf32> to vector<2x256xf32>
    %114 = vector.broadcast %2 : vector<1x256xf32> to vector<2x256xf32>
    %115 = arith.mulf %113, %114 : vector<2x256xf32>
    %116 = arith.addf %112, %115 : vector<2x256xf32>
    %cst_45 = arith.constant -1.000000e+00 : f32
    %cst_46 = arith.constant 1.000000e+00 : f32
    %117 = vector.broadcast %cst_45 : f32 to vector<2x256xf32>
    %118 = arith.maximumf %117, %116 : vector<2x256xf32>
    %119 = vector.broadcast %cst_46 : f32 to vector<2x256xf32>
    %120 = arith.minimumf %119, %118 : vector<2x256xf32>
    %c0_47 = arith.constant 0 : index
    %c1536_48 = arith.constant 1536 : index
    %121 = vector.load %arg4[%c0_47, %c1536_48] : memref<2x7424xf32, #tpu.memory_space<vmem>>, vector<2x256xf32>
    tpu.vector_store %arg4[%c0_47, %c1536_48], %120 {strides = array<i32>} : memref<2x7424xf32, #tpu.memory_space<vmem>>, vector<2x256xf32>,
    %122 = vector.extract_strided_slice %116 {offsets = [0, 255], sizes = [2, 1], strides = [1, 1]} : vector<2x256xf32> to vector<2x1xf32>
    %123 = vector.extract_strided_slice %116 {offsets = [0, 254], sizes = [2, 1], strides = [1, 1]} : vector<2x256xf32> to vector<2x1xf32>
    %c0_49 = arith.constant 0 : index
    %c1792 = arith.constant 1792 : index
    %124 = vector.load %arg0[%c0_49, %c1792] : memref<2x7424xf32, #tpu.memory_space<vmem>>, vector<2x256xf32>
    %cst_50 = arith.constant dense<0.000000e+00> : vector<2x256xf32>
    %125 = tpu.matmul %124, %0, %cst_50 {dimension_numbers = #tpu.dot_dimension_numbers<[1], [0], [0], [1], [0, 0, 1, 1], [], []>} : vector<2x256xf32>, vector<256x256xf32>, vector<2x256xf32> -> vector<2x256xf32>
    %126 = vector.broadcast %122 : vector<2x1xf32> to vector<2x256xf32>
    %127 = vector.broadcast %1 : vector<1x256xf32> to vector<2x256xf32>
    %128 = arith.mulf %126, %127 : vector<2x256xf32>
    %129 = arith.addf %125, %128 : vector<2x256xf32>
    %130 = vector.broadcast %123 : vector<2x1xf32> to vector<2x256xf32>
    %131 = vector.broadcast %2 : vector<1x256xf32> to vector<2x256xf32>
    %132 = arith.mulf %130, %131 : vector<2x256xf32>
    %133 = arith.addf %129, %132 : vector<2x256xf32>
    %cst_51 = arith.constant -1.000000e+00 : f32
    %cst_52 = arith.constant 1.000000e+00 : f32
    %134 = vector.broadcast %cst_51 : f32 to vector<2x256xf32>
    %135 = arith.maximumf %134, %133 : vector<2x256xf32>
    %136 = vector.broadcast %cst_52 : f32 to vector<2x256xf32>
    %137 = arith.minimumf %136, %135 : vector<2x256xf32>
    %c0_53 = arith.constant 0 : index
    %c1792_54 = arith.constant 1792 : index
    %138 = vector.load %arg4[%c0_53, %c1792_54] : memref<2x7424xf32, #tpu.memory_space<vmem>>, vector<2x256xf32>
    tpu.vector_store %arg4[%c0_53, %c1792_54], %137 {strides = array<i32>} : memref<2x7424xf32, #tpu.memory_space<vmem>>, vector<2x256xf32>,
    %139 = vector.extract_strided_slice %133 {offsets = [0, 255], sizes = [2, 1], strides = [1, 1]} : vector<2x256xf32> to vector<2x1xf32>
    %140 = vector.extract_strided_slice %133 {offsets = [0, 254], sizes = [2, 1], strides = [1, 1]} : vector<2x256xf32> to vector<2x1xf32>
    %c0_55 = arith.constant 0 : index
    %c2048 = arith.constant 2048 : index
    %141 = vector.load %arg0[%c0_55, %c2048] : memref<2x7424xf32, #tpu.memory_space<vmem>>, vector<2x256xf32>
    %cst_56 = arith.constant dense<0.000000e+00> : vector<2x256xf32>
    %142 = tpu.matmul %141, %0, %cst_56 {dimension_numbers = #tpu.dot_dimension_numbers<[1], [0], [0], [1], [0, 0, 1, 1], [], []>} : vector<2x256xf32>, vector<256x256xf32>, vector<2x256xf32> -> vector<2x256xf32>
    %143 = vector.broadcast %139 : vector<2x1xf32> to vector<2x256xf32>
    %144 = vector.broadcast %1 : vector<1x256xf32> to vector<2x256xf32>
    %145 = arith.mulf %143, %144 : vector<2x256xf32>
    %146 = arith.addf %142, %145 : vector<2x256xf32>
    %147 = vector.broadcast %140 : vector<2x1xf32> to vector<2x256xf32>
    %148 = vector.broadcast %2 : vector<1x256xf32> to vector<2x256xf32>
    %149 = arith.mulf %147, %148 : vector<2x256xf32>
    %150 = arith.addf %146, %149 : vector<2x256xf32>
    %cst_57 = arith.constant -1.000000e+00 : f32
    %cst_58 = arith.constant 1.000000e+00 : f32
    %151 = vector.broadcast %cst_57 : f32 to vector<2x256xf32>
    %152 = arith.maximumf %151, %150 : vector<2x256xf32>
    %153 = vector.broadcast %cst_58 : f32 to vector<2x256xf32>
    %154 = arith.minimumf %153, %152 : vector<2x256xf32>
    %c0_59 = arith.constant 0 : index
    %c2048_60 = arith.constant 2048 : index
    %155 = vector.load %arg4[%c0_59, %c2048_60] : memref<2x7424xf32, #tpu.memory_space<vmem>>, vector<2x256xf32>
    tpu.vector_store %arg4[%c0_59, %c2048_60], %154 {strides = array<i32>} : memref<2x7424xf32, #tpu.memory_space<vmem>>, vector<2x256xf32>,
    %156 = vector.extract_strided_slice %150 {offsets = [0, 255], sizes = [2, 1], strides = [1, 1]} : vector<2x256xf32> to vector<2x1xf32>
    %157 = vector.extract_strided_slice %150 {offsets = [0, 254], sizes = [2, 1], strides = [1, 1]} : vector<2x256xf32> to vector<2x1xf32>
    %c0_61 = arith.constant 0 : index
    %c2304 = arith.constant 2304 : index
    %158 = vector.load %arg0[%c0_61, %c2304] : memref<2x7424xf32, #tpu.memory_space<vmem>>, vector<2x256xf32>
    %cst_62 = arith.constant dense<0.000000e+00> : vector<2x256xf32>
    %159 = tpu.matmul %158, %0, %cst_62 {dimension_numbers = #tpu.dot_dimension_numbers<[1], [0], [0], [1], [0, 0, 1, 1], [], []>} : vector<2x256xf32>, vector<256x256xf32>, vector<2x256xf32> -> vector<2x256xf32>
    %160 = vector.broadcast %156 : vector<2x1xf32> to vector<2x256xf32>
    %161 = vector.broadcast %1 : vector<1x256xf32> to vector<2x256xf32>
    %162 = arith.mulf %160, %161 : vector<2x256xf32>
    %163 = arith.addf %159, %162 : vector<2x256xf32>
    %164 = vector.broadcast %157 : vector<2x1xf32> to vector<2x256xf32>
    %165 = vector.broadcast %2 : vector<1x256xf32> to vector<2x256xf32>
    %166 = arith.mulf %164, %165 : vector<2x256xf32>
    %167 = arith.addf %163, %166 : vector<2x256xf32>
    %cst_63 = arith.constant -1.000000e+00 : f32
    %cst_64 = arith.constant 1.000000e+00 : f32
    %168 = vector.broadcast %cst_63 : f32 to vector<2x256xf32>
    %169 = arith.maximumf %168, %167 : vector<2x256xf32>
    %170 = vector.broadcast %cst_64 : f32 to vector<2x256xf32>
    %171 = arith.minimumf %170, %169 : vector<2x256xf32>
    %c0_65 = arith.constant 0 : index
    %c2304_66 = arith.constant 2304 : index
    %172 = vector.load %arg4[%c0_65, %c2304_66] : memref<2x7424xf32, #tpu.memory_space<vmem>>, vector<2x256xf32>
    tpu.vector_store %arg4[%c0_65, %c2304_66], %171 {strides = array<i32>} : memref<2x7424xf32, #tpu.memory_space<vmem>>, vector<2x256xf32>,
    %173 = vector.extract_strided_slice %167 {offsets = [0, 255], sizes = [2, 1], strides = [1, 1]} : vector<2x256xf32> to vector<2x1xf32>
    %174 = vector.extract_strided_slice %167 {offsets = [0, 254], sizes = [2, 1], strides = [1, 1]} : vector<2x256xf32> to vector<2x1xf32>
    %c0_67 = arith.constant 0 : index
    %c2560 = arith.constant 2560 : index
    %175 = vector.load %arg0[%c0_67, %c2560] : memref<2x7424xf32, #tpu.memory_space<vmem>>, vector<2x256xf32>
    %cst_68 = arith.constant dense<0.000000e+00> : vector<2x256xf32>
    %176 = tpu.matmul %175, %0, %cst_68 {dimension_numbers = #tpu.dot_dimension_numbers<[1], [0], [0], [1], [0, 0, 1, 1], [], []>} : vector<2x256xf32>, vector<256x256xf32>, vector<2x256xf32> -> vector<2x256xf32>
    %177 = vector.broadcast %173 : vector<2x1xf32> to vector<2x256xf32>
    %178 = vector.broadcast %1 : vector<1x256xf32> to vector<2x256xf32>
    %179 = arith.mulf %177, %178 : vector<2x256xf32>
    %180 = arith.addf %176, %179 : vector<2x256xf32>
    %181 = vector.broadcast %174 : vector<2x1xf32> to vector<2x256xf32>
    %182 = vector.broadcast %2 : vector<1x256xf32> to vector<2x256xf32>
    %183 = arith.mulf %181, %182 : vector<2x256xf32>
    %184 = arith.addf %180, %183 : vector<2x256xf32>
    %cst_69 = arith.constant -1.000000e+00 : f32
    %cst_70 = arith.constant 1.000000e+00 : f32
    %185 = vector.broadcast %cst_69 : f32 to vector<2x256xf32>
    %186 = arith.maximumf %185, %184 : vector<2x256xf32>
    %187 = vector.broadcast %cst_70 : f32 to vector<2x256xf32>
    %188 = arith.minimumf %187, %186 : vector<2x256xf32>
    %c0_71 = arith.constant 0 : index
    %c2560_72 = arith.constant 2560 : index
    %189 = vector.load %arg4[%c0_71, %c2560_72] : memref<2x7424xf32, #tpu.memory_space<vmem>>, vector<2x256xf32>
    tpu.vector_store %arg4[%c0_71, %c2560_72], %188 {strides = array<i32>} : memref<2x7424xf32, #tpu.memory_space<vmem>>, vector<2x256xf32>,
    %190 = vector.extract_strided_slice %184 {offsets = [0, 255], sizes = [2, 1], strides = [1, 1]} : vector<2x256xf32> to vector<2x1xf32>
    %191 = vector.extract_strided_slice %184 {offsets = [0, 254], sizes = [2, 1], strides = [1, 1]} : vector<2x256xf32> to vector<2x1xf32>
    %c0_73 = arith.constant 0 : index
    %c2816 = arith.constant 2816 : index
    %192 = vector.load %arg0[%c0_73, %c2816] : memref<2x7424xf32, #tpu.memory_space<vmem>>, vector<2x256xf32>
    %cst_74 = arith.constant dense<0.000000e+00> : vector<2x256xf32>
    %193 = tpu.matmul %192, %0, %cst_74 {dimension_numbers = #tpu.dot_dimension_numbers<[1], [0], [0], [1], [0, 0, 1, 1], [], []>} : vector<2x256xf32>, vector<256x256xf32>, vector<2x256xf32> -> vector<2x256xf32>
    %194 = vector.broadcast %190 : vector<2x1xf32> to vector<2x256xf32>
    %195 = vector.broadcast %1 : vector<1x256xf32> to vector<2x256xf32>
    %196 = arith.mulf %194, %195 : vector<2x256xf32>
    %197 = arith.addf %193, %196 : vector<2x256xf32>
    %198 = vector.broadcast %191 : vector<2x1xf32> to vector<2x256xf32>
    %199 = vector.broadcast %2 : vector<1x256xf32> to vector<2x256xf32>
    %200 = arith.mulf %198, %199 : vector<2x256xf32>
    %201 = arith.addf %197, %200 : vector<2x256xf32>
    %cst_75 = arith.constant -1.000000e+00 : f32
    %cst_76 = arith.constant 1.000000e+00 : f32
    %202 = vector.broadcast %cst_75 : f32 to vector<2x256xf32>
    %203 = arith.maximumf %202, %201 : vector<2x256xf32>
    %204 = vector.broadcast %cst_76 : f32 to vector<2x256xf32>
    %205 = arith.minimumf %204, %203 : vector<2x256xf32>
    %c0_77 = arith.constant 0 : index
    %c2816_78 = arith.constant 2816 : index
    %206 = vector.load %arg4[%c0_77, %c2816_78] : memref<2x7424xf32, #tpu.memory_space<vmem>>, vector<2x256xf32>
    tpu.vector_store %arg4[%c0_77, %c2816_78], %205 {strides = array<i32>} : memref<2x7424xf32, #tpu.memory_space<vmem>>, vector<2x256xf32>,
    %207 = vector.extract_strided_slice %201 {offsets = [0, 255], sizes = [2, 1], strides = [1, 1]} : vector<2x256xf32> to vector<2x1xf32>
    %208 = vector.extract_strided_slice %201 {offsets = [0, 254], sizes = [2, 1], strides = [1, 1]} : vector<2x256xf32> to vector<2x1xf32>
    %c0_79 = arith.constant 0 : index
    %c3072 = arith.constant 3072 : index
    %209 = vector.load %arg0[%c0_79, %c3072] : memref<2x7424xf32, #tpu.memory_space<vmem>>, vector<2x256xf32>
    %cst_80 = arith.constant dense<0.000000e+00> : vector<2x256xf32>
    %210 = tpu.matmul %209, %0, %cst_80 {dimension_numbers = #tpu.dot_dimension_numbers<[1], [0], [0], [1], [0, 0, 1, 1], [], []>} : vector<2x256xf32>, vector<256x256xf32>, vector<2x256xf32> -> vector<2x256xf32>
    %211 = vector.broadcast %207 : vector<2x1xf32> to vector<2x256xf32>
    %212 = vector.broadcast %1 : vector<1x256xf32> to vector<2x256xf32>
    %213 = arith.mulf %211, %212 : vector<2x256xf32>
    %214 = arith.addf %210, %213 : vector<2x256xf32>
    %215 = vector.broadcast %208 : vector<2x1xf32> to vector<2x256xf32>
    %216 = vector.broadcast %2 : vector<1x256xf32> to vector<2x256xf32>
    %217 = arith.mulf %215, %216 : vector<2x256xf32>
    %218 = arith.addf %214, %217 : vector<2x256xf32>
    %cst_81 = arith.constant -1.000000e+00 : f32
    %cst_82 = arith.constant 1.000000e+00 : f32
    %219 = vector.broadcast %cst_81 : f32 to vector<2x256xf32>
    %220 = arith.maximumf %219, %218 : vector<2x256xf32>
    %221 = vector.broadcast %cst_82 : f32 to vector<2x256xf32>
    %222 = arith.minimumf %221, %220 : vector<2x256xf32>
    %c0_83 = arith.constant 0 : index
    %c3072_84 = arith.constant 3072 : index
    %223 = vector.load %arg4[%c0_83, %c3072_84] : memref<2x7424xf32, #tpu.memory_space<vmem>>, vector<2x256xf32>
    tpu.vector_store %arg4[%c0_83, %c3072_84], %222 {strides = array<i32>} : memref<2x7424xf32, #tpu.memory_space<vmem>>, vector<2x256xf32>,
    %224 = vector.extract_strided_slice %218 {offsets = [0, 255], sizes = [2, 1], strides = [1, 1]} : vector<2x256xf32> to vector<2x1xf32>
    %225 = vector.extract_strided_slice %218 {offsets = [0, 254], sizes = [2, 1], strides = [1, 1]} : vector<2x256xf32> to vector<2x1xf32>
    %c0_85 = arith.constant 0 : index
    %c3328 = arith.constant 3328 : index
    %226 = vector.load %arg0[%c0_85, %c3328] : memref<2x7424xf32, #tpu.memory_space<vmem>>, vector<2x256xf32>
    %cst_86 = arith.constant dense<0.000000e+00> : vector<2x256xf32>
    %227 = tpu.matmul %226, %0, %cst_86 {dimension_numbers = #tpu.dot_dimension_numbers<[1], [0], [0], [1], [0, 0, 1, 1], [], []>} : vector<2x256xf32>, vector<256x256xf32>, vector<2x256xf32> -> vector<2x256xf32>
    %228 = vector.broadcast %224 : vector<2x1xf32> to vector<2x256xf32>
    %229 = vector.broadcast %1 : vector<1x256xf32> to vector<2x256xf32>
    %230 = arith.mulf %228, %229 : vector<2x256xf32>
    %231 = arith.addf %227, %230 : vector<2x256xf32>
    %232 = vector.broadcast %225 : vector<2x1xf32> to vector<2x256xf32>
    %233 = vector.broadcast %2 : vector<1x256xf32> to vector<2x256xf32>
    %234 = arith.mulf %232, %233 : vector<2x256xf32>
    %235 = arith.addf %231, %234 : vector<2x256xf32>
    %cst_87 = arith.constant -1.000000e+00 : f32
    %cst_88 = arith.constant 1.000000e+00 : f32
    %236 = vector.broadcast %cst_87 : f32 to vector<2x256xf32>
    %237 = arith.maximumf %236, %235 : vector<2x256xf32>
    %238 = vector.broadcast %cst_88 : f32 to vector<2x256xf32>
    %239 = arith.minimumf %238, %237 : vector<2x256xf32>
    %c0_89 = arith.constant 0 : index
    %c3328_90 = arith.constant 3328 : index
    %240 = vector.load %arg4[%c0_89, %c3328_90] : memref<2x7424xf32, #tpu.memory_space<vmem>>, vector<2x256xf32>
    tpu.vector_store %arg4[%c0_89, %c3328_90], %239 {strides = array<i32>} : memref<2x7424xf32, #tpu.memory_space<vmem>>, vector<2x256xf32>,
    %241 = vector.extract_strided_slice %235 {offsets = [0, 255], sizes = [2, 1], strides = [1, 1]} : vector<2x256xf32> to vector<2x1xf32>
    %242 = vector.extract_strided_slice %235 {offsets = [0, 254], sizes = [2, 1], strides = [1, 1]} : vector<2x256xf32> to vector<2x1xf32>
    %c0_91 = arith.constant 0 : index
    %c3584 = arith.constant 3584 : index
    %243 = vector.load %arg0[%c0_91, %c3584] : memref<2x7424xf32, #tpu.memory_space<vmem>>, vector<2x256xf32>
    %cst_92 = arith.constant dense<0.000000e+00> : vector<2x256xf32>
    %244 = tpu.matmul %243, %0, %cst_92 {dimension_numbers = #tpu.dot_dimension_numbers<[1], [0], [0], [1], [0, 0, 1, 1], [], []>} : vector<2x256xf32>, vector<256x256xf32>, vector<2x256xf32> -> vector<2x256xf32>
    %245 = vector.broadcast %241 : vector<2x1xf32> to vector<2x256xf32>
    %246 = vector.broadcast %1 : vector<1x256xf32> to vector<2x256xf32>
    %247 = arith.mulf %245, %246 : vector<2x256xf32>
    %248 = arith.addf %244, %247 : vector<2x256xf32>
    %249 = vector.broadcast %242 : vector<2x1xf32> to vector<2x256xf32>
    %250 = vector.broadcast %2 : vector<1x256xf32> to vector<2x256xf32>
    %251 = arith.mulf %249, %250 : vector<2x256xf32>
    %252 = arith.addf %248, %251 : vector<2x256xf32>
    %cst_93 = arith.constant -1.000000e+00 : f32
    %cst_94 = arith.constant 1.000000e+00 : f32
    %253 = vector.broadcast %cst_93 : f32 to vector<2x256xf32>
    %254 = arith.maximumf %253, %252 : vector<2x256xf32>
    %255 = vector.broadcast %cst_94 : f32 to vector<2x256xf32>
    %256 = arith.minimumf %255, %254 : vector<2x256xf32>
    %c0_95 = arith.constant 0 : index
    %c3584_96 = arith.constant 3584 : index
    %257 = vector.load %arg4[%c0_95, %c3584_96] : memref<2x7424xf32, #tpu.memory_space<vmem>>, vector<2x256xf32>
    tpu.vector_store %arg4[%c0_95, %c3584_96], %256 {strides = array<i32>} : memref<2x7424xf32, #tpu.memory_space<vmem>>, vector<2x256xf32>,
    %258 = vector.extract_strided_slice %252 {offsets = [0, 255], sizes = [2, 1], strides = [1, 1]} : vector<2x256xf32> to vector<2x1xf32>
    %259 = vector.extract_strided_slice %252 {offsets = [0, 254], sizes = [2, 1], strides = [1, 1]} : vector<2x256xf32> to vector<2x1xf32>
    %c0_97 = arith.constant 0 : index
    %c3840 = arith.constant 3840 : index
    %260 = vector.load %arg0[%c0_97, %c3840] : memref<2x7424xf32, #tpu.memory_space<vmem>>, vector<2x256xf32>
    %cst_98 = arith.constant dense<0.000000e+00> : vector<2x256xf32>
    %261 = tpu.matmul %260, %0, %cst_98 {dimension_numbers = #tpu.dot_dimension_numbers<[1], [0], [0], [1], [0, 0, 1, 1], [], []>} : vector<2x256xf32>, vector<256x256xf32>, vector<2x256xf32> -> vector<2x256xf32>
    %262 = vector.broadcast %258 : vector<2x1xf32> to vector<2x256xf32>
    %263 = vector.broadcast %1 : vector<1x256xf32> to vector<2x256xf32>
    %264 = arith.mulf %262, %263 : vector<2x256xf32>
    %265 = arith.addf %261, %264 : vector<2x256xf32>
    %266 = vector.broadcast %259 : vector<2x1xf32> to vector<2x256xf32>
    %267 = vector.broadcast %2 : vector<1x256xf32> to vector<2x256xf32>
    %268 = arith.mulf %266, %267 : vector<2x256xf32>
    %269 = arith.addf %265, %268 : vector<2x256xf32>
    %cst_99 = arith.constant -1.000000e+00 : f32
    %cst_100 = arith.constant 1.000000e+00 : f32
    %270 = vector.broadcast %cst_99 : f32 to vector<2x256xf32>
    %271 = arith.maximumf %270, %269 : vector<2x256xf32>
    %272 = vector.broadcast %cst_100 : f32 to vector<2x256xf32>
    %273 = arith.minimumf %272, %271 : vector<2x256xf32>
    %c0_101 = arith.constant 0 : index
    %c3840_102 = arith.constant 3840 : index
    %274 = vector.load %arg4[%c0_101, %c3840_102] : memref<2x7424xf32, #tpu.memory_space<vmem>>, vector<2x256xf32>
    tpu.vector_store %arg4[%c0_101, %c3840_102], %273 {strides = array<i32>} : memref<2x7424xf32, #tpu.memory_space<vmem>>, vector<2x256xf32>,
    %275 = vector.extract_strided_slice %269 {offsets = [0, 255], sizes = [2, 1], strides = [1, 1]} : vector<2x256xf32> to vector<2x1xf32>
    %276 = vector.extract_strided_slice %269 {offsets = [0, 254], sizes = [2, 1], strides = [1, 1]} : vector<2x256xf32> to vector<2x1xf32>
    %c0_103 = arith.constant 0 : index
    %c4096 = arith.constant 4096 : index
    %277 = vector.load %arg0[%c0_103, %c4096] : memref<2x7424xf32, #tpu.memory_space<vmem>>, vector<2x256xf32>
    %cst_104 = arith.constant dense<0.000000e+00> : vector<2x256xf32>
    %278 = tpu.matmul %277, %0, %cst_104 {dimension_numbers = #tpu.dot_dimension_numbers<[1], [0], [0], [1], [0, 0, 1, 1], [], []>} : vector<2x256xf32>, vector<256x256xf32>, vector<2x256xf32> -> vector<2x256xf32>
    %279 = vector.broadcast %275 : vector<2x1xf32> to vector<2x256xf32>
    %280 = vector.broadcast %1 : vector<1x256xf32> to vector<2x256xf32>
    %281 = arith.mulf %279, %280 : vector<2x256xf32>
    %282 = arith.addf %278, %281 : vector<2x256xf32>
    %283 = vector.broadcast %276 : vector<2x1xf32> to vector<2x256xf32>
    %284 = vector.broadcast %2 : vector<1x256xf32> to vector<2x256xf32>
    %285 = arith.mulf %283, %284 : vector<2x256xf32>
    %286 = arith.addf %282, %285 : vector<2x256xf32>
    %cst_105 = arith.constant -1.000000e+00 : f32
    %cst_106 = arith.constant 1.000000e+00 : f32
    %287 = vector.broadcast %cst_105 : f32 to vector<2x256xf32>
    %288 = arith.maximumf %287, %286 : vector<2x256xf32>
    %289 = vector.broadcast %cst_106 : f32 to vector<2x256xf32>
    %290 = arith.minimumf %289, %288 : vector<2x256xf32>
    %c0_107 = arith.constant 0 : index
    %c4096_108 = arith.constant 4096 : index
    %291 = vector.load %arg4[%c0_107, %c4096_108] : memref<2x7424xf32, #tpu.memory_space<vmem>>, vector<2x256xf32>
    tpu.vector_store %arg4[%c0_107, %c4096_108], %290 {strides = array<i32>} : memref<2x7424xf32, #tpu.memory_space<vmem>>, vector<2x256xf32>,
    %292 = vector.extract_strided_slice %286 {offsets = [0, 255], sizes = [2, 1], strides = [1, 1]} : vector<2x256xf32> to vector<2x1xf32>
    %293 = vector.extract_strided_slice %286 {offsets = [0, 254], sizes = [2, 1], strides = [1, 1]} : vector<2x256xf32> to vector<2x1xf32>
    %c0_109 = arith.constant 0 : index
    %c4352 = arith.constant 4352 : index
    %294 = vector.load %arg0[%c0_109, %c4352] : memref<2x7424xf32, #tpu.memory_space<vmem>>, vector<2x256xf32>
    %cst_110 = arith.constant dense<0.000000e+00> : vector<2x256xf32>
    %295 = tpu.matmul %294, %0, %cst_110 {dimension_numbers = #tpu.dot_dimension_numbers<[1], [0], [0], [1], [0, 0, 1, 1], [], []>} : vector<2x256xf32>, vector<256x256xf32>, vector<2x256xf32> -> vector<2x256xf32>
    %296 = vector.broadcast %292 : vector<2x1xf32> to vector<2x256xf32>
    %297 = vector.broadcast %1 : vector<1x256xf32> to vector<2x256xf32>
    %298 = arith.mulf %296, %297 : vector<2x256xf32>
    %299 = arith.addf %295, %298 : vector<2x256xf32>
    %300 = vector.broadcast %293 : vector<2x1xf32> to vector<2x256xf32>
    %301 = vector.broadcast %2 : vector<1x256xf32> to vector<2x256xf32>
    %302 = arith.mulf %300, %301 : vector<2x256xf32>
    %303 = arith.addf %299, %302 : vector<2x256xf32>
    %cst_111 = arith.constant -1.000000e+00 : f32
    %cst_112 = arith.constant 1.000000e+00 : f32
    %304 = vector.broadcast %cst_111 : f32 to vector<2x256xf32>
    %305 = arith.maximumf %304, %303 : vector<2x256xf32>
    %306 = vector.broadcast %cst_112 : f32 to vector<2x256xf32>
    %307 = arith.minimumf %306, %305 : vector<2x256xf32>
    %c0_113 = arith.constant 0 : index
    %c4352_114 = arith.constant 4352 : index
    %308 = vector.load %arg4[%c0_113, %c4352_114] : memref<2x7424xf32, #tpu.memory_space<vmem>>, vector<2x256xf32>
    tpu.vector_store %arg4[%c0_113, %c4352_114], %307 {strides = array<i32>} : memref<2x7424xf32, #tpu.memory_space<vmem>>, vector<2x256xf32>,
    %309 = vector.extract_strided_slice %303 {offsets = [0, 255], sizes = [2, 1], strides = [1, 1]} : vector<2x256xf32> to vector<2x1xf32>
    %310 = vector.extract_strided_slice %303 {offsets = [0, 254], sizes = [2, 1], strides = [1, 1]} : vector<2x256xf32> to vector<2x1xf32>
    %c0_115 = arith.constant 0 : index
    %c4608 = arith.constant 4608 : index
    %311 = vector.load %arg0[%c0_115, %c4608] : memref<2x7424xf32, #tpu.memory_space<vmem>>, vector<2x256xf32>
    %cst_116 = arith.constant dense<0.000000e+00> : vector<2x256xf32>
    %312 = tpu.matmul %311, %0, %cst_116 {dimension_numbers = #tpu.dot_dimension_numbers<[1], [0], [0], [1], [0, 0, 1, 1], [], []>} : vector<2x256xf32>, vector<256x256xf32>, vector<2x256xf32> -> vector<2x256xf32>
    %313 = vector.broadcast %309 : vector<2x1xf32> to vector<2x256xf32>
    %314 = vector.broadcast %1 : vector<1x256xf32> to vector<2x256xf32>
    %315 = arith.mulf %313, %314 : vector<2x256xf32>
    %316 = arith.addf %312, %315 : vector<2x256xf32>
    %317 = vector.broadcast %310 : vector<2x1xf32> to vector<2x256xf32>
    %318 = vector.broadcast %2 : vector<1x256xf32> to vector<2x256xf32>
    %319 = arith.mulf %317, %318 : vector<2x256xf32>
    %320 = arith.addf %316, %319 : vector<2x256xf32>
    %cst_117 = arith.constant -1.000000e+00 : f32
    %cst_118 = arith.constant 1.000000e+00 : f32
    %321 = vector.broadcast %cst_117 : f32 to vector<2x256xf32>
    %322 = arith.maximumf %321, %320 : vector<2x256xf32>
    %323 = vector.broadcast %cst_118 : f32 to vector<2x256xf32>
    %324 = arith.minimumf %323, %322 : vector<2x256xf32>
    %c0_119 = arith.constant 0 : index
    %c4608_120 = arith.constant 4608 : index
    %325 = vector.load %arg4[%c0_119, %c4608_120] : memref<2x7424xf32, #tpu.memory_space<vmem>>, vector<2x256xf32>
    tpu.vector_store %arg4[%c0_119, %c4608_120], %324 {strides = array<i32>} : memref<2x7424xf32, #tpu.memory_space<vmem>>, vector<2x256xf32>,
    %326 = vector.extract_strided_slice %320 {offsets = [0, 255], sizes = [2, 1], strides = [1, 1]} : vector<2x256xf32> to vector<2x1xf32>
    %327 = vector.extract_strided_slice %320 {offsets = [0, 254], sizes = [2, 1], strides = [1, 1]} : vector<2x256xf32> to vector<2x1xf32>
    %c0_121 = arith.constant 0 : index
    %c4864 = arith.constant 4864 : index
    %328 = vector.load %arg0[%c0_121, %c4864] : memref<2x7424xf32, #tpu.memory_space<vmem>>, vector<2x256xf32>
    %cst_122 = arith.constant dense<0.000000e+00> : vector<2x256xf32>
    %329 = tpu.matmul %328, %0, %cst_122 {dimension_numbers = #tpu.dot_dimension_numbers<[1], [0], [0], [1], [0, 0, 1, 1], [], []>} : vector<2x256xf32>, vector<256x256xf32>, vector<2x256xf32> -> vector<2x256xf32>
    %330 = vector.broadcast %326 : vector<2x1xf32> to vector<2x256xf32>
    %331 = vector.broadcast %1 : vector<1x256xf32> to vector<2x256xf32>
    %332 = arith.mulf %330, %331 : vector<2x256xf32>
    %333 = arith.addf %329, %332 : vector<2x256xf32>
    %334 = vector.broadcast %327 : vector<2x1xf32> to vector<2x256xf32>
    %335 = vector.broadcast %2 : vector<1x256xf32> to vector<2x256xf32>
    %336 = arith.mulf %334, %335 : vector<2x256xf32>
    %337 = arith.addf %333, %336 : vector<2x256xf32>
    %cst_123 = arith.constant -1.000000e+00 : f32
    %cst_124 = arith.constant 1.000000e+00 : f32
    %338 = vector.broadcast %cst_123 : f32 to vector<2x256xf32>
    %339 = arith.maximumf %338, %337 : vector<2x256xf32>
    %340 = vector.broadcast %cst_124 : f32 to vector<2x256xf32>
    %341 = arith.minimumf %340, %339 : vector<2x256xf32>
    %c0_125 = arith.constant 0 : index
    %c4864_126 = arith.constant 4864 : index
    %342 = vector.load %arg4[%c0_125, %c4864_126] : memref<2x7424xf32, #tpu.memory_space<vmem>>, vector<2x256xf32>
    tpu.vector_store %arg4[%c0_125, %c4864_126], %341 {strides = array<i32>} : memref<2x7424xf32, #tpu.memory_space<vmem>>, vector<2x256xf32>,
    %343 = vector.extract_strided_slice %337 {offsets = [0, 255], sizes = [2, 1], strides = [1, 1]} : vector<2x256xf32> to vector<2x1xf32>
    %344 = vector.extract_strided_slice %337 {offsets = [0, 254], sizes = [2, 1], strides = [1, 1]} : vector<2x256xf32> to vector<2x1xf32>
    %c0_127 = arith.constant 0 : index
    %c5120 = arith.constant 5120 : index
    %345 = vector.load %arg0[%c0_127, %c5120] : memref<2x7424xf32, #tpu.memory_space<vmem>>, vector<2x256xf32>
    %cst_128 = arith.constant dense<0.000000e+00> : vector<2x256xf32>
    %346 = tpu.matmul %345, %0, %cst_128 {dimension_numbers = #tpu.dot_dimension_numbers<[1], [0], [0], [1], [0, 0, 1, 1], [], []>} : vector<2x256xf32>, vector<256x256xf32>, vector<2x256xf32> -> vector<2x256xf32>
    %347 = vector.broadcast %343 : vector<2x1xf32> to vector<2x256xf32>
    %348 = vector.broadcast %1 : vector<1x256xf32> to vector<2x256xf32>
    %349 = arith.mulf %347, %348 : vector<2x256xf32>
    %350 = arith.addf %346, %349 : vector<2x256xf32>
    %351 = vector.broadcast %344 : vector<2x1xf32> to vector<2x256xf32>
    %352 = vector.broadcast %2 : vector<1x256xf32> to vector<2x256xf32>
    %353 = arith.mulf %351, %352 : vector<2x256xf32>
    %354 = arith.addf %350, %353 : vector<2x256xf32>
    %cst_129 = arith.constant -1.000000e+00 : f32
    %cst_130 = arith.constant 1.000000e+00 : f32
    %355 = vector.broadcast %cst_129 : f32 to vector<2x256xf32>
    %356 = arith.maximumf %355, %354 : vector<2x256xf32>
    %357 = vector.broadcast %cst_130 : f32 to vector<2x256xf32>
    %358 = arith.minimumf %357, %356 : vector<2x256xf32>
    %c0_131 = arith.constant 0 : index
    %c5120_132 = arith.constant 5120 : index
    %359 = vector.load %arg4[%c0_131, %c5120_132] : memref<2x7424xf32, #tpu.memory_space<vmem>>, vector<2x256xf32>
    tpu.vector_store %arg4[%c0_131, %c5120_132], %358 {strides = array<i32>} : memref<2x7424xf32, #tpu.memory_space<vmem>>, vector<2x256xf32>,
    %360 = vector.extract_strided_slice %354 {offsets = [0, 255], sizes = [2, 1], strides = [1, 1]} : vector<2x256xf32> to vector<2x1xf32>
    %361 = vector.extract_strided_slice %354 {offsets = [0, 254], sizes = [2, 1], strides = [1, 1]} : vector<2x256xf32> to vector<2x1xf32>
    %c0_133 = arith.constant 0 : index
    %c5376 = arith.constant 5376 : index
    %362 = vector.load %arg0[%c0_133, %c5376] : memref<2x7424xf32, #tpu.memory_space<vmem>>, vector<2x256xf32>
    %cst_134 = arith.constant dense<0.000000e+00> : vector<2x256xf32>
    %363 = tpu.matmul %362, %0, %cst_134 {dimension_numbers = #tpu.dot_dimension_numbers<[1], [0], [0], [1], [0, 0, 1, 1], [], []>} : vector<2x256xf32>, vector<256x256xf32>, vector<2x256xf32> -> vector<2x256xf32>
    %364 = vector.broadcast %360 : vector<2x1xf32> to vector<2x256xf32>
    %365 = vector.broadcast %1 : vector<1x256xf32> to vector<2x256xf32>
    %366 = arith.mulf %364, %365 : vector<2x256xf32>
    %367 = arith.addf %363, %366 : vector<2x256xf32>
    %368 = vector.broadcast %361 : vector<2x1xf32> to vector<2x256xf32>
    %369 = vector.broadcast %2 : vector<1x256xf32> to vector<2x256xf32>
    %370 = arith.mulf %368, %369 : vector<2x256xf32>
    %371 = arith.addf %367, %370 : vector<2x256xf32>
    %cst_135 = arith.constant -1.000000e+00 : f32
    %cst_136 = arith.constant 1.000000e+00 : f32
    %372 = vector.broadcast %cst_135 : f32 to vector<2x256xf32>
    %373 = arith.maximumf %372, %371 : vector<2x256xf32>
    %374 = vector.broadcast %cst_136 : f32 to vector<2x256xf32>
    %375 = arith.minimumf %374, %373 : vector<2x256xf32>
    %c0_137 = arith.constant 0 : index
    %c5376_138 = arith.constant 5376 : index
    %376 = vector.load %arg4[%c0_137, %c5376_138] : memref<2x7424xf32, #tpu.memory_space<vmem>>, vector<2x256xf32>
    tpu.vector_store %arg4[%c0_137, %c5376_138], %375 {strides = array<i32>} : memref<2x7424xf32, #tpu.memory_space<vmem>>, vector<2x256xf32>,
    %377 = vector.extract_strided_slice %371 {offsets = [0, 255], sizes = [2, 1], strides = [1, 1]} : vector<2x256xf32> to vector<2x1xf32>
    %378 = vector.extract_strided_slice %371 {offsets = [0, 254], sizes = [2, 1], strides = [1, 1]} : vector<2x256xf32> to vector<2x1xf32>
    %c0_139 = arith.constant 0 : index
    %c5632 = arith.constant 5632 : index
    %379 = vector.load %arg0[%c0_139, %c5632] : memref<2x7424xf32, #tpu.memory_space<vmem>>, vector<2x256xf32>
    %cst_140 = arith.constant dense<0.000000e+00> : vector<2x256xf32>
    %380 = tpu.matmul %379, %0, %cst_140 {dimension_numbers = #tpu.dot_dimension_numbers<[1], [0], [0], [1], [0, 0, 1, 1], [], []>} : vector<2x256xf32>, vector<256x256xf32>, vector<2x256xf32> -> vector<2x256xf32>
    %381 = vector.broadcast %377 : vector<2x1xf32> to vector<2x256xf32>
    %382 = vector.broadcast %1 : vector<1x256xf32> to vector<2x256xf32>
    %383 = arith.mulf %381, %382 : vector<2x256xf32>
    %384 = arith.addf %380, %383 : vector<2x256xf32>
    %385 = vector.broadcast %378 : vector<2x1xf32> to vector<2x256xf32>
    %386 = vector.broadcast %2 : vector<1x256xf32> to vector<2x256xf32>
    %387 = arith.mulf %385, %386 : vector<2x256xf32>
    %388 = arith.addf %384, %387 : vector<2x256xf32>
    %cst_141 = arith.constant -1.000000e+00 : f32
    %cst_142 = arith.constant 1.000000e+00 : f32
    %389 = vector.broadcast %cst_141 : f32 to vector<2x256xf32>
    %390 = arith.maximumf %389, %388 : vector<2x256xf32>
    %391 = vector.broadcast %cst_142 : f32 to vector<2x256xf32>
    %392 = arith.minimumf %391, %390 : vector<2x256xf32>
    %c0_143 = arith.constant 0 : index
    %c5632_144 = arith.constant 5632 : index
    %393 = vector.load %arg4[%c0_143, %c5632_144] : memref<2x7424xf32, #tpu.memory_space<vmem>>, vector<2x256xf32>
    tpu.vector_store %arg4[%c0_143, %c5632_144], %392 {strides = array<i32>} : memref<2x7424xf32, #tpu.memory_space<vmem>>, vector<2x256xf32>,
    %394 = vector.extract_strided_slice %388 {offsets = [0, 255], sizes = [2, 1], strides = [1, 1]} : vector<2x256xf32> to vector<2x1xf32>
    %395 = vector.extract_strided_slice %388 {offsets = [0, 254], sizes = [2, 1], strides = [1, 1]} : vector<2x256xf32> to vector<2x1xf32>
    %c0_145 = arith.constant 0 : index
    %c5888 = arith.constant 5888 : index
    %396 = vector.load %arg0[%c0_145, %c5888] : memref<2x7424xf32, #tpu.memory_space<vmem>>, vector<2x256xf32>
    %cst_146 = arith.constant dense<0.000000e+00> : vector<2x256xf32>
    %397 = tpu.matmul %396, %0, %cst_146 {dimension_numbers = #tpu.dot_dimension_numbers<[1], [0], [0], [1], [0, 0, 1, 1], [], []>} : vector<2x256xf32>, vector<256x256xf32>, vector<2x256xf32> -> vector<2x256xf32>
    %398 = vector.broadcast %394 : vector<2x1xf32> to vector<2x256xf32>
    %399 = vector.broadcast %1 : vector<1x256xf32> to vector<2x256xf32>
    %400 = arith.mulf %398, %399 : vector<2x256xf32>
    %401 = arith.addf %397, %400 : vector<2x256xf32>
    %402 = vector.broadcast %395 : vector<2x1xf32> to vector<2x256xf32>
    %403 = vector.broadcast %2 : vector<1x256xf32> to vector<2x256xf32>
    %404 = arith.mulf %402, %403 : vector<2x256xf32>
    %405 = arith.addf %401, %404 : vector<2x256xf32>
    %cst_147 = arith.constant -1.000000e+00 : f32
    %cst_148 = arith.constant 1.000000e+00 : f32
    %406 = vector.broadcast %cst_147 : f32 to vector<2x256xf32>
    %407 = arith.maximumf %406, %405 : vector<2x256xf32>
    %408 = vector.broadcast %cst_148 : f32 to vector<2x256xf32>
    %409 = arith.minimumf %408, %407 : vector<2x256xf32>
    %c0_149 = arith.constant 0 : index
    %c5888_150 = arith.constant 5888 : index
    %410 = vector.load %arg4[%c0_149, %c5888_150] : memref<2x7424xf32, #tpu.memory_space<vmem>>, vector<2x256xf32>
    tpu.vector_store %arg4[%c0_149, %c5888_150], %409 {strides = array<i32>} : memref<2x7424xf32, #tpu.memory_space<vmem>>, vector<2x256xf32>,
    %411 = vector.extract_strided_slice %405 {offsets = [0, 255], sizes = [2, 1], strides = [1, 1]} : vector<2x256xf32> to vector<2x1xf32>
    %412 = vector.extract_strided_slice %405 {offsets = [0, 254], sizes = [2, 1], strides = [1, 1]} : vector<2x256xf32> to vector<2x1xf32>
    %c0_151 = arith.constant 0 : index
    %c6144 = arith.constant 6144 : index
    %413 = vector.load %arg0[%c0_151, %c6144] : memref<2x7424xf32, #tpu.memory_space<vmem>>, vector<2x256xf32>
    %cst_152 = arith.constant dense<0.000000e+00> : vector<2x256xf32>
    %414 = tpu.matmul %413, %0, %cst_152 {dimension_numbers = #tpu.dot_dimension_numbers<[1], [0], [0], [1], [0, 0, 1, 1], [], []>} : vector<2x256xf32>, vector<256x256xf32>, vector<2x256xf32> -> vector<2x256xf32>
    %415 = vector.broadcast %411 : vector<2x1xf32> to vector<2x256xf32>
    %416 = vector.broadcast %1 : vector<1x256xf32> to vector<2x256xf32>
    %417 = arith.mulf %415, %416 : vector<2x256xf32>
    %418 = arith.addf %414, %417 : vector<2x256xf32>
    %419 = vector.broadcast %412 : vector<2x1xf32> to vector<2x256xf32>
    %420 = vector.broadcast %2 : vector<1x256xf32> to vector<2x256xf32>
    %421 = arith.mulf %419, %420 : vector<2x256xf32>
    %422 = arith.addf %418, %421 : vector<2x256xf32>
    %cst_153 = arith.constant -1.000000e+00 : f32
    %cst_154 = arith.constant 1.000000e+00 : f32
    %423 = vector.broadcast %cst_153 : f32 to vector<2x256xf32>
    %424 = arith.maximumf %423, %422 : vector<2x256xf32>
    %425 = vector.broadcast %cst_154 : f32 to vector<2x256xf32>
    %426 = arith.minimumf %425, %424 : vector<2x256xf32>
    %c0_155 = arith.constant 0 : index
    %c6144_156 = arith.constant 6144 : index
    %427 = vector.load %arg4[%c0_155, %c6144_156] : memref<2x7424xf32, #tpu.memory_space<vmem>>, vector<2x256xf32>
    tpu.vector_store %arg4[%c0_155, %c6144_156], %426 {strides = array<i32>} : memref<2x7424xf32, #tpu.memory_space<vmem>>, vector<2x256xf32>,
    %428 = vector.extract_strided_slice %422 {offsets = [0, 255], sizes = [2, 1], strides = [1, 1]} : vector<2x256xf32> to vector<2x1xf32>
    %429 = vector.extract_strided_slice %422 {offsets = [0, 254], sizes = [2, 1], strides = [1, 1]} : vector<2x256xf32> to vector<2x1xf32>
    %c0_157 = arith.constant 0 : index
    %c6400 = arith.constant 6400 : index
    %430 = vector.load %arg0[%c0_157, %c6400] : memref<2x7424xf32, #tpu.memory_space<vmem>>, vector<2x256xf32>
    %cst_158 = arith.constant dense<0.000000e+00> : vector<2x256xf32>
    %431 = tpu.matmul %430, %0, %cst_158 {dimension_numbers = #tpu.dot_dimension_numbers<[1], [0], [0], [1], [0, 0, 1, 1], [], []>} : vector<2x256xf32>, vector<256x256xf32>, vector<2x256xf32> -> vector<2x256xf32>
    %432 = vector.broadcast %428 : vector<2x1xf32> to vector<2x256xf32>
    %433 = vector.broadcast %1 : vector<1x256xf32> to vector<2x256xf32>
    %434 = arith.mulf %432, %433 : vector<2x256xf32>
    %435 = arith.addf %431, %434 : vector<2x256xf32>
    %436 = vector.broadcast %429 : vector<2x1xf32> to vector<2x256xf32>
    %437 = vector.broadcast %2 : vector<1x256xf32> to vector<2x256xf32>
    %438 = arith.mulf %436, %437 : vector<2x256xf32>
    %439 = arith.addf %435, %438 : vector<2x256xf32>
    %cst_159 = arith.constant -1.000000e+00 : f32
    %cst_160 = arith.constant 1.000000e+00 : f32
    %440 = vector.broadcast %cst_159 : f32 to vector<2x256xf32>
    %441 = arith.maximumf %440, %439 : vector<2x256xf32>
    %442 = vector.broadcast %cst_160 : f32 to vector<2x256xf32>
    %443 = arith.minimumf %442, %441 : vector<2x256xf32>
    %c0_161 = arith.constant 0 : index
    %c6400_162 = arith.constant 6400 : index
    %444 = vector.load %arg4[%c0_161, %c6400_162] : memref<2x7424xf32, #tpu.memory_space<vmem>>, vector<2x256xf32>
    tpu.vector_store %arg4[%c0_161, %c6400_162], %443 {strides = array<i32>} : memref<2x7424xf32, #tpu.memory_space<vmem>>, vector<2x256xf32>,
    %445 = vector.extract_strided_slice %439 {offsets = [0, 255], sizes = [2, 1], strides = [1, 1]} : vector<2x256xf32> to vector<2x1xf32>
    %446 = vector.extract_strided_slice %439 {offsets = [0, 254], sizes = [2, 1], strides = [1, 1]} : vector<2x256xf32> to vector<2x1xf32>
    %c0_163 = arith.constant 0 : index
    %c6656 = arith.constant 6656 : index
    %447 = vector.load %arg0[%c0_163, %c6656] : memref<2x7424xf32, #tpu.memory_space<vmem>>, vector<2x256xf32>
    %cst_164 = arith.constant dense<0.000000e+00> : vector<2x256xf32>
    %448 = tpu.matmul %447, %0, %cst_164 {dimension_numbers = #tpu.dot_dimension_numbers<[1], [0], [0], [1], [0, 0, 1, 1], [], []>} : vector<2x256xf32>, vector<256x256xf32>, vector<2x256xf32> -> vector<2x256xf32>
    %449 = vector.broadcast %445 : vector<2x1xf32> to vector<2x256xf32>
    %450 = vector.broadcast %1 : vector<1x256xf32> to vector<2x256xf32>
    %451 = arith.mulf %449, %450 : vector<2x256xf32>
    %452 = arith.addf %448, %451 : vector<2x256xf32>
    %453 = vector.broadcast %446 : vector<2x1xf32> to vector<2x256xf32>
    %454 = vector.broadcast %2 : vector<1x256xf32> to vector<2x256xf32>
    %455 = arith.mulf %453, %454 : vector<2x256xf32>
    %456 = arith.addf %452, %455 : vector<2x256xf32>
    %cst_165 = arith.constant -1.000000e+00 : f32
    %cst_166 = arith.constant 1.000000e+00 : f32
    %457 = vector.broadcast %cst_165 : f32 to vector<2x256xf32>
    %458 = arith.maximumf %457, %456 : vector<2x256xf32>
    %459 = vector.broadcast %cst_166 : f32 to vector<2x256xf32>
    %460 = arith.minimumf %459, %458 : vector<2x256xf32>
    %c0_167 = arith.constant 0 : index
    %c6656_168 = arith.constant 6656 : index
    %461 = vector.load %arg4[%c0_167, %c6656_168] : memref<2x7424xf32, #tpu.memory_space<vmem>>, vector<2x256xf32>
    tpu.vector_store %arg4[%c0_167, %c6656_168], %460 {strides = array<i32>} : memref<2x7424xf32, #tpu.memory_space<vmem>>, vector<2x256xf32>,
    %462 = vector.extract_strided_slice %456 {offsets = [0, 255], sizes = [2, 1], strides = [1, 1]} : vector<2x256xf32> to vector<2x1xf32>
    %463 = vector.extract_strided_slice %456 {offsets = [0, 254], sizes = [2, 1], strides = [1, 1]} : vector<2x256xf32> to vector<2x1xf32>
    %c0_169 = arith.constant 0 : index
    %c6912 = arith.constant 6912 : index
    %464 = vector.load %arg0[%c0_169, %c6912] : memref<2x7424xf32, #tpu.memory_space<vmem>>, vector<2x256xf32>
    %cst_170 = arith.constant dense<0.000000e+00> : vector<2x256xf32>
    %465 = tpu.matmul %464, %0, %cst_170 {dimension_numbers = #tpu.dot_dimension_numbers<[1], [0], [0], [1], [0, 0, 1, 1], [], []>} : vector<2x256xf32>, vector<256x256xf32>, vector<2x256xf32> -> vector<2x256xf32>
    %466 = vector.broadcast %462 : vector<2x1xf32> to vector<2x256xf32>
    %467 = vector.broadcast %1 : vector<1x256xf32> to vector<2x256xf32>
    %468 = arith.mulf %466, %467 : vector<2x256xf32>
    %469 = arith.addf %465, %468 : vector<2x256xf32>
    %470 = vector.broadcast %463 : vector<2x1xf32> to vector<2x256xf32>
    %471 = vector.broadcast %2 : vector<1x256xf32> to vector<2x256xf32>
    %472 = arith.mulf %470, %471 : vector<2x256xf32>
    %473 = arith.addf %469, %472 : vector<2x256xf32>
    %cst_171 = arith.constant -1.000000e+00 : f32
    %cst_172 = arith.constant 1.000000e+00 : f32
    %474 = vector.broadcast %cst_171 : f32 to vector<2x256xf32>
    %475 = arith.maximumf %474, %473 : vector<2x256xf32>
    %476 = vector.broadcast %cst_172 : f32 to vector<2x256xf32>
    %477 = arith.minimumf %476, %475 : vector<2x256xf32>
    %c0_173 = arith.constant 0 : index
    %c6912_174 = arith.constant 6912 : index
    %478 = vector.load %arg4[%c0_173, %c6912_174] : memref<2x7424xf32, #tpu.memory_space<vmem>>, vector<2x256xf32>
    tpu.vector_store %arg4[%c0_173, %c6912_174], %477 {strides = array<i32>} : memref<2x7424xf32, #tpu.memory_space<vmem>>, vector<2x256xf32>,
    %479 = vector.extract_strided_slice %473 {offsets = [0, 255], sizes = [2, 1], strides = [1, 1]} : vector<2x256xf32> to vector<2x1xf32>
    %480 = vector.extract_strided_slice %473 {offsets = [0, 254], sizes = [2, 1], strides = [1, 1]} : vector<2x256xf32> to vector<2x1xf32>
    %c0_175 = arith.constant 0 : index
    %c7168 = arith.constant 7168 : index
    %481 = vector.load %arg0[%c0_175, %c7168] : memref<2x7424xf32, #tpu.memory_space<vmem>>, vector<2x256xf32>
    %cst_176 = arith.constant dense<0.000000e+00> : vector<2x256xf32>
    %482 = tpu.matmul %481, %0, %cst_176 {dimension_numbers = #tpu.dot_dimension_numbers<[1], [0], [0], [1], [0, 0, 1, 1], [], []>} : vector<2x256xf32>, vector<256x256xf32>, vector<2x256xf32> -> vector<2x256xf32>
    %483 = vector.broadcast %479 : vector<2x1xf32> to vector<2x256xf32>
    %484 = vector.broadcast %1 : vector<1x256xf32> to vector<2x256xf32>
    %485 = arith.mulf %483, %484 : vector<2x256xf32>
    %486 = arith.addf %482, %485 : vector<2x256xf32>
    %487 = vector.broadcast %480 : vector<2x1xf32> to vector<2x256xf32>
    %488 = vector.broadcast %2 : vector<1x256xf32> to vector<2x256xf32>
    %489 = arith.mulf %487, %488 : vector<2x256xf32>
    %490 = arith.addf %486, %489 : vector<2x256xf32>
    %cst_177 = arith.constant -1.000000e+00 : f32
    %cst_178 = arith.constant 1.000000e+00 : f32
    %491 = vector.broadcast %cst_177 : f32 to vector<2x256xf32>
    %492 = arith.maximumf %491, %490 : vector<2x256xf32>
    %493 = vector.broadcast %cst_178 : f32 to vector<2x256xf32>
    %494 = arith.minimumf %493, %492 : vector<2x256xf32>
    %c0_179 = arith.constant 0 : index
    %c7168_180 = arith.constant 7168 : index
    %495 = vector.load %arg4[%c0_179, %c7168_180] : memref<2x7424xf32, #tpu.memory_space<vmem>>, vector<2x256xf32>
    tpu.vector_store %arg4[%c0_179, %c7168_180], %494 {strides = array<i32>} : memref<2x7424xf32, #tpu.memory_space<vmem>>, vector<2x256xf32>,
    return
  }
}

module attributes {stable_mosaic.version = 11 : i64} {
  func.func @_mfcc_kernel(%arg0: i32, %arg1: memref<1x54x512xbf16, #tpu.memory_space<vmem>>, %arg2: memref<512x768xbf16, #tpu.memory_space<vmem>>, %arg3: memref<384x128xf32, #tpu.memory_space<vmem>>, %arg4: memref<128x128xf32, #tpu.memory_space<vmem>>, %arg5: memref<1x54x128xf32, #tpu.memory_space<vmem>>) attributes {dimension_semantics = [#tpu.dimension_semantics<parallel>], iteration_bounds = array<i64: 2>, scalar_prefetch = 0 : i64, scratch_operands = 0 : i64, tpu.core_type = #tpu.core_type<tc>, window_params = [{transform_indices = @transform_0, window_bounds = array<i64: 1, 54, 512>}, {pipeline_mode = #tpu.pipeline_mode<synchronous>, transform_indices = @transform_1, window_bounds = array<i64: 512, 768>}, {pipeline_mode = #tpu.pipeline_mode<synchronous>, transform_indices = @transform_2, window_bounds = array<i64: 384, 128>}, {pipeline_mode = #tpu.pipeline_mode<synchronous>, transform_indices = @transform_3, window_bounds = array<i64: 128, 128>}, {transform_indices = @transform_4, window_bounds = array<i64: 1, 54, 128>}]} {
    %c0 = arith.constant 0 : index
    %c0_0 = arith.constant 0 : index
    %c0_1 = arith.constant 0 : index
    %0 = vector.load %arg1[%c0, %c0_0, %c0_1] : memref<1x54x512xbf16, #tpu.memory_space<vmem>>, vector<1x54x512xbf16>
    %1 = vector.shape_cast %0 : vector<1x54x512xbf16> to vector<54x512xbf16>
    %c0_2 = arith.constant 0 : index
    %c0_3 = arith.constant 0 : index
    %2 = vector.load %arg2[%c0_2, %c0_3] : memref<512x768xbf16, #tpu.memory_space<vmem>>, vector<512x768xbf16>
    %cst = arith.constant dense<0.000000e+00> : vector<54x768xf32>
    %3 = tpu.matmul %1, %2, %cst {dimension_numbers = #tpu.dot_dimension_numbers<[1], [0], [0], [1], [0, 0, 1, 1], [], []>} : vector<54x512xbf16>, vector<512x768xbf16>, vector<54x768xf32> -> vector<54x768xf32>
    %4 = vector.extract_strided_slice %3 {offsets = [0, 0], sizes = [54, 384], strides = [1, 1]} : vector<54x768xf32> to vector<54x384xf32>
    %5 = vector.extract_strided_slice %3 {offsets = [0, 384], sizes = [54, 384], strides = [1, 1]} : vector<54x768xf32> to vector<54x384xf32>
    %6 = arith.mulf %4, %4 : vector<54x384xf32>
    %7 = arith.mulf %5, %5 : vector<54x384xf32>
    %8 = arith.addf %6, %7 : vector<54x384xf32>
    %c0_4 = arith.constant 0 : index
    %c0_5 = arith.constant 0 : index
    %9 = vector.load %arg3[%c0_4, %c0_5] : memref<384x128xf32, #tpu.memory_space<vmem>>, vector<384x128xf32>
    %cst_6 = arith.constant dense<0.000000e+00> : vector<54x128xf32>
    %10 = tpu.matmul %8, %9, %cst_6 {dimension_numbers = #tpu.dot_dimension_numbers<[1], [0], [0], [1], [0, 0, 1, 1], [], []>} : vector<54x384xf32>, vector<384x128xf32>, vector<54x128xf32> -> vector<54x128xf32>
    %cst_7 = arith.constant 1.000000e-10 : f32
    %11 = vector.broadcast %cst_7 : f32 to vector<54x128xf32>
    %12 = arith.maximumf %10, %11 : vector<54x128xf32>
    %13 = math.log %12 : vector<54x128xf32>
    %cst_8 = arith.constant 0.434294492 : f32
    %14 = vector.broadcast %cst_8 : f32 to vector<54x128xf32>
    %15 = arith.mulf %13, %14 : vector<54x128xf32>
    %cst_9 = arith.constant 1.000000e+01 : f32
    %16 = vector.broadcast %cst_9 : f32 to vector<54x128xf32>
    %17 = arith.mulf %16, %15 : vector<54x128xf32>
    %18 = vector.extract_strided_slice %17 {offsets = [0, 0], sizes = [54, 64], strides = [1, 1]} : vector<54x128xf32> to vector<54x64xf32>
    %19 = vector.shape_cast %18 : vector<54x64xf32> to vector<1x54x64xf32>
    %cst_10 = arith.constant dense<0xFF800000> : vector<1xf32>
    %20 = vector.multi_reduction <maximumf>, %19, %cst_10 [1, 2] : vector<1x54x64xf32> to vector<1xf32>
    %21 = vector.shape_cast %20 : vector<1xf32> to vector<1x1x1xf32>
    %22 = vector.extract %21[0, 0, 0] : f32 from vector<1x1x1xf32>
    %cst_11 = arith.constant 8.000000e+01 : f32
    %23 = arith.subf %22, %cst_11 : f32
    %24 = vector.broadcast %23 : f32 to vector<54x128xf32>
    %25 = arith.maximumf %17, %24 : vector<54x128xf32>
    %c0_12 = arith.constant 0 : index
    %c0_13 = arith.constant 0 : index
    %26 = vector.load %arg4[%c0_12, %c0_13] : memref<128x128xf32, #tpu.memory_space<vmem>>, vector<128x128xf32>
    %cst_14 = arith.constant dense<0.000000e+00> : vector<54x128xf32>
    %27 = tpu.matmul %25, %26, %cst_14 {dimension_numbers = #tpu.dot_dimension_numbers<[1], [0], [0], [1], [0, 0, 1, 1], [], []>} : vector<54x128xf32>, vector<128x128xf32>, vector<54x128xf32> -> vector<54x128xf32>
    %c0_15 = arith.constant 0 : index
    %c0_16 = arith.constant 0 : index
    %c0_17 = arith.constant 0 : index
    %28 = vector.load %arg5[%c0_15, %c0_16, %c0_17] : memref<1x54x128xf32, #tpu.memory_space<vmem>>, vector<1x54x128xf32>
    %29 = vector.shape_cast %28 : vector<1x54x128xf32> to vector<54x128xf32>
    %30 = vector.shape_cast %27 : vector<54x128xf32> to vector<1x54x128xf32>
    tpu.vector_store %arg5[%c0_15, %c0_16, %c0_17], %30 {strides = array<i32>} : memref<1x54x128xf32, #tpu.memory_space<vmem>>, vector<1x54x128xf32>,
    return
  }
  func.func @transform_0(%arg0: i32) -> (i32, i32, i32) {
    %c0_i32 = arith.constant 0 : i32
    %c0_i32_0 = arith.constant 0 : i32
    %c0_i32_1 = arith.constant 0 : i32
    return %arg0, %c0_i32, %c0_i32_0 : i32, i32, i32
  }
  func.func @transform_1(%arg0: i32) -> (i32, i32) {
    %c0_i32 = arith.constant 0 : i32
    %c0_i32_0 = arith.constant 0 : i32
    %c0_i32_1 = arith.constant 0 : i32
    return %c0_i32, %c0_i32_0 : i32, i32
  }
  func.func @transform_2(%arg0: i32) -> (i32, i32) {
    %c0_i32 = arith.constant 0 : i32
    %c0_i32_0 = arith.constant 0 : i32
    %c0_i32_1 = arith.constant 0 : i32
    return %c0_i32, %c0_i32_0 : i32, i32
  }
  func.func @transform_3(%arg0: i32) -> (i32, i32) {
    %c0_i32 = arith.constant 0 : i32
    %c0_i32_0 = arith.constant 0 : i32
    %c0_i32_1 = arith.constant 0 : i32
    return %c0_i32, %c0_i32_0 : i32, i32
  }
  func.func @transform_4(%arg0: i32) -> (i32, i32, i32) {
    %c0_i32 = arith.constant 0 : i32
    %c0_i32_0 = arith.constant 0 : i32
    %c0_i32_1 = arith.constant 0 : i32
    return %arg0, %c0_i32, %c0_i32_0 : i32, i32, i32
  }
}

module attributes {stable_mosaic.version = 11 : i64} {
  func.func @_convmm_kernel(%arg0: memref<16x9xbf16, #tpu.memory_space<vmem>>, %arg1: memref<9x3848xbf16, #tpu.memory_space<vmem>>, %arg2: memref<16x1xf32, #tpu.memory_space<vmem>>, %arg3: memref<16x3848xf32, #tpu.memory_space<vmem>>) attributes {dimension_semantics = [], scalar_prefetch = 0 : i64, scratch_operands = 0 : i64, tpu.core_type = #tpu.core_type<tc>} {
    %c0 = arith.constant 0 : index
    %c0_0 = arith.constant 0 : index
    %0 = vector.load %arg0[%c0, %c0_0] : memref<16x9xbf16, #tpu.memory_space<vmem>>, vector<16x9xbf16>
    %c0_1 = arith.constant 0 : index
    %c0_2 = arith.constant 0 : index
    %1 = vector.load %arg1[%c0_1, %c0_2] : memref<9x3848xbf16, #tpu.memory_space<vmem>>, vector<9x3848xbf16>
    %cst = arith.constant dense<0.000000e+00> : vector<16x3848xf32>
    %2 = tpu.matmul %0, %1, %cst {dimension_numbers = #tpu.dot_dimension_numbers<[1], [0], [0], [1], [0, 0, 1, 1], [], []>} : vector<16x9xbf16>, vector<9x3848xbf16>, vector<16x3848xf32> -> vector<16x3848xf32>
    %c0_3 = arith.constant 0 : index
    %c0_4 = arith.constant 0 : index
    %3 = vector.load %arg2[%c0_3, %c0_4] : memref<16x1xf32, #tpu.memory_space<vmem>>, vector<16x1xf32>
    %4 = vector.broadcast %3 : vector<16x1xf32> to vector<16x3848xf32>
    %5 = arith.addf %2, %4 : vector<16x3848xf32>
    %cst_5 = arith.constant 0.000000e+00 : f32
    %6 = vector.broadcast %cst_5 : f32 to vector<16x3848xf32>
    %7 = arith.maximumf %5, %6 : vector<16x3848xf32>
    %c0_6 = arith.constant 0 : index
    %c0_7 = arith.constant 0 : index
    %8 = vector.load %arg3[%c0_6, %c0_7] : memref<16x3848xf32, #tpu.memory_space<vmem>>, vector<16x3848xf32>
    tpu.vector_store %arg3[%c0_6, %c0_7], %7 {strides = array<i32>} : memref<16x3848xf32, #tpu.memory_space<vmem>>, vector<16x3848xf32>,
    return
  }
}

module attributes {stable_mosaic.version = 11 : i64} {
  func.func @_convmm_kernel(%arg0: memref<32x144xbf16, #tpu.memory_space<vmem>>, %arg1: memref<144x768xbf16, #tpu.memory_space<vmem>>, %arg2: memref<32x1xf32, #tpu.memory_space<vmem>>, %arg3: memref<32x768xf32, #tpu.memory_space<vmem>>) attributes {dimension_semantics = [], scalar_prefetch = 0 : i64, scratch_operands = 0 : i64, tpu.core_type = #tpu.core_type<tc>} {
    %c0 = arith.constant 0 : index
    %c0_0 = arith.constant 0 : index
    %0 = vector.load %arg0[%c0, %c0_0] : memref<32x144xbf16, #tpu.memory_space<vmem>>, vector<32x144xbf16>
    %c0_1 = arith.constant 0 : index
    %c0_2 = arith.constant 0 : index
    %1 = vector.load %arg1[%c0_1, %c0_2] : memref<144x768xbf16, #tpu.memory_space<vmem>>, vector<144x768xbf16>
    %cst = arith.constant dense<0.000000e+00> : vector<32x768xf32>
    %2 = tpu.matmul %0, %1, %cst {dimension_numbers = #tpu.dot_dimension_numbers<[1], [0], [0], [1], [0, 0, 1, 1], [], []>} : vector<32x144xbf16>, vector<144x768xbf16>, vector<32x768xf32> -> vector<32x768xf32>
    %c0_3 = arith.constant 0 : index
    %c0_4 = arith.constant 0 : index
    %3 = vector.load %arg2[%c0_3, %c0_4] : memref<32x1xf32, #tpu.memory_space<vmem>>, vector<32x1xf32>
    %4 = vector.broadcast %3 : vector<32x1xf32> to vector<32x768xf32>
    %5 = arith.addf %2, %4 : vector<32x768xf32>
    %cst_5 = arith.constant 0.000000e+00 : f32
    %6 = vector.broadcast %cst_5 : f32 to vector<32x768xf32>
    %7 = arith.maximumf %5, %6 : vector<32x768xf32>
    %c0_6 = arith.constant 0 : index
    %c0_7 = arith.constant 0 : index
    %8 = vector.load %arg3[%c0_6, %c0_7] : memref<32x768xf32, #tpu.memory_space<vmem>>, vector<32x768xf32>
    tpu.vector_store %arg3[%c0_6, %c0_7], %7 {strides = array<i32>} : memref<32x768xf32, #tpu.memory_space<vmem>>, vector<32x768xf32>,
    return
  }
}

module attributes {stable_mosaic.version = 11 : i64} {
  func.func @_convmm_kernel(%arg0: memref<64x288xbf16, #tpu.memory_space<vmem>>, %arg1: memref<288x120xbf16, #tpu.memory_space<vmem>>, %arg2: memref<64x1xf32, #tpu.memory_space<vmem>>, %arg3: memref<64x120xf32, #tpu.memory_space<vmem>>) attributes {dimension_semantics = [], scalar_prefetch = 0 : i64, scratch_operands = 0 : i64, tpu.core_type = #tpu.core_type<tc>} {
    %c0 = arith.constant 0 : index
    %c0_0 = arith.constant 0 : index
    %0 = vector.load %arg0[%c0, %c0_0] : memref<64x288xbf16, #tpu.memory_space<vmem>>, vector<64x288xbf16>
    %c0_1 = arith.constant 0 : index
    %c0_2 = arith.constant 0 : index
    %1 = vector.load %arg1[%c0_1, %c0_2] : memref<288x120xbf16, #tpu.memory_space<vmem>>, vector<288x120xbf16>
    %cst = arith.constant dense<0.000000e+00> : vector<64x120xf32>
    %2 = tpu.matmul %0, %1, %cst {dimension_numbers = #tpu.dot_dimension_numbers<[1], [0], [0], [1], [0, 0, 1, 1], [], []>} : vector<64x288xbf16>, vector<288x120xbf16>, vector<64x120xf32> -> vector<64x120xf32>
    %c0_3 = arith.constant 0 : index
    %c0_4 = arith.constant 0 : index
    %3 = vector.load %arg2[%c0_3, %c0_4] : memref<64x1xf32, #tpu.memory_space<vmem>>, vector<64x1xf32>
    %4 = vector.broadcast %3 : vector<64x1xf32> to vector<64x120xf32>
    %5 = arith.addf %2, %4 : vector<64x120xf32>
    %cst_5 = arith.constant 0.000000e+00 : f32
    %6 = vector.broadcast %cst_5 : f32 to vector<64x120xf32>
    %7 = arith.maximumf %5, %6 : vector<64x120xf32>
    %c0_6 = arith.constant 0 : index
    %c0_7 = arith.constant 0 : index
    %8 = vector.load %arg3[%c0_6, %c0_7] : memref<64x120xf32, #tpu.memory_space<vmem>>, vector<64x120xf32>
    tpu.vector_store %arg3[%c0_6, %c0_7], %7 {strides = array<i32>} : memref<64x120xf32, #tpu.memory_space<vmem>>, vector<64x120xf32>,
    return
  }
}

module attributes {stable_mosaic.version = 11 : i64} {
  func.func @_lstm_head_kernel(%arg0: memref<4x2x128xf32, #tpu.memory_space<vmem>>, %arg1: memref<192x256xf32, #tpu.memory_space<vmem>>, %arg2: memref<1x256xf32, #tpu.memory_space<vmem>>, %arg3: memref<128x256xf32, #tpu.memory_space<vmem>>, %arg4: memref<1x256xf32, #tpu.memory_space<vmem>>, %arg5: memref<64x32xf32, #tpu.memory_space<vmem>>, %arg6: memref<1x32xf32, #tpu.memory_space<vmem>>, %arg7: memref<32x2xf32, #tpu.memory_space<vmem>>, %arg8: memref<1x2xf32, #tpu.memory_space<vmem>>, %arg9: memref<2x2xf32, #tpu.memory_space<vmem>>) attributes {dimension_semantics = [], scalar_prefetch = 0 : i64, scratch_operands = 0 : i64, tpu.core_type = #tpu.core_type<tc>} {
    %c0 = arith.constant 0 : index
    %c0_0 = arith.constant 0 : index
    %0 = vector.load %arg1[%c0, %c0_0] : memref<192x256xf32, #tpu.memory_space<vmem>>, vector<192x256xf32>
    %c0_1 = arith.constant 0 : index
    %c0_2 = arith.constant 0 : index
    %1 = vector.load %arg2[%c0_1, %c0_2] : memref<1x256xf32, #tpu.memory_space<vmem>>, vector<1x256xf32>
    %c0_3 = arith.constant 0 : index
    %c0_4 = arith.constant 0 : index
    %2 = vector.load %arg3[%c0_3, %c0_4] : memref<128x256xf32, #tpu.memory_space<vmem>>, vector<128x256xf32>
    %c0_5 = arith.constant 0 : index
    %c0_6 = arith.constant 0 : index
    %3 = vector.load %arg4[%c0_5, %c0_6] : memref<1x256xf32, #tpu.memory_space<vmem>>, vector<1x256xf32>
    %cst = arith.constant 0.000000e+00 : f32
    %4 = vector.broadcast %cst : f32 to vector<2x64xf32>
    %cst_7 = arith.constant 0.000000e+00 : f32
    %5 = vector.broadcast %cst_7 : f32 to vector<2x64xf32>
    %cst_8 = arith.constant 0.000000e+00 : f32
    %6 = vector.broadcast %cst_8 : f32 to vector<2x64xf32>
    %cst_9 = arith.constant 0.000000e+00 : f32
    %7 = vector.broadcast %cst_9 : f32 to vector<2x64xf32>
    %cst_10 = arith.constant 0.000000e+00 : f32
    %8 = vector.broadcast %cst_10 : f32 to vector<2x64xf32>
    %c0_11 = arith.constant 0 : index
    %c0_12 = arith.constant 0 : index
    %c0_13 = arith.constant 0 : index
    %9 = vector.load %arg0[%c0_11, %c0_12, %c0_13] : memref<4x2x128xf32, #tpu.memory_space<vmem>>, vector<1x2x128xf32>
    %10 = vector.shape_cast %9 : vector<1x2x128xf32> to vector<2x128xf32>
    %11 = tpu.concatenate %10, %4 in 1 : vector<2x128xf32>, vector<2x64xf32> -> vector<2x192xf32>
    %cst_14 = arith.constant dense<0.000000e+00> : vector<2x256xf32>
    %12 = tpu.matmul %11, %0, %cst_14 {dimension_numbers = #tpu.dot_dimension_numbers<[1], [0], [0], [1], [0, 0, 1, 1], [], []>} : vector<2x192xf32>, vector<192x256xf32>, vector<2x256xf32> -> vector<2x256xf32>
    %13 = vector.broadcast %1 : vector<1x256xf32> to vector<2x256xf32>
    %14 = arith.addf %12, %13 : vector<2x256xf32>
    %15 = vector.extract_strided_slice %14 {offsets = [0, 0], sizes = [2, 64], strides = [1, 1]} : vector<2x256xf32> to vector<2x64xf32>
    %16 = arith.negf %15 : vector<2x64xf32>
    %17 = math.exp %16 : vector<2x64xf32>
    %cst_15 = arith.constant 1.000000e+00 : f32
    %18 = vector.broadcast %cst_15 : f32 to vector<2x64xf32>
    %19 = arith.addf %18, %17 : vector<2x64xf32>
    %20 = arith.divf %18, %19 : vector<2x64xf32>
    %21 = vector.extract_strided_slice %14 {offsets = [0, 64], sizes = [2, 64], strides = [1, 1]} : vector<2x256xf32> to vector<2x64xf32>
    %22 = arith.negf %21 : vector<2x64xf32>
    %23 = math.exp %22 : vector<2x64xf32>
    %cst_16 = arith.constant 1.000000e+00 : f32
    %24 = vector.broadcast %cst_16 : f32 to vector<2x64xf32>
    %25 = arith.addf %24, %23 : vector<2x64xf32>
    %26 = arith.divf %24, %25 : vector<2x64xf32>
    %27 = vector.extract_strided_slice %14 {offsets = [0, 128], sizes = [2, 64], strides = [1, 1]} : vector<2x256xf32> to vector<2x64xf32>
    %28 = math.tanh %27 : vector<2x64xf32>
    %29 = vector.extract_strided_slice %14 {offsets = [0, 192], sizes = [2, 64], strides = [1, 1]} : vector<2x256xf32> to vector<2x64xf32>
    %30 = arith.negf %29 : vector<2x64xf32>
    %31 = math.exp %30 : vector<2x64xf32>
    %cst_17 = arith.constant 1.000000e+00 : f32
    %32 = vector.broadcast %cst_17 : f32 to vector<2x64xf32>
    %33 = arith.addf %32, %31 : vector<2x64xf32>
    %34 = arith.divf %32, %33 : vector<2x64xf32>
    %35 = arith.mulf %26, %5 : vector<2x64xf32>
    %36 = arith.mulf %20, %28 : vector<2x64xf32>
    %37 = arith.addf %35, %36 : vector<2x64xf32>
    %38 = math.tanh %37 : vector<2x64xf32>
    %39 = arith.mulf %34, %38 : vector<2x64xf32>
    %40 = tpu.concatenate %39, %6 in 1 : vector<2x64xf32>, vector<2x64xf32> -> vector<2x128xf32>
    %cst_18 = arith.constant dense<0.000000e+00> : vector<2x256xf32>
    %41 = tpu.matmul %40, %2, %cst_18 {dimension_numbers = #tpu.dot_dimension_numbers<[1], [0], [0], [1], [0, 0, 1, 1], [], []>} : vector<2x128xf32>, vector<128x256xf32>, vector<2x256xf32> -> vector<2x256xf32>
    %42 = vector.broadcast %3 : vector<1x256xf32> to vector<2x256xf32>
    %43 = arith.addf %41, %42 : vector<2x256xf32>
    %44 = vector.extract_strided_slice %43 {offsets = [0, 0], sizes = [2, 64], strides = [1, 1]} : vector<2x256xf32> to vector<2x64xf32>
    %45 = arith.negf %44 : vector<2x64xf32>
    %46 = math.exp %45 : vector<2x64xf32>
    %cst_19 = arith.constant 1.000000e+00 : f32
    %47 = vector.broadcast %cst_19 : f32 to vector<2x64xf32>
    %48 = arith.addf %47, %46 : vector<2x64xf32>
    %49 = arith.divf %47, %48 : vector<2x64xf32>
    %50 = vector.extract_strided_slice %43 {offsets = [0, 64], sizes = [2, 64], strides = [1, 1]} : vector<2x256xf32> to vector<2x64xf32>
    %51 = arith.negf %50 : vector<2x64xf32>
    %52 = math.exp %51 : vector<2x64xf32>
    %cst_20 = arith.constant 1.000000e+00 : f32
    %53 = vector.broadcast %cst_20 : f32 to vector<2x64xf32>
    %54 = arith.addf %53, %52 : vector<2x64xf32>
    %55 = arith.divf %53, %54 : vector<2x64xf32>
    %56 = vector.extract_strided_slice %43 {offsets = [0, 128], sizes = [2, 64], strides = [1, 1]} : vector<2x256xf32> to vector<2x64xf32>
    %57 = math.tanh %56 : vector<2x64xf32>
    %58 = vector.extract_strided_slice %43 {offsets = [0, 192], sizes = [2, 64], strides = [1, 1]} : vector<2x256xf32> to vector<2x64xf32>
    %59 = arith.negf %58 : vector<2x64xf32>
    %60 = math.exp %59 : vector<2x64xf32>
    %cst_21 = arith.constant 1.000000e+00 : f32
    %61 = vector.broadcast %cst_21 : f32 to vector<2x64xf32>
    %62 = arith.addf %61, %60 : vector<2x64xf32>
    %63 = arith.divf %61, %62 : vector<2x64xf32>
    %64 = arith.mulf %55, %7 : vector<2x64xf32>
    %65 = arith.mulf %49, %57 : vector<2x64xf32>
    %66 = arith.addf %64, %65 : vector<2x64xf32>
    %67 = math.tanh %66 : vector<2x64xf32>
    %68 = arith.mulf %63, %67 : vector<2x64xf32>
    %69 = arith.addf %8, %68 : vector<2x64xf32>
    %c1 = arith.constant 1 : index
    %c0_22 = arith.constant 0 : index
    %c0_23 = arith.constant 0 : index
    %70 = vector.load %arg0[%c1, %c0_22, %c0_23] : memref<4x2x128xf32, #tpu.memory_space<vmem>>, vector<1x2x128xf32>
    %71 = vector.shape_cast %70 : vector<1x2x128xf32> to vector<2x128xf32>
    %72 = tpu.concatenate %71, %39 in 1 : vector<2x128xf32>, vector<2x64xf32> -> vector<2x192xf32>
    %cst_24 = arith.constant dense<0.000000e+00> : vector<2x256xf32>
    %73 = tpu.matmul %72, %0, %cst_24 {dimension_numbers = #tpu.dot_dimension_numbers<[1], [0], [0], [1], [0, 0, 1, 1], [], []>} : vector<2x192xf32>, vector<192x256xf32>, vector<2x256xf32> -> vector<2x256xf32>
    %74 = vector.broadcast %1 : vector<1x256xf32> to vector<2x256xf32>
    %75 = arith.addf %73, %74 : vector<2x256xf32>
    %76 = vector.extract_strided_slice %75 {offsets = [0, 0], sizes = [2, 64], strides = [1, 1]} : vector<2x256xf32> to vector<2x64xf32>
    %77 = arith.negf %76 : vector<2x64xf32>
    %78 = math.exp %77 : vector<2x64xf32>
    %cst_25 = arith.constant 1.000000e+00 : f32
    %79 = vector.broadcast %cst_25 : f32 to vector<2x64xf32>
    %80 = arith.addf %79, %78 : vector<2x64xf32>
    %81 = arith.divf %79, %80 : vector<2x64xf32>
    %82 = vector.extract_strided_slice %75 {offsets = [0, 64], sizes = [2, 64], strides = [1, 1]} : vector<2x256xf32> to vector<2x64xf32>
    %83 = arith.negf %82 : vector<2x64xf32>
    %84 = math.exp %83 : vector<2x64xf32>
    %cst_26 = arith.constant 1.000000e+00 : f32
    %85 = vector.broadcast %cst_26 : f32 to vector<2x64xf32>
    %86 = arith.addf %85, %84 : vector<2x64xf32>
    %87 = arith.divf %85, %86 : vector<2x64xf32>
    %88 = vector.extract_strided_slice %75 {offsets = [0, 128], sizes = [2, 64], strides = [1, 1]} : vector<2x256xf32> to vector<2x64xf32>
    %89 = math.tanh %88 : vector<2x64xf32>
    %90 = vector.extract_strided_slice %75 {offsets = [0, 192], sizes = [2, 64], strides = [1, 1]} : vector<2x256xf32> to vector<2x64xf32>
    %91 = arith.negf %90 : vector<2x64xf32>
    %92 = math.exp %91 : vector<2x64xf32>
    %cst_27 = arith.constant 1.000000e+00 : f32
    %93 = vector.broadcast %cst_27 : f32 to vector<2x64xf32>
    %94 = arith.addf %93, %92 : vector<2x64xf32>
    %95 = arith.divf %93, %94 : vector<2x64xf32>
    %96 = arith.mulf %87, %37 : vector<2x64xf32>
    %97 = arith.mulf %81, %89 : vector<2x64xf32>
    %98 = arith.addf %96, %97 : vector<2x64xf32>
    %99 = math.tanh %98 : vector<2x64xf32>
    %100 = arith.mulf %95, %99 : vector<2x64xf32>
    %101 = tpu.concatenate %100, %68 in 1 : vector<2x64xf32>, vector<2x64xf32> -> vector<2x128xf32>
    %cst_28 = arith.constant dense<0.000000e+00> : vector<2x256xf32>
    %102 = tpu.matmul %101, %2, %cst_28 {dimension_numbers = #tpu.dot_dimension_numbers<[1], [0], [0], [1], [0, 0, 1, 1], [], []>} : vector<2x128xf32>, vector<128x256xf32>, vector<2x256xf32> -> vector<2x256xf32>
    %103 = vector.broadcast %3 : vector<1x256xf32> to vector<2x256xf32>
    %104 = arith.addf %102, %103 : vector<2x256xf32>
    %105 = vector.extract_strided_slice %104 {offsets = [0, 0], sizes = [2, 64], strides = [1, 1]} : vector<2x256xf32> to vector<2x64xf32>
    %106 = arith.negf %105 : vector<2x64xf32>
    %107 = math.exp %106 : vector<2x64xf32>
    %cst_29 = arith.constant 1.000000e+00 : f32
    %108 = vector.broadcast %cst_29 : f32 to vector<2x64xf32>
    %109 = arith.addf %108, %107 : vector<2x64xf32>
    %110 = arith.divf %108, %109 : vector<2x64xf32>
    %111 = vector.extract_strided_slice %104 {offsets = [0, 64], sizes = [2, 64], strides = [1, 1]} : vector<2x256xf32> to vector<2x64xf32>
    %112 = arith.negf %111 : vector<2x64xf32>
    %113 = math.exp %112 : vector<2x64xf32>
    %cst_30 = arith.constant 1.000000e+00 : f32
    %114 = vector.broadcast %cst_30 : f32 to vector<2x64xf32>
    %115 = arith.addf %114, %113 : vector<2x64xf32>
    %116 = arith.divf %114, %115 : vector<2x64xf32>
    %117 = vector.extract_strided_slice %104 {offsets = [0, 128], sizes = [2, 64], strides = [1, 1]} : vector<2x256xf32> to vector<2x64xf32>
    %118 = math.tanh %117 : vector<2x64xf32>
    %119 = vector.extract_strided_slice %104 {offsets = [0, 192], sizes = [2, 64], strides = [1, 1]} : vector<2x256xf32> to vector<2x64xf32>
    %120 = arith.negf %119 : vector<2x64xf32>
    %121 = math.exp %120 : vector<2x64xf32>
    %cst_31 = arith.constant 1.000000e+00 : f32
    %122 = vector.broadcast %cst_31 : f32 to vector<2x64xf32>
    %123 = arith.addf %122, %121 : vector<2x64xf32>
    %124 = arith.divf %122, %123 : vector<2x64xf32>
    %125 = arith.mulf %116, %66 : vector<2x64xf32>
    %126 = arith.mulf %110, %118 : vector<2x64xf32>
    %127 = arith.addf %125, %126 : vector<2x64xf32>
    %128 = math.tanh %127 : vector<2x64xf32>
    %129 = arith.mulf %124, %128 : vector<2x64xf32>
    %130 = arith.addf %69, %129 : vector<2x64xf32>
    %c2 = arith.constant 2 : index
    %c0_32 = arith.constant 0 : index
    %c0_33 = arith.constant 0 : index
    %131 = vector.load %arg0[%c2, %c0_32, %c0_33] : memref<4x2x128xf32, #tpu.memory_space<vmem>>, vector<1x2x128xf32>
    %132 = vector.shape_cast %131 : vector<1x2x128xf32> to vector<2x128xf32>
    %133 = tpu.concatenate %132, %100 in 1 : vector<2x128xf32>, vector<2x64xf32> -> vector<2x192xf32>
    %cst_34 = arith.constant dense<0.000000e+00> : vector<2x256xf32>
    %134 = tpu.matmul %133, %0, %cst_34 {dimension_numbers = #tpu.dot_dimension_numbers<[1], [0], [0], [1], [0, 0, 1, 1], [], []>} : vector<2x192xf32>, vector<192x256xf32>, vector<2x256xf32> -> vector<2x256xf32>
    %135 = vector.broadcast %1 : vector<1x256xf32> to vector<2x256xf32>
    %136 = arith.addf %134, %135 : vector<2x256xf32>
    %137 = vector.extract_strided_slice %136 {offsets = [0, 0], sizes = [2, 64], strides = [1, 1]} : vector<2x256xf32> to vector<2x64xf32>
    %138 = arith.negf %137 : vector<2x64xf32>
    %139 = math.exp %138 : vector<2x64xf32>
    %cst_35 = arith.constant 1.000000e+00 : f32
    %140 = vector.broadcast %cst_35 : f32 to vector<2x64xf32>
    %141 = arith.addf %140, %139 : vector<2x64xf32>
    %142 = arith.divf %140, %141 : vector<2x64xf32>
    %143 = vector.extract_strided_slice %136 {offsets = [0, 64], sizes = [2, 64], strides = [1, 1]} : vector<2x256xf32> to vector<2x64xf32>
    %144 = arith.negf %143 : vector<2x64xf32>
    %145 = math.exp %144 : vector<2x64xf32>
    %cst_36 = arith.constant 1.000000e+00 : f32
    %146 = vector.broadcast %cst_36 : f32 to vector<2x64xf32>
    %147 = arith.addf %146, %145 : vector<2x64xf32>
    %148 = arith.divf %146, %147 : vector<2x64xf32>
    %149 = vector.extract_strided_slice %136 {offsets = [0, 128], sizes = [2, 64], strides = [1, 1]} : vector<2x256xf32> to vector<2x64xf32>
    %150 = math.tanh %149 : vector<2x64xf32>
    %151 = vector.extract_strided_slice %136 {offsets = [0, 192], sizes = [2, 64], strides = [1, 1]} : vector<2x256xf32> to vector<2x64xf32>
    %152 = arith.negf %151 : vector<2x64xf32>
    %153 = math.exp %152 : vector<2x64xf32>
    %cst_37 = arith.constant 1.000000e+00 : f32
    %154 = vector.broadcast %cst_37 : f32 to vector<2x64xf32>
    %155 = arith.addf %154, %153 : vector<2x64xf32>
    %156 = arith.divf %154, %155 : vector<2x64xf32>
    %157 = arith.mulf %148, %98 : vector<2x64xf32>
    %158 = arith.mulf %142, %150 : vector<2x64xf32>
    %159 = arith.addf %157, %158 : vector<2x64xf32>
    %160 = math.tanh %159 : vector<2x64xf32>
    %161 = arith.mulf %156, %160 : vector<2x64xf32>
    %162 = tpu.concatenate %161, %129 in 1 : vector<2x64xf32>, vector<2x64xf32> -> vector<2x128xf32>
    %cst_38 = arith.constant dense<0.000000e+00> : vector<2x256xf32>
    %163 = tpu.matmul %162, %2, %cst_38 {dimension_numbers = #tpu.dot_dimension_numbers<[1], [0], [0], [1], [0, 0, 1, 1], [], []>} : vector<2x128xf32>, vector<128x256xf32>, vector<2x256xf32> -> vector<2x256xf32>
    %164 = vector.broadcast %3 : vector<1x256xf32> to vector<2x256xf32>
    %165 = arith.addf %163, %164 : vector<2x256xf32>
    %166 = vector.extract_strided_slice %165 {offsets = [0, 0], sizes = [2, 64], strides = [1, 1]} : vector<2x256xf32> to vector<2x64xf32>
    %167 = arith.negf %166 : vector<2x64xf32>
    %168 = math.exp %167 : vector<2x64xf32>
    %cst_39 = arith.constant 1.000000e+00 : f32
    %169 = vector.broadcast %cst_39 : f32 to vector<2x64xf32>
    %170 = arith.addf %169, %168 : vector<2x64xf32>
    %171 = arith.divf %169, %170 : vector<2x64xf32>
    %172 = vector.extract_strided_slice %165 {offsets = [0, 64], sizes = [2, 64], strides = [1, 1]} : vector<2x256xf32> to vector<2x64xf32>
    %173 = arith.negf %172 : vector<2x64xf32>
    %174 = math.exp %173 : vector<2x64xf32>
    %cst_40 = arith.constant 1.000000e+00 : f32
    %175 = vector.broadcast %cst_40 : f32 to vector<2x64xf32>
    %176 = arith.addf %175, %174 : vector<2x64xf32>
    %177 = arith.divf %175, %176 : vector<2x64xf32>
    %178 = vector.extract_strided_slice %165 {offsets = [0, 128], sizes = [2, 64], strides = [1, 1]} : vector<2x256xf32> to vector<2x64xf32>
    %179 = math.tanh %178 : vector<2x64xf32>
    %180 = vector.extract_strided_slice %165 {offsets = [0, 192], sizes = [2, 64], strides = [1, 1]} : vector<2x256xf32> to vector<2x64xf32>
    %181 = arith.negf %180 : vector<2x64xf32>
    %182 = math.exp %181 : vector<2x64xf32>
    %cst_41 = arith.constant 1.000000e+00 : f32
    %183 = vector.broadcast %cst_41 : f32 to vector<2x64xf32>
    %184 = arith.addf %183, %182 : vector<2x64xf32>
    %185 = arith.divf %183, %184 : vector<2x64xf32>
    %186 = arith.mulf %177, %127 : vector<2x64xf32>
    %187 = arith.mulf %171, %179 : vector<2x64xf32>
    %188 = arith.addf %186, %187 : vector<2x64xf32>
    %189 = math.tanh %188 : vector<2x64xf32>
    %190 = arith.mulf %185, %189 : vector<2x64xf32>
    %191 = arith.addf %130, %190 : vector<2x64xf32>
    %c3 = arith.constant 3 : index
    %c0_42 = arith.constant 0 : index
    %c0_43 = arith.constant 0 : index
    %192 = vector.load %arg0[%c3, %c0_42, %c0_43] : memref<4x2x128xf32, #tpu.memory_space<vmem>>, vector<1x2x128xf32>
    %193 = vector.shape_cast %192 : vector<1x2x128xf32> to vector<2x128xf32>
    %194 = tpu.concatenate %193, %161 in 1 : vector<2x128xf32>, vector<2x64xf32> -> vector<2x192xf32>
    %cst_44 = arith.constant dense<0.000000e+00> : vector<2x256xf32>
    %195 = tpu.matmul %194, %0, %cst_44 {dimension_numbers = #tpu.dot_dimension_numbers<[1], [0], [0], [1], [0, 0, 1, 1], [], []>} : vector<2x192xf32>, vector<192x256xf32>, vector<2x256xf32> -> vector<2x256xf32>
    %196 = vector.broadcast %1 : vector<1x256xf32> to vector<2x256xf32>
    %197 = arith.addf %195, %196 : vector<2x256xf32>
    %198 = vector.extract_strided_slice %197 {offsets = [0, 0], sizes = [2, 64], strides = [1, 1]} : vector<2x256xf32> to vector<2x64xf32>
    %199 = arith.negf %198 : vector<2x64xf32>
    %200 = math.exp %199 : vector<2x64xf32>
    %cst_45 = arith.constant 1.000000e+00 : f32
    %201 = vector.broadcast %cst_45 : f32 to vector<2x64xf32>
    %202 = arith.addf %201, %200 : vector<2x64xf32>
    %203 = arith.divf %201, %202 : vector<2x64xf32>
    %204 = vector.extract_strided_slice %197 {offsets = [0, 64], sizes = [2, 64], strides = [1, 1]} : vector<2x256xf32> to vector<2x64xf32>
    %205 = arith.negf %204 : vector<2x64xf32>
    %206 = math.exp %205 : vector<2x64xf32>
    %cst_46 = arith.constant 1.000000e+00 : f32
    %207 = vector.broadcast %cst_46 : f32 to vector<2x64xf32>
    %208 = arith.addf %207, %206 : vector<2x64xf32>
    %209 = arith.divf %207, %208 : vector<2x64xf32>
    %210 = vector.extract_strided_slice %197 {offsets = [0, 128], sizes = [2, 64], strides = [1, 1]} : vector<2x256xf32> to vector<2x64xf32>
    %211 = math.tanh %210 : vector<2x64xf32>
    %212 = vector.extract_strided_slice %197 {offsets = [0, 192], sizes = [2, 64], strides = [1, 1]} : vector<2x256xf32> to vector<2x64xf32>
    %213 = arith.negf %212 : vector<2x64xf32>
    %214 = math.exp %213 : vector<2x64xf32>
    %cst_47 = arith.constant 1.000000e+00 : f32
    %215 = vector.broadcast %cst_47 : f32 to vector<2x64xf32>
    %216 = arith.addf %215, %214 : vector<2x64xf32>
    %217 = arith.divf %215, %216 : vector<2x64xf32>
    %218 = arith.mulf %209, %159 : vector<2x64xf32>
    %219 = arith.mulf %203, %211 : vector<2x64xf32>
    %220 = arith.addf %218, %219 : vector<2x64xf32>
    %221 = math.tanh %220 : vector<2x64xf32>
    %222 = arith.mulf %217, %221 : vector<2x64xf32>
    %223 = tpu.concatenate %222, %190 in 1 : vector<2x64xf32>, vector<2x64xf32> -> vector<2x128xf32>
    %cst_48 = arith.constant dense<0.000000e+00> : vector<2x256xf32>
    %224 = tpu.matmul %223, %2, %cst_48 {dimension_numbers = #tpu.dot_dimension_numbers<[1], [0], [0], [1], [0, 0, 1, 1], [], []>} : vector<2x128xf32>, vector<128x256xf32>, vector<2x256xf32> -> vector<2x256xf32>
    %225 = vector.broadcast %3 : vector<1x256xf32> to vector<2x256xf32>
    %226 = arith.addf %224, %225 : vector<2x256xf32>
    %227 = vector.extract_strided_slice %226 {offsets = [0, 0], sizes = [2, 64], strides = [1, 1]} : vector<2x256xf32> to vector<2x64xf32>
    %228 = arith.negf %227 : vector<2x64xf32>
    %229 = math.exp %228 : vector<2x64xf32>
    %cst_49 = arith.constant 1.000000e+00 : f32
    %230 = vector.broadcast %cst_49 : f32 to vector<2x64xf32>
    %231 = arith.addf %230, %229 : vector<2x64xf32>
    %232 = arith.divf %230, %231 : vector<2x64xf32>
    %233 = vector.extract_strided_slice %226 {offsets = [0, 64], sizes = [2, 64], strides = [1, 1]} : vector<2x256xf32> to vector<2x64xf32>
    %234 = arith.negf %233 : vector<2x64xf32>
    %235 = math.exp %234 : vector<2x64xf32>
    %cst_50 = arith.constant 1.000000e+00 : f32
    %236 = vector.broadcast %cst_50 : f32 to vector<2x64xf32>
    %237 = arith.addf %236, %235 : vector<2x64xf32>
    %238 = arith.divf %236, %237 : vector<2x64xf32>
    %239 = vector.extract_strided_slice %226 {offsets = [0, 128], sizes = [2, 64], strides = [1, 1]} : vector<2x256xf32> to vector<2x64xf32>
    %240 = math.tanh %239 : vector<2x64xf32>
    %241 = vector.extract_strided_slice %226 {offsets = [0, 192], sizes = [2, 64], strides = [1, 1]} : vector<2x256xf32> to vector<2x64xf32>
    %242 = arith.negf %241 : vector<2x64xf32>
    %243 = math.exp %242 : vector<2x64xf32>
    %cst_51 = arith.constant 1.000000e+00 : f32
    %244 = vector.broadcast %cst_51 : f32 to vector<2x64xf32>
    %245 = arith.addf %244, %243 : vector<2x64xf32>
    %246 = arith.divf %244, %245 : vector<2x64xf32>
    %247 = arith.mulf %238, %188 : vector<2x64xf32>
    %248 = arith.mulf %232, %240 : vector<2x64xf32>
    %249 = arith.addf %247, %248 : vector<2x64xf32>
    %250 = math.tanh %249 : vector<2x64xf32>
    %251 = arith.mulf %246, %250 : vector<2x64xf32>
    %252 = arith.addf %191, %251 : vector<2x64xf32>
    %cst_52 = arith.constant 2.500000e-01 : f32
    %253 = vector.broadcast %cst_52 : f32 to vector<2x64xf32>
    %254 = arith.mulf %252, %253 : vector<2x64xf32>
    %c0_53 = arith.constant 0 : index
    %c0_54 = arith.constant 0 : index
    %255 = vector.load %arg5[%c0_53, %c0_54] : memref<64x32xf32, #tpu.memory_space<vmem>>, vector<64x32xf32>
    %cst_55 = arith.constant dense<0.000000e+00> : vector<2x32xf32>
    %256 = tpu.matmul %254, %255, %cst_55 {dimension_numbers = #tpu.dot_dimension_numbers<[1], [0], [0], [1], [0, 0, 1, 1], [], []>} : vector<2x64xf32>, vector<64x32xf32>, vector<2x32xf32> -> vector<2x32xf32>
    %c0_56 = arith.constant 0 : index
    %c0_57 = arith.constant 0 : index
    %257 = vector.load %arg6[%c0_56, %c0_57] : memref<1x32xf32, #tpu.memory_space<vmem>>, vector<1x32xf32>
    %258 = vector.broadcast %257 : vector<1x32xf32> to vector<2x32xf32>
    %259 = arith.addf %256, %258 : vector<2x32xf32>
    %c0_58 = arith.constant 0 : index
    %c0_59 = arith.constant 0 : index
    %260 = vector.load %arg7[%c0_58, %c0_59] : memref<32x2xf32, #tpu.memory_space<vmem>>, vector<32x2xf32>
    %cst_60 = arith.constant dense<0.000000e+00> : vector<2x2xf32>
    %261 = tpu.matmul %259, %260, %cst_60 {dimension_numbers = #tpu.dot_dimension_numbers<[1], [0], [0], [1], [0, 0, 1, 1], [], []>} : vector<2x32xf32>, vector<32x2xf32>, vector<2x2xf32> -> vector<2x2xf32>
    %c0_61 = arith.constant 0 : index
    %c0_62 = arith.constant 0 : index
    %262 = vector.load %arg8[%c0_61, %c0_62] : memref<1x2xf32, #tpu.memory_space<vmem>>, vector<1x2xf32>
    %263 = vector.broadcast %262 : vector<1x2xf32> to vector<2x2xf32>
    %264 = arith.addf %261, %263 : vector<2x2xf32>
    %c0_63 = arith.constant 0 : index
    %c0_64 = arith.constant 0 : index
    %265 = vector.load %arg9[%c0_63, %c0_64] : memref<2x2xf32, #tpu.memory_space<vmem>>, vector<2x2xf32>
    tpu.vector_store %arg9[%c0_63, %c0_64], %264 {strides = array<i32>} : memref<2x2xf32, #tpu.memory_space<vmem>>, vector<2x2xf32>,
    return
  }
}

</mosaic_0001>

<llo_original>
// kernel: mfcc_crnn_forward.6
$region0: #{mfcc_crnn_forward.6}
  #allocation0 [shape = 'u32[]', space=smem, size = 0x4, offset = 0x4, fixed_abs, tag = 'smem constant byte address 0x4 - core index']
  #allocation1 [shape = 'u32[144,128]{1,0:T(1,128)}', space=vmem, size = 0x12000, scoped, tag = 'internal scratch']
  %s0 = inlined_call_operand.vmem [shape: f32[2,7424], index: 0, kind: input, shape index: {}]
  %s1 = inlined_call_operand.hbm [shape: f32[256,256], index: 1, kind: input, shape index: {}]
  %s2 = inlined_call_operand.hbm [shape: f32[1,256], index: 2, kind: input, shape index: {}]
  %s3 = inlined_call_operand.hbm [shape: f32[1,256], index: 3, kind: input, shape index: {}]
  %s4 = inlined_call_operand.vmem [shape: f32[2,7424], index: 4, kind: output, shape index: {}]
  %s5 = sld [smem:[#allocation0]]
  $region38: #{mfcc_crnn_forward.6} parent=0
    _
  %s7 = ssub.s32 1, %s5
  %s8 = scalar_select 0, %s7, %s5
  $region1: #{mfcc_crnn_forward.6} parent=0
    #allocation2 [shape = 'u8[262144]{0}', space=vmem, size = 0x40000, scoped, tag = 'input window, operand 1, single buffered']
    #allocation3 [shape = 's32[1]{0}', space=sflag, size = 0x4, scoped, tag = 'scoped memory for mfcc_crnn_forward.6']
    #allocation4 [shape = 'u8[1024]{0}', space=vmem, size = 0x400, scoped, tag = 'input window, operand 2, single buffered']
    #allocation5 [shape = 's32[1]{0}', space=sflag, size = 0x4, scoped, tag = 'scoped memory for mfcc_crnn_forward.6']
    #allocation6 [shape = 'u8[1024]{0}', space=vmem, size = 0x400, scoped, tag = 'input window, operand 3, single buffered']
    %9 = vsyncpa [#allocation3], 0
    %10 = vsyncpa [#allocation5], 0
    // Predicated region
    $region2: #{mfcc_crnn_forward.6} parent=1 // pred_check
      _
    $region3: #{mfcc_crnn_forward.6} parent=1 // pred_check_branch
      %12 = sbr.rel (0) target = $region5
    $region4: #{mfcc_crnn_forward.6} parent=1 // pred_region
      _
    $region5: #{mfcc_crnn_forward.6} parent=1 // pred_fallthru
      _
    // Predicated region
    $region6: #{mfcc_crnn_forward.6} parent=1 // pred_check
      _
    $region7: #{mfcc_crnn_forward.6} parent=1 // pred_check_branch
      %14 = sbr.rel (0) target = $region9
    $region8: #{mfcc_crnn_forward.6} parent=1 // pred_region
      %s16 = ssub.s32 8192, 8192
      %17 = vsyncadd [#allocation3], %s16
      %s18 = sshll.u32 [#allocation2], 4
      %s19 = int_to_ptr.vmem [resolvable:$true] %s18
      %24 = dma.hbm_to_vmem [thread:$0]  %s1, 8192, %s19, [#allocation3], 256, 256, 16
    $region9: #{mfcc_crnn_forward.6} parent=1 // pred_fallthru
      _
    // Predicated region
    $region10: #{mfcc_crnn_forward.6} parent=1 // pred_check
      _
    $region11: #{mfcc_crnn_forward.6} parent=1 // pred_check_branch
      %26 = sbr.rel (0) target = $region13
    $region12: #{mfcc_crnn_forward.6} parent=1 // pred_region
      %s28 = ssub.s32 32, 32
      %29 = vsyncadd [#allocation5], %s28
      %s31 = sshll.u32 [#allocation4], 4
      %s32 = int_to_ptr.vmem [resolvable:$true] %s31
      %34 = dma.hbm_to_vmem [thread:$0]  %s2, 32, %s32, [#allocation5]
    $region13: #{mfcc_crnn_forward.6} parent=1 // pred_fallthru
      _
    // Predicated region
    $region14: #{mfcc_crnn_forward.6} parent=1 // pred_check
      _
    $region15: #{mfcc_crnn_forward.6} parent=1 // pred_check_branch
      %36 = sbr.rel (0) target = $region17
    $region16: #{mfcc_crnn_forward.6} parent=1 // pred_region
      %s38 = ssub.s32 32, 32
      %39 = vsyncadd [#allocation5], %s38
      %s41 = sshll.u32 [#allocation6], 4
      %s42 = int_to_ptr.vmem [resolvable:$true] %s41
      %44 = dma.hbm_to_vmem [thread:$0]  %s3, 32, %s42, [#allocation5]
    $region17: #{mfcc_crnn_forward.6} parent=1 // pred_fallthru
      _
    // Predicated region
    $region18: #{mfcc_crnn_forward.6} parent=1 // pred_check
      _
    $region19: #{mfcc_crnn_forward.6} parent=1 // pred_check_branch
      %46 = sbr.rel (0) target = $region21
    $region20: #{mfcc_crnn_forward.6} parent=1 // pred_region
      %47 = dma.done [#allocation3], 8192
    $region21: #{mfcc_crnn_forward.6} parent=1 // pred_fallthru
      _
    // Predicated region
    $region22: #{mfcc_crnn_forward.6} parent=1 // pred_check
      _
    $region23: #{mfcc_crnn_forward.6} parent=1 // pred_check_branch
      %49 = sbr.rel (0) target = $region25
    $region24: #{mfcc_crnn_forward.6} parent=1 // pred_region
      %50 = dma.done [#allocation5], 32
    $region25: #{mfcc_crnn_forward.6} parent=1 // pred_fallthru
      _
    // Predicated region
    $region26: #{mfcc_crnn_forward.6} parent=1 // pred_check
      _
    $region27: #{mfcc_crnn_forward.6} parent=1 // pred_check_branch
      %52 = sbr.rel (0) target = $region29
    $region28: #{mfcc_crnn_forward.6} parent=1 // pred_region
      %53 = dma.done [#allocation5], 32
    $region29: #{mfcc_crnn_forward.6} parent=1 // pred_fallthru
      _
    %v54 = vld [vmem:[#allocation2] sm:$0xff]
    %v55 = vld [vmem:[#allocation2 + $0x8] sm:$0xff]
    %v56 = vld [vmem:[#allocation2 + $0x10] sm:$0xff]
    %v57 = vld [vmem:[#allocation2 + $0x18] sm:$0xff]
    %v58 = vld [vmem:[#allocation2 + $0x20] sm:$0xff]
    %v59 = vld [vmem:[#allocation2 + $0x28] sm:$0xff]
    %v60 = vld [vmem:[#allocation2 + $0x30] sm:$0xff]
    %v61 = vld [vmem:[#allocation2 + $0x38] sm:$0xff]
    %v62 = vld [vmem:[#allocation2 + $0x40] sm:$0xff]
    %v63 = vld [vmem:[#allocation2 + $0x48] sm:$0xff]
    %v64 = vld [vmem:[#allocation2 + $0x50] sm:$0xff]
    %v65 = vld [vmem:[#allocation2 + $0x58] sm:$0xff]
    %v66 = vld [vmem:[#allocation2 + $0x60] sm:$0xff]
    %v67 = vld [vmem:[#allocation2 + $0x68] sm:$0xff]
    %v68 = vld [vmem:[#allocation2 + $0x70] sm:$0xff]
    %v69 = vld [vmem:[#allocation2 + $0x78] sm:$0xff]
    %v70 = vld [vmem:[#allocation2 + $0x80] sm:$0xff]
    %v71 = vld [vmem:[#allocation2 + $0x88] sm:$0xff]
    %v72 = vld [vmem:[#allocation2 + $0x90] sm:$0xff]
    %v73 = vld [vmem:[#allocation2 + $0x98] sm:$0xff]
    %v74 = vld [vmem:[#allocation2 + $0xa0] sm:$0xff]
    %v75 = vld [vmem:[#allocation2 + $0xa8] sm:$0xff]
    %v76 = vld [vmem:[#allocation2 + $0xb0] sm:$0xff]
    %v77 = vld [vmem:[#allocation2 + $0xb8] sm:$0xff]
    %v78 = vld [vmem:[#allocation2 + $0xc0] sm:$0xff]
    %v79 = vld [vmem:[#allocation2 + $0xc8] sm:$0xff]
    %v80 = vld [vmem:[#allocation2 + $0xd0] sm:$0xff]
    %v81 = vld [vmem:[#allocation2 + $0xd8] sm:$0xff]
    %v82 = vld [vmem:[#allocation2 + $0xe0] sm:$0xff]
    %v83 = vld [vmem:[#allocation2 + $0xe8] sm:$0xff]
    %v84 = vld [vmem:[#allocation2 + $0xf0] sm:$0xff]
    %v85 = vld [vmem:[#allocation2 + $0xf8] sm:$0xff]
    %v86 = vld [vmem:[#allocation2 + $0x100] sm:$0xff]
    %v87 = vld [vmem:[#allocation2 + $0x108] sm:$0xff]
    %v88 = vld [vmem:[#allocation2 + $0x110] sm:$0xff]
    %v89 = vld [vmem:[#allocation2 + $0x118] sm:$0xff]
    %v90 = vld [vmem:[#allocation2 + $0x120] sm:$0xff]
    %v91 = vld [vmem:[#allocation2 + $0x128] sm:$0xff]
    %v92 = vld [vmem:[#allocation2 + $0x130] sm:$0xff]
    %v93 = vld [vmem:[#allocation2 + $0x138] sm:$0xff]
    %v94 = vld [vmem:[#allocation2 + $0x140] sm:$0xff]
    %v95 = vld [vmem:[#allocation2 + $0x148] sm:$0xff]
    %v96 = vld [vmem:[#allocation2 + $0x150] sm:$0xff]
    %v97 = vld [vmem:[#allocation2 + $0x158] sm:$0xff]
    %v98 = vld [vmem:[#allocation2 + $0x160] sm:$0xff]
    %v99 = vld [vmem:[#allocation2 + $0x168] sm:$0xff]
    %v100 = vld [vmem:[#allocation2 + $0x170] sm:$0xff]
    %v101 = vld [vmem:[#allocation2 + $0x178] sm:$0xff]
    %v102 = vld [vmem:[#allocation2 + $0x180] sm:$0xff]
    %v103 = vld [vmem:[#allocation2 + $0x188] sm:$0xff]
    %v104 = vld [vmem:[#allocation2 + $0x190] sm:$0xff]
    %v105 = vld [vmem:[#allocation2 + $0x198] sm:$0xff]
    %v106 = vld [vmem:[#allocation2 + $0x1a0] sm:$0xff]
    %v107 = vld [vmem:[#allocation2 + $0x1a8] sm:$0xff]
    %v108 = vld [vmem:[#allocation2 + $0x1b0] sm:$0xff]
    %v109 = vld [vmem:[#allocation2 + $0x1b8] sm:$0xff]
    %v110 = vld [vmem:[#allocation2 + $0x1c0] sm:$0xff]
    %v111 = vld [vmem:[#allocation2 + $0x1c8] sm:$0xff]
    %v112 = vld [vmem:[#allocation2 + $0x1d0] sm:$0xff]
    %v113 = vld [vmem:[#allocation2 + $0x1d8] sm:$0xff]
    %v114 = vld [vmem:[#allocation2 + $0x1e0] sm:$0xff]
    %v115 = vld [vmem:[#allocation2 + $0x1e8] sm:$0xff]
    %v116 = vld [vmem:[#allocation2 + $0x1f0] sm:$0xff]
    %v117 = vld [vmem:[#allocation2 + $0x1f8] sm:$0xff]
    %v118 = vld [vmem:[#allocation4] sm:$0x3]
    %v119 = vld [vmem:[#allocation6] sm:$0x3]
    %v120 = vld [vmem:[%s0] sm:$0xf]
    %v122 = vlaneseq
    %v123 = vshrl.u32 %v122, 7
    %v124 = vsub.s32 0, %v123
    %v125 = vrot.slane %v118, %v124
    %v126 = vlaneseq
    %v127 = vshrl.u32 %v126, 7
    %v128 = vsub.s32 1, %v127
    %v129 = vrot.slane %v118, %v128
    %v132 = vmul.f32 %v125, 0.0
    %v133 = vmul.f32 %v129, 0.0
    %v136 = vunpack.c.l.s4 1983009808
    %v137 = vunpack.c.0.s8 %v136
    %v138 = vlaneseq
    %v139 = vshrl.u32 %v138, 7
    %v140 = vsub.s32 %v137, %v139
    %v141 = vrot.slane %v120, %v140
    %v142 = vcombine.high %v141, %v141
    %145 = vmatprep.subr.mxu0 %v55
    %146 = vmatpush1.msra.mxu0 %v54
    %147 = vmatprep.subr.mxu0 %v57
    %148 = vmatpush1.msra.mxu0 %v56
    %149 = vmatprep.subr.mxu0 %v59
    %150 = vmatpush1.msra.mxu0 %v58
    %151 = vmatprep.subr.mxu0 %v61
    %152 = vmatpush1.msra.mxu0 %v60
    %153 = vmatprep.subr.mxu0 %v63
    %154 = vmatpush1.msra.mxu0 %v62
    %155 = vmatprep.subr.mxu0 %v65
    %156 = vmatpush1.msra.mxu0 %v64
    %157 = vmatprep.subr.mxu0 %v67
    %158 = vmatpush1.msra.mxu0 %v66
    %159 = vmatprep.subr.mxu0 %v69
    %160 = vmatpush1.msra.mxu0 %v68
    %161 = vmatprep.subr.mxu0 %v71
    %162 = vmatpush1.msra.mxu0 %v70
    %163 = vmatprep.subr.mxu0 %v73
    %164 = vmatpush1.msra.mxu0 %v72
    %165 = vmatprep.subr.mxu0 %v75
    %166 = vmatpush1.msra.mxu0 %v74
    %167 = vmatprep.subr.mxu0 %v77
    %168 = vmatpush1.msra.mxu0 %v76
    %169 = vmatprep.subr.mxu0 %v79
    %170 = vmatpush1.msra.mxu0 %v78
    %171 = vmatprep.subr.mxu0 %v81
    %172 = vmatpush1.msra.mxu0 %v80
    %173 = vmatprep.subr.mxu0 %v83
    %174 = vmatpush1.msra.mxu0 %v82
    %175 = vmatprep.subr.mxu0 %v85
    %176 = vmatpush1.msra.mxu0 %v84
    %177 = vmatprep.subr.mxu0 %v87
    %178 = vmatpush1.msra.mxu0 %v86
    %179 = vmatprep.subr.mxu0 %v89
    %180 = vmatpush1.msra.mxu0 %v88
    %181 = vmatprep.subr.mxu0 %v91
    %182 = vmatpush1.msra.mxu0 %v90
    %183 = vmatprep.subr.mxu0 %v93
    %184 = vmatpush1.msra.mxu0 %v92
    %185 = vmatprep.subr.mxu0 %v95
    %186 = vmatpush1.msra.mxu0 %v94
    %187 = vmatprep.subr.mxu0 %v97
    %188 = vmatpush1.msra.mxu0 %v96
    %189 = vmatprep.subr.mxu0 %v99
    %190 = vmatpush1.msra.mxu0 %v98
    %191 = vmatprep.subr.mxu0 %v101
    %192 = vmatpush1.msra.mxu0 %v100
    %193 = vmatprep.subr.mxu0 %v103
    %194 = vmatpush1.msra.mxu0 %v102
    %195 = vmatprep.subr.mxu0 %v105
    %196 = vmatpush1.msra.mxu0 %v104
    %197 = vmatprep.subr.mxu0 %v107
    %198 = vmatpush1.msra.mxu0 %v106
    %199 = vmatprep.subr.mxu0 %v109
    %200 = vmatpush1.msra.mxu0 %v108
    %201 = vmatprep.subr.mxu0 %v111
    %202 = vmatpush1.msra.mxu0 %v110
    %203 = vmatprep.subr.mxu0 %v113
    %204 = vmatpush1.msra.mxu0 %v112
    %205 = vmatprep.subr.mxu0 %v115
    %206 = vmatpush1.msra.mxu0 %v114
    %207 = vmatprep.subr.mxu0 %v117
    %208 = vmatpush1.msra.mxu0 %v116
    %209 = vmatprep.mubr.f32.mxu0 %v142
    %210 = vmatmul.mubr.f32.gmra.mrb[0].mxu0 %v141
    %v211 = vpop.f32.mrb[0].mxu0
    %v212 = vadd.f32 %v132, %v211
    %v213 = vpop.f32.mrb[0].mxu0
    %v214 = vadd.f32 %v133, %v213
    %215 = vdwg.mxu0
    %v217 = vlaneseq
    %v218 = vshrl.u32 %v217, 7
    %v219 = vsub.s32 0, %v218
    %v220 = vrot.slane %v119, %v219
    %v221 = vlaneseq
    %v222 = vshrl.u32 %v221, 7
    %v223 = vsub.s32 1, %v222
    %v224 = vrot.slane %v119, %v223
    %v227 = vmul.f32 %v220, 0.0
    %v228 = vmul.f32 %v224, 0.0
    %v229 = vadd.f32 %v212, %v227
    %v230 = vadd.f32 %v214, %v228
    %v231 = vmax.f32 %v229, -1.0
    %v232 = vmax.f32 %v230, -1.0
    %v233 = vmin.f32 %v231, 1.0
    %v234 = vmin.f32 %v232, 1.0
    %v237 = vcombine.low %v233, %v234
    %v239 = vunpack.c.l.s4 1983009808
    %v240 = vunpack.c.0.s8 %v239
    %v241 = vlaneseq
    %v242 = vshrl.u32 %v241, 7
    %v243 = vsub.s32 %v240, %v242
    %v244 = vrot.slane %v237, %v243
    %246 = vst [vmem:[%s4] sm:$0xf] %v244
    %v247 = vld [vmem:[%s0 + $0x4] sm:$0xf]
    %249 = vset.pattern.permute.xlu0 127
    %250 = vperm.xlu0 %249, %v230
    %v251 = vpop.permute.xlu0 %250
    %v253 = vmul.f32 %v251, %v125
    %v254 = vmul.f32 %v251, %v129
    %v257 = vunpack.c.l.s4 1983009808
    %v258 = vunpack.c.0.s8 %v257
    %v259 = vlaneseq
    %v260 = vshrl.u32 %v259, 7
    %v261 = vsub.s32 %v258, %v260
    %v262 = vrot.slane %v247, %v261
    %v263 = vcombine.high %v262, %v262
    %266 = vmatprep.subr.mxu0 %v55
    %267 = vmatpush1.msra.mxu0 %v54
    %268 = vmatprep.subr.mxu0 %v57
    %269 = vmatpush1.msra.mxu0 %v56
    %270 = vmatprep.subr.mxu0 %v59
    %271 = vmatpush1.msra.mxu0 %v58
    %272 = vmatprep.subr.mxu0 %v61
    %273 = vmatpush1.msra.mxu0 %v60
    %274 = vmatprep.subr.mxu0 %v63
    %275 = vmatpush1.msra.mxu0 %v62
    %276 = vmatprep.subr.mxu0 %v65
    %277 = vmatpush1.msra.mxu0 %v64
    %278 = vmatprep.subr.mxu0 %v67
    %279 = vmatpush1.msra.mxu0 %v66
    %280 = vmatprep.subr.mxu0 %v69
    %281 = vmatpush1.msra.mxu0 %v68
    %282 = vmatprep.subr.mxu0 %v71
    %283 = vmatpush1.msra.mxu0 %v70
    %284 = vmatprep.subr.mxu0 %v73
    %285 = vmatpush1.msra.mxu0 %v72
    %286 = vmatprep.subr.mxu0 %v75
    %287 = vmatpush1.msra.mxu0 %v74
    %288 = vmatprep.subr.mxu0 %v77
    %289 = vmatpush1.msra.mxu0 %v76
    %290 = vmatprep.subr.mxu0 %v79
    %291 = vmatpush1.msra.mxu0 %v78
    %292 = vmatprep.subr.mxu0 %v81
    %293 = vmatpush1.msra.mxu0 %v80
    %294 = vmatprep.subr.mxu0 %v83
    %295 = vmatpush1.msra.mxu0 %v82
    %296 = vmatprep.subr.mxu0 %v85
    %297 = vmatpush1.msra.mxu0 %v84
    %298 = vmatprep.subr.mxu0 %v87
    %299 = vmatpush1.msra.mxu0 %v86
    %300 = vmatprep.subr.mxu0 %v89
    %301 = vmatpush1.msra.mxu0 %v88
    %302 = vmatprep.subr.mxu0 %v91
    %303 = vmatpush1.msra.mxu0 %v90
    %304 = vmatprep.subr.mxu0 %v93
    %305 = vmatpush1.msra.mxu0 %v92
    %306 = vmatprep.subr.mxu0 %v95
    %307 = vmatpush1.msra.mxu0 %v94
    %308 = vmatprep.subr.mxu0 %v97
    %309 = vmatpush1.msra.mxu0 %v96
    %310 = vmatprep.subr.mxu0 %v99
    %311 = vmatpush1.msra.mxu0 %v98
    %312 = vmatprep.subr.mxu0 %v101
    %313 = vmatpush1.msra.mxu0 %v100
    %314 = vmatprep.subr.mxu0 %v103
    %315 = vmatpush1.msra.mxu0 %v102
    %316 = vmatprep.subr.mxu0 %v105
    %317 = vmatpush1.msra.mxu0 %v104
    %318 = vmatprep.subr.mxu0 %v107
    %319 = vmatpush1.msra.mxu0 %v106
    %320 = vmatprep.subr.mxu0 %v109
    %321 = vmatpush1.msra.mxu0 %v108
    %322 = vmatprep.subr.mxu0 %v111
    %323 = vmatpush1.msra.mxu0 %v110
    %324 = vmatprep.subr.mxu0 %v113
    %325 = vmatpush1.msra.mxu0 %v112
    %326 = vmatprep.subr.mxu0 %v115
    %327 = vmatpush1.msra.mxu0 %v114
    %328 = vmatprep.subr.mxu0 %v117
    %329 = vmatpush1.msra.mxu0 %v116
    %330 = vmatprep.mubr.f32.mxu0 %v263
    %331 = vmatmul.mubr.f32.gmra.mrb[0].mxu0 %v262
    %v332 = vpop.f32.mrb[0].mxu0
    %v333 = vadd.f32 %v253, %v332
    %v334 = vpop.f32.mrb[0].mxu0
    %v335 = vadd.f32 %v254, %v334
    %336 = vdwg.mxu0
    %337 = vset.pattern.permute.xlu0 126
    %338 = vperm.xlu0 %337, %v230
    %v339 = vpop.permute.xlu0 %338
    %v341 = vmul.f32 %v339, %v220
    %v342 = vmul.f32 %v339, %v224
    %v343 = vadd.f32 %v333, %v341
    %v344 = vadd.f32 %v335, %v342
    %v345 = vmax.f32 %v343, -1.0
    %v346 = vmax.f32 %v344, -1.0
    %v347 = vmin.f32 %v345, 1.0
    %v348 = vmin.f32 %v346, 1.0
    %v351 = vcombine.low %v347, %v348
    %v353 = vunpack.c.l.s4 1983009808
    %v354 = vunpack.c.0.s8 %v353
    %v355 = vlaneseq
    %v356 = vshrl.u32 %v355, 7
    %v357 = vsub.s32 %v354, %v356
    %v358 = vrot.slane %v351, %v357
    %360 = vst [vmem:[%s4 + $0x4] sm:$0xf] %v358
    %v361 = vld [vmem:[%s0 + $0x8] sm:$0xf]
    %363 = vset.pattern.permute.xlu0 127
    %364 = vperm.xlu0 %363, %v344
    %v365 = vpop.permute.xlu0 %364
    %v367 = vmul.f32 %v365, %v125
    %v368 = vmul.f32 %v365, %v129
    %v371 = vunpack.c.l.s4 1983009808
    %v372 = vunpack.c.0.s8 %v371
    %v373 = vlaneseq
    %v374 = vshrl.u32 %v373, 7
    %v375 = vsub.s32 %v372, %v374
    %v376 = vrot.slane %v361, %v375
    %v377 = vcombine.high %v376, %v376
    %380 = vmatprep.subr.mxu0 %v55
    %381 = vmatpush1.msra.mxu0 %v54
    %382 = vmatprep.subr.mxu0 %v57
    %383 = vmatpush1.msra.mxu0 %v56
    %384 = vmatprep.subr.mxu0 %v59
    %385 = vmatpush1.msra.mxu0 %v58
    %386 = vmatprep.subr.mxu0 %v61
    %387 = vmatpush1.msra.mxu0 %v60
    %388 = vmatprep.subr.mxu0 %v63
    %389 = vmatpush1.msra.mxu0 %v62
    %390 = vmatprep.subr.mxu0 %v65
    %391 = vmatpush1.msra.mxu0 %v64
    %392 = vmatprep.subr.mxu0 %v67
    %393 = vmatpush1.msra.mxu0 %v66
    %394 = vmatprep.subr.mxu0 %v69
    %395 = vmatpush1.msra.mxu0 %v68
    %396 = vmatprep.subr.mxu0 %v71
    %397 = vmatpush1.msra.mxu0 %v70
    %398 = vmatprep.subr.mxu0 %v73
    %399 = vmatpush1.msra.mxu0 %v72
    %400 = vmatprep.subr.mxu0 %v75
    %401 = vmatpush1.msra.mxu0 %v74
    %402 = vmatprep.subr.mxu0 %v77
    %403 = vmatpush1.msra.mxu0 %v76
    %404 = vmatprep.subr.mxu0 %v79
    %405 = vmatpush1.msra.mxu0 %v78
    %406 = vmatprep.subr.mxu0 %v81
    %407 = vmatpush1.msra.mxu0 %v80
    %408 = vmatprep.subr.mxu0 %v83
    %409 = vmatpush1.msra.mxu0 %v82
    %410 = vmatprep.subr.mxu0 %v85
    %411 = vmatpush1.msra.mxu0 %v84
    %412 = vmatprep.subr.mxu0 %v87
    %413 = vmatpush1.msra.mxu0 %v86
    %414 = vmatprep.subr.mxu0 %v89
    %415 = vmatpush1.msra.mxu0 %v88
    %416 = vmatprep.subr.mxu0 %v91
    %417 = vmatpush1.msra.mxu0 %v90
    %418 = vmatprep.subr.mxu0 %v93
    %419 = vmatpush1.msra.mxu0 %v92
    %420 = vmatprep.subr.mxu0 %v95
    %421 = vmatpush1.msra.mxu0 %v94
    %422 = vmatprep.subr.mxu0 %v97
    %423 = vmatpush1.msra.mxu0 %v96
    %424 = vmatprep.subr.mxu0 %v99
    %425 = vmatpush1.msra.mxu0 %v98
    %426 = vmatprep.subr.mxu0 %v101
    %427 = vmatpush1.msra.mxu0 %v100
    %428 = vmatprep.subr.mxu0 %v103
    %429 = vmatpush1.msra.mxu0 %v102
    %430 = vmatprep.subr.mxu0 %v105
    %431 = vmatpush1.msra.mxu0 %v104
    %432 = vmatprep.subr.mxu0 %v107
    %433 = vmatpush1.msra.mxu0 %v106
    %434 = vmatprep.subr.mxu0 %v109
    %435 = vmatpush1.msra.mxu0 %v108
    %436 = vmatprep.subr.mxu0 %v111
    %437 = vmatpush1.msra.mxu0 %v110
    %438 = vmatprep.subr.mxu0 %v113
    %439 = vmatpush1.msra.mxu0 %v112
    %440 = vmatprep.subr.mxu0 %v115
    %441 = vmatpush1.msra.mxu0 %v114
    %442 = vmatprep.subr.mxu0 %v117
    %443 = vmatpush1.msra.mxu0 %v116
    %444 = vmatprep.mubr.f32.mxu0 %v377
    %445 = vmatmul.mubr.f32.gmra.mrb[0].mxu0 %v376
    %v446 = vpop.f32.mrb[0].mxu0
    %v447 = vadd.f32 %v367, %v446
    %v448 = vpop.f32.mrb[0].mxu0
    %v449 = vadd.f32 %v368, %v448
    %450 = vdwg.mxu0
    %451 = vset.pattern.permute.xlu0 126
    %452 = vperm.xlu0 %451, %v344
    %v453 = vpop.permute.xlu0 %452
    %v455 = vmul.f32 %v453, %v220
    %v456 = vmul.f32 %v453, %v224
    %v457 = vadd.f32 %v447, %v455
    %v458 = vadd.f32 %v449, %v456
    %v459 = vmax.f32 %v457, -1.0
    %v460 = vmax.f32 %v458, -1.0
    %v461 = vmin.f32 %v459, 1.0
    %v462 = vmin.f32 %v460, 1.0
    %v465 = vcombine.low %v461, %v462
    %v467 = vunpack.c.l.s4 1983009808
    %v468 = vunpack.c.0.s8 %v467
    %v469 = vlaneseq
    %v470 = vshrl.u32 %v469, 7
    %v471 = vsub.s32 %v468, %v470
    %v472 = vrot.slane %v465, %v471
    %474 = vst [vmem:[%s4 + $0x8] sm:$0xf] %v472
    %v475 = vld [vmem:[%s0 + $0xc] sm:$0xf]
    %477 = vset.pattern.permute.xlu0 127
    %478 = vperm.xlu0 %477, %v458
    %v479 = vpop.permute.xlu0 %478
    %v481 = vmul.f32 %v479, %v125
    %v482 = vmul.f32 %v479, %v129
    %v485 = vunpack.c.l.s4 1983009808
    %v486 = vunpack.c.0.s8 %v485
    %v487 = vlaneseq
    %v488 = vshrl.u32 %v487, 7
    %v489 = vsub.s32 %v486, %v488
    %v490 = vrot.slane %v475, %v489
    %v491 = vcombine.high %v490, %v490
    %494 = vmatprep.subr.mxu0 %v55
    %495 = vmatpush1.msra.mxu0 %v54
    %496 = vmatprep.subr.mxu0 %v57
    %497 = vmatpush1.msra.mxu0 %v56
    %498 = vmatprep.subr.mxu0 %v59
    %499 = vmatpush1.msra.mxu0 %v58
    %500 = vmatprep.subr.mxu0 %v61
    %501 = vmatpush1.msra.mxu0 %v60
    %502 = vmatprep.subr.mxu0 %v63
    %503 = vmatpush1.msra.mxu0 %v62
    %504 = vmatprep.subr.mxu0 %v65
    %505 = vmatpush1.msra.mxu0 %v64
    %506 = vmatprep.subr.mxu0 %v67
    %507 = vmatpush1.msra.mxu0 %v66
    %508 = vmatprep.subr.mxu0 %v69
    %509 = vmatpush1.msra.mxu0 %v68
    %510 = vmatprep.subr.mxu0 %v71
    %511 = vmatpush1.msra.mxu0 %v70
    %512 = vmatprep.subr.mxu0 %v73
    %513 = vmatpush1.msra.mxu0 %v72
    %514 = vmatprep.subr.mxu0 %v75
    %515 = vmatpush1.msra.mxu0 %v74
    %516 = vmatprep.subr.mxu0 %v77
    %517 = vmatpush1.msra.mxu0 %v76
    %518 = vmatprep.subr.mxu0 %v79
    %519 = vmatpush1.msra.mxu0 %v78
    %520 = vmatprep.subr.mxu0 %v81
    %521 = vmatpush1.msra.mxu0 %v80
    %522 = vmatprep.subr.mxu0 %v83
    %523 = vmatpush1.msra.mxu0 %v82
    %524 = vmatprep.subr.mxu0 %v85
    %525 = vmatpush1.msra.mxu0 %v84
    %526 = vmatprep.subr.mxu0 %v87
    %527 = vmatpush1.msra.mxu0 %v86
    %528 = vmatprep.subr.mxu0 %v89
    %529 = vmatpush1.msra.mxu0 %v88
    %530 = vmatprep.subr.mxu0 %v91
    %531 = vmatpush1.msra.mxu0 %v90
    %532 = vmatprep.subr.mxu0 %v93
    %533 = vmatpush1.msra.mxu0 %v92
    %534 = vmatprep.subr.mxu0 %v95
    %535 = vmatpush1.msra.mxu0 %v94
    %536 = vmatprep.subr.mxu0 %v97
    %537 = vmatpush1.msra.mxu0 %v96
    %538 = vmatprep.subr.mxu0 %v99
    %539 = vmatpush1.msra.mxu0 %v98
    %540 = vmatprep.subr.mxu0 %v101
    %541 = vmatpush1.msra.mxu0 %v100
    %542 = vmatprep.subr.mxu0 %v103
    %543 = vmatpush1.msra.mxu0 %v102
    %544 = vmatprep.subr.mxu0 %v105
    %545 = vmatpush1.msra.mxu0 %v104
    %546 = vmatprep.subr.mxu0 %v107
    %547 = vmatpush1.msra.mxu0 %v106
    %548 = vmatprep.subr.mxu0 %v109
    %549 = vmatpush1.msra.mxu0 %v108
    %550 = vmatprep.subr.mxu0 %v111
    %551 = vmatpush1.msra.mxu0 %v110
    %552 = vmatprep.subr.mxu0 %v113
    %553 = vmatpush1.msra.mxu0 %v112
    %554 = vmatprep.subr.mxu0 %v115
    %555 = vmatpush1.msra.mxu0 %v114
    %556 = vmatprep.subr.mxu0 %v117
    %557 = vmatpush1.msra.mxu0 %v116
    %558 = vmatprep.mubr.f32.mxu0 %v491
    %559 = vmatmul.mubr.f32.gmra.mrb[0].mxu0 %v490
    %v560 = vpop.f32.mrb[0].mxu0
    %v561 = vadd.f32 %v481, %v560
    %v562 = vpop.f32.mrb[0].mxu0
    %v563 = vadd.f32 %v482, %v562
    %564 = vdwg.mxu0
    %565 = vset.pattern.permute.xlu0 126
    %566 = vperm.xlu0 %565, %v458
    %v567 = vpop.permute.xlu0 %566
    %v569 = vmul.f32 %v567, %v220
    %v570 = vmul.f32 %v567, %v224
    %v571 = vadd.f32 %v561, %v569
    %v572 = vadd.f32 %v563, %v570
    %v573 = vmax.f32 %v571, -1.0
    %v574 = vmax.f32 %v572, -1.0
    %v575 = vmin.f32 %v573, 1.0
    %v576 = vmin.f32 %v574, 1.0
    %v579 = vcombine.low %v575, %v576
    %v581 = vunpack.c.l.s4 1983009808
    %v582 = vunpack.c.0.s8 %v581
    %v583 = vlaneseq
    %v584 = vshrl.u32 %v583, 7
    %v585 = vsub.s32 %v582, %v584
    %v586 = vrot.slane %v579, %v585
    %588 = vst [vmem:[%s4 + $0xc] sm:$0xf] %v586
    %v589 = vld [vmem:[%s0 + $0x10] sm:$0xf]
    %591 = vset.pattern.permute.xlu0 127
    %592 = vperm.xlu0 %591, %v572
    %v593 = vpop.permute.xlu0 %592
    %v595 = vmul.f32 %v593, %v125
    %v596 = vmul.f32 %v593, %v129
    %v599 = vunpack.c.l.s4 1983009808
    %v600 = vunpack.c.0.s8 %v599
    %v601 = vlaneseq
    %v602 = vshrl.u32 %v601, 7
    %v603 = vsub.s32 %v600, %v602
    %v604 = vrot.slane %v589, %v603
    %v605 = vcombine.high %v604, %v604
    %608 = vmatprep.subr.mxu0 %v55
    %609 = vmatpush1.msra.mxu0 %v54
    %610 = vmatprep.subr.mxu0 %v57
    %611 = vmatpush1.msra.mxu0 %v56
    %612 = vmatprep.subr.mxu0 %v59
    %613 = vmatpush1.msra.mxu0 %v58
    %614 = vmatprep.subr.mxu0 %v61
    %615 = vmatpush1.msra.mxu0 %v60
    %616 = vmatprep.subr.mxu0 %v63
    %617 = vmatpush1.msra.mxu0 %v62
    %618 = vmatprep.subr.mxu0 %v65
    %619 = vmatpush1.msra.mxu0 %v64
    %620 = vmatprep.subr.mxu0 %v67
    %621 = vmatpush1.msra.mxu0 %v66
    %622 = vmatprep.subr.mxu0 %v69
    %623 = vmatpush1.msra.mxu0 %v68
    %624 = vmatprep.subr.mxu0 %v71
    %625 = vmatpush1.msra.mxu0 %v70
    %626 = vmatprep.subr.mxu0 %v73
    %627 = vmatpush1.msra.mxu0 %v72
    %628 = vmatprep.subr.mxu0 %v75
    %629 = vmatpush1.msra.mxu0 %v74
    %630 = vmatprep.subr.mxu0 %v77
    %631 = vmatpush1.msra.mxu0 %v76
    %632 = vmatprep.subr.mxu0 %v79
    %633 = vmatpush1.msra.mxu0 %v78
    %634 = vmatprep.subr.mxu0 %v81
    %635 = vmatpush1.msra.mxu0 %v80
    %636 = vmatprep.subr.mxu0 %v83
    %637 = vmatpush1.msra.mxu0 %v82
    %638 = vmatprep.subr.mxu0 %v85
    %639 = vmatpush1.msra.mxu0 %v84
    %640 = vmatprep.subr.mxu0 %v87
    %641 = vmatpush1.msra.mxu0 %v86
    %642 = vmatprep.subr.mxu0 %v89
    %643 = vmatpush1.msra.mxu0 %v88
    %644 = vmatprep.subr.mxu0 %v91
    %645 = vmatpush1.msra.mxu0 %v90
    %646 = vmatprep.subr.mxu0 %v93
    %647 = vmatpush1.msra.mxu0 %v92
    %648 = vmatprep.subr.mxu0 %v95
    %649 = vmatpush1.msra.mxu0 %v94
    %650 = vmatprep.subr.mxu0 %v97
    %651 = vmatpush1.msra.mxu0 %v96
    %652 = vmatprep.subr.mxu0 %v99
    %653 = vmatpush1.msra.mxu0 %v98
    %654 = vmatprep.subr.mxu0 %v101
    %655 = vmatpush1.msra.mxu0 %v100
    %656 = vmatprep.subr.mxu0 %v103
    %657 = vmatpush1.msra.mxu0 %v102
    %658 = vmatprep.subr.mxu0 %v105
    %659 = vmatpush1.msra.mxu0 %v104
    %660 = vmatprep.subr.mxu0 %v107
    %661 = vmatpush1.msra.mxu0 %v106
    %662 = vmatprep.subr.mxu0 %v109
    %663 = vmatpush1.msra.mxu0 %v108
    %664 = vmatprep.subr.mxu0 %v111
    %665 = vmatpush1.msra.mxu0 %v110
    %666 = vmatprep.subr.mxu0 %v113
    %667 = vmatpush1.msra.mxu0 %v112
    %668 = vmatprep.subr.mxu0 %v115
    %669 = vmatpush1.msra.mxu0 %v114
    %670 = vmatprep.subr.mxu0 %v117
    %671 = vmatpush1.msra.mxu0 %v116
    %672 = vmatprep.mubr.f32.mxu0 %v605
    %673 = vmatmul.mubr.f32.gmra.mrb[0].mxu0 %v604
    %v674 = vpop.f32.mrb[0].mxu0
    %v675 = vadd.f32 %v595, %v674
    %v676 = vpop.f32.mrb[0].mxu0
    %v677 = vadd.f32 %v596, %v676
    %678 = vdwg.mxu0
    %679 = vset.pattern.permute.xlu0 126
    %680 = vperm.xlu0 %679, %v572
    %v681 = vpop.permute.xlu0 %680
    %v683 = vmul.f32 %v681, %v220
    %v684 = vmul.f32 %v681, %v224
    %v685 = vadd.f32 %v675, %v683
    %v686 = vadd.f32 %v677, %v684
    %v687 = vmax.f32 %v685, -1.0
    %v688 = vmax.f32 %v686, -1.0
    %v689 = vmin.f32 %v687, 1.0
    %v690 = vmin.f32 %v688, 1.0
    %v693 = vcombine.low %v689, %v690
    %v695 = vunpack.c.l.s4 1983009808
    %v696 = vunpack.c.0.s8 %v695
    %v697 = vlaneseq
    %v698 = vshrl.u32 %v697, 7
    %v699 = vsub.s32 %v696, %v698
    %v700 = vrot.slane %v693, %v699
    %702 = vst [vmem:[%s4 + $0x10] sm:$0xf] %v700
    %v703 = vld [vmem:[%s0 + $0x14] sm:$0xf]
    %705 = vset.pattern.permute.xlu0 127
    %706 = vperm.xlu0 %705, %v686
    %v707 = vpop.permute.xlu0 %706
    %v709 = vmul.f32 %v707, %v125
    %v710 = vmul.f32 %v707, %v129
    %v713 = vunpack.c.l.s4 1983009808
    %v714 = vunpack.c.0.s8 %v713
    %v715 = vlaneseq
    %v716 = vshrl.u32 %v715, 7
    %v717 = vsub.s32 %v714, %v716
    %v718 = vrot.slane %v703, %v717
    %v719 = vcombine.high %v718, %v718
    %722 = vmatprep.subr.mxu0 %v55
    %723 = vmatpush1.msra.mxu0 %v54
    %724 = vmatprep.subr.mxu0 %v57
    %725 = vmatpush1.msra.mxu0 %v56
    %726 = vmatprep.subr.mxu0 %v59
    %727 = vmatpush1.msra.mxu0 %v58
    %728 = vmatprep.subr.mxu0 %v61
    %729 = vmatpush1.msra.mxu0 %v60
    %730 = vmatprep.subr.mxu0 %v63
    %731 = vmatpush1.msra.mxu0 %v62
    %732 = vmatprep.subr.mxu0 %v65
    %733 = vmatpush1.msra.mxu0 %v64
    %734 = vmatprep.subr.mxu0 %v67
    %735 = vmatpush1.msra.mxu0 %v66
    %736 = vmatprep.subr.mxu0 %v69
    %737 = vmatpush1.msra.mxu0 %v68
    %738 = vmatprep.subr.mxu0 %v71
    %739 = vmatpush1.msra.mxu0 %v70
    %740 = vmatprep.subr.mxu0 %v73
    %741 = vmatpush1.msra.mxu0 %v72
    %742 = vmatprep.subr.mxu0 %v75
    %743 = vmatpush1.msra.mxu0 %v74
    %744 = vmatprep.subr.mxu0 %v77
    %745 = vmatpush1.msra.mxu0 %v76
    %746 = vmatprep.subr.mxu0 %v79
    %747 = vmatpush1.msra.mxu0 %v78
    %748 = vmatprep.subr.mxu0 %v81
    %749 = vmatpush1.msra.mxu0 %v80
    %750 = vmatprep.subr.mxu0 %v83
    %751 = vmatpush1.msra.mxu0 %v82
    %752 = vmatprep.subr.mxu0 %v85
    %753 = vmatpush1.msra.mxu0 %v84
    %754 = vmatprep.subr.mxu0 %v87
    %755 = vmatpush1.msra.mxu0 %v86
    %756 = vmatprep.subr.mxu0 %v89
    %757 = vmatpush1.msra.mxu0 %v88
    %758 = vmatprep.subr.mxu0 %v91
    %759 = vmatpush1.msra.mxu0 %v90
    %760 = vmatprep.subr.mxu0 %v93
    %761 = vmatpush1.msra.mxu0 %v92
    %762 = vmatprep.subr.mxu0 %v95
    %763 = vmatpush1.msra.mxu0 %v94
    %764 = vmatprep.subr.mxu0 %v97
    %765 = vmatpush1.msra.mxu0 %v96
    %766 = vmatprep.subr.mxu0 %v99
    %767 = vmatpush1.msra.mxu0 %v98
    %768 = vmatprep.subr.mxu0 %v101
    %769 = vmatpush1.msra.mxu0 %v100
    %770 = vmatprep.subr.mxu0 %v103
    %771 = vmatpush1.msra.mxu0 %v102
    %772 = vmatprep.subr.mxu0 %v105
    %773 = vmatpush1.msra.mxu0 %v104
    %774 = vmatprep.subr.mxu0 %v107
    %775 = vmatpush1.msra.mxu0 %v106
    %776 = vmatprep.subr.mxu0 %v109
    %777 = vmatpush1.msra.mxu0 %v108
    %778 = vmatprep.subr.mxu0 %v111
    %779 = vmatpush1.msra.mxu0 %v110
    %780 = vmatprep.subr.mxu0 %v113
    %781 = vmatpush1.msra.mxu0 %v112
    %782 = vmatprep.subr.mxu0 %v115
    %783 = vmatpush1.msra.mxu0 %v114
    %784 = vmatprep.subr.mxu0 %v117
    %785 = vmatpush1.msra.mxu0 %v116
    %786 = vmatprep.mubr.f32.mxu0 %v719
    %787 = vmatmul.mubr.f32.gmra.mrb[0].mxu0 %v718
    %v788 = vpop.f32.mrb[0].mxu0
    %v789 = vadd.f32 %v709, %v788
    %v790 = vpop.f32.mrb[0].mxu0
    %v791 = vadd.f32 %v710, %v790
    %792 = vdwg.mxu0
    %793 = vset.pattern.permute.xlu0 126
    %794 = vperm.xlu0 %793, %v686
    %v795 = vpop.permute.xlu0 %794
    %v797 = vmul.f32 %v795, %v220
    %v798 = vmul.f32 %v795, %v224
    %v799 = vadd.f32 %v789, %v797
    %v800 = vadd.f32 %v791, %v798
    %v801 = vmax.f32 %v799, -1.0
    %v802 = vmax.f32 %v800, -1.0
    %v803 = vmin.f32 %v801, 1.0
    %v804 = vmin.f32 %v802, 1.0
    %v807 = vcombine.low %v803, %v804
    %v809 = vunpack.c.l.s4 1983009808
    %v810 = vunpack.c.0.s8 %v809
    %v811 = vlaneseq
    %v812 = vshrl.u32 %v811, 7
    %v813 = vsub.s32 %v810, %v812
    %v814 = vrot.slane %v807, %v813
    %816 = vst [vmem:[%s4 + $0x14] sm:$0xf] %v814
    %v817 = vld [vmem:[%s0 + $0x18] sm:$0xf]
    %819 = vset.pattern.permute.xlu0 127
    %820 = vperm.xlu0 %819, %v800
    %v821 = vpop.permute.xlu0 %820
    %v823 = vmul.f32 %v821, %v125
    %v824 = vmul.f32 %v821, %v129
    %v827 = vunpack.c.l.s4 1983009808
    %v828 = vunpack.c.0.s8 %v827
    %v829 = vlaneseq
    %v830 = vshrl.u32 %v829, 7
    %v831 = vsub.s32 %v828, %v830
    %v832 = vrot.slane %v817, %v831
    %v833 = vcombine.high %v832, %v832
    %836 = vmatprep.subr.mxu0 %v55
    %837 = vmatpush1.msra.mxu0 %v54
    %838 = vmatprep.subr.mxu0 %v57
    %839 = vmatpush1.msra.mxu0 %v56
    %840 = vmatprep.subr.mxu0 %v59
    %841 = vmatpush1.msra.mxu0 %v58
    %842 = vmatprep.subr.mxu0 %v61
    %843 = vmatpush1.msra.mxu0 %v60
    %844 = vmatprep.subr.mxu0 %v63
    %845 = vmatpush1.msra.mxu0 %v62
    %846 = vmatprep.subr.mxu0 %v65
    %847 = vmatpush1.msra.mxu0 %v64
    %848 = vmatprep.subr.mxu0 %v67
    %849 = vmatpush1.msra.mxu0 %v66
    %850 = vmatprep.subr.mxu0 %v69
    %851 = vmatpush1.msra.mxu0 %v68
    %852 = vmatprep.subr.mxu0 %v71
    %853 = vmatpush1.msra.mxu0 %v70
    %854 = vmatprep.subr.mxu0 %v73
    %855 = vmatpush1.msra.mxu0 %v72
    %856 = vmatprep.subr.mxu0 %v75
    %857 = vmatpush1.msra.mxu0 %v74
    %858 = vmatprep.subr.mxu0 %v77
    %859 = vmatpush1.msra.mxu0 %v76
    %860 = vmatprep.subr.mxu0 %v79
    %861 = vmatpush1.msra.mxu0 %v78
    %862 = vmatprep.subr.mxu0 %v81
    %863 = vmatpush1.msra.mxu0 %v80
    %864 = vmatprep.subr.mxu0 %v83
    %865 = vmatpush1.msra.mxu0 %v82
    %866 = vmatprep.subr.mxu0 %v85
    %867 = vmatpush1.msra.mxu0 %v84
    %868 = vmatprep.subr.mxu0 %v87
    %869 = vmatpush1.msra.mxu0 %v86
    %870 = vmatprep.subr.mxu0 %v89
    %871 = vmatpush1.msra.mxu0 %v88
    %872 = vmatprep.subr.mxu0 %v91
    %873 = vmatpush1.msra.mxu0 %v90
    %874 = vmatprep.subr.mxu0 %v93
    %875 = vmatpush1.msra.mxu0 %v92
    %876 = vmatprep.subr.mxu0 %v95
    %877 = vmatpush1.msra.mxu0 %v94
    %878 = vmatprep.subr.mxu0 %v97
    %879 = vmatpush1.msra.mxu0 %v96
    %880 = vmatprep.subr.mxu0 %v99
    %881 = vmatpush1.msra.mxu0 %v98
    %882 = vmatprep.subr.mxu0 %v101
    %883 = vmatpush1.msra.mxu0 %v100
    %884 = vmatprep.subr.mxu0 %v103
    %885 = vmatpush1.msra.mxu0 %v102
    %886 = vmatprep.subr.mxu0 %v105
    %887 = vmatpush1.msra.mxu0 %v104
    %888 = vmatprep.subr.mxu0 %v107
    %889 = vmatpush1.msra.mxu0 %v106
    %890 = vmatprep.subr.mxu0 %v109
    %891 = vmatpush1.msra.mxu0 %v108
    %892 = vmatprep.subr.mxu0 %v111
    %893 = vmatpush1.msra.mxu0 %v110
    %894 = vmatprep.subr.mxu0 %v113
    %895 = vmatpush1.msra.mxu0 %v112
    %896 = vmatprep.subr.mxu0 %v115
    %897 = vmatpush1.msra.mxu0 %v114
    %898 = vmatprep.subr.mxu0 %v117
    %899 = vmatpush1.msra.mxu0 %v116
    %900 = vmatprep.mubr.f32.mxu0 %v833
    %901 = vmatmul.mubr.f32.gmra.mrb[0].mxu0 %v832
    %v902 = vpop.f32.mrb[0].mxu0
    %v903 = vadd.f32 %v823, %v902
    %v904 = vpop.f32.mrb[0].mxu0
    %v905 = vadd.f32 %v824, %v904
    %906 = vdwg.mxu0
    %907 = vset.pattern.permute.xlu0 126
    %908 = vperm.xlu0 %907, %v800
    %v909 = vpop.permute.xlu0 %908
    %v911 = vmul.f32 %v909, %v220
    %v912 = vmul.f32 %v909, %v224
    %v913 = vadd.f32 %v903, %v911
    %v914 = vadd.f32 %v905, %v912
    %v915 = vmax.f32 %v913, -1.0
    %v916 = vmax.f32 %v914, -1.0
    %v917 = vmin.f32 %v915, 1.0
    %v918 = vmin.f32 %v916, 1.0
    %v921 = vcombine.low %v917, %v918
    %v923 = vunpack.c.l.s4 1983009808
    %v924 = vunpack.c.0.s8 %v923
    %v925 = vlaneseq
    %v926 = vshrl.u32 %v925, 7
    %v927 = vsub.s32 %v924, %v926
    %v928 = vrot.slane %v921, %v927
    %930 = vst [vmem:[%s4 + $0x18] sm:$0xf] %v928
    %v931 = vld [vmem:[%s0 + $0x1c] sm:$0xf]
    %933 = vset.pattern.permute.xlu0 127
    %934 = vperm.xlu0 %933, %v914
    %v935 = vpop.permute.xlu0 %934
    %v937 = vmul.f32 %v935, %v125
    %v938 = vmul.f32 %v935, %v129
    %v941 = vunpack.c.l.s4 1983009808
    %v942 = vunpack.c.0.s8 %v941
    %v943 = vlaneseq
    %v944 = vshrl.u32 %v943, 7
    %v945 = vsub.s32 %v942, %v944
    %v946 = vrot.slane %v931, %v945
    %v947 = vcombine.high %v946, %v946
    %950 = vmatprep.subr.mxu0 %v55
    %951 = vmatpush1.msra.mxu0 %v54
    %952 = vmatprep.subr.mxu0 %v57
    %953 = vmatpush1.msra.mxu0 %v56
    %954 = vmatprep.subr.mxu0 %v59
    %955 = vmatpush1.msra.mxu0 %v58
    %956 = vmatprep.subr.mxu0 %v61
    %957 = vmatpush1.msra.mxu0 %v60
    %958 = vmatprep.subr.mxu0 %v63
    %959 = vmatpush1.msra.mxu0 %v62
    %960 = vmatprep.subr.mxu0 %v65
    %961 = vmatpush1.msra.mxu0 %v64
    %962 = vmatprep.subr.mxu0 %v67
    %963 = vmatpush1.msra.mxu0 %v66
    %964 = vmatprep.subr.mxu0 %v69
    %965 = vmatpush1.msra.mxu0 %v68
    %966 = vmatprep.subr.mxu0 %v71
    %967 = vmatpush1.msra.mxu0 %v70
    %968 = vmatprep.subr.mxu0 %v73
    %969 = vmatpush1.msra.mxu0 %v72
    %970 = vmatprep.subr.mxu0 %v75
    %971 = vmatpush1.msra.mxu0 %v74
    %972 = vmatprep.subr.mxu0 %v77
    %973 = vmatpush1.msra.mxu0 %v76
    %974 = vmatprep.subr.mxu0 %v79
    %975 = vmatpush1.msra.mxu0 %v78
    %976 = vmatprep.subr.mxu0 %v81
    %977 = vmatpush1.msra.mxu0 %v80
    %978 = vmatprep.subr.mxu0 %v83
    %979 = vmatpush1.msra.mxu0 %v82
    %980 = vmatprep.subr.mxu0 %v85
    %981 = vmatpush1.msra.mxu0 %v84
    %982 = vmatprep.subr.mxu0 %v87
    %983 = vmatpush1.msra.mxu0 %v86
    %984 = vmatprep.subr.mxu0 %v89
    %985 = vmatpush1.msra.mxu0 %v88
    %986 = vmatprep.subr.mxu0 %v91
    %987 = vmatpush1.msra.mxu0 %v90
    %988 = vmatprep.subr.mxu0 %v93
    %989 = vmatpush1.msra.mxu0 %v92
    %990 = vmatprep.subr.mxu0 %v95
    %991 = vmatpush1.msra.mxu0 %v94
    %992 = vmatprep.subr.mxu0 %v97
    %993 = vmatpush1.msra.mxu0 %v96
    %994 = vmatprep.subr.mxu0 %v99
    %995 = vmatpush1.msra.mxu0 %v98
    %996 = vmatprep.subr.mxu0 %v101
    %997 = vmatpush1.msra.mxu0 %v100
    %998 = vmatprep.subr.mxu0 %v103
    %999 = vmatpush1.msra.mxu0 %v102
    %1000 = vmatprep.subr.mxu0 %v105
    %1001 = vmatpush1.msra.mxu0 %v104
    %1002 = vmatprep.subr.mxu0 %v107
    %1003 = vmatpush1.msra.mxu0 %v106
    %1004 = vmatprep.subr.mxu0 %v109
    %1005 = vmatpush1.msra.mxu0 %v108
    %1006 = vmatprep.subr.mxu0 %v111
    %1007 = vmatpush1.msra.mxu0 %v110
    %1008 = vmatprep.subr.mxu0 %v113
    %1009 = vmatpush1.msra.mxu0 %v112
    %1010 = vmatprep.subr.mxu0 %v115
    %1011 = vmatpush1.msra.mxu0 %v114
    %1012 = vmatprep.subr.mxu0 %v117
    %1013 = vmatpush1.msra.mxu0 %v116
    %1014 = vmatprep.mubr.f32.mxu0 %v947
    %1015 = vmatmul.mubr.f32.gmra.mrb[0].mxu0 %v946
    %v1016 = vpop.f32.mrb[0].mxu0
    %v1017 = vadd.f32 %v937, %v1016
    %v1018 = vpop.f32.mrb[0].mxu0
    %v1019 = vadd.f32 %v938, %v1018
    %1020 = vdwg.mxu0
    %1021 = vset.pattern.permute.xlu0 126
    %1022 = vperm.xlu0 %1021, %v914
    %v1023 = vpop.permute.xlu0 %1022
    %v1025 = vmul.f32 %v1023, %v220
    %v1026 = vmul.f32 %v1023, %v224
    %v1027 = vadd.f32 %v1017, %v1025
    %v1028 = vadd.f32 %v1019, %v1026
    %v1029 = vmax.f32 %v1027, -1.0
    %v1030 = vmax.f32 %v1028, -1.0
    %v1031 = vmin.f32 %v1029, 1.0
    %v1032 = vmin.f32 %v1030, 1.0
    %v1035 = vcombine.low %v1031, %v1032
    %v1037 = vunpack.c.l.s4 1983009808
    %v1038 = vunpack.c.0.s8 %v1037
    %v1039 = vlaneseq
    %v1040 = vshrl.u32 %v1039, 7
    %v1041 = vsub.s32 %v1038, %v1040
    %v1042 = vrot.slane %v1035, %v1041
    %1044 = vst [vmem:[%s4 + $0x1c] sm:$0xf] %v1042
    %v1045 = vld [vmem:[%s0 + $0x20] sm:$0xf]
    %1047 = vset.pattern.permute.xlu0 127
    %1048 = vperm.xlu0 %1047, %v1028
    %v1049 = vpop.permute.xlu0 %1048
    %v1051 = vmul.f32 %v1049, %v125
    %v1052 = vmul.f32 %v1049, %v129
    %v1055 = vunpack.c.l.s4 1983009808
    %v1056 = vunpack.c.0.s8 %v1055
    %v1057 = vlaneseq
    %v1058 = vshrl.u32 %v1057, 7
    %v1059 = vsub.s32 %v1056, %v1058
    %v1060 = vrot.slane %v1045, %v1059
    %v1061 = vcombine.high %v1060, %v1060
    %1064 = vmatprep.subr.mxu0 %v55
    %1065 = vmatpush1.msra.mxu0 %v54
    %1066 = vmatprep.subr.mxu0 %v57
    %1067 = vmatpush1.msra.mxu0 %v56
    %1068 = vmatprep.subr.mxu0 %v59
    %1069 = vmatpush1.msra.mxu0 %v58
    %1070 = vmatprep.subr.mxu0 %v61
    %1071 = vmatpush1.msra.mxu0 %v60
    %1072 = vmatprep.subr.mxu0 %v63
    %1073 = vmatpush1.msra.mxu0 %v62
    %1074 = vmatprep.subr.mxu0 %v65
    %1075 = vmatpush1.msra.mxu0 %v64
    %1076 = vmatprep.subr.mxu0 %v67
    %1077 = vmatpush1.msra.mxu0 %v66
    %1078 = vmatprep.subr.mxu0 %v69
    %1079 = vmatpush1.msra.mxu0 %v68
    %1080 = vmatprep.subr.mxu0 %v71
    %1081 = vmatpush1.msra.mxu0 %v70
    %1082 = vmatprep.subr.mxu0 %v73
    %1083 = vmatpush1.msra.mxu0 %v72
    %1084 = vmatprep.subr.mxu0 %v75
    %1085 = vmatpush1.msra.mxu0 %v74
    %1086 = vmatprep.subr.mxu0 %v77
    %1087 = vmatpush1.msra.mxu0 %v76
    %1088 = vmatprep.subr.mxu0 %v79
    %1089 = vmatpush1.msra.mxu0 %v78
    %1090 = vmatprep.subr.mxu0 %v81
    %1091 = vmatpush1.msra.mxu0 %v80
    %1092 = vmatprep.subr.mxu0 %v83
    %1093 = vmatpush1.msra.mxu0 %v82
    %1094 = vmatprep.subr.mxu0 %v85
    %1095 = vmatpush1.msra.mxu0 %v84
    %1096 = vmatprep.subr.mxu0 %v87
    %1097 = vmatpush1.msra.mxu0 %v86
    %1098 = vmatprep.subr.mxu0 %v89
    %1099 = vmatpush1.msra.mxu0 %v88
    %1100 = vmatprep.subr.mxu0 %v91
    %1101 = vmatpush1.msra.mxu0 %v90
    %1102 = vmatprep.subr.mxu0 %v93
    %1103 = vmatpush1.msra.mxu0 %v92
    %1104 = vmatprep.subr.mxu0 %v95
    %1105 = vmatpush1.msra.mxu0 %v94
    %1106 = vmatprep.subr.mxu0 %v97
    %1107 = vmatpush1.msra.mxu0 %v96
    %1108 = vmatprep.subr.mxu0 %v99
    %1109 = vmatpush1.msra.mxu0 %v98
    %1110 = vmatprep.subr.mxu0 %v101
    %1111 = vmatpush1.msra.mxu0 %v100
    %1112 = vmatprep.subr.mxu0 %v103
    %1113 = vmatpush1.msra.mxu0 %v102
    %1114 = vmatprep.subr.mxu0 %v105
    %1115 = vmatpush1.msra.mxu0 %v104
    %1116 = vmatprep.subr.mxu0 %v107
    %1117 = vmatpush1.msra.mxu0 %v106
    %1118 = vmatprep.subr.mxu0 %v109
    %1119 = vmatpush1.msra.mxu0 %v108
    %1120 = vmatprep.subr.mxu0 %v111
    %1121 = vmatpush1.msra.mxu0 %v110
    %1122 = vmatprep.subr.mxu0 %v113
    %1123 = vmatpush1.msra.mxu0 %v112
    %1124 = vmatprep.subr.mxu0 %v115
    %1125 = vmatpush1.msra.mxu0 %v114
    %1126 = vmatprep.subr.mxu0 %v117
    %1127 = vmatpush1.msra.mxu0 %v116
    %1128 = vmatprep.mubr.f32.mxu0 %v1061
    %1129 = vmatmul.mubr.f32.gmra.mrb[0].mxu0 %v1060
    %v1130 = vpop.f32.mrb[0].mxu0
    %v1131 = vadd.f32 %v1051, %v1130
    %v1132 = vpop.f32.mrb[0].mxu0
    %v1133 = vadd.f32 %v1052, %v1132
    %1134 = vdwg.mxu0
    %1135 = vset.pattern.permute.xlu0 126
    %1136 = vperm.xlu0 %1135, %v1028
    %v1137 = vpop.permute.xlu0 %1136
    %v1139 = vmul.f32 %v1137, %v220
    %v1140 = vmul.f32 %v1137, %v224
    %v1141 = vadd.f32 %v1131, %v1139
    %v1142 = vadd.f32 %v1133, %v1140
    %v1143 = vmax.f32 %v1141, -1.0
    %v1144 = vmax.f32 %v1142, -1.0
    %v1145 = vmin.f32 %v1143, 1.0
    %v1146 = vmin.f32 %v1144, 1.0
    %v1149 = vcombine.low %v1145, %v1146
    %v1151 = vunpack.c.l.s4 1983009808
    %v1152 = vunpack.c.0.s8 %v1151
    %v1153 = vlaneseq
    %v1154 = vshrl.u32 %v1153, 7
    %v1155 = vsub.s32 %v1152, %v1154
    %v1156 = vrot.slane %v1149, %v1155
    %1158 = vst [vmem:[%s4 + $0x20] sm:$0xf] %v1156
    %v1159 = vld [vmem:[%s0 + $0x24] sm:$0xf]
    %1161 = vset.pattern.permute.xlu0 127
    %1162 = vperm.xlu0 %1161, %v1142
    %v1163 = vpop.permute.xlu0 %1162
    %v1165 = vmul.f32 %v1163, %v125
    %v1166 = vmul.f32 %v1163, %v129
    %v1169 = vunpack.c.l.s4 1983009808
    %v1170 = vunpack.c.0.s8 %v1169
    %v1171 = vlaneseq
    %v1172 = vshrl.u32 %v1171, 7
    %v1173 = vsub.s32 %v1170, %v1172
    %v1174 = vrot.slane %v1159, %v1173
    %v1175 = vcombine.high %v1174, %v1174
    %1178 = vmatprep.subr.mxu0 %v55
    %1179 = vmatpush1.msra.mxu0 %v54
    %1180 = vmatprep.subr.mxu0 %v57
    %1181 = vmatpush1.msra.mxu0 %v56
    %1182 = vmatprep.subr.mxu0 %v59
    %1183 = vmatpush1.msra.mxu0 %v58
    %1184 = vmatprep.subr.mxu0 %v61
    %1185 = vmatpush1.msra.mxu0 %v60
    %1186 = vmatprep.subr.mxu0 %v63
    %1187 = vmatpush1.msra.mxu0 %v62
    %1188 = vmatprep.subr.mxu0 %v65
    %1189 = vmatpush1.msra.mxu0 %v64
    %1190 = vmatprep.subr.mxu0 %v67
    %1191 = vmatpush1.msra.mxu0 %v66
    %1192 = vmatprep.subr.mxu0 %v69
    %1193 = vmatpush1.msra.mxu0 %v68
    %1194 = vmatprep.subr.mxu0 %v71
    %1195 = vmatpush1.msra.mxu0 %v70
    %1196 = vmatprep.subr.mxu0 %v73
    %1197 = vmatpush1.msra.mxu0 %v72
    %1198 = vmatprep.subr.mxu0 %v75
    %1199 = vmatpush1.msra.mxu0 %v74
    %1200 = vmatprep.subr.mxu0 %v77
    %1201 = vmatpush1.msra.mxu0 %v76
    %1202 = vmatprep.subr.mxu0 %v79
    %1203 = vmatpush1.msra.mxu0 %v78
    %1204 = vmatprep.subr.mxu0 %v81
    %1205 = vmatpush1.msra.mxu0 %v80
    %1206 = vmatprep.subr.mxu0 %v83
    %1207 = vmatpush1.msra.mxu0 %v82
    %1208 = vmatprep.subr.mxu0 %v85
    %1209 = vmatpush1.msra.mxu0 %v84
    %1210 = vmatprep.subr.mxu0 %v87
    %1211 = vmatpush1.msra.mxu0 %v86
    %1212 = vmatprep.subr.mxu0 %v89
    %1213 = vmatpush1.msra.mxu0 %v88
    %1214 = vmatprep.subr.mxu0 %v91
    %1215 = vmatpush1.msra.mxu0 %v90
    %1216 = vmatprep.subr.mxu0 %v93
    %1217 = vmatpush1.msra.mxu0 %v92
    %1218 = vmatprep.subr.mxu0 %v95
    %1219 = vmatpush1.msra.mxu0 %v94
    %1220 = vmatprep.subr.mxu0 %v97
    %1221 = vmatpush1.msra.mxu0 %v96
    %1222 = vmatprep.subr.mxu0 %v99
    %1223 = vmatpush1.msra.mxu0 %v98
    %1224 = vmatprep.subr.mxu0 %v101
    %1225 = vmatpush1.msra.mxu0 %v100
    %1226 = vmatprep.subr.mxu0 %v103
    %1227 = vmatpush1.msra.mxu0 %v102
    %1228 = vmatprep.subr.mxu0 %v105
    %1229 = vmatpush1.msra.mxu0 %v104
    %1230 = vmatprep.subr.mxu0 %v107
    %1231 = vmatpush1.msra.mxu0 %v106
    %1232 = vmatprep.subr.mxu0 %v109
    %1233 = vmatpush1.msra.mxu0 %v108
    %1234 = vmatprep.subr.mxu0 %v111
    %1235 = vmatpush1.msra.mxu0 %v110
    %1236 = vmatprep.subr.mxu0 %v113
    %1237 = vmatpush1.msra.mxu0 %v112
    %1238 = vmatprep.subr.mxu0 %v115
    %1239 = vmatpush1.msra.mxu0 %v114
    %1240 = vmatprep.subr.mxu0 %v117
    %1241 = vmatpush1.msra.mxu0 %v116
    %1242 = vmatprep.mubr.f32.mxu0 %v1175
    %1243 = vmatmul.mubr.f32.gmra.mrb[0].mxu0 %v1174
    %v1244 = vpop.f32.mrb[0].mxu0
    %v1245 = vadd.f32 %v1165, %v1244
    %v1246 = vpop.f32.mrb[0].mxu0
    %v1247 = vadd.f32 %v1166, %v1246
    %1248 = vdwg.mxu0
    %1249 = vset.pattern.permute.xlu0 126
    %1250 = vperm.xlu0 %1249, %v1142
    %v1251 = vpop.permute.xlu0 %1250
    %v1253 = vmul.f32 %v1251, %v220
    %v1254 = vmul.f32 %v1251, %v224
    %v1255 = vadd.f32 %v1245, %v1253
    %v1256 = vadd.f32 %v1247, %v1254
    %v1257 = vmax.f32 %v1255, -1.0
    %v1258 = vmax.f32 %v1256, -1.0
    %v1259 = vmin.f32 %v1257, 1.0
    %v1260 = vmin.f32 %v1258, 1.0
    %v1263 = vcombine.low %v1259, %v1260
    %v1265 = vunpack.c.l.s4 1983009808
    %v1266 = vunpack.c.0.s8 %v1265
    %v1267 = vlaneseq
    %v1268 = vshrl.u32 %v1267, 7
    %v1269 = vsub.s32 %v1266, %v1268
    %v1270 = vrot.slane %v1263, %v1269
    %1272 = vst [vmem:[%s4 + $0x24] sm:$0xf] %v1270
    %v1273 = vld [vmem:[%s0 + $0x28] sm:$0xf]
    %1275 = vset.pattern.permute.xlu0 127
    %1276 = vperm.xlu0 %1275, %v1256
    %v1277 = vpop.permute.xlu0 %1276
    %v1279 = vmul.f32 %v1277, %v125
    %v1280 = vmul.f32 %v1277, %v129
    %v1283 = vunpack.c.l.s4 1983009808
    %v1284 = vunpack.c.0.s8 %v1283
    %v1285 = vlaneseq
    %v1286 = vshrl.u32 %v1285, 7
    %v1287 = vsub.s32 %v1284, %v1286
    %v1288 = vrot.slane %v1273, %v1287
    %v1289 = vcombine.high %v1288, %v1288
    %1292 = vmatprep.subr.mxu0 %v55
    %1293 = vmatpush1.msra.mxu0 %v54
    %1294 = vmatprep.subr.mxu0 %v57
    %1295 = vmatpush1.msra.mxu0 %v56
    %1296 = vmatprep.subr.mxu0 %v59
    %1297 = vmatpush1.msra.mxu0 %v58
    %1298 = vmatprep.subr.mxu0 %v61
    %1299 = vmatpush1.msra.mxu0 %v60
    %1300 = vmatprep.subr.mxu0 %v63
    %1301 = vmatpush1.msra.mxu0 %v62
    %1302 = vmatprep.subr.mxu0 %v65
    %1303 = vmatpush1.msra.mxu0 %v64
    %1304 = vmatprep.subr.mxu0 %v67
    %1305 = vmatpush1.msra.mxu0 %v66
    %1306 = vmatprep.subr.mxu0 %v69
    %1307 = vmatpush1.msra.mxu0 %v68
    %1308 = vmatprep.subr.mxu0 %v71
    %1309 = vmatpush1.msra.mxu0 %v70
    %1310 = vmatprep.subr.mxu0 %v73
    %1311 = vmatpush1.msra.mxu0 %v72
    %1312 = vmatprep.subr.mxu0 %v75
    %1313 = vmatpush1.msra.mxu0 %v74
    %1314 = vmatprep.subr.mxu0 %v77
    %1315 = vmatpush1.msra.mxu0 %v76
    %1316 = vmatprep.subr.mxu0 %v79
    %1317 = vmatpush1.msra.mxu0 %v78
    %1318 = vmatprep.subr.mxu0 %v81
    %1319 = vmatpush1.msra.mxu0 %v80
    %1320 = vmatprep.subr.mxu0 %v83
    %1321 = vmatpush1.msra.mxu0 %v82
    %1322 = vmatprep.subr.mxu0 %v85
    %1323 = vmatpush1.msra.mxu0 %v84
    %1324 = vmatprep.subr.mxu0 %v87
    %1325 = vmatpush1.msra.mxu0 %v86
    %1326 = vmatprep.subr.mxu0 %v89
    %1327 = vmatpush1.msra.mxu0 %v88
    %1328 = vmatprep.subr.mxu0 %v91
    %1329 = vmatpush1.msra.mxu0 %v90
    %1330 = vmatprep.subr.mxu0 %v93
    %1331 = vmatpush1.msra.mxu0 %v92
    %1332 = vmatprep.subr.mxu0 %v95
    %1333 = vmatpush1.msra.mxu0 %v94
    %1334 = vmatprep.subr.mxu0 %v97
    %1335 = vmatpush1.msra.mxu0 %v96
    %1336 = vmatprep.subr.mxu0 %v99
    %1337 = vmatpush1.msra.mxu0 %v98
    %1338 = vmatprep.subr.mxu0 %v101
    %1339 = vmatpush1.msra.mxu0 %v100
    %1340 = vmatprep.subr.mxu0 %v103
    %1341 = vmatpush1.msra.mxu0 %v102
    %1342 = vmatprep.subr.mxu0 %v105
    %1343 = vmatpush1.msra.mxu0 %v104
    %1344 = vmatprep.subr.mxu0 %v107
    %1345 = vmatpush1.msra.mxu0 %v106
    %1346 = vmatprep.subr.mxu0 %v109
    %1347 = vmatpush1.msra.mxu0 %v108
    %1348 = vmatprep.subr.mxu0 %v111
    %1349 = vmatpush1.msra.mxu0 %v110
    %1350 = vmatprep.subr.mxu0 %v113
    %1351 = vmatpush1.msra.mxu0 %v112
    %1352 = vmatprep.subr.mxu0 %v115
    %1353 = vmatpush1.msra.mxu0 %v114
    %1354 = vmatprep.subr.mxu0 %v117
    %1355 = vmatpush1.msra.mxu0 %v116
    %1356 = vmatprep.mubr.f32.mxu0 %v1289
    %1357 = vmatmul.mubr.f32.gmra.mrb[0].mxu0 %v1288
    %v1358 = vpop.f32.mrb[0].mxu0
    %v1359 = vadd.f32 %v1279, %v1358
    %v1360 = vpop.f32.mrb[0].mxu0
    %v1361 = vadd.f32 %v1280, %v1360
    %1362 = vdwg.mxu0
    %1363 = vset.pattern.permute.xlu0 126
    %1364 = vperm.xlu0 %1363, %v1256
    %v1365 = vpop.permute.xlu0 %1364
    %v1367 = vmul.f32 %v1365, %v220
    %v1368 = vmul.f32 %v1365, %v224
    %v1369 = vadd.f32 %v1359, %v1367
    %v1370 = vadd.f32 %v1361, %v1368
    %v1371 = vmax.f32 %v1369, -1.0
    %v1372 = vmax.f32 %v1370, -1.0
    %v1373 = vmin.f32 %v1371, 1.0
    %v1374 = vmin.f32 %v1372, 1.0
    %v1377 = vcombine.low %v1373, %v1374
    %v1379 = vunpack.c.l.s4 1983009808
    %v1380 = vunpack.c.0.s8 %v1379
    %v1381 = vlaneseq
    %v1382 = vshrl.u32 %v1381, 7
    %v1383 = vsub.s32 %v1380, %v1382
    %v1384 = vrot.slane %v1377, %v1383
    %1386 = vst [vmem:[%s4 + $0x28] sm:$0xf] %v1384
    %v1387 = vld [vmem:[%s0 + $0x2c] sm:$0xf]
    %1389 = vset.pattern.permute.xlu0 127
    %1390 = vperm.xlu0 %1389, %v1370
    %v1391 = vpop.permute.xlu0 %1390
    %v1393 = vmul.f32 %v1391, %v125
    %v1394 = vmul.f32 %v1391, %v129
    %v1397 = vunpack.c.l.s4 1983009808
    %v1398 = vunpack.c.0.s8 %v1397
    %v1399 = vlaneseq
    %v1400 = vshrl.u32 %v1399, 7
    %v1401 = vsub.s32 %v1398, %v1400
    %v1402 = vrot.slane %v1387, %v1401
    %v1403 = vcombine.high %v1402, %v1402
    %1406 = vmatprep.subr.mxu0 %v55
    %1407 = vmatpush1.msra.mxu0 %v54
    %1408 = vmatprep.subr.mxu0 %v57
    %1409 = vmatpush1.msra.mxu0 %v56
    %1410 = vmatprep.subr.mxu0 %v59
    %1411 = vmatpush1.msra.mxu0 %v58
    %1412 = vmatprep.subr.mxu0 %v61
    %1413 = vmatpush1.msra.mxu0 %v60
    %1414 = vmatprep.subr.mxu0 %v63
    %1415 = vmatpush1.msra.mxu0 %v62
    %1416 = vmatprep.subr.mxu0 %v65
    %1417 = vmatpush1.msra.mxu0 %v64
    %1418 = vmatprep.subr.mxu0 %v67
    %1419 = vmatpush1.msra.mxu0 %v66
    %1420 = vmatprep.subr.mxu0 %v69
    %1421 = vmatpush1.msra.mxu0 %v68
    %1422 = vmatprep.subr.mxu0 %v71
    %1423 = vmatpush1.msra.mxu0 %v70
    %1424 = vmatprep.subr.mxu0 %v73
    %1425 = vmatpush1.msra.mxu0 %v72
    %1426 = vmatprep.subr.mxu0 %v75
    %1427 = vmatpush1.msra.mxu0 %v74
    %1428 = vmatprep.subr.mxu0 %v77
    %1429 = vmatpush1.msra.mxu0 %v76
    %1430 = vmatprep.subr.mxu0 %v79
    %1431 = vmatpush1.msra.mxu0 %v78
    %1432 = vmatprep.subr.mxu0 %v81
    %1433 = vmatpush1.msra.mxu0 %v80
    %1434 = vmatprep.subr.mxu0 %v83
    %1435 = vmatpush1.msra.mxu0 %v82
    %1436 = vmatprep.subr.mxu0 %v85
    %1437 = vmatpush1.msra.mxu0 %v84
    %1438 = vmatprep.subr.mxu0 %v87
    %1439 = vmatpush1.msra.mxu0 %v86
    %1440 = vmatprep.subr.mxu0 %v89
    %1441 = vmatpush1.msra.mxu0 %v88
    %1442 = vmatprep.subr.mxu0 %v91
    %1443 = vmatpush1.msra.mxu0 %v90
    %1444 = vmatprep.subr.mxu0 %v93
    %1445 = vmatpush1.msra.mxu0 %v92
    %1446 = vmatprep.subr.mxu0 %v95
    %1447 = vmatpush1.msra.mxu0 %v94
    %1448 = vmatprep.subr.mxu0 %v97
    %1449 = vmatpush1.msra.mxu0 %v96
    %1450 = vmatprep.subr.mxu0 %v99
    %1451 = vmatpush1.msra.mxu0 %v98
    %1452 = vmatprep.subr.mxu0 %v101
    %1453 = vmatpush1.msra.mxu0 %v100
    %1454 = vmatprep.subr.mxu0 %v103
    %1455 = vmatpush1.msra.mxu0 %v102
    %1456 = vmatprep.subr.mxu0 %v105
    %1457 = vmatpush1.msra.mxu0 %v104
    %1458 = vmatprep.subr.mxu0 %v107
    %1459 = vmatpush1.msra.mxu0 %v106
    %1460 = vmatprep.subr.mxu0 %v109
    %1461 = vmatpush1.msra.mxu0 %v108
    %1462 = vmatprep.subr.mxu0 %v111
    %1463 = vmatpush1.msra.mxu0 %v110
    %1464 = vmatprep.subr.mxu0 %v113
    %1465 = vmatpush1.msra.mxu0 %v112
    %1466 = vmatprep.subr.mxu0 %v115
    %1467 = vmatpush1.msra.mxu0 %v114
    %1468 = vmatprep.subr.mxu0 %v117
    %1469 = vmatpush1.msra.mxu0 %v116
    %1470 = vmatprep.mubr.f32.mxu0 %v1403
    %1471 = vmatmul.mubr.f32.gmra.mrb[0].mxu0 %v1402
    %v1472 = vpop.f32.mrb[0].mxu0
    %v1473 = vadd.f32 %v1393, %v1472
    %v1474 = vpop.f32.mrb[0].mxu0
    %v1475 = vadd.f32 %v1394, %v1474
    %1476 = vdwg.mxu0
    %1477 = vset.pattern.permute.xlu0 126
    %1478 = vperm.xlu0 %1477, %v1370
    %v1479 = vpop.permute.xlu0 %1478
    %v1481 = vmul.f32 %v1479, %v220
    %v1482 = vmul.f32 %v1479, %v224
    %v1483 = vadd.f32 %v1473, %v1481
    %v1484 = vadd.f32 %v1475, %v1482
    %v1485 = vmax.f32 %v1483, -1.0
    %v1486 = vmax.f32 %v1484, -1.0
    %v1487 = vmin.f32 %v1485, 1.0
    %v1488 = vmin.f32 %v1486, 1.0
    %v1491 = vcombine.low %v1487, %v1488
    %v1493 = vunpack.c.l.s4 1983009808
    %v1494 = vunpack.c.0.s8 %v1493
    %v1495 = vlaneseq
    %v1496 = vshrl.u32 %v1495, 7
    %v1497 = vsub.s32 %v1494, %v1496
    %v1498 = vrot.slane %v1491, %v1497
    %1500 = vst [vmem:[%s4 + $0x2c] sm:$0xf] %v1498
    %v1501 = vld [vmem:[%s0 + $0x30] sm:$0xf]
    %1503 = vset.pattern.permute.xlu0 127
    %1504 = vperm.xlu0 %1503, %v1484
    %v1505 = vpop.permute.xlu0 %1504
    %v1507 = vmul.f32 %v1505, %v125
    %v1508 = vmul.f32 %v1505, %v129
    %v1511 = vunpack.c.l.s4 1983009808
    %v1512 = vunpack.c.0.s8 %v1511
    %v1513 = vlaneseq
    %v1514 = vshrl.u32 %v1513, 7
    %v1515 = vsub.s32 %v1512, %v1514
    %v1516 = vrot.slane %v1501, %v1515
    %v1517 = vcombine.high %v1516, %v1516
    %1520 = vmatprep.subr.mxu0 %v55
    %1521 = vmatpush1.msra.mxu0 %v54
    %1522 = vmatprep.subr.mxu0 %v57
    %1523 = vmatpush1.msra.mxu0 %v56
    %1524 = vmatprep.subr.mxu0 %v59
    %1525 = vmatpush1.msra.mxu0 %v58
    %1526 = vmatprep.subr.mxu0 %v61
    %1527 = vmatpush1.msra.mxu0 %v60
    %1528 = vmatprep.subr.mxu0 %v63
    %1529 = vmatpush1.msra.mxu0 %v62
    %1530 = vmatprep.subr.mxu0 %v65
    %1531 = vmatpush1.msra.mxu0 %v64
    %1532 = vmatprep.subr.mxu0 %v67
    %1533 = vmatpush1.msra.mxu0 %v66
    %1534 = vmatprep.subr.mxu0 %v69
    %1535 = vmatpush1.msra.mxu0 %v68
    %1536 = vmatprep.subr.mxu0 %v71
    %1537 = vmatpush1.msra.mxu0 %v70
    %1538 = vmatprep.subr.mxu0 %v73
    %1539 = vmatpush1.msra.mxu0 %v72
    %1540 = vmatprep.subr.mxu0 %v75
    %1541 = vmatpush1.msra.mxu0 %v74
    %1542 = vmatprep.subr.mxu0 %v77
    %1543 = vmatpush1.msra.mxu0 %v76
    %1544 = vmatprep.subr.mxu0 %v79
    %1545 = vmatpush1.msra.mxu0 %v78
    %1546 = vmatprep.subr.mxu0 %v81
    %1547 = vmatpush1.msra.mxu0 %v80
    %1548 = vmatprep.subr.mxu0 %v83
    %1549 = vmatpush1.msra.mxu0 %v82
    %1550 = vmatprep.subr.mxu0 %v85
    %1551 = vmatpush1.msra.mxu0 %v84
    %1552 = vmatprep.subr.mxu0 %v87
    %1553 = vmatpush1.msra.mxu0 %v86
    %1554 = vmatprep.subr.mxu0 %v89
    %1555 = vmatpush1.msra.mxu0 %v88
    %1556 = vmatprep.subr.mxu0 %v91
    %1557 = vmatpush1.msra.mxu0 %v90
    %1558 = vmatprep.subr.mxu0 %v93
    %1559 = vmatpush1.msra.mxu0 %v92
    %1560 = vmatprep.subr.mxu0 %v95
    %1561 = vmatpush1.msra.mxu0 %v94
    %1562 = vmatprep.subr.mxu0 %v97
    %1563 = vmatpush1.msra.mxu0 %v96
    %1564 = vmatprep.subr.mxu0 %v99
    %1565 = vmatpush1.msra.mxu0 %v98
    %1566 = vmatprep.subr.mxu0 %v101
    %1567 = vmatpush1.msra.mxu0 %v100
    %1568 = vmatprep.subr.mxu0 %v103
    %1569 = vmatpush1.msra.mxu0 %v102
    %1570 = vmatprep.subr.mxu0 %v105
    %1571 = vmatpush1.msra.mxu0 %v104
    %1572 = vmatprep.subr.mxu0 %v107
    %1573 = vmatpush1.msra.mxu0 %v106
    %1574 = vmatprep.subr.mxu0 %v109
    %1575 = vmatpush1.msra.mxu0 %v108
    %1576 = vmatprep.subr.mxu0 %v111
    %1577 = vmatpush1.msra.mxu0 %v110
    %1578 = vmatprep.subr.mxu0 %v113
    %1579 = vmatpush1.msra.mxu0 %v112
    %1580 = vmatprep.subr.mxu0 %v115
    %1581 = vmatpush1.msra.mxu0 %v114
    %1582 = vmatprep.subr.mxu0 %v117
    %1583 = vmatpush1.msra.mxu0 %v116
    %1584 = vmatprep.mubr.f32.mxu0 %v1517
    %1585 = vmatmul.mubr.f32.gmra.mrb[0].mxu0 %v1516
    %v1586 = vpop.f32.mrb[0].mxu0
    %v1587 = vadd.f32 %v1507, %v1586
    %v1588 = vpop.f32.mrb[0].mxu0
    %v1589 = vadd.f32 %v1508, %v1588
    %1590 = vdwg.mxu0
    %1591 = vset.pattern.permute.xlu0 126
    %1592 = vperm.xlu0 %1591, %v1484
    %v1593 = vpop.permute.xlu0 %1592
    %v1595 = vmul.f32 %v1593, %v220
    %v1596 = vmul.f32 %v1593, %v224
    %v1597 = vadd.f32 %v1587, %v1595
    %v1598 = vadd.f32 %v1589, %v1596
    %v1599 = vmax.f32 %v1597, -1.0
    %v1600 = vmax.f32 %v1598, -1.0
    %v1601 = vmin.f32 %v1599, 1.0
    %v1602 = vmin.f32 %v1600, 1.0
    %v1605 = vcombine.low %v1601, %v1602
    %v1607 = vunpack.c.l.s4 1983009808
    %v1608 = vunpack.c.0.s8 %v1607
    %v1609 = vlaneseq
    %v1610 = vshrl.u32 %v1609, 7
    %v1611 = vsub.s32 %v1608, %v1610
    %v1612 = vrot.slane %v1605, %v1611
    %1614 = vst [vmem:[%s4 + $0x30] sm:$0xf] %v1612
    %v1615 = vld [vmem:[%s0 + $0x34] sm:$0xf]
    %1617 = vset.pattern.permute.xlu0 127
    %1618 = vperm.xlu0 %1617, %v1598
    %v1619 = vpop.permute.xlu0 %1618
    %v1621 = vmul.f32 %v1619, %v125
    %v1622 = vmul.f32 %v1619, %v129
    %v1625 = vunpack.c.l.s4 1983009808
    %v1626 = vunpack.c.0.s8 %v1625
    %v1627 = vlaneseq
    %v1628 = vshrl.u32 %v1627, 7
    %v1629 = vsub.s32 %v1626, %v1628
    %v1630 = vrot.slane %v1615, %v1629
    %v1631 = vcombine.high %v1630, %v1630
    %1634 = vmatprep.subr.mxu0 %v55
    %1635 = vmatpush1.msra.mxu0 %v54
    %1636 = vmatprep.subr.mxu0 %v57
    %1637 = vmatpush1.msra.mxu0 %v56
    %1638 = vmatprep.subr.mxu0 %v59
    %1639 = vmatpush1.msra.mxu0 %v58
    %1640 = vmatprep.subr.mxu0 %v61
    %1641 = vmatpush1.msra.mxu0 %v60
    %1642 = vmatprep.subr.mxu0 %v63
    %1643 = vmatpush1.msra.mxu0 %v62
    %1644 = vmatprep.subr.mxu0 %v65
    %1645 = vmatpush1.msra.mxu0 %v64
    %1646 = vmatprep.subr.mxu0 %v67
    %1647 = vmatpush1.msra.mxu0 %v66
    %1648 = vmatprep.subr.mxu0 %v69
    %1649 = vmatpush1.msra.mxu0 %v68
    %1650 = vmatprep.subr.mxu0 %v71
    %1651 = vmatpush1.msra.mxu0 %v70
    %1652 = vmatprep.subr.mxu0 %v73
    %1653 = vmatpush1.msra.mxu0 %v72
    %1654 = vmatprep.subr.mxu0 %v75
    %1655 = vmatpush1.msra.mxu0 %v74
    %1656 = vmatprep.subr.mxu0 %v77
    %1657 = vmatpush1.msra.mxu0 %v76
    %1658 = vmatprep.subr.mxu0 %v79
    %1659 = vmatpush1.msra.mxu0 %v78
    %1660 = vmatprep.subr.mxu0 %v81
    %1661 = vmatpush1.msra.mxu0 %v80
    %1662 = vmatprep.subr.mxu0 %v83
    %1663 = vmatpush1.msra.mxu0 %v82
    %1664 = vmatprep.subr.mxu0 %v85
    %1665 = vmatpush1.msra.mxu0 %v84
    %1666 = vmatprep.subr.mxu0 %v87
    %1667 = vmatpush1.msra.mxu0 %v86
    %1668 = vmatprep.subr.mxu0 %v89
    %1669 = vmatpush1.msra.mxu0 %v88
    %1670 = vmatprep.subr.mxu0 %v91
    %1671 = vmatpush1.msra.mxu0 %v90
    %1672 = vmatprep.subr.mxu0 %v93
    %1673 = vmatpush1.msra.mxu0 %v92
    %1674 = vmatprep.subr.mxu0 %v95
    %1675 = vmatpush1.msra.mxu0 %v94
    %1676 = vmatprep.subr.mxu0 %v97
    %1677 = vmatpush1.msra.mxu0 %v96
    %1678 = vmatprep.subr.mxu0 %v99
    %1679 = vmatpush1.msra.mxu0 %v98
    %1680 = vmatprep.subr.mxu0 %v101
    %1681 = vmatpush1.msra.mxu0 %v100
    %1682 = vmatprep.subr.mxu0 %v103
    %1683 = vmatpush1.msra.mxu0 %v102
    %1684 = vmatprep.subr.mxu0 %v105
    %1685 = vmatpush1.msra.mxu0 %v104
    %1686 = vmatprep.subr.mxu0 %v107
    %1687 = vmatpush1.msra.mxu0 %v106
    %1688 = vmatprep.subr.mxu0 %v109
    %1689 = vmatpush1.msra.mxu0 %v108
    %1690 = vmatprep.subr.mxu0 %v111
    %1691 = vmatpush1.msra.mxu0 %v110
    %1692 = vmatprep.subr.mxu0 %v113
    %1693 = vmatpush1.msra.mxu0 %v112
    %1694 = vmatprep.subr.mxu0 %v115
    %1695 = vmatpush1.msra.mxu0 %v114
    %1696 = vmatprep.subr.mxu0 %v117
    %1697 = vmatpush1.msra.mxu0 %v116
    %1698 = vmatprep.mubr.f32.mxu0 %v1631
    %1699 = vmatmul.mubr.f32.gmra.mrb[0].mxu0 %v1630
    %v1700 = vpop.f32.mrb[0].mxu0
    %v1701 = vadd.f32 %v1621, %v1700
    %v1702 = vpop.f32.mrb[0].mxu0
    %v1703 = vadd.f32 %v1622, %v1702
    %1704 = vdwg.mxu0
    %1705 = vset.pattern.permute.xlu0 126
    %1706 = vperm.xlu0 %1705, %v1598
    %v1707 = vpop.permute.xlu0 %1706
    %v1709 = vmul.f32 %v1707, %v220
    %v1710 = vmul.f32 %v1707, %v224
    %v1711 = vadd.f32 %v1701, %v1709
    %v1712 = vadd.f32 %v1703, %v1710
    %v1713 = vmax.f32 %v1711, -1.0
    %v1714 = vmax.f32 %v1712, -1.0
    %v1715 = vmin.f32 %v1713, 1.0
    %v1716 = vmin.f32 %v1714, 1.0
    %v1719 = vcombine.low %v1715, %v1716
    %v1721 = vunpack.c.l.s4 1983009808
    %v1722 = vunpack.c.0.s8 %v1721
    %v1723 = vlaneseq
    %v1724 = vshrl.u32 %v1723, 7
    %v1725 = vsub.s32 %v1722, %v1724
    %v1726 = vrot.slane %v1719, %v1725
    %1728 = vst [vmem:[%s4 + $0x34] sm:$0xf] %v1726
    %v1729 = vld [vmem:[%s0 + $0x38] sm:$0xf]
    %1731 = vset.pattern.permute.xlu0 127
    %1732 = vperm.xlu0 %1731, %v1712
    %v1733 = vpop.permute.xlu0 %1732
    %v1735 = vmul.f32 %v1733, %v125
    %v1736 = vmul.f32 %v1733, %v129
    %v1739 = vunpack.c.l.s4 1983009808
    %v1740 = vunpack.c.0.s8 %v1739
    %v1741 = vlaneseq
    %v1742 = vshrl.u32 %v1741, 7
    %v1743 = vsub.s32 %v1740, %v1742
    %v1744 = vrot.slane %v1729, %v1743
    %v1745 = vcombine.high %v1744, %v1744
    %1748 = vmatprep.subr.mxu0 %v55
    %1749 = vmatpush1.msra.mxu0 %v54
    %1750 = vmatprep.subr.mxu0 %v57
    %1751 = vmatpush1.msra.mxu0 %v56
    %1752 = vmatprep.subr.mxu0 %v59
    %1753 = vmatpush1.msra.mxu0 %v58
    %1754 = vmatprep.subr.mxu0 %v61
    %1755 = vmatpush1.msra.mxu0 %v60
    %1756 = vmatprep.subr.mxu0 %v63
    %1757 = vmatpush1.msra.mxu0 %v62
    %1758 = vmatprep.subr.mxu0 %v65
    %1759 = vmatpush1.msra.mxu0 %v64
    %1760 = vmatprep.subr.mxu0 %v67
    %1761 = vmatpush1.msra.mxu0 %v66
    %1762 = vmatprep.subr.mxu0 %v69
    %1763 = vmatpush1.msra.mxu0 %v68
    %1764 = vmatprep.subr.mxu0 %v71
    %1765 = vmatpush1.msra.mxu0 %v70
    %1766 = vmatprep.subr.mxu0 %v73
    %1767 = vmatpush1.msra.mxu0 %v72
    %1768 = vmatprep.subr.mxu0 %v75
    %1769 = vmatpush1.msra.mxu0 %v74
    %1770 = vmatprep.subr.mxu0 %v77
    %1771 = vmatpush1.msra.mxu0 %v76
    %1772 = vmatprep.subr.mxu0 %v79
    %1773 = vmatpush1.msra.mxu0 %v78
    %1774 = vmatprep.subr.mxu0 %v81
    %1775 = vmatpush1.msra.mxu0 %v80
    %1776 = vmatprep.subr.mxu0 %v83
    %1777 = vmatpush1.msra.mxu0 %v82
    %1778 = vmatprep.subr.mxu0 %v85
    %1779 = vmatpush1.msra.mxu0 %v84
    %1780 = vmatprep.subr.mxu0 %v87
    %1781 = vmatpush1.msra.mxu0 %v86
    %1782 = vmatprep.subr.mxu0 %v89
    %1783 = vmatpush1.msra.mxu0 %v88
    %1784 = vmatprep.subr.mxu0 %v91
    %1785 = vmatpush1.msra.mxu0 %v90
    %1786 = vmatprep.subr.mxu0 %v93
    %1787 = vmatpush1.msra.mxu0 %v92
    %1788 = vmatprep.subr.mxu0 %v95
    %1789 = vmatpush1.msra.mxu0 %v94
    %1790 = vmatprep.subr.mxu0 %v97
    %1791 = vmatpush1.msra.mxu0 %v96
    %1792 = vmatprep.subr.mxu0 %v99
    %1793 = vmatpush1.msra.mxu0 %v98
    %1794 = vmatprep.subr.mxu0 %v101
    %1795 = vmatpush1.msra.mxu0 %v100
    %1796 = vmatprep.subr.mxu0 %v103
    %1797 = vmatpush1.msra.mxu0 %v102
    %1798 = vmatprep.subr.mxu0 %v105
    %1799 = vmatpush1.msra.mxu0 %v104
    %1800 = vmatprep.subr.mxu0 %v107
    %1801 = vmatpush1.msra.mxu0 %v106
    %1802 = vmatprep.subr.mxu0 %v109
    %1803 = vmatpush1.msra.mxu0 %v108
    %1804 = vmatprep.subr.mxu0 %v111
    %1805 = vmatpush1.msra.mxu0 %v110
    %1806 = vmatprep.subr.mxu0 %v113
    %1807 = vmatpush1.msra.mxu0 %v112
    %1808 = vmatprep.subr.mxu0 %v115
    %1809 = vmatpush1.msra.mxu0 %v114
    %1810 = vmatprep.subr.mxu0 %v117
    %1811 = vmatpush1.msra.mxu0 %v116
    %1812 = vmatprep.mubr.f32.mxu0 %v1745
    %1813 = vmatmul.mubr.f32.gmra.mrb[0].mxu0 %v1744
    %v1814 = vpop.f32.mrb[0].mxu0
    %v1815 = vadd.f32 %v1735, %v1814
    %v1816 = vpop.f32.mrb[0].mxu0
    %v1817 = vadd.f32 %v1736, %v1816
    %1818 = vdwg.mxu0
    %1819 = vset.pattern.permute.xlu0 126
    %1820 = vperm.xlu0 %1819, %v1712
    %v1821 = vpop.permute.xlu0 %1820
    %v1823 = vmul.f32 %v1821, %v220
    %v1824 = vmul.f32 %v1821, %v224
    %v1825 = vadd.f32 %v1815, %v1823
    %v1826 = vadd.f32 %v1817, %v1824
    %v1827 = vmax.f32 %v1825, -1.0
    %v1828 = vmax.f32 %v1826, -1.0
    %v1829 = vmin.f32 %v1827, 1.0
    %v1830 = vmin.f32 %v1828, 1.0
    %v1833 = vcombine.low %v1829, %v1830
    %v1835 = vunpack.c.l.s4 1983009808
    %v1836 = vunpack.c.0.s8 %v1835
    %v1837 = vlaneseq
    %v1838 = vshrl.u32 %v1837, 7
    %v1839 = vsub.s32 %v1836, %v1838
    %v1840 = vrot.slane %v1833, %v1839
    %1842 = vst [vmem:[%s4 + $0x38] sm:$0xf] %v1840
    %v1843 = vld [vmem:[%s0 + $0x3c] sm:$0xf]
    %1845 = vset.pattern.permute.xlu0 127
    %1846 = vperm.xlu0 %1845, %v1826
    %v1847 = vpop.permute.xlu0 %1846
    %v1849 = vmul.f32 %v1847, %v125
    %v1850 = vmul.f32 %v1847, %v129
    %v1853 = vunpack.c.l.s4 1983009808
    %v1854 = vunpack.c.0.s8 %v1853
    %v1855 = vlaneseq
    %v1856 = vshrl.u32 %v1855, 7
    %v1857 = vsub.s32 %v1854, %v1856
    %v1858 = vrot.slane %v1843, %v1857
    %v1859 = vcombine.high %v1858, %v1858
    %1862 = vmatprep.subr.mxu0 %v55
    %1863 = vmatpush1.msra.mxu0 %v54
    %1864 = vmatprep.subr.mxu0 %v57
    %1865 = vmatpush1.msra.mxu0 %v56
    %1866 = vmatprep.subr.mxu0 %v59
    %1867 = vmatpush1.msra.mxu0 %v58
    %1868 = vmatprep.subr.mxu0 %v61
    %1869 = vmatpush1.msra.mxu0 %v60
    %1870 = vmatprep.subr.mxu0 %v63
    %1871 = vmatpush1.msra.mxu0 %v62
    %1872 = vmatprep.subr.mxu0 %v65
    %1873 = vmatpush1.msra.mxu0 %v64
    %1874 = vmatprep.subr.mxu0 %v67
    %1875 = vmatpush1.msra.mxu0 %v66
    %1876 = vmatprep.subr.mxu0 %v69
    %1877 = vmatpush1.msra.mxu0 %v68
    %1878 = vmatprep.subr.mxu0 %v71
    %1879 = vmatpush1.msra.mxu0 %v70
    %1880 = vmatprep.subr.mxu0 %v73
    %1881 = vmatpush1.msra.mxu0 %v72
    %1882 = vmatprep.subr.mxu0 %v75
    %1883 = vmatpush1.msra.mxu0 %v74
    %1884 = vmatprep.subr.mxu0 %v77
    %1885 = vmatpush1.msra.mxu0 %v76
    %1886 = vmatprep.subr.mxu0 %v79
    %1887 = vmatpush1.msra.mxu0 %v78
    %1888 = vmatprep.subr.mxu0 %v81
    %1889 = vmatpush1.msra.mxu0 %v80
    %1890 = vmatprep.subr.mxu0 %v83
    %1891 = vmatpush1.msra.mxu0 %v82
    %1892 = vmatprep.subr.mxu0 %v85
    %1893 = vmatpush1.msra.mxu0 %v84
    %1894 = vmatprep.subr.mxu0 %v87
    %1895 = vmatpush1.msra.mxu0 %v86
    %1896 = vmatprep.subr.mxu0 %v89
    %1897 = vmatpush1.msra.mxu0 %v88
    %1898 = vmatprep.subr.mxu0 %v91
    %1899 = vmatpush1.msra.mxu0 %v90
    %1900 = vmatprep.subr.mxu0 %v93
    %1901 = vmatpush1.msra.mxu0 %v92
    %1902 = vmatprep.subr.mxu0 %v95
    %1903 = vmatpush1.msra.mxu0 %v94
    %1904 = vmatprep.subr.mxu0 %v97
    %1905 = vmatpush1.msra.mxu0 %v96
    %1906 = vmatprep.subr.mxu0 %v99
    %1907 = vmatpush1.msra.mxu0 %v98
    %1908 = vmatprep.subr.mxu0 %v101
    %1909 = vmatpush1.msra.mxu0 %v100
    %1910 = vmatprep.subr.mxu0 %v103
    %1911 = vmatpush1.msra.mxu0 %v102
    %1912 = vmatprep.subr.mxu0 %v105
    %1913 = vmatpush1.msra.mxu0 %v104
    %1914 = vmatprep.subr.mxu0 %v107
    %1915 = vmatpush1.msra.mxu0 %v106
    %1916 = vmatprep.subr.mxu0 %v109
    %1917 = vmatpush1.msra.mxu0 %v108
    %1918 = vmatprep.subr.mxu0 %v111
    %1919 = vmatpush1.msra.mxu0 %v110
    %1920 = vmatprep.subr.mxu0 %v113
    %1921 = vmatpush1.msra.mxu0 %v112
    %1922 = vmatprep.subr.mxu0 %v115
    %1923 = vmatpush1.msra.mxu0 %v114
    %1924 = vmatprep.subr.mxu0 %v117
    %1925 = vmatpush1.msra.mxu0 %v116
    %1926 = vmatprep.mubr.f32.mxu0 %v1859
    %1927 = vmatmul.mubr.f32.gmra.mrb[0].mxu0 %v1858
    %v1928 = vpop.f32.mrb[0].mxu0
    %v1929 = vadd.f32 %v1849, %v1928
    %v1930 = vpop.f32.mrb[0].mxu0
    %v1931 = vadd.f32 %v1850, %v1930
    %1932 = vdwg.mxu0
    %1933 = vset.pattern.permute.xlu0 126
    %1934 = vperm.xlu0 %1933, %v1826
    %v1935 = vpop.permute.xlu0 %1934
    %v1937 = vmul.f32 %v1935, %v220
    %v1938 = vmul.f32 %v1935, %v224
    %v1939 = vadd.f32 %v1929, %v1937
    %v1940 = vadd.f32 %v1931, %v1938
    %v1941 = vmax.f32 %v1939, -1.0
    %v1942 = vmax.f32 %v1940, -1.0
    %v1943 = vmin.f32 %v1941, 1.0
    %v1944 = vmin.f32 %v1942, 1.0
    %v1947 = vcombine.low %v1943, %v1944
    %v1949 = vunpack.c.l.s4 1983009808
    %v1950 = vunpack.c.0.s8 %v1949
    %v1951 = vlaneseq
    %v1952 = vshrl.u32 %v1951, 7
    %v1953 = vsub.s32 %v1950, %v1952
    %v1954 = vrot.slane %v1947, %v1953
    %1956 = vst [vmem:[%s4 + $0x3c] sm:$0xf] %v1954
    %v1957 = vld [vmem:[%s0 + $0x40] sm:$0xf]
    %1959 = vset.pattern.permute.xlu0 127
    %1960 = vperm.xlu0 %1959, %v1940
    %v1961 = vpop.permute.xlu0 %1960
    %v1963 = vmul.f32 %v1961, %v125
    %v1964 = vmul.f32 %v1961, %v129
    %v1967 = vunpack.c.l.s4 1983009808
    %v1968 = vunpack.c.0.s8 %v1967
    %v1969 = vlaneseq
    %v1970 = vshrl.u32 %v1969, 7
    %v1971 = vsub.s32 %v1968, %v1970
    %v1972 = vrot.slane %v1957, %v1971
    %v1973 = vcombine.high %v1972, %v1972
    %1976 = vmatprep.subr.mxu0 %v55
    %1977 = vmatpush1.msra.mxu0 %v54
    %1978 = vmatprep.subr.mxu0 %v57
    %1979 = vmatpush1.msra.mxu0 %v56
    %1980 = vmatprep.subr.mxu0 %v59
    %1981 = vmatpush1.msra.mxu0 %v58
    %1982 = vmatprep.subr.mxu0 %v61
    %1983 = vmatpush1.msra.mxu0 %v60
    %1984 = vmatprep.subr.mxu0 %v63
    %1985 = vmatpush1.msra.mxu0 %v62
    %1986 = vmatprep.subr.mxu0 %v65
    %1987 = vmatpush1.msra.mxu0 %v64
    %1988 = vmatprep.subr.mxu0 %v67
    %1989 = vmatpush1.msra.mxu0 %v66
    %1990 = vmatprep.subr.mxu0 %v69
    %1991 = vmatpush1.msra.mxu0 %v68
    %1992 = vmatprep.subr.mxu0 %v71
    %1993 = vmatpush1.msra.mxu0 %v70
    %1994 = vmatprep.subr.mxu0 %v73
    %1995 = vmatpush1.msra.mxu0 %v72
    %1996 = vmatprep.subr.mxu0 %v75
    %1997 = vmatpush1.msra.mxu0 %v74
    %1998 = vmatprep.subr.mxu0 %v77
    %1999 = vmatpush1.msra.mxu0 %v76
    %2000 = vmatprep.subr.mxu0 %v79
    %2001 = vmatpush1.msra.mxu0 %v78
    %2002 = vmatprep.subr.mxu0 %v81
    %2003 = vmatpush1.msra.mxu0 %v80
    %2004 = vmatprep.subr.mxu0 %v83
    %2005 = vmatpush1.msra.mxu0 %v82
    %2006 = vmatprep.subr.mxu0 %v85
    %2007 = vmatpush1.msra.mxu0 %v84
    %2008 = vmatprep.subr.mxu0 %v87
    %2009 = vmatpush1.msra.mxu0 %v86
    %2010 = vmatprep.subr.mxu0 %v89
    %2011 = vmatpush1.msra.mxu0 %v88
    %2012 = vmatprep.subr.mxu0 %v91
    %2013 = vmatpush1.msra.mxu0 %v90
    %2014 = vmatprep.subr.mxu0 %v93
    %2015 = vmatpush1.msra.mxu0 %v92
    %2016 = vmatprep.subr.mxu0 %v95
    %2017 = vmatpush1.msra.mxu0 %v94
    %2018 = vmatprep.subr.mxu0 %v97
    %2019 = vmatpush1.msra.mxu0 %v96
    %2020 = vmatprep.subr.mxu0 %v99
    %2021 = vmatpush1.msra.mxu0 %v98
    %2022 = vmatprep.subr.mxu0 %v101
    %2023 = vmatpush1.msra.mxu0 %v100
    %2024 = vmatprep.subr.mxu0 %v103
    %2025 = vmatpush1.msra.mxu0 %v102
    %2026 = vmatprep.subr.mxu0 %v105
    %2027 = vmatpush1.msra.mxu0 %v104
    %2028 = vmatprep.subr.mxu0 %v107
    %2029 = vmatpush1.msra.mxu0 %v106
    %2030 = vmatprep.subr.mxu0 %v109
    %2031 = vmatpush1.msra.mxu0 %v108
    %2032 = vmatprep.subr.mxu0 %v111
    %2033 = vmatpush1.msra.mxu0 %v110
    %2034 = vmatprep.subr.mxu0 %v113
    %2035 = vmatpush1.msra.mxu0 %v112
    %2036 = vmatprep.subr.mxu0 %v115
    %2037 = vmatpush1.msra.mxu0 %v114
    %2038 = vmatprep.subr.mxu0 %v117
    %2039 = vmatpush1.msra.mxu0 %v116
    %2040 = vmatprep.mubr.f32.mxu0 %v1973
    %2041 = vmatmul.mubr.f32.gmra.mrb[0].mxu0 %v1972
    %v2042 = vpop.f32.mrb[0].mxu0
    %v2043 = vadd.f32 %v1963, %v2042
    %v2044 = vpop.f32.mrb[0].mxu0
    %v2045 = vadd.f32 %v1964, %v2044
    %2046 = vdwg.mxu0
    %2047 = vset.pattern.permute.xlu0 126
    %2048 = vperm.xlu0 %2047, %v1940
    %v2049 = vpop.permute.xlu0 %2048
    %v2051 = vmul.f32 %v2049, %v220
    %v2052 = vmul.f32 %v2049, %v224
    %v2053 = vadd.f32 %v2043, %v2051
    %v2054 = vadd.f32 %v2045, %v2052
    %v2055 = vmax.f32 %v2053, -1.0
    %v2056 = vmax.f32 %v2054, -1.0
    %v2057 = vmin.f32 %v2055, 1.0
    %v2058 = vmin.f32 %v2056, 1.0
    %v2061 = vcombine.low %v2057, %v2058
    %v2063 = vunpack.c.l.s4 1983009808
    %v2064 = vunpack.c.0.s8 %v2063
    %v2065 = vlaneseq
    %v2066 = vshrl.u32 %v2065, 7
    %v2067 = vsub.s32 %v2064, %v2066
    %v2068 = vrot.slane %v2061, %v2067
    %2070 = vst [vmem:[%s4 + $0x40] sm:$0xf] %v2068
    %v2071 = vld [vmem:[%s0 + $0x44] sm:$0xf]
    %2073 = vset.pattern.permute.xlu0 127
    %2074 = vperm.xlu0 %2073, %v2054
    %v2075 = vpop.permute.xlu0 %2074
    %v2077 = vmul.f32 %v2075, %v125
    %v2078 = vmul.f32 %v2075, %v129
    %v2081 = vunpack.c.l.s4 1983009808
    %v2082 = vunpack.c.0.s8 %v2081
    %v2083 = vlaneseq
    %v2084 = vshrl.u32 %v2083, 7
    %v2085 = vsub.s32 %v2082, %v2084
    %v2086 = vrot.slane %v2071, %v2085
    %v2087 = vcombine.high %v2086, %v2086
    %2090 = vmatprep.subr.mxu0 %v55
    %2091 = vmatpush1.msra.mxu0 %v54
    %2092 = vmatprep.subr.mxu0 %v57
    %2093 = vmatpush1.msra.mxu0 %v56
    %2094 = vmatprep.subr.mxu0 %v59
    %2095 = vmatpush1.msra.mxu0 %v58
    %2096 = vmatprep.subr.mxu0 %v61
    %2097 = vmatpush1.msra.mxu0 %v60
    %2098 = vmatprep.subr.mxu0 %v63
    %2099 = vmatpush1.msra.mxu0 %v62
    %2100 = vmatprep.subr.mxu0 %v65
    %2101 = vmatpush1.msra.mxu0 %v64
    %2102 = vmatprep.subr.mxu0 %v67
    %2103 = vmatpush1.msra.mxu0 %v66
    %2104 = vmatprep.subr.mxu0 %v69
    %2105 = vmatpush1.msra.mxu0 %v68
    %2106 = vmatprep.subr.mxu0 %v71
    %2107 = vmatpush1.msra.mxu0 %v70
    %2108 = vmatprep.subr.mxu0 %v73
    %2109 = vmatpush1.msra.mxu0 %v72
    %2110 = vmatprep.subr.mxu0 %v75
    %2111 = vmatpush1.msra.mxu0 %v74
    %2112 = vmatprep.subr.mxu0 %v77
    %2113 = vmatpush1.msra.mxu0 %v76
    %2114 = vmatprep.subr.mxu0 %v79
    %2115 = vmatpush1.msra.mxu0 %v78
    %2116 = vmatprep.subr.mxu0 %v81
    %2117 = vmatpush1.msra.mxu0 %v80
    %2118 = vmatprep.subr.mxu0 %v83
    %2119 = vmatpush1.msra.mxu0 %v82
    %2120 = vmatprep.subr.mxu0 %v85
    %2121 = vmatpush1.msra.mxu0 %v84
    %2122 = vmatprep.subr.mxu0 %v87
    %2123 = vmatpush1.msra.mxu0 %v86
    %2124 = vmatprep.subr.mxu0 %v89
    %2125 = vmatpush1.msra.mxu0 %v88
    %2126 = vmatprep.subr.mxu0 %v91
    %2127 = vmatpush1.msra.mxu0 %v90
    %2128 = vmatprep.subr.mxu0 %v93
    %2129 = vmatpush1.msra.mxu0 %v92
    %2130 = vmatprep.subr.mxu0 %v95
    %2131 = vmatpush1.msra.mxu0 %v94
    %2132 = vmatprep.subr.mxu0 %v97
    %2133 = vmatpush1.msra.mxu0 %v96
    %2134 = vmatprep.subr.mxu0 %v99
    %2135 = vmatpush1.msra.mxu0 %v98
    %2136 = vmatprep.subr.mxu0 %v101
    %2137 = vmatpush1.msra.mxu0 %v100
    %2138 = vmatprep.subr.mxu0 %v103
    %2139 = vmatpush1.msra.mxu0 %v102
    %2140 = vmatprep.subr.mxu0 %v105
    %2141 = vmatpush1.msra.mxu0 %v104
    %2142 = vmatprep.subr.mxu0 %v107
    %2143 = vmatpush1.msra.mxu0 %v106
    %2144 = vmatprep.subr.mxu0 %v109
    %2145 = vmatpush1.msra.mxu0 %v108
    %2146 = vmatprep.subr.mxu0 %v111
    %2147 = vmatpush1.msra.mxu0 %v110
    %2148 = vmatprep.subr.mxu0 %v113
    %2149 = vmatpush1.msra.mxu0 %v112
    %2150 = vmatprep.subr.mxu0 %v115
    %2151 = vmatpush1.msra.mxu0 %v114
    %2152 = vmatprep.subr.mxu0 %v117
    %2153 = vmatpush1.msra.mxu0 %v116
    %2154 = vmatprep.mubr.f32.mxu0 %v2087
    %2155 = vmatmul.mubr.f32.gmra.mrb[0].mxu0 %v2086
    %v2156 = vpop.f32.mrb[0].mxu0
    %v2157 = vadd.f32 %v2077, %v2156
    %v2158 = vpop.f32.mrb[0].mxu0
    %v2159 = vadd.f32 %v2078, %v2158
    %2160 = vdwg.mxu0
    %2161 = vset.pattern.permute.xlu0 126
    %2162 = vperm.xlu0 %2161, %v2054
    %v2163 = vpop.permute.xlu0 %2162
    %v2165 = vmul.f32 %v2163, %v220
    %v2166 = vmul.f32 %v2163, %v224
    %v2167 = vadd.f32 %v2157, %v2165
    %v2168 = vadd.f32 %v2159, %v2166
    %v2169 = vmax.f32 %v2167, -1.0
    %v2170 = vmax.f32 %v2168, -1.0
    %v2171 = vmin.f32 %v2169, 1.0
    %v2172 = vmin.f32 %v2170, 1.0
    %v2175 = vcombine.low %v2171, %v2172
    %v2177 = vunpack.c.l.s4 1983009808
    %v2178 = vunpack.c.0.s8 %v2177
    %v2179 = vlaneseq
    %v2180 = vshrl.u32 %v2179, 7
    %v2181 = vsub.s32 %v2178, %v2180
    %v2182 = vrot.slane %v2175, %v2181
    %2184 = vst [vmem:[%s4 + $0x44] sm:$0xf] %v2182
    %v2185 = vld [vmem:[%s0 + $0x48] sm:$0xf]
    %2187 = vset.pattern.permute.xlu0 127
    %2188 = vperm.xlu0 %2187, %v2168
    %v2189 = vpop.permute.xlu0 %2188
    %v2191 = vmul.f32 %v2189, %v125
    %v2192 = vmul.f32 %v2189, %v129
    %v2195 = vunpack.c.l.s4 1983009808
    %v2196 = vunpack.c.0.s8 %v2195
    %v2197 = vlaneseq
    %v2198 = vshrl.u32 %v2197, 7
    %v2199 = vsub.s32 %v2196, %v2198
    %v2200 = vrot.slane %v2185, %v2199
    %v2201 = vcombine.high %v2200, %v2200
    %2204 = vmatprep.subr.mxu0 %v55
    %2205 = vmatpush1.msra.mxu0 %v54
    %2206 = vmatprep.subr.mxu0 %v57
    %2207 = vmatpush1.msra.mxu0 %v56
    %2208 = vmatprep.subr.mxu0 %v59
    %2209 = vmatpush1.msra.mxu0 %v58
    %2210 = vmatprep.subr.mxu0 %v61
    %2211 = vmatpush1.msra.mxu0 %v60
    %2212 = vmatprep.subr.mxu0 %v63
    %2213 = vmatpush1.msra.mxu0 %v62
    %2214 = vmatprep.subr.mxu0 %v65
    %2215 = vmatpush1.msra.mxu0 %v64
    %2216 = vmatprep.subr.mxu0 %v67
    %2217 = vmatpush1.msra.mxu0 %v66
    %2218 = vmatprep.subr.mxu0 %v69
    %2219 = vmatpush1.msra.mxu0 %v68
    %2220 = vmatprep.subr.mxu0 %v71
    %2221 = vmatpush1.msra.mxu0 %v70
    %2222 = vmatprep.subr.mxu0 %v73
    %2223 = vmatpush1.msra.mxu0 %v72
    %2224 = vmatprep.subr.mxu0 %v75
    %2225 = vmatpush1.msra.mxu0 %v74
    %2226 = vmatprep.subr.mxu0 %v77
    %2227 = vmatpush1.msra.mxu0 %v76
    %2228 = vmatprep.subr.mxu0 %v79
    %2229 = vmatpush1.msra.mxu0 %v78
    %2230 = vmatprep.subr.mxu0 %v81
    %2231 = vmatpush1.msra.mxu0 %v80
    %2232 = vmatprep.subr.mxu0 %v83
    %2233 = vmatpush1.msra.mxu0 %v82
    %2234 = vmatprep.subr.mxu0 %v85
    %2235 = vmatpush1.msra.mxu0 %v84
    %2236 = vmatprep.subr.mxu0 %v87
    %2237 = vmatpush1.msra.mxu0 %v86
    %2238 = vmatprep.subr.mxu0 %v89
    %2239 = vmatpush1.msra.mxu0 %v88
    %2240 = vmatprep.subr.mxu0 %v91
    %2241 = vmatpush1.msra.mxu0 %v90
    %2242 = vmatprep.subr.mxu0 %v93
    %2243 = vmatpush1.msra.mxu0 %v92
    %2244 = vmatprep.subr.mxu0 %v95
    %2245 = vmatpush1.msra.mxu0 %v94
    %2246 = vmatprep.subr.mxu0 %v97
    %2247 = vmatpush1.msra.mxu0 %v96
    %2248 = vmatprep.subr.mxu0 %v99
    %2249 = vmatpush1.msra.mxu0 %v98
    %2250 = vmatprep.subr.mxu0 %v101
    %2251 = vmatpush1.msra.mxu0 %v100
    %2252 = vmatprep.subr.mxu0 %v103
    %2253 = vmatpush1.msra.mxu0 %v102
    %2254 = vmatprep.subr.mxu0 %v105
    %2255 = vmatpush1.msra.mxu0 %v104
    %2256 = vmatprep.subr.mxu0 %v107
    %2257 = vmatpush1.msra.mxu0 %v106
    %2258 = vmatprep.subr.mxu0 %v109
    %2259 = vmatpush1.msra.mxu0 %v108
    %2260 = vmatprep.subr.mxu0 %v111
    %2261 = vmatpush1.msra.mxu0 %v110
    %2262 = vmatprep.subr.mxu0 %v113
    %2263 = vmatpush1.msra.mxu0 %v112
    %2264 = vmatprep.subr.mxu0 %v115
    %2265 = vmatpush1.msra.mxu0 %v114
    %2266 = vmatprep.subr.mxu0 %v117
    %2267 = vmatpush1.msra.mxu0 %v116
    %2268 = vmatprep.mubr.f32.mxu0 %v2201
    %2269 = vmatmul.mubr.f32.gmra.mrb[0].mxu0 %v2200
    %v2270 = vpop.f32.mrb[0].mxu0
    %v2271 = vadd.f32 %v2191, %v2270
    %v2272 = vpop.f32.mrb[0].mxu0
    %v2273 = vadd.f32 %v2192, %v2272
    %2274 = vdwg.mxu0
    %2275 = vset.pattern.permute.xlu0 126
    %2276 = vperm.xlu0 %2275, %v2168
    %v2277 = vpop.permute.xlu0 %2276
    %v2279 = vmul.f32 %v2277, %v220
    %v2280 = vmul.f32 %v2277, %v224
    %v2281 = vadd.f32 %v2271, %v2279
    %v2282 = vadd.f32 %v2273, %v2280
    %v2283 = vmax.f32 %v2281, -1.0
    %v2284 = vmax.f32 %v2282, -1.0
    %v2285 = vmin.f32 %v2283, 1.0
    %v2286 = vmin.f32 %v2284, 1.0
    %v2289 = vcombine.low %v2285, %v2286
    %v2291 = vunpack.c.l.s4 1983009808
    %v2292 = vunpack.c.0.s8 %v2291
    %v2293 = vlaneseq
    %v2294 = vshrl.u32 %v2293, 7
    %v2295 = vsub.s32 %v2292, %v2294
    %v2296 = vrot.slane %v2289, %v2295
    %2298 = vst [vmem:[%s4 + $0x48] sm:$0xf] %v2296
    %v2299 = vld [vmem:[%s0 + $0x4c] sm:$0xf]
    %2301 = vset.pattern.permute.xlu0 127
    %2302 = vperm.xlu0 %2301, %v2282
    %v2303 = vpop.permute.xlu0 %2302
    %v2305 = vmul.f32 %v2303, %v125
    %v2306 = vmul.f32 %v2303, %v129
    %v2309 = vunpack.c.l.s4 1983009808
    %v2310 = vunpack.c.0.s8 %v2309
    %v2311 = vlaneseq
    %v2312 = vshrl.u32 %v2311, 7
    %v2313 = vsub.s32 %v2310, %v2312
    %v2314 = vrot.slane %v2299, %v2313
    %v2315 = vcombine.high %v2314, %v2314
    %2318 = vmatprep.subr.mxu0 %v55
    %2319 = vmatpush1.msra.mxu0 %v54
    %2320 = vmatprep.subr.mxu0 %v57
    %2321 = vmatpush1.msra.mxu0 %v56
    %2322 = vmatprep.subr.mxu0 %v59
    %2323 = vmatpush1.msra.mxu0 %v58
    %2324 = vmatprep.subr.mxu0 %v61
    %2325 = vmatpush1.msra.mxu0 %v60
    %2326 = vmatprep.subr.mxu0 %v63
    %2327 = vmatpush1.msra.mxu0 %v62
    %2328 = vmatprep.subr.mxu0 %v65
    %2329 = vmatpush1.msra.mxu0 %v64
    %2330 = vmatprep.subr.mxu0 %v67
    %2331 = vmatpush1.msra.mxu0 %v66
    %2332 = vmatprep.subr.mxu0 %v69
    %2333 = vmatpush1.msra.mxu0 %v68
    %2334 = vmatprep.subr.mxu0 %v71
    %2335 = vmatpush1.msra.mxu0 %v70
    %2336 = vmatprep.subr.mxu0 %v73
    %2337 = vmatpush1.msra.mxu0 %v72
    %2338 = vmatprep.subr.mxu0 %v75
    %2339 = vmatpush1.msra.mxu0 %v74
    %2340 = vmatprep.subr.mxu0 %v77
    %2341 = vmatpush1.msra.mxu0 %v76
    %2342 = vmatprep.subr.mxu0 %v79
    %2343 = vmatpush1.msra.mxu0 %v78
    %2344 = vmatprep.subr.mxu0 %v81
    %2345 = vmatpush1.msra.mxu0 %v80
    %2346 = vmatprep.subr.mxu0 %v83
    %2347 = vmatpush1.msra.mxu0 %v82
    %2348 = vmatprep.subr.mxu0 %v85
    %2349 = vmatpush1.msra.mxu0 %v84
    %2350 = vmatprep.subr.mxu0 %v87
    %2351 = vmatpush1.msra.mxu0 %v86
    %2352 = vmatprep.subr.mxu0 %v89
    %2353 = vmatpush1.msra.mxu0 %v88
    %2354 = vmatprep.subr.mxu0 %v91
    %2355 = vmatpush1.msra.mxu0 %v90
    %2356 = vmatprep.subr.mxu0 %v93
    %2357 = vmatpush1.msra.mxu0 %v92
    %2358 = vmatprep.subr.mxu0 %v95
    %2359 = vmatpush1.msra.mxu0 %v94
    %2360 = vmatprep.subr.mxu0 %v97
    %2361 = vmatpush1.msra.mxu0 %v96
    %2362 = vmatprep.subr.mxu0 %v99
    %2363 = vmatpush1.msra.mxu0 %v98
    %2364 = vmatprep.subr.mxu0 %v101
    %2365 = vmatpush1.msra.mxu0 %v100
    %2366 = vmatprep.subr.mxu0 %v103
    %2367 = vmatpush1.msra.mxu0 %v102
    %2368 = vmatprep.subr.mxu0 %v105
    %2369 = vmatpush1.msra.mxu0 %v104
    %2370 = vmatprep.subr.mxu0 %v107
    %2371 = vmatpush1.msra.mxu0 %v106
    %2372 = vmatprep.subr.mxu0 %v109
    %2373 = vmatpush1.msra.mxu0 %v108
    %2374 = vmatprep.subr.mxu0 %v111
    %2375 = vmatpush1.msra.mxu0 %v110
    %2376 = vmatprep.subr.mxu0 %v113
    %2377 = vmatpush1.msra.mxu0 %v112
    %2378 = vmatprep.subr.mxu0 %v115
    %2379 = vmatpush1.msra.mxu0 %v114
    %2380 = vmatprep.subr.mxu0 %v117
    %2381 = vmatpush1.msra.mxu0 %v116
    %2382 = vmatprep.mubr.f32.mxu0 %v2315
    %2383 = vmatmul.mubr.f32.gmra.mrb[0].mxu0 %v2314
    %v2384 = vpop.f32.mrb[0].mxu0
    %v2385 = vadd.f32 %v2305, %v2384
    %v2386 = vpop.f32.mrb[0].mxu0
    %v2387 = vadd.f32 %v2306, %v2386
    %2388 = vdwg.mxu0
    %2389 = vset.pattern.permute.xlu0 126
    %2390 = vperm.xlu0 %2389, %v2282
    %v2391 = vpop.permute.xlu0 %2390
    %v2393 = vmul.f32 %v2391, %v220
    %v2394 = vmul.f32 %v2391, %v224
    %v2395 = vadd.f32 %v2385, %v2393
    %v2396 = vadd.f32 %v2387, %v2394
    %v2397 = vmax.f32 %v2395, -1.0
    %v2398 = vmax.f32 %v2396, -1.0
    %v2399 = vmin.f32 %v2397, 1.0
    %v2400 = vmin.f32 %v2398, 1.0
    %v2403 = vcombine.low %v2399, %v2400
    %v2405 = vunpack.c.l.s4 1983009808
    %v2406 = vunpack.c.0.s8 %v2405
    %v2407 = vlaneseq
    %v2408 = vshrl.u32 %v2407, 7
    %v2409 = vsub.s32 %v2406, %v2408
    %v2410 = vrot.slane %v2403, %v2409
    %2412 = vst [vmem:[%s4 + $0x4c] sm:$0xf] %v2410
    %v2413 = vld [vmem:[%s0 + $0x50] sm:$0xf]
    %2415 = vset.pattern.permute.xlu0 127
    %2416 = vperm.xlu0 %2415, %v2396
    %v2417 = vpop.permute.xlu0 %2416
    %v2419 = vmul.f32 %v2417, %v125
    %v2420 = vmul.f32 %v2417, %v129
    %v2423 = vunpack.c.l.s4 1983009808
    %v2424 = vunpack.c.0.s8 %v2423
    %v2425 = vlaneseq
    %v2426 = vshrl.u32 %v2425, 7
    %v2427 = vsub.s32 %v2424, %v2426
    %v2428 = vrot.slane %v2413, %v2427
    %v2429 = vcombine.high %v2428, %v2428
    %2432 = vmatprep.subr.mxu0 %v55
    %2433 = vmatpush1.msra.mxu0 %v54
    %2434 = vmatprep.subr.mxu0 %v57
    %2435 = vmatpush1.msra.mxu0 %v56
    %2436 = vmatprep.subr.mxu0 %v59
    %2437 = vmatpush1.msra.mxu0 %v58
    %2438 = vmatprep.subr.mxu0 %v61
    %2439 = vmatpush1.msra.mxu0 %v60
    %2440 = vmatprep.subr.mxu0 %v63
    %2441 = vmatpush1.msra.mxu0 %v62
    %2442 = vmatprep.subr.mxu0 %v65
    %2443 = vmatpush1.msra.mxu0 %v64
    %2444 = vmatprep.subr.mxu0 %v67
    %2445 = vmatpush1.msra.mxu0 %v66
    %2446 = vmatprep.subr.mxu0 %v69
    %2447 = vmatpush1.msra.mxu0 %v68
    %2448 = vmatprep.subr.mxu0 %v71
    %2449 = vmatpush1.msra.mxu0 %v70
    %2450 = vmatprep.subr.mxu0 %v73
    %2451 = vmatpush1.msra.mxu0 %v72
    %2452 = vmatprep.subr.mxu0 %v75
    %2453 = vmatpush1.msra.mxu0 %v74
    %2454 = vmatprep.subr.mxu0 %v77
    %2455 = vmatpush1.msra.mxu0 %v76
    %2456 = vmatprep.subr.mxu0 %v79
    %2457 = vmatpush1.msra.mxu0 %v78
    %2458 = vmatprep.subr.mxu0 %v81
    %2459 = vmatpush1.msra.mxu0 %v80
    %2460 = vmatprep.subr.mxu0 %v83
    %2461 = vmatpush1.msra.mxu0 %v82
    %2462 = vmatprep.subr.mxu0 %v85
    %2463 = vmatpush1.msra.mxu0 %v84
    %2464 = vmatprep.subr.mxu0 %v87
    %2465 = vmatpush1.msra.mxu0 %v86
    %2466 = vmatprep.subr.mxu0 %v89
    %2467 = vmatpush1.msra.mxu0 %v88
    %2468 = vmatprep.subr.mxu0 %v91
    %2469 = vmatpush1.msra.mxu0 %v90
    %2470 = vmatprep.subr.mxu0 %v93
    %2471 = vmatpush1.msra.mxu0 %v92
    %2472 = vmatprep.subr.mxu0 %v95
    %2473 = vmatpush1.msra.mxu0 %v94
    %2474 = vmatprep.subr.mxu0 %v97
    %2475 = vmatpush1.msra.mxu0 %v96
    %2476 = vmatprep.subr.mxu0 %v99
    %2477 = vmatpush1.msra.mxu0 %v98
    %2478 = vmatprep.subr.mxu0 %v101
    %2479 = vmatpush1.msra.mxu0 %v100
    %2480 = vmatprep.subr.mxu0 %v103
    %2481 = vmatpush1.msra.mxu0 %v102
    %2482 = vmatprep.subr.mxu0 %v105
    %2483 = vmatpush1.msra.mxu0 %v104
    %2484 = vmatprep.subr.mxu0 %v107
    %2485 = vmatpush1.msra.mxu0 %v106
    %2486 = vmatprep.subr.mxu0 %v109
    %2487 = vmatpush1.msra.mxu0 %v108
    %2488 = vmatprep.subr.mxu0 %v111
    %2489 = vmatpush1.msra.mxu0 %v110
    %2490 = vmatprep.subr.mxu0 %v113
    %2491 = vmatpush1.msra.mxu0 %v112
    %2492 = vmatprep.subr.mxu0 %v115
    %2493 = vmatpush1.msra.mxu0 %v114
    %2494 = vmatprep.subr.mxu0 %v117
    %2495 = vmatpush1.msra.mxu0 %v116
    %2496 = vmatprep.mubr.f32.mxu0 %v2429
    %2497 = vmatmul.mubr.f32.gmra.mrb[0].mxu0 %v2428
    %v2498 = vpop.f32.mrb[0].mxu0
    %v2499 = vadd.f32 %v2419, %v2498
    %v2500 = vpop.f32.mrb[0].mxu0
    %v2501 = vadd.f32 %v2420, %v2500
    %2502 = vdwg.mxu0
    %2503 = vset.pattern.permute.xlu0 126
    %2504 = vperm.xlu0 %2503, %v2396
    %v2505 = vpop.permute.xlu0 %2504
    %v2507 = vmul.f32 %v2505, %v220
    %v2508 = vmul.f32 %v2505, %v224
    %v2509 = vadd.f32 %v2499, %v2507
    %v2510 = vadd.f32 %v2501, %v2508
    %v2511 = vmax.f32 %v2509, -1.0
    %v2512 = vmax.f32 %v2510, -1.0
    %v2513 = vmin.f32 %v2511, 1.0
    %v2514 = vmin.f32 %v2512, 1.0
    %v2517 = vcombine.low %v2513, %v2514
    %v2519 = vunpack.c.l.s4 1983009808
    %v2520 = vunpack.c.0.s8 %v2519
    %v2521 = vlaneseq
    %v2522 = vshrl.u32 %v2521, 7
    %v2523 = vsub.s32 %v2520, %v2522
    %v2524 = vrot.slane %v2517, %v2523
    %2526 = vst [vmem:[%s4 + $0x50] sm:$0xf] %v2524
    %v2527 = vld [vmem:[%s0 + $0x54] sm:$0xf]
    %2529 = vset.pattern.permute.xlu0 127
    %2530 = vperm.xlu0 %2529, %v2510
    %v2531 = vpop.permute.xlu0 %2530
    %v2533 = vmul.f32 %v2531, %v125
    %v2534 = vmul.f32 %v2531, %v129
    %v2537 = vunpack.c.l.s4 1983009808
    %v2538 = vunpack.c.0.s8 %v2537
    %v2539 = vlaneseq
    %v2540 = vshrl.u32 %v2539, 7
    %v2541 = vsub.s32 %v2538, %v2540
    %v2542 = vrot.slane %v2527, %v2541
    %v2543 = vcombine.high %v2542, %v2542
    %2546 = vmatprep.subr.mxu0 %v55
    %2547 = vmatpush1.msra.mxu0 %v54
    %2548 = vmatprep.subr.mxu0 %v57
    %2549 = vmatpush1.msra.mxu0 %v56
    %2550 = vmatprep.subr.mxu0 %v59
    %2551 = vmatpush1.msra.mxu0 %v58
    %2552 = vmatprep.subr.mxu0 %v61
    %2553 = vmatpush1.msra.mxu0 %v60
    %2554 = vmatprep.subr.mxu0 %v63
    %2555 = vmatpush1.msra.mxu0 %v62
    %2556 = vmatprep.subr.mxu0 %v65
    %2557 = vmatpush1.msra.mxu0 %v64
    %2558 = vmatprep.subr.mxu0 %v67
    %2559 = vmatpush1.msra.mxu0 %v66
    %2560 = vmatprep.subr.mxu0 %v69
    %2561 = vmatpush1.msra.mxu0 %v68
    %2562 = vmatprep.subr.mxu0 %v71
    %2563 = vmatpush1.msra.mxu0 %v70
    %2564 = vmatprep.subr.mxu0 %v73
    %2565 = vmatpush1.msra.mxu0 %v72
    %2566 = vmatprep.subr.mxu0 %v75
    %2567 = vmatpush1.msra.mxu0 %v74
    %2568 = vmatprep.subr.mxu0 %v77
    %2569 = vmatpush1.msra.mxu0 %v76
    %2570 = vmatprep.subr.mxu0 %v79
    %2571 = vmatpush1.msra.mxu0 %v78
    %2572 = vmatprep.subr.mxu0 %v81
    %2573 = vmatpush1.msra.mxu0 %v80
    %2574 = vmatprep.subr.mxu0 %v83
    %2575 = vmatpush1.msra.mxu0 %v82
    %2576 = vmatprep.subr.mxu0 %v85
    %2577 = vmatpush1.msra.mxu0 %v84
    %2578 = vmatprep.subr.mxu0 %v87
    %2579 = vmatpush1.msra.mxu0 %v86
    %2580 = vmatprep.subr.mxu0 %v89
    %2581 = vmatpush1.msra.mxu0 %v88
    %2582 = vmatprep.subr.mxu0 %v91
    %2583 = vmatpush1.msra.mxu0 %v90
    %2584 = vmatprep.subr.mxu0 %v93
    %2585 = vmatpush1.msra.mxu0 %v92
    %2586 = vmatprep.subr.mxu0 %v95
    %2587 = vmatpush1.msra.mxu0 %v94
    %2588 = vmatprep.subr.mxu0 %v97
    %2589 = vmatpush1.msra.mxu0 %v96
    %2590 = vmatprep.subr.mxu0 %v99
    %2591 = vmatpush1.msra.mxu0 %v98
    %2592 = vmatprep.subr.mxu0 %v101
    %2593 = vmatpush1.msra.mxu0 %v100
    %2594 = vmatprep.subr.mxu0 %v103
    %2595 = vmatpush1.msra.mxu0 %v102
    %2596 = vmatprep.subr.mxu0 %v105
    %2597 = vmatpush1.msra.mxu0 %v104
    %2598 = vmatprep.subr.mxu0 %v107
    %2599 = vmatpush1.msra.mxu0 %v106
    %2600 = vmatprep.subr.mxu0 %v109
    %2601 = vmatpush1.msra.mxu0 %v108
    %2602 = vmatprep.subr.mxu0 %v111
    %2603 = vmatpush1.msra.mxu0 %v110
    %2604 = vmatprep.subr.mxu0 %v113
    %2605 = vmatpush1.msra.mxu0 %v112
    %2606 = vmatprep.subr.mxu0 %v115
    %2607 = vmatpush1.msra.mxu0 %v114
    %2608 = vmatprep.subr.mxu0 %v117
    %2609 = vmatpush1.msra.mxu0 %v116
    %2610 = vmatprep.mubr.f32.mxu0 %v2543
    %2611 = vmatmul.mubr.f32.gmra.mrb[0].mxu0 %v2542
    %v2612 = vpop.f32.mrb[0].mxu0
    %v2613 = vadd.f32 %v2533, %v2612
    %v2614 = vpop.f32.mrb[0].mxu0
    %v2615 = vadd.f32 %v2534, %v2614
    %2616 = vdwg.mxu0
    %2617 = vset.pattern.permute.xlu0 126
    %2618 = vperm.xlu0 %2617, %v2510
    %v2619 = vpop.permute.xlu0 %2618
    %v2621 = vmul.f32 %v2619, %v220
    %v2622 = vmul.f32 %v2619, %v224
    %v2623 = vadd.f32 %v2613, %v2621
    %v2624 = vadd.f32 %v2615, %v2622
    %v2625 = vmax.f32 %v2623, -1.0
    %v2626 = vmax.f32 %v2624, -1.0
    %v2627 = vmin.f32 %v2625, 1.0
    %v2628 = vmin.f32 %v2626, 1.0
    %v2631 = vcombine.low %v2627, %v2628
    %v2633 = vunpack.c.l.s4 1983009808
    %v2634 = vunpack.c.0.s8 %v2633
    %v2635 = vlaneseq
    %v2636 = vshrl.u32 %v2635, 7
    %v2637 = vsub.s32 %v2634, %v2636
    %v2638 = vrot.slane %v2631, %v2637
    %2640 = vst [vmem:[%s4 + $0x54] sm:$0xf] %v2638
    %v2641 = vld [vmem:[%s0 + $0x58] sm:$0xf]
    %2643 = vset.pattern.permute.xlu0 127
    %2644 = vperm.xlu0 %2643, %v2624
    %v2645 = vpop.permute.xlu0 %2644
    %v2647 = vmul.f32 %v2645, %v125
    %v2648 = vmul.f32 %v2645, %v129
    %v2651 = vunpack.c.l.s4 1983009808
    %v2652 = vunpack.c.0.s8 %v2651
    %v2653 = vlaneseq
    %v2654 = vshrl.u32 %v2653, 7
    %v2655 = vsub.s32 %v2652, %v2654
    %v2656 = vrot.slane %v2641, %v2655
    %v2657 = vcombine.high %v2656, %v2656
    %2660 = vmatprep.subr.mxu0 %v55
    %2661 = vmatpush1.msra.mxu0 %v54
    %2662 = vmatprep.subr.mxu0 %v57
    %2663 = vmatpush1.msra.mxu0 %v56
    %2664 = vmatprep.subr.mxu0 %v59
    %2665 = vmatpush1.msra.mxu0 %v58
    %2666 = vmatprep.subr.mxu0 %v61
    %2667 = vmatpush1.msra.mxu0 %v60
    %2668 = vmatprep.subr.mxu0 %v63
    %2669 = vmatpush1.msra.mxu0 %v62
    %2670 = vmatprep.subr.mxu0 %v65
    %2671 = vmatpush1.msra.mxu0 %v64
    %2672 = vmatprep.subr.mxu0 %v67
    %2673 = vmatpush1.msra.mxu0 %v66
    %2674 = vmatprep.subr.mxu0 %v69
    %2675 = vmatpush1.msra.mxu0 %v68
    %2676 = vmatprep.subr.mxu0 %v71
    %2677 = vmatpush1.msra.mxu0 %v70
    %2678 = vmatprep.subr.mxu0 %v73
    %2679 = vmatpush1.msra.mxu0 %v72
    %2680 = vmatprep.subr.mxu0 %v75
    %2681 = vmatpush1.msra.mxu0 %v74
    %2682 = vmatprep.subr.mxu0 %v77
    %2683 = vmatpush1.msra.mxu0 %v76
    %2684 = vmatprep.subr.mxu0 %v79
    %2685 = vmatpush1.msra.mxu0 %v78
    %2686 = vmatprep.subr.mxu0 %v81
    %2687 = vmatpush1.msra.mxu0 %v80
    %2688 = vmatprep.subr.mxu0 %v83
    %2689 = vmatpush1.msra.mxu0 %v82
    %2690 = vmatprep.subr.mxu0 %v85
    %2691 = vmatpush1.msra.mxu0 %v84
    %2692 = vmatprep.subr.mxu0 %v87
    %2693 = vmatpush1.msra.mxu0 %v86
    %2694 = vmatprep.subr.mxu0 %v89
    %2695 = vmatpush1.msra.mxu0 %v88
    %2696 = vmatprep.subr.mxu0 %v91
    %2697 = vmatpush1.msra.mxu0 %v90
    %2698 = vmatprep.subr.mxu0 %v93
    %2699 = vmatpush1.msra.mxu0 %v92
    %2700 = vmatprep.subr.mxu0 %v95
    %2701 = vmatpush1.msra.mxu0 %v94
    %2702 = vmatprep.subr.mxu0 %v97
    %2703 = vmatpush1.msra.mxu0 %v96
    %2704 = vmatprep.subr.mxu0 %v99
    %2705 = vmatpush1.msra.mxu0 %v98
    %2706 = vmatprep.subr.mxu0 %v101
    %2707 = vmatpush1.msra.mxu0 %v100
    %2708 = vmatprep.subr.mxu0 %v103
    %2709 = vmatpush1.msra.mxu0 %v102
    %2710 = vmatprep.subr.mxu0 %v105
    %2711 = vmatpush1.msra.mxu0 %v104
    %2712 = vmatprep.subr.mxu0 %v107
    %2713 = vmatpush1.msra.mxu0 %v106
    %2714 = vmatprep.subr.mxu0 %v109
    %2715 = vmatpush1.msra.mxu0 %v108
    %2716 = vmatprep.subr.mxu0 %v111
    %2717 = vmatpush1.msra.mxu0 %v110
    %2718 = vmatprep.subr.mxu0 %v113
    %2719 = vmatpush1.msra.mxu0 %v112
    %2720 = vmatprep.subr.mxu0 %v115
    %2721 = vmatpush1.msra.mxu0 %v114
    %2722 = vmatprep.subr.mxu0 %v117
    %2723 = vmatpush1.msra.mxu0 %v116
    %2724 = vmatprep.mubr.f32.mxu0 %v2657
    %2725 = vmatmul.mubr.f32.gmra.mrb[0].mxu0 %v2656
    %v2726 = vpop.f32.mrb[0].mxu0
    %v2727 = vadd.f32 %v2647, %v2726
    %v2728 = vpop.f32.mrb[0].mxu0
    %v2729 = vadd.f32 %v2648, %v2728
    %2730 = vdwg.mxu0
    %2731 = vset.pattern.permute.xlu0 126
    %2732 = vperm.xlu0 %2731, %v2624
    %v2733 = vpop.permute.xlu0 %2732
    %v2735 = vmul.f32 %v2733, %v220
    %v2736 = vmul.f32 %v2733, %v224
    %v2737 = vadd.f32 %v2727, %v2735
    %v2738 = vadd.f32 %v2729, %v2736
    %v2739 = vmax.f32 %v2737, -1.0
    %v2740 = vmax.f32 %v2738, -1.0
    %v2741 = vmin.f32 %v2739, 1.0
    %v2742 = vmin.f32 %v2740, 1.0
    %v2745 = vcombine.low %v2741, %v2742
    %v2747 = vunpack.c.l.s4 1983009808
    %v2748 = vunpack.c.0.s8 %v2747
    %v2749 = vlaneseq
    %v2750 = vshrl.u32 %v2749, 7
    %v2751 = vsub.s32 %v2748, %v2750
    %v2752 = vrot.slane %v2745, %v2751
    %2754 = vst [vmem:[%s4 + $0x58] sm:$0xf] %v2752
    %v2755 = vld [vmem:[%s0 + $0x5c] sm:$0xf]
    %2757 = vset.pattern.permute.xlu0 127
    %2758 = vperm.xlu0 %2757, %v2738
    %v2759 = vpop.permute.xlu0 %2758
    %v2761 = vmul.f32 %v2759, %v125
    %v2762 = vmul.f32 %v2759, %v129
    %v2765 = vunpack.c.l.s4 1983009808
    %v2766 = vunpack.c.0.s8 %v2765
    %v2767 = vlaneseq
    %v2768 = vshrl.u32 %v2767, 7
    %v2769 = vsub.s32 %v2766, %v2768
    %v2770 = vrot.slane %v2755, %v2769
    %v2771 = vcombine.high %v2770, %v2770
    %2774 = vmatprep.subr.mxu0 %v55
    %2775 = vmatpush1.msra.mxu0 %v54
    %2776 = vmatprep.subr.mxu0 %v57
    %2777 = vmatpush1.msra.mxu0 %v56
    %2778 = vmatprep.subr.mxu0 %v59
    %2779 = vmatpush1.msra.mxu0 %v58
    %2780 = vmatprep.subr.mxu0 %v61
    %2781 = vmatpush1.msra.mxu0 %v60
    %2782 = vmatprep.subr.mxu0 %v63
    %2783 = vmatpush1.msra.mxu0 %v62
    %2784 = vmatprep.subr.mxu0 %v65
    %2785 = vmatpush1.msra.mxu0 %v64
    %2786 = vmatprep.subr.mxu0 %v67
    %2787 = vmatpush1.msra.mxu0 %v66
    %2788 = vmatprep.subr.mxu0 %v69
    %2789 = vmatpush1.msra.mxu0 %v68
    %2790 = vmatprep.subr.mxu0 %v71
    %2791 = vmatpush1.msra.mxu0 %v70
    %2792 = vmatprep.subr.mxu0 %v73
    %2793 = vmatpush1.msra.mxu0 %v72
    %2794 = vmatprep.subr.mxu0 %v75
    %2795 = vmatpush1.msra.mxu0 %v74
    %2796 = vmatprep.subr.mxu0 %v77
    %2797 = vmatpush1.msra.mxu0 %v76
    %2798 = vmatprep.subr.mxu0 %v79
    %2799 = vmatpush1.msra.mxu0 %v78
    %2800 = vmatprep.subr.mxu0 %v81
    %2801 = vmatpush1.msra.mxu0 %v80
    %2802 = vmatprep.subr.mxu0 %v83
    %2803 = vmatpush1.msra.mxu0 %v82
    %2804 = vmatprep.subr.mxu0 %v85
    %2805 = vmatpush1.msra.mxu0 %v84
    %2806 = vmatprep.subr.mxu0 %v87
    %2807 = vmatpush1.msra.mxu0 %v86
    %2808 = vmatprep.subr.mxu0 %v89
    %2809 = vmatpush1.msra.mxu0 %v88
    %2810 = vmatprep.subr.mxu0 %v91
    %2811 = vmatpush1.msra.mxu0 %v90
    %2812 = vmatprep.subr.mxu0 %v93
    %2813 = vmatpush1.msra.mxu0 %v92
    %2814 = vmatprep.subr.mxu0 %v95
    %2815 = vmatpush1.msra.mxu0 %v94
    %2816 = vmatprep.subr.mxu0 %v97
    %2817 = vmatpush1.msra.mxu0 %v96
    %2818 = vmatprep.subr.mxu0 %v99
    %2819 = vmatpush1.msra.mxu0 %v98
    %2820 = vmatprep.subr.mxu0 %v101
    %2821 = vmatpush1.msra.mxu0 %v100
    %2822 = vmatprep.subr.mxu0 %v103
    %2823 = vmatpush1.msra.mxu0 %v102
    %2824 = vmatprep.subr.mxu0 %v105
    %2825 = vmatpush1.msra.mxu0 %v104
    %2826 = vmatprep.subr.mxu0 %v107
    %2827 = vmatpush1.msra.mxu0 %v106
    %2828 = vmatprep.subr.mxu0 %v109
    %2829 = vmatpush1.msra.mxu0 %v108
    %2830 = vmatprep.subr.mxu0 %v111
    %2831 = vmatpush1.msra.mxu0 %v110
    %2832 = vmatprep.subr.mxu0 %v113
    %2833 = vmatpush1.msra.mxu0 %v112
    %2834 = vmatprep.subr.mxu0 %v115
    %2835 = vmatpush1.msra.mxu0 %v114
    %2836 = vmatprep.subr.mxu0 %v117
    %2837 = vmatpush1.msra.mxu0 %v116
    %2838 = vmatprep.mubr.f32.mxu0 %v2771
    %2839 = vmatmul.mubr.f32.gmra.mrb[0].mxu0 %v2770
    %v2840 = vpop.f32.mrb[0].mxu0
    %v2841 = vadd.f32 %v2761, %v2840
    %v2842 = vpop.f32.mrb[0].mxu0
    %v2843 = vadd.f32 %v2762, %v2842
    %2844 = vdwg.mxu0
    %2845 = vset.pattern.permute.xlu0 126
    %2846 = vperm.xlu0 %2845, %v2738
    %v2847 = vpop.permute.xlu0 %2846
    %v2849 = vmul.f32 %v2847, %v220
    %v2850 = vmul.f32 %v2847, %v224
    %v2851 = vadd.f32 %v2841, %v2849
    %v2852 = vadd.f32 %v2843, %v2850
    %v2853 = vmax.f32 %v2851, -1.0
    %v2854 = vmax.f32 %v2852, -1.0
    %v2855 = vmin.f32 %v2853, 1.0
    %v2856 = vmin.f32 %v2854, 1.0
    %v2859 = vcombine.low %v2855, %v2856
    %v2861 = vunpack.c.l.s4 1983009808
    %v2862 = vunpack.c.0.s8 %v2861
    %v2863 = vlaneseq
    %v2864 = vshrl.u32 %v2863, 7
    %v2865 = vsub.s32 %v2862, %v2864
    %v2866 = vrot.slane %v2859, %v2865
    %2868 = vst [vmem:[%s4 + $0x5c] sm:$0xf] %v2866
    %v2869 = vld [vmem:[%s0 + $0x60] sm:$0xf]
    %2871 = vset.pattern.permute.xlu0 127
    %2872 = vperm.xlu0 %2871, %v2852
    %v2873 = vpop.permute.xlu0 %2872
    %v2875 = vmul.f32 %v2873, %v125
    %v2876 = vmul.f32 %v2873, %v129
    %v2879 = vunpack.c.l.s4 1983009808
    %v2880 = vunpack.c.0.s8 %v2879
    %v2881 = vlaneseq
    %v2882 = vshrl.u32 %v2881, 7
    %v2883 = vsub.s32 %v2880, %v2882
    %v2884 = vrot.slane %v2869, %v2883
    %v2885 = vcombine.high %v2884, %v2884
    %2888 = vmatprep.subr.mxu0 %v55
    %2889 = vmatpush1.msra.mxu0 %v54
    %2890 = vmatprep.subr.mxu0 %v57
    %2891 = vmatpush1.msra.mxu0 %v56
    %2892 = vmatprep.subr.mxu0 %v59
    %2893 = vmatpush1.msra.mxu0 %v58
    %2894 = vmatprep.subr.mxu0 %v61
    %2895 = vmatpush1.msra.mxu0 %v60
    %2896 = vmatprep.subr.mxu0 %v63
    %2897 = vmatpush1.msra.mxu0 %v62
    %2898 = vmatprep.subr.mxu0 %v65
    %2899 = vmatpush1.msra.mxu0 %v64
    %2900 = vmatprep.subr.mxu0 %v67
    %2901 = vmatpush1.msra.mxu0 %v66
    %2902 = vmatprep.subr.mxu0 %v69
    %2903 = vmatpush1.msra.mxu0 %v68
    %2904 = vmatprep.subr.mxu0 %v71
    %2905 = vmatpush1.msra.mxu0 %v70
    %2906 = vmatprep.subr.mxu0 %v73
    %2907 = vmatpush1.msra.mxu0 %v72
    %2908 = vmatprep.subr.mxu0 %v75
    %2909 = vmatpush1.msra.mxu0 %v74
    %2910 = vmatprep.subr.mxu0 %v77
    %2911 = vmatpush1.msra.mxu0 %v76
    %2912 = vmatprep.subr.mxu0 %v79
    %2913 = vmatpush1.msra.mxu0 %v78
    %2914 = vmatprep.subr.mxu0 %v81
    %2915 = vmatpush1.msra.mxu0 %v80
    %2916 = vmatprep.subr.mxu0 %v83
    %2917 = vmatpush1.msra.mxu0 %v82
    %2918 = vmatprep.subr.mxu0 %v85
    %2919 = vmatpush1.msra.mxu0 %v84
    %2920 = vmatprep.subr.mxu0 %v87
    %2921 = vmatpush1.msra.mxu0 %v86
    %2922 = vmatprep.subr.mxu0 %v89
    %2923 = vmatpush1.msra.mxu0 %v88
    %2924 = vmatprep.subr.mxu0 %v91
    %2925 = vmatpush1.msra.mxu0 %v90
    %2926 = vmatprep.subr.mxu0 %v93
    %2927 = vmatpush1.msra.mxu0 %v92
    %2928 = vmatprep.subr.mxu0 %v95
    %2929 = vmatpush1.msra.mxu0 %v94
    %2930 = vmatprep.subr.mxu0 %v97
    %2931 = vmatpush1.msra.mxu0 %v96
    %2932 = vmatprep.subr.mxu0 %v99
    %2933 = vmatpush1.msra.mxu0 %v98
    %2934 = vmatprep.subr.mxu0 %v101
    %2935 = vmatpush1.msra.mxu0 %v100
    %2936 = vmatprep.subr.mxu0 %v103
    %2937 = vmatpush1.msra.mxu0 %v102
    %2938 = vmatprep.subr.mxu0 %v105
    %2939 = vmatpush1.msra.mxu0 %v104
    %2940 = vmatprep.subr.mxu0 %v107
    %2941 = vmatpush1.msra.mxu0 %v106
    %2942 = vmatprep.subr.mxu0 %v109
    %2943 = vmatpush1.msra.mxu0 %v108
    %2944 = vmatprep.subr.mxu0 %v111
    %2945 = vmatpush1.msra.mxu0 %v110
    %2946 = vmatprep.subr.mxu0 %v113
    %2947 = vmatpush1.msra.mxu0 %v112
    %2948 = vmatprep.subr.mxu0 %v115
    %2949 = vmatpush1.msra.mxu0 %v114
    %2950 = vmatprep.subr.mxu0 %v117
    %2951 = vmatpush1.msra.mxu0 %v116
    %2952 = vmatprep.mubr.f32.mxu0 %v2885
    %2953 = vmatmul.mubr.f32.gmra.mrb[0].mxu0 %v2884
    %v2954 = vpop.f32.mrb[0].mxu0
    %v2955 = vadd.f32 %v2875, %v2954
    %v2956 = vpop.f32.mrb[0].mxu0
    %v2957 = vadd.f32 %v2876, %v2956
    %2958 = vdwg.mxu0
    %2959 = vset.pattern.permute.xlu0 126
    %2960 = vperm.xlu0 %2959, %v2852
    %v2961 = vpop.permute.xlu0 %2960
    %v2963 = vmul.f32 %v2961, %v220
    %v2964 = vmul.f32 %v2961, %v224
    %v2965 = vadd.f32 %v2955, %v2963
    %v2966 = vadd.f32 %v2957, %v2964
    %v2967 = vmax.f32 %v2965, -1.0
    %v2968 = vmax.f32 %v2966, -1.0
    %v2969 = vmin.f32 %v2967, 1.0
    %v2970 = vmin.f32 %v2968, 1.0
    %v2973 = vcombine.low %v2969, %v2970
    %v2975 = vunpack.c.l.s4 1983009808
    %v2976 = vunpack.c.0.s8 %v2975
    %v2977 = vlaneseq
    %v2978 = vshrl.u32 %v2977, 7
    %v2979 = vsub.s32 %v2976, %v2978
    %v2980 = vrot.slane %v2973, %v2979
    %2982 = vst [vmem:[%s4 + $0x60] sm:$0xf] %v2980
    %v2983 = vld [vmem:[%s0 + $0x64] sm:$0xf]
    %2985 = vset.pattern.permute.xlu0 127
    %2986 = vperm.xlu0 %2985, %v2966
    %v2987 = vpop.permute.xlu0 %2986
    %v2989 = vmul.f32 %v2987, %v125
    %v2990 = vmul.f32 %v2987, %v129
    %v2993 = vunpack.c.l.s4 1983009808
    %v2994 = vunpack.c.0.s8 %v2993
    %v2995 = vlaneseq
    %v2996 = vshrl.u32 %v2995, 7
    %v2997 = vsub.s32 %v2994, %v2996
    %v2998 = vrot.slane %v2983, %v2997
    %v2999 = vcombine.high %v2998, %v2998
    %3002 = vmatprep.subr.mxu0 %v55
    %3003 = vmatpush1.msra.mxu0 %v54
    %3004 = vmatprep.subr.mxu0 %v57
    %3005 = vmatpush1.msra.mxu0 %v56
    %3006 = vmatprep.subr.mxu0 %v59
    %3007 = vmatpush1.msra.mxu0 %v58
    %3008 = vmatprep.subr.mxu0 %v61
    %3009 = vmatpush1.msra.mxu0 %v60
    %3010 = vmatprep.subr.mxu0 %v63
    %3011 = vmatpush1.msra.mxu0 %v62
    %3012 = vmatprep.subr.mxu0 %v65
    %3013 = vmatpush1.msra.mxu0 %v64
    %3014 = vmatprep.subr.mxu0 %v67
    %3015 = vmatpush1.msra.mxu0 %v66
    %3016 = vmatprep.subr.mxu0 %v69
    %3017 = vmatpush1.msra.mxu0 %v68
    %3018 = vmatprep.subr.mxu0 %v71
    %3019 = vmatpush1.msra.mxu0 %v70
    %3020 = vmatprep.subr.mxu0 %v73
    %3021 = vmatpush1.msra.mxu0 %v72
    %3022 = vmatprep.subr.mxu0 %v75
    %3023 = vmatpush1.msra.mxu0 %v74
    %3024 = vmatprep.subr.mxu0 %v77
    %3025 = vmatpush1.msra.mxu0 %v76
    %3026 = vmatprep.subr.mxu0 %v79
    %3027 = vmatpush1.msra.mxu0 %v78
    %3028 = vmatprep.subr.mxu0 %v81
    %3029 = vmatpush1.msra.mxu0 %v80
    %3030 = vmatprep.subr.mxu0 %v83
    %3031 = vmatpush1.msra.mxu0 %v82
    %3032 = vmatprep.subr.mxu0 %v85
    %3033 = vmatpush1.msra.mxu0 %v84
    %3034 = vmatprep.subr.mxu0 %v87
    %3035 = vmatpush1.msra.mxu0 %v86
    %3036 = vmatprep.subr.mxu0 %v89
    %3037 = vmatpush1.msra.mxu0 %v88
    %3038 = vmatprep.subr.mxu0 %v91
    %3039 = vmatpush1.msra.mxu0 %v90
    %3040 = vmatprep.subr.mxu0 %v93
    %3041 = vmatpush1.msra.mxu0 %v92
    %3042 = vmatprep.subr.mxu0 %v95
    %3043 = vmatpush1.msra.mxu0 %v94
    %3044 = vmatprep.subr.mxu0 %v97
    %3045 = vmatpush1.msra.mxu0 %v96
    %3046 = vmatprep.subr.mxu0 %v99
    %3047 = vmatpush1.msra.mxu0 %v98
    %3048 = vmatprep.subr.mxu0 %v101
    %3049 = vmatpush1.msra.mxu0 %v100
    %3050 = vmatprep.subr.mxu0 %v103
    %3051 = vmatpush1.msra.mxu0 %v102
    %3052 = vmatprep.subr.mxu0 %v105
    %3053 = vmatpush1.msra.mxu0 %v104
    %3054 = vmatprep.subr.mxu0 %v107
    %3055 = vmatpush1.msra.mxu0 %v106
    %3056 = vmatprep.subr.mxu0 %v109
    %3057 = vmatpush1.msra.mxu0 %v108
    %3058 = vmatprep.subr.mxu0 %v111
    %3059 = vmatpush1.msra.mxu0 %v110
    %3060 = vmatprep.subr.mxu0 %v113
    %3061 = vmatpush1.msra.mxu0 %v112
    %3062 = vmatprep.subr.mxu0 %v115
    %3063 = vmatpush1.msra.mxu0 %v114
    %3064 = vmatprep.subr.mxu0 %v117
    %3065 = vmatpush1.msra.mxu0 %v116
    %3066 = vmatprep.mubr.f32.mxu0 %v2999
    %3067 = vmatmul.mubr.f32.gmra.mrb[0].mxu0 %v2998
    %v3068 = vpop.f32.mrb[0].mxu0
    %v3069 = vadd.f32 %v2989, %v3068
    %v3070 = vpop.f32.mrb[0].mxu0
    %v3071 = vadd.f32 %v2990, %v3070
    %3072 = vdwg.mxu0
    %3073 = vset.pattern.permute.xlu0 126
    %3074 = vperm.xlu0 %3073, %v2966
    %v3075 = vpop.permute.xlu0 %3074
    %v3077 = vmul.f32 %v3075, %v220
    %v3078 = vmul.f32 %v3075, %v224
    %v3079 = vadd.f32 %v3069, %v3077
    %v3080 = vadd.f32 %v3071, %v3078
    %v3081 = vmax.f32 %v3079, -1.0
    %v3082 = vmax.f32 %v3080, -1.0
    %v3083 = vmin.f32 %v3081, 1.0
    %v3084 = vmin.f32 %v3082, 1.0
    %v3087 = vcombine.low %v3083, %v3084
    %v3089 = vunpack.c.l.s4 1983009808
    %v3090 = vunpack.c.0.s8 %v3089
    %v3091 = vlaneseq
    %v3092 = vshrl.u32 %v3091, 7
    %v3093 = vsub.s32 %v3090, %v3092
    %v3094 = vrot.slane %v3087, %v3093
    %3096 = vst [vmem:[%s4 + $0x64] sm:$0xf] %v3094
    %v3097 = vld [vmem:[%s0 + $0x68] sm:$0xf]
    %3099 = vset.pattern.permute.xlu0 127
    %3100 = vperm.xlu0 %3099, %v3080
    %v3101 = vpop.permute.xlu0 %3100
    %v3103 = vmul.f32 %v3101, %v125
    %v3104 = vmul.f32 %v3101, %v129
    %v3107 = vunpack.c.l.s4 1983009808
    %v3108 = vunpack.c.0.s8 %v3107
    %v3109 = vlaneseq
    %v3110 = vshrl.u32 %v3109, 7
    %v3111 = vsub.s32 %v3108, %v3110
    %v3112 = vrot.slane %v3097, %v3111
    %v3113 = vcombine.high %v3112, %v3112
    %3116 = vmatprep.subr.mxu0 %v55
    %3117 = vmatpush1.msra.mxu0 %v54
    %3118 = vmatprep.subr.mxu0 %v57
    %3119 = vmatpush1.msra.mxu0 %v56
    %3120 = vmatprep.subr.mxu0 %v59
    %3121 = vmatpush1.msra.mxu0 %v58
    %3122 = vmatprep.subr.mxu0 %v61
    %3123 = vmatpush1.msra.mxu0 %v60
    %3124 = vmatprep.subr.mxu0 %v63
    %3125 = vmatpush1.msra.mxu0 %v62
    %3126 = vmatprep.subr.mxu0 %v65
    %3127 = vmatpush1.msra.mxu0 %v64
    %3128 = vmatprep.subr.mxu0 %v67
    %3129 = vmatpush1.msra.mxu0 %v66
    %3130 = vmatprep.subr.mxu0 %v69
    %3131 = vmatpush1.msra.mxu0 %v68
    %3132 = vmatprep.subr.mxu0 %v71
    %3133 = vmatpush1.msra.mxu0 %v70
    %3134 = vmatprep.subr.mxu0 %v73
    %3135 = vmatpush1.msra.mxu0 %v72
    %3136 = vmatprep.subr.mxu0 %v75
    %3137 = vmatpush1.msra.mxu0 %v74
    %3138 = vmatprep.subr.mxu0 %v77
    %3139 = vmatpush1.msra.mxu0 %v76
    %3140 = vmatprep.subr.mxu0 %v79
    %3141 = vmatpush1.msra.mxu0 %v78
    %3142 = vmatprep.subr.mxu0 %v81
    %3143 = vmatpush1.msra.mxu0 %v80
    %3144 = vmatprep.subr.mxu0 %v83
    %3145 = vmatpush1.msra.mxu0 %v82
    %3146 = vmatprep.subr.mxu0 %v85
    %3147 = vmatpush1.msra.mxu0 %v84
    %3148 = vmatprep.subr.mxu0 %v87
    %3149 = vmatpush1.msra.mxu0 %v86
    %3150 = vmatprep.subr.mxu0 %v89
    %3151 = vmatpush1.msra.mxu0 %v88
    %3152 = vmatprep.subr.mxu0 %v91
    %3153 = vmatpush1.msra.mxu0 %v90
    %3154 = vmatprep.subr.mxu0 %v93
    %3155 = vmatpush1.msra.mxu0 %v92
    %3156 = vmatprep.subr.mxu0 %v95
    %3157 = vmatpush1.msra.mxu0 %v94
    %3158 = vmatprep.subr.mxu0 %v97
    %3159 = vmatpush1.msra.mxu0 %v96
    %3160 = vmatprep.subr.mxu0 %v99
    %3161 = vmatpush1.msra.mxu0 %v98
    %3162 = vmatprep.subr.mxu0 %v101
    %3163 = vmatpush1.msra.mxu0 %v100
    %3164 = vmatprep.subr.mxu0 %v103
    %3165 = vmatpush1.msra.mxu0 %v102
    %3166 = vmatprep.subr.mxu0 %v105
    %3167 = vmatpush1.msra.mxu0 %v104
    %3168 = vmatprep.subr.mxu0 %v107
    %3169 = vmatpush1.msra.mxu0 %v106
    %3170 = vmatprep.subr.mxu0 %v109
    %3171 = vmatpush1.msra.mxu0 %v108
    %3172 = vmatprep.subr.mxu0 %v111
    %3173 = vmatpush1.msra.mxu0 %v110
    %3174 = vmatprep.subr.mxu0 %v113
    %3175 = vmatpush1.msra.mxu0 %v112
    %3176 = vmatprep.subr.mxu0 %v115
    %3177 = vmatpush1.msra.mxu0 %v114
    %3178 = vmatprep.subr.mxu0 %v117
    %3179 = vmatpush1.msra.mxu0 %v116
    %3180 = vmatprep.mubr.f32.mxu0 %v3113
    %3181 = vmatmul.mubr.f32.gmra.mrb[0].mxu0 %v3112
    %v3182 = vpop.f32.mrb[0].mxu0
    %v3183 = vadd.f32 %v3103, %v3182
    %v3184 = vpop.f32.mrb[0].mxu0
    %v3185 = vadd.f32 %v3104, %v3184
    %3186 = vdwg.mxu0
    %3187 = vset.pattern.permute.xlu0 126
    %3188 = vperm.xlu0 %3187, %v3080
    %v3189 = vpop.permute.xlu0 %3188
    %v3191 = vmul.f32 %v3189, %v220
    %v3192 = vmul.f32 %v3189, %v224
    %v3193 = vadd.f32 %v3183, %v3191
    %v3194 = vadd.f32 %v3185, %v3192
    %v3195 = vmax.f32 %v3193, -1.0
    %v3196 = vmax.f32 %v3194, -1.0
    %v3197 = vmin.f32 %v3195, 1.0
    %v3198 = vmin.f32 %v3196, 1.0
    %v3201 = vcombine.low %v3197, %v3198
    %v3203 = vunpack.c.l.s4 1983009808
    %v3204 = vunpack.c.0.s8 %v3203
    %v3205 = vlaneseq
    %v3206 = vshrl.u32 %v3205, 7
    %v3207 = vsub.s32 %v3204, %v3206
    %v3208 = vrot.slane %v3201, %v3207
    %3210 = vst [vmem:[%s4 + $0x68] sm:$0xf] %v3208
    %v3211 = vld [vmem:[%s0 + $0x6c] sm:$0xf]
    %3213 = vset.pattern.permute.xlu0 127
    %3214 = vperm.xlu0 %3213, %v3194
    %v3215 = vpop.permute.xlu0 %3214
    %v3217 = vmul.f32 %v3215, %v125
    %v3218 = vmul.f32 %v3215, %v129
    %v3221 = vunpack.c.l.s4 1983009808
    %v3222 = vunpack.c.0.s8 %v3221
    %v3223 = vlaneseq
    %v3224 = vshrl.u32 %v3223, 7
    %v3225 = vsub.s32 %v3222, %v3224
    %v3226 = vrot.slane %v3211, %v3225
    %v3227 = vcombine.high %v3226, %v3226
    %3230 = vmatprep.subr.mxu0 %v55
    %3231 = vmatpush1.msra.mxu0 %v54
    %3232 = vmatprep.subr.mxu0 %v57
    %3233 = vmatpush1.msra.mxu0 %v56
    %3234 = vmatprep.subr.mxu0 %v59
    %3235 = vmatpush1.msra.mxu0 %v58
    %3236 = vmatprep.subr.mxu0 %v61
    %3237 = vmatpush1.msra.mxu0 %v60
    %3238 = vmatprep.subr.mxu0 %v63
    %3239 = vmatpush1.msra.mxu0 %v62
    %3240 = vmatprep.subr.mxu0 %v65
    %3241 = vmatpush1.msra.mxu0 %v64
    %3242 = vmatprep.subr.mxu0 %v67
    %3243 = vmatpush1.msra.mxu0 %v66
    %3244 = vmatprep.subr.mxu0 %v69
    %3245 = vmatpush1.msra.mxu0 %v68
    %3246 = vmatprep.subr.mxu0 %v71
    %3247 = vmatpush1.msra.mxu0 %v70
    %3248 = vmatprep.subr.mxu0 %v73
    %3249 = vmatpush1.msra.mxu0 %v72
    %3250 = vmatprep.subr.mxu0 %v75
    %3251 = vmatpush1.msra.mxu0 %v74
    %3252 = vmatprep.subr.mxu0 %v77
    %3253 = vmatpush1.msra.mxu0 %v76
    %3254 = vmatprep.subr.mxu0 %v79
    %3255 = vmatpush1.msra.mxu0 %v78
    %3256 = vmatprep.subr.mxu0 %v81
    %3257 = vmatpush1.msra.mxu0 %v80
    %3258 = vmatprep.subr.mxu0 %v83
    %3259 = vmatpush1.msra.mxu0 %v82
    %3260 = vmatprep.subr.mxu0 %v85
    %3261 = vmatpush1.msra.mxu0 %v84
    %3262 = vmatprep.subr.mxu0 %v87
    %3263 = vmatpush1.msra.mxu0 %v86
    %3264 = vmatprep.subr.mxu0 %v89
    %3265 = vmatpush1.msra.mxu0 %v88
    %3266 = vmatprep.subr.mxu0 %v91
    %3267 = vmatpush1.msra.mxu0 %v90
    %3268 = vmatprep.subr.mxu0 %v93
    %3269 = vmatpush1.msra.mxu0 %v92
    %3270 = vmatprep.subr.mxu0 %v95
    %3271 = vmatpush1.msra.mxu0 %v94
    %3272 = vmatprep.subr.mxu0 %v97
    %3273 = vmatpush1.msra.mxu0 %v96
    %3274 = vmatprep.subr.mxu0 %v99
    %3275 = vmatpush1.msra.mxu0 %v98
    %3276 = vmatprep.subr.mxu0 %v101
    %3277 = vmatpush1.msra.mxu0 %v100
    %3278 = vmatprep.subr.mxu0 %v103
    %3279 = vmatpush1.msra.mxu0 %v102
    %3280 = vmatprep.subr.mxu0 %v105
    %3281 = vmatpush1.msra.mxu0 %v104
    %3282 = vmatprep.subr.mxu0 %v107
    %3283 = vmatpush1.msra.mxu0 %v106
    %3284 = vmatprep.subr.mxu0 %v109
    %3285 = vmatpush1.msra.mxu0 %v108
    %3286 = vmatprep.subr.mxu0 %v111
    %3287 = vmatpush1.msra.mxu0 %v110
    %3288 = vmatprep.subr.mxu0 %v113
    %3289 = vmatpush1.msra.mxu0 %v112
    %3290 = vmatprep.subr.mxu0 %v115
    %3291 = vmatpush1.msra.mxu0 %v114
    %3292 = vmatprep.subr.mxu0 %v117
    %3293 = vmatpush1.msra.mxu0 %v116
    %3294 = vmatprep.mubr.f32.mxu0 %v3227
    %3295 = vmatmul.mubr.f32.gmra.mrb[0].mxu0 %v3226
    %v3296 = vpop.f32.mrb[0].mxu0
    %v3297 = vadd.f32 %v3217, %v3296
    %v3298 = vpop.f32.mrb[0].mxu0
    %v3299 = vadd.f32 %v3218, %v3298
    %3300 = vdwg.mxu0
    %3301 = vset.pattern.permute.xlu0 126
    %3302 = vperm.xlu0 %3301, %v3194
    %v3303 = vpop.permute.xlu0 %3302
    %v3305 = vmul.f32 %v3303, %v220
    %v3306 = vmul.f32 %v3303, %v224
    %v3307 = vadd.f32 %v3297, %v3305
    %v3308 = vadd.f32 %v3299, %v3306
    %v3309 = vmax.f32 %v3307, -1.0
    %v3310 = vmax.f32 %v3308, -1.0
    %v3311 = vmin.f32 %v3309, 1.0
    %v3312 = vmin.f32 %v3310, 1.0
    %v3315 = vcombine.low %v3311, %v3312
    %v3317 = vunpack.c.l.s4 1983009808
    %v3318 = vunpack.c.0.s8 %v3317
    %v3319 = vlaneseq
    %v3320 = vshrl.u32 %v3319, 7
    %v3321 = vsub.s32 %v3318, %v3320
    %v3322 = vrot.slane %v3315, %v3321
    %3324 = vst [vmem:[%s4 + $0x6c] sm:$0xf] %v3322
    %v3325 = vld [vmem:[%s0 + $0x70] sm:$0xf]
    %3327 = vset.pattern.permute.xlu0 127
    %3328 = vperm.xlu0 %3327, %v3308
    %v3329 = vpop.permute.xlu0 %3328
    %v3331 = vmul.f32 %v3329, %v125
    %v3332 = vmul.f32 %v3329, %v129
    %v3335 = vunpack.c.l.s4 1983009808
    %v3336 = vunpack.c.0.s8 %v3335
    %v3337 = vlaneseq
    %v3338 = vshrl.u32 %v3337, 7
    %v3339 = vsub.s32 %v3336, %v3338
    %v3340 = vrot.slane %v3325, %v3339
    %v3341 = vcombine.high %v3340, %v3340
    %3344 = vmatprep.subr.mxu0 %v55
    %3345 = vmatpush1.msra.mxu0 %v54
    %3346 = vmatprep.subr.mxu0 %v57
    %3347 = vmatpush1.msra.mxu0 %v56
    %3348 = vmatprep.subr.mxu0 %v59
    %3349 = vmatpush1.msra.mxu0 %v58
    %3350 = vmatprep.subr.mxu0 %v61
    %3351 = vmatpush1.msra.mxu0 %v60
    %3352 = vmatprep.subr.mxu0 %v63
    %3353 = vmatpush1.msra.mxu0 %v62
    %3354 = vmatprep.subr.mxu0 %v65
    %3355 = vmatpush1.msra.mxu0 %v64
    %3356 = vmatprep.subr.mxu0 %v67
    %3357 = vmatpush1.msra.mxu0 %v66
    %3358 = vmatprep.subr.mxu0 %v69
    %3359 = vmatpush1.msra.mxu0 %v68
    %3360 = vmatprep.subr.mxu0 %v71
    %3361 = vmatpush1.msra.mxu0 %v70
    %3362 = vmatprep.subr.mxu0 %v73
    %3363 = vmatpush1.msra.mxu0 %v72
    %3364 = vmatprep.subr.mxu0 %v75
    %3365 = vmatpush1.msra.mxu0 %v74
    %3366 = vmatprep.subr.mxu0 %v77
    %3367 = vmatpush1.msra.mxu0 %v76
    %3368 = vmatprep.subr.mxu0 %v79
    %3369 = vmatpush1.msra.mxu0 %v78
    %3370 = vmatprep.subr.mxu0 %v81
    %3371 = vmatpush1.msra.mxu0 %v80
    %3372 = vmatprep.subr.mxu0 %v83
    %3373 = vmatpush1.msra.mxu0 %v82
    %3374 = vmatprep.subr.mxu0 %v85
    %3375 = vmatpush1.msra.mxu0 %v84
    %3376 = vmatprep.subr.mxu0 %v87
    %3377 = vmatpush1.msra.mxu0 %v86
    %3378 = vmatprep.subr.mxu0 %v89
    %3379 = vmatpush1.msra.mxu0 %v88
    %3380 = vmatprep.subr.mxu0 %v91
    %3381 = vmatpush1.msra.mxu0 %v90
    %3382 = vmatprep.subr.mxu0 %v93
    %3383 = vmatpush1.msra.mxu0 %v92
    %3384 = vmatprep.subr.mxu0 %v95
    %3385 = vmatpush1.msra.mxu0 %v94
    %3386 = vmatprep.subr.mxu0 %v97
    %3387 = vmatpush1.msra.mxu0 %v96
    %3388 = vmatprep.subr.mxu0 %v99
    %3389 = vmatpush1.msra.mxu0 %v98
    %3390 = vmatprep.subr.mxu0 %v101
    %3391 = vmatpush1.msra.mxu0 %v100
    %3392 = vmatprep.subr.mxu0 %v103
    %3393 = vmatpush1.msra.mxu0 %v102
    %3394 = vmatprep.subr.mxu0 %v105
    %3395 = vmatpush1.msra.mxu0 %v104
    %3396 = vmatprep.subr.mxu0 %v107
    %3397 = vmatpush1.msra.mxu0 %v106
    %3398 = vmatprep.subr.mxu0 %v109
    %3399 = vmatpush1.msra.mxu0 %v108
    %3400 = vmatprep.subr.mxu0 %v111
    %3401 = vmatpush1.msra.mxu0 %v110
    %3402 = vmatprep.subr.mxu0 %v113
    %3403 = vmatpush1.msra.mxu0 %v112
    %3404 = vmatprep.subr.mxu0 %v115
    %3405 = vmatpush1.msra.mxu0 %v114
    %3406 = vmatprep.subr.mxu0 %v117
    %3407 = vmatpush1.msra.mxu0 %v116
    %3408 = vmatprep.mubr.f32.mxu0 %v3341
    %3409 = vmatmul.mubr.f32.gmra.mrb[0].mxu0 %v3340
    %v3410 = vpop.f32.mrb[0].mxu0
    %v3411 = vadd.f32 %v3331, %v3410
    %v3412 = vpop.f32.mrb[0].mxu0
    %v3413 = vadd.f32 %v3332, %v3412
    %3414 = vdwg.mxu0
    %3415 = vset.pattern.permute.xlu0 126
    %3416 = vperm.xlu0 %3415, %v3308
    %v3417 = vpop.permute.xlu0 %3416
    %v3419 = vmul.f32 %v3417, %v220
    %v3420 = vmul.f32 %v3417, %v224
    %v3421 = vadd.f32 %v3411, %v3419
    %v3422 = vadd.f32 %v3413, %v3420
    %v3423 = vmax.f32 %v3421, -1.0
    %v3424 = vmax.f32 %v3422, -1.0
    %v3425 = vmin.f32 %v3423, 1.0
    %v3426 = vmin.f32 %v3424, 1.0
    %v3429 = vcombine.low %v3425, %v3426
    %v3431 = vunpack.c.l.s4 1983009808
    %v3432 = vunpack.c.0.s8 %v3431
    %v3433 = vlaneseq
    %v3434 = vshrl.u32 %v3433, 7
    %v3435 = vsub.s32 %v3432, %v3434
    %v3436 = vrot.slane %v3429, %v3435
    %3438 = vst [vmem:[%s4 + $0x70] sm:$0xf] %v3436
    // Predicated region
    $region30: #{mfcc_crnn_forward.6} parent=1 // pred_check
      _
    $region31: #{mfcc_crnn_forward.6} parent=1 // pred_check_branch
      %3440 = sbr.rel (0) target = $region33
    $region32: #{mfcc_crnn_forward.6} parent=1 // pred_region
      _
    $region33: #{mfcc_crnn_forward.6} parent=1 // pred_fallthru
      _
    // Predicated region
    $region34: #{mfcc_crnn_forward.6} parent=1 // pred_check
      _
    $region35: #{mfcc_crnn_forward.6} parent=1 // pred_check_branch
      %3442 = sbr.rel (0) target = $region37
    $region36: #{mfcc_crnn_forward.6} parent=1 // pred_region
      _
    $region37: #{mfcc_crnn_forward.6} parent=1 // pred_fallthru
      _
    %3443 = vsyncpa [#allocation3], 1
    %3444 = vsyncpa [#allocation5], 1

// kernel: mfcc_crnn_forward.7
$region0: #{mfcc_crnn_forward.7}
  #allocation0 [shape = 'u32[]', space=smem, size = 0x4, offset = 0x4, fixed_abs, tag = 'smem constant byte address 0x4 - core index']
  #allocation1 [shape = 'u32[144,128]{1,0:T(1,128)}', space=vmem, size = 0x12000, scoped, tag = 'internal scratch']
  %s0 = inlined_call_operand.vmem [shape: bf16[2,54,512], index: 0, kind: input, shape index: {}]
  %s1 = inlined_call_operand.vmem [shape: bf16[512,768], index: 1, kind: input, shape index: {}]
  %s2 = inlined_call_operand.vmem [shape: f32[384,128], index: 2, kind: input, shape index: {}]
  %s3 = inlined_call_operand.vmem [shape: f32[128,128], index: 3, kind: input, shape index: {}]
  %s4 = inlined_call_operand.vmem [shape: f32[2,54,128], index: 4, kind: output, shape index: {}]
  %s5 = sld [smem:[#allocation0]]
  $region49: #{mfcc_crnn_forward.7} parent=0
    _
  %s7 = ssub.s32 1, %s5
  %s8 = scalar_select 0, %s7, %s5
  loop: start=0, step=1, limit=4
  $region2: #{mfcc_crnn_forward.7} parent=0 // loop_pre_header
    _
  $region3: #{mfcc_crnn_forward.7} parent=0 // loop_header
    %s10 = sphi 0, %s14
    %p11 = scmp.ge.s32.totalorder %s10, 4
    %s20 = sphi 0, %s22
    %s23 = sphi 0, %s20
    %s24 = sphi 0, %s23
    %s40 = sphi 0, %s24
    %s44 = sphi 0, %s44
    %s46 = sphi 0, %s44
    %s47 = sphi 0, %s46
    %s61 = sphi 0, %s47
    %s65 = sphi 0, %s65
    %s67 = sphi 0, %s65
    %s68 = sphi 0, %s67
    %s82 = sphi 0, %s68
    %s86 = sphi 0, %s86
    %s88 = sphi 0, %s86
    %s89 = sphi 0, %s88
    %s103 = sphi 0, %s89
    %s109 = sphi 0, %s111
    %s112 = sphi 0, %s109
    %s113 = sphi 0, %s112
    %s129 = sphi 0, %s113
  $region4: #{mfcc_crnn_forward.7} parent=0 // loop_header_branch
    %13 = sbr.rel (%p11) target = $region8
  $region5: #{mfcc_crnn_forward.7} parent=0 // loop_body
    %s15 = ssub.s32 %s10, 1
    %s16 = ssub.s32 %s10, 2
    %s17 = sadd.s32 %s10, 1
    %s18 = ssub.s32 %s10, %s17
    %p19 = scmp.eq.s32.totalorder %s18, 0
    %s21 = sadd.s32 %s20, 1
    %s22 = scalar_select %p19, %s20, %s21
    %p25 = pneg %p19
    %p26 = scmp.eq.s32.totalorder %s10, 1
    %p27 = por %p25, %p26
    %p28 = scmp.ne.s32.totalorder %s20, %s23
    %p29 = scmp.eq.s32.totalorder %s10, 0
    %p30 = por %p28, %p29
    %p31 = scmp.ne.s32.totalorder %s20, %s23
    %p32 = scmp.eq.s32.totalorder %s15, 1
    %p33 = por %p31, %p32
    %p34 = scmp.ne.s32.totalorder %s23, %s24
    %p35 = scmp.eq.s32.totalorder %s15, 0
    %p36 = por %p34, %p35
    %p37 = scmp.ne.s32.totalorder %s23, %s24
    %p38 = scmp.eq.s32.totalorder %s16, 1
    %p39 = por %p37, %p38
    %p41 = scmp.ne.s32.totalorder %s24, %s40
    %p42 = scmp.eq.s32.totalorder %s16, 0
    %p43 = por %p41, %p42
    %s45 = sadd.s32 %s44, 1
    %p48 = scmp.eq.s32.totalorder %s10, 1
    %p49 = scmp.ne.s32.totalorder %s44, %s46
    %p50 = scmp.eq.s32.totalorder %s10, 0
    %p51 = por %p49, %p50
    %p52 = scmp.ne.s32.totalorder %s44, %s46
    %p53 = scmp.eq.s32.totalorder %s15, 1
    %p54 = por %p52, %p53
    %p55 = scmp.ne.s32.totalorder %s46, %s47
    %p56 = scmp.eq.s32.totalorder %s15, 0
    %p57 = por %p55, %p56
    %p58 = scmp.ne.s32.totalorder %s46, %s47
    %p59 = scmp.eq.s32.totalorder %s16, 1
    %p60 = por %p58, %p59
    %p62 = scmp.ne.s32.totalorder %s47, %s61
    %p63 = scmp.eq.s32.totalorder %s16, 0
    %p64 = por %p62, %p63
    %s66 = sadd.s32 %s65, 1
    %p69 = scmp.eq.s32.totalorder %s10, 1
    %p70 = scmp.ne.s32.totalorder %s65, %s67
    %p71 = scmp.eq.s32.totalorder %s10, 0
    %p72 = por %p70, %p71
    %p73 = scmp.ne.s32.totalorder %s65, %s67
    %p74 = scmp.eq.s32.totalorder %s15, 1
    %p75 = por %p73, %p74
    %p76 = scmp.ne.s32.totalorder %s67, %s68
    %p77 = scmp.eq.s32.totalorder %s15, 0
    %p78 = por %p76, %p77
    %p79 = scmp.ne.s32.totalorder %s67, %s68
    %p80 = scmp.eq.s32.totalorder %s16, 1
    %p81 = por %p79, %p80
    %p83 = scmp.ne.s32.totalorder %s68, %s82
    %p84 = scmp.eq.s32.totalorder %s16, 0
    %p85 = por %p83, %p84
    %s87 = sadd.s32 %s86, 1
    %p90 = scmp.eq.s32.totalorder %s10, 1
    %p91 = scmp.ne.s32.totalorder %s86, %s88
    %p92 = scmp.eq.s32.totalorder %s10, 0
    %p93 = por %p91, %p92
    %p94 = scmp.ne.s32.totalorder %s86, %s88
    %p95 = scmp.eq.s32.totalorder %s15, 1
    %p96 = por %p94, %p95
    %p97 = scmp.ne.s32.totalorder %s88, %s89
    %p98 = scmp.eq.s32.totalorder %s15, 0
    %p99 = por %p97, %p98
    %p100 = scmp.ne.s32.totalorder %s88, %s89
    %p101 = scmp.eq.s32.totalorder %s16, 1
    %p102 = por %p100, %p101
    %p104 = scmp.ne.s32.totalorder %s89, %s103
    %p105 = scmp.eq.s32.totalorder %s16, 0
    %p106 = por %p104, %p105
    %s107 = ssub.s32 %s10, %s17
    %p108 = scmp.eq.s32.totalorder %s107, 0
    %s110 = sadd.s32 %s109, 1
    %s111 = scalar_select %p108, %s109, %s110
    %p114 = pneg %p108
    %p115 = scmp.eq.s32.totalorder %s10, 1
    %p116 = por %p114, %p115
    %p117 = scmp.ne.s32.totalorder %s109, %s112
    %p118 = scmp.eq.s32.totalorder %s10, 0
    %p119 = por %p117, %p118
    %p120 = scmp.ne.s32.totalorder %s109, %s112
    %p121 = scmp.eq.s32.totalorder %s15, 1
    %p122 = por %p120, %p121
    %p123 = scmp.ne.s32.totalorder %s112, %s113
    %p124 = scmp.eq.s32.totalorder %s15, 0
    %p125 = por %p123, %p124
    %p126 = scmp.ne.s32.totalorder %s112, %s113
    %p127 = scmp.eq.s32.totalorder %s16, 1
    %p128 = por %p126, %p127
    %p130 = scmp.ne.s32.totalorder %s113, %s129
    %p131 = scmp.eq.s32.totalorder %s16, 0
    %p132 = por %p130, %p131
    %p133 = scmp.le.s32.totalorder 1, %s10
    %p134 = scmp.lt.s32.totalorder %s10, 3
    %p135 = pnand %p133, %p134
    %p136 = pneg %p135
    // Predicated region
    $region9: #{mfcc_crnn_forward.7} parent=5 // pred_check
      _
    $region10: #{mfcc_crnn_forward.7} parent=5 // pred_check_branch
      %138 = sbr.rel (%p135) target = $region12
    $region11: #{mfcc_crnn_forward.7} parent=5 // pred_region
      %s139 = ssub.s32 %s10, 1
      // Predicated region
      $region13: #{mfcc_crnn_forward.7} parent=11 // pred_check
        %p140 = pneg %p57
      $region14: #{mfcc_crnn_forward.7} parent=11 // pred_check_branch
        %142 = sbr.rel (%p140) target = $region16
      $region15: #{mfcc_crnn_forward.7} parent=11 // pred_region
        _
      $region16: #{mfcc_crnn_forward.7} parent=11 // pred_fallthru
        _
      // Predicated region
      $region17: #{mfcc_crnn_forward.7} parent=11 // pred_check
        %p143 = pneg %p78
      $region18: #{mfcc_crnn_forward.7} parent=11 // pred_check_branch
        %145 = sbr.rel (%p143) target = $region20
      $region19: #{mfcc_crnn_forward.7} parent=11 // pred_region
        _
      $region20: #{mfcc_crnn_forward.7} parent=11 // pred_fallthru
        _
      // Predicated region
      $region21: #{mfcc_crnn_forward.7} parent=11 // pred_check
        %p146 = pneg %p99
      $region22: #{mfcc_crnn_forward.7} parent=11 // pred_check_branch
        %148 = sbr.rel (%p146) target = $region24
      $region23: #{mfcc_crnn_forward.7} parent=11 // pred_region
        _
      $region24: #{mfcc_crnn_forward.7} parent=11 // pred_fallthru
        _
    $region12: #{mfcc_crnn_forward.7} parent=5 // pred_fallthru
      _
    %p149 = scmp.lt.s32.totalorder %s10, 2
    // Predicated region
    $region25: #{mfcc_crnn_forward.7} parent=5 // pred_check
      %p150 = pneg %p149
    $region26: #{mfcc_crnn_forward.7} parent=5 // pred_check_branch
      %152 = sbr.rel (%p150) target = $region28
    $region27: #{mfcc_crnn_forward.7} parent=5 // pred_region
      // Predicated region
      $region29: #{mfcc_crnn_forward.7} parent=27 // pred_check
        %p153 = pneg %p30
      $region30: #{mfcc_crnn_forward.7} parent=27 // pred_check_branch
        %155 = sbr.rel (%p153) target = $region32
      $region31: #{mfcc_crnn_forward.7} parent=27 // pred_region
        %p156 = scmp.lt.s32.totalorder %s10, 1
        %s157 = scalar_select %p156, %s10, 1
        %s158 = smul.addr %s157, 28
        %s159 = smul.addr %s158, 4
        %s160 = scalar_lea.vmem %s0, %s159
      $region32: #{mfcc_crnn_forward.7} parent=27 // pred_fallthru
        _
    $region28: #{mfcc_crnn_forward.7} parent=5 // pred_fallthru
      _
    %p161 = scmp.le.s32.totalorder 1, %s10
    %p162 = scmp.lt.s32.totalorder %s10, 3
    %p163 = pnand %p161, %p162
    %p164 = pneg %p163
    // Predicated region
    $region33: #{mfcc_crnn_forward.7} parent=5 // pred_check
      _
    $region34: #{mfcc_crnn_forward.7} parent=5 // pred_check_branch
      %166 = sbr.rel (%p163) target = $region36
    $region35: #{mfcc_crnn_forward.7} parent=5 // pred_region
      %s167 = ssub.s32 %s10, 1
      %p168 = scmp.lt.s32.totalorder %s15, 1
      %s169 = scalar_select %p168, %s15, 1
      %s170 = smul.addr %s169, 28
      %s171 = smul.addr %s170, 4
      %s172 = scalar_lea.vmem %s0, %s171
      %p173 = pneg %p36
      %p174 = pneg %p33
      %p175 = pneg %p57
      %p176 = pneg %p54
      %p177 = pneg %p78
      %p178 = pneg %p75
      %p179 = pneg %p99
      %p180 = pneg %p96
      %p181 = pneg %p125
      %p182 = pneg %p122
      %p183 = scmp.lt.s32.totalorder %s15, 1
      %s184 = scalar_select %p183, %s15, 1
      %s185 = smul.addr %s184, 7
      %s186 = smul.addr %s185, 8
      %s187 = scalar_lea.vmem %s4, %s186
      %p188 = scmp.lt.s32.totalorder %s15, 1
      %s189 = scalar_select %p188, %s15, 1
      %s190 = smul.addr %s189, 28
      %s191 = smul.addr %s190, 4
      %s192 = scalar_lea.vmem %s0, %s191
      %p193 = scmp.lt.s32.totalorder %s15, 1
      %s194 = scalar_select %p193, %s15, 1
      %s195 = smul.addr %s194, 7
      %s196 = smul.addr %s195, 8
      %s197 = scalar_lea.vmem %s4, %s196
      %v198 = vld [vmem:[%s192] sm:$0xff]
      %v199 = vld [vmem:[%s192 + $0x8] sm:$0xff]
      %v200 = vld [vmem:[%s192 + $0x10] sm:$0xff]
      %v201 = vld [vmem:[%s192 + $0x18] sm:$0xff]
      %v202 = vld [vmem:[%s192 + $0x20] sm:$0xff]
      %v203 = vld [vmem:[%s192 + $0x28] sm:$0xff]
      %v204 = vld [vmem:[%s192 + $0x30] sm:$0xff]
      %v205 = vld [vmem:[%s192 + $0x38] sm:$0xff]
      %v206 = vld [vmem:[%s192 + $0x40] sm:$0xff]
      %v207 = vld [vmem:[%s192 + $0x48] sm:$0xff]
      %v208 = vld [vmem:[%s192 + $0x50] sm:$0xff]
      %v209 = vld [vmem:[%s192 + $0x58] sm:$0xff]
      %v210 = vld [vmem:[%s192 + $0x60] sm:$0x77]
      %v211 = vld [vmem:[%s192 + $0x68] sm:$0x77]
      %v212 = vld [vmem:[%s1] sm:$0xff]
      %v213 = vld [vmem:[%s1 + $0x8] sm:$0xff]
      %v214 = vld [vmem:[%s1 + $0x10] sm:$0xff]
      %v215 = vld [vmem:[%s1 + $0x18] sm:$0xff]
      %v216 = vld [vmem:[%s1 + $0x20] sm:$0xff]
      %v217 = vld [vmem:[%s1 + $0x28] sm:$0xff]
      %v218 = vld [vmem:[%s1 + $0x30] sm:$0xff]
      %v219 = vld [vmem:[%s1 + $0x38] sm:$0xff]
      %v220 = vld [vmem:[%s1 + $0x40] sm:$0xff]
      %v221 = vld [vmem:[%s1 + $0x48] sm:$0xff]
      %v222 = vld [vmem:[%s1 + $0x50] sm:$0xff]
      %v223 = vld [vmem:[%s1 + $0x58] sm:$0xff]
      %v224 = vld [vmem:[%s1 + $0x60] sm:$0xff]
      %v225 = vld [vmem:[%s1 + $0x68] sm:$0xff]
      %v226 = vld [vmem:[%s1 + $0x70] sm:$0xff]
      %v227 = vld [vmem:[%s1 + $0x78] sm:$0xff]
      %v228 = vld [vmem:[%s1 + $0x80] sm:$0xff]
      %v229 = vld [vmem:[%s1 + $0x88] sm:$0xff]
      %v230 = vld [vmem:[%s1 + $0x90] sm:$0xff]
      %v231 = vld [vmem:[%s1 + $0x98] sm:$0xff]
      %v232 = vld [vmem:[%s1 + $0xa0] sm:$0xff]
      %v233 = vld [vmem:[%s1 + $0xa8] sm:$0xff]
      %v234 = vld [vmem:[%s1 + $0xb0] sm:$0xff]
      %v235 = vld [vmem:[%s1 + $0xb8] sm:$0xff]
      %v236 = vld [vmem:[%s1 + $0xc0] sm:$0xff]
      %v237 = vld [vmem:[%s1 + $0xc8] sm:$0xff]
      %v238 = vld [vmem:[%s1 + $0xd0] sm:$0xff]
      %v239 = vld [vmem:[%s1 + $0xd8] sm:$0xff]
      %v240 = vld [vmem:[%s1 + $0xe0] sm:$0xff]
      %v241 = vld [vmem:[%s1 + $0xe8] sm:$0xff]
      %v242 = vld [vmem:[%s1 + $0xf0] sm:$0xff]
      %v243 = vld [vmem:[%s1 + $0xf8] sm:$0xff]
      %v244 = vld [vmem:[%s1 + $0x100] sm:$0xff]
      %v245 = vld [vmem:[%s1 + $0x108] sm:$0xff]
      %v246 = vld [vmem:[%s1 + $0x110] sm:$0xff]
      %v247 = vld [vmem:[%s1 + $0x118] sm:$0xff]
      %v248 = vld [vmem:[%s1 + $0x120] sm:$0xff]
      %v249 = vld [vmem:[%s1 + $0x128] sm:$0xff]
      %v250 = vld [vmem:[%s1 + $0x130] sm:$0xff]
      %v251 = vld [vmem:[%s1 + $0x138] sm:$0xff]
      %v252 = vld [vmem:[%s1 + $0x140] sm:$0xff]
      %v253 = vld [vmem:[%s1 + $0x148] sm:$0xff]
      %v254 = vld [vmem:[%s1 + $0x150] sm:$0xff]
      %v255 = vld [vmem:[%s1 + $0x158] sm:$0xff]
      %v256 = vld [vmem:[%s1 + $0x160] sm:$0xff]
      %v257 = vld [vmem:[%s1 + $0x168] sm:$0xff]
      %v258 = vld [vmem:[%s1 + $0x170] sm:$0xff]
      %v259 = vld [vmem:[%s1 + $0x178] sm:$0xff]
      %v260 = vld [vmem:[%s1 + $0x180] sm:$0xff]
      %v261 = vld [vmem:[%s1 + $0x188] sm:$0xff]
      %v262 = vld [vmem:[%s1 + $0x190] sm:$0xff]
      %v263 = vld [vmem:[%s1 + $0x198] sm:$0xff]
      %v264 = vld [vmem:[%s1 + $0x1a0] sm:$0xff]
      %v265 = vld [vmem:[%s1 + $0x1a8] sm:$0xff]
      %v266 = vld [vmem:[%s1 + $0x1b0] sm:$0xff]
      %v267 = vld [vmem:[%s1 + $0x1b8] sm:$0xff]
      %v268 = vld [vmem:[%s1 + $0x1c0] sm:$0xff]
      %v269 = vld [vmem:[%s1 + $0x1c8] sm:$0xff]
      %v270 = vld [vmem:[%s1 + $0x1d0] sm:$0xff]
      %v271 = vld [vmem:[%s1 + $0x1d8] sm:$0xff]
      %v272 = vld [vmem:[%s1 + $0x1e0] sm:$0xff]
      %v273 = vld [vmem:[%s1 + $0x1e8] sm:$0xff]
      %v274 = vld [vmem:[%s1 + $0x1f0] sm:$0xff]
      %v275 = vld [vmem:[%s1 + $0x1f8] sm:$0xff]
      %v276 = vld [vmem:[%s1 + $0x200] sm:$0xff]
      %v277 = vld [vmem:[%s1 + $0x208] sm:$0xff]
      %v278 = vld [vmem:[%s1 + $0x210] sm:$0xff]
      %v279 = vld [vmem:[%s1 + $0x218] sm:$0xff]
      %v280 = vld [vmem:[%s1 + $0x220] sm:$0xff]
      %v281 = vld [vmem:[%s1 + $0x228] sm:$0xff]
      %v282 = vld [vmem:[%s1 + $0x230] sm:$0xff]
      %v283 = vld [vmem:[%s1 + $0x238] sm:$0xff]
      %v284 = vld [vmem:[%s1 + $0x240] sm:$0xff]
      %v285 = vld [vmem:[%s1 + $0x248] sm:$0xff]
      %v286 = vld [vmem:[%s1 + $0x250] sm:$0xff]
      %v287 = vld [vmem:[%s1 + $0x258] sm:$0xff]
      %v288 = vld [vmem:[%s1 + $0x260] sm:$0xff]
      %v289 = vld [vmem:[%s1 + $0x268] sm:$0xff]
      %v290 = vld [vmem:[%s1 + $0x270] sm:$0xff]
      %v291 = vld [vmem:[%s1 + $0x278] sm:$0xff]
      %v292 = vld [vmem:[%s1 + $0x280] sm:$0xff]
      %v293 = vld [vmem:[%s1 + $0x288] sm:$0xff]
      %v294 = vld [vmem:[%s1 + $0x290] sm:$0xff]
      %v295 = vld [vmem:[%s1 + $0x298] sm:$0xff]
      %v296 = vld [vmem:[%s1 + $0x2a0] sm:$0xff]
      %v297 = vld [vmem:[%s1 + $0x2a8] sm:$0xff]
      %v298 = vld [vmem:[%s1 + $0x2b0] sm:$0xff]
      %v299 = vld [vmem:[%s1 + $0x2b8] sm:$0xff]
      %v300 = vld [vmem:[%s1 + $0x2c0] sm:$0xff]
      %v301 = vld [vmem:[%s1 + $0x2c8] sm:$0xff]
      %v302 = vld [vmem:[%s1 + $0x2d0] sm:$0xff]
      %v303 = vld [vmem:[%s1 + $0x2d8] sm:$0xff]
      %v304 = vld [vmem:[%s1 + $0x2e0] sm:$0xff]
      %v305 = vld [vmem:[%s1 + $0x2e8] sm:$0xff]
      %v306 = vld [vmem:[%s1 + $0x2f0] sm:$0xff]
      %v307 = vld [vmem:[%s1 + $0x2f8] sm:$0xff]
      %v308 = vld [vmem:[%s1 + $0x300] sm:$0xff]
      %v309 = vld [vmem:[%s1 + $0x308] sm:$0xff]
      %v310 = vld [vmem:[%s1 + $0x310] sm:$0xff]
      %v311 = vld [vmem:[%s1 + $0x318] sm:$0xff]
      %v312 = vld [vmem:[%s1 + $0x320] sm:$0xff]
      %v313 = vld [vmem:[%s1 + $0x328] sm:$0xff]
      %v314 = vld [vmem:[%s1 + $0x330] sm:$0xff]
      %v315 = vld [vmem:[%s1 + $0x338] sm:$0xff]
      %v316 = vld [vmem:[%s1 + $0x340] sm:$0xff]
      %v317 = vld [vmem:[%s1 + $0x348] sm:$0xff]
      %v318 = vld [vmem:[%s1 + $0x350] sm:$0xff]
      %v319 = vld [vmem:[%s1 + $0x358] sm:$0xff]
      %v320 = vld [vmem:[%s1 + $0x360] sm:$0xff]
      %v321 = vld [vmem:[%s1 + $0x368] sm:$0xff]
      %v322 = vld [vmem:[%s1 + $0x370] sm:$0xff]
      %v323 = vld [vmem:[%s1 + $0x378] sm:$0xff]
      %v324 = vld [vmem:[%s1 + $0x380] sm:$0xff]
      %v325 = vld [vmem:[%s1 + $0x388] sm:$0xff]
      %v326 = vld [vmem:[%s1 + $0x390] sm:$0xff]
      %v327 = vld [vmem:[%s1 + $0x398] sm:$0xff]
      %v328 = vld [vmem:[%s1 + $0x3a0] sm:$0xff]
      %v329 = vld [vmem:[%s1 + $0x3a8] sm:$0xff]
      %v330 = vld [vmem:[%s1 + $0x3b0] sm:$0xff]
      %v331 = vld [vmem:[%s1 + $0x3b8] sm:$0xff]
      %v332 = vld [vmem:[%s1 + $0x3c0] sm:$0xff]
      %v333 = vld [vmem:[%s1 + $0x3c8] sm:$0xff]
      %v334 = vld [vmem:[%s1 + $0x3d0] sm:$0xff]
      %v335 = vld [vmem:[%s1 + $0x3d8] sm:$0xff]
      %v336 = vld [vmem:[%s1 + $0x3e0] sm:$0xff]
      %v337 = vld [vmem:[%s1 + $0x3e8] sm:$0xff]
      %v338 = vld [vmem:[%s1 + $0x3f0] sm:$0xff]
      %v339 = vld [vmem:[%s1 + $0x3f8] sm:$0xff]
      %v340 = vld [vmem:[%s1 + $0x400] sm:$0xff]
      %v341 = vld [vmem:[%s1 + $0x408] sm:$0xff]
      %v342 = vld [vmem:[%s1 + $0x410] sm:$0xff]
      %v343 = vld [vmem:[%s1 + $0x418] sm:$0xff]
      %v344 = vld [vmem:[%s1 + $0x420] sm:$0xff]
      %v345 = vld [vmem:[%s1 + $0x428] sm:$0xff]
      %v346 = vld [vmem:[%s1 + $0x430] sm:$0xff]
      %v347 = vld [vmem:[%s1 + $0x438] sm:$0xff]
      %v348 = vld [vmem:[%s1 + $0x440] sm:$0xff]
      %v349 = vld [vmem:[%s1 + $0x448] sm:$0xff]
      %v350 = vld [vmem:[%s1 + $0x450] sm:$0xff]
      %v351 = vld [vmem:[%s1 + $0x458] sm:$0xff]
      %v352 = vld [vmem:[%s1 + $0x460] sm:$0xff]
      %v353 = vld [vmem:[%s1 + $0x468] sm:$0xff]
      %v354 = vld [vmem:[%s1 + $0x470] sm:$0xff]
      %v355 = vld [vmem:[%s1 + $0x478] sm:$0xff]
      %v356 = vld [vmem:[%s1 + $0x480] sm:$0xff]
      %v357 = vld [vmem:[%s1 + $0x488] sm:$0xff]
      %v358 = vld [vmem:[%s1 + $0x490] sm:$0xff]
      %v359 = vld [vmem:[%s1 + $0x498] sm:$0xff]
      %v360 = vld [vmem:[%s1 + $0x4a0] sm:$0xff]
      %v361 = vld [vmem:[%s1 + $0x4a8] sm:$0xff]
      %v362 = vld [vmem:[%s1 + $0x4b0] sm:$0xff]
      %v363 = vld [vmem:[%s1 + $0x4b8] sm:$0xff]
      %v364 = vld [vmem:[%s1 + $0x4c0] sm:$0xff]
      %v365 = vld [vmem:[%s1 + $0x4c8] sm:$0xff]
      %v366 = vld [vmem:[%s1 + $0x4d0] sm:$0xff]
      %v367 = vld [vmem:[%s1 + $0x4d8] sm:$0xff]
      %v368 = vld [vmem:[%s1 + $0x4e0] sm:$0xff]
      %v369 = vld [vmem:[%s1 + $0x4e8] sm:$0xff]
      %v370 = vld [vmem:[%s1 + $0x4f0] sm:$0xff]
      %v371 = vld [vmem:[%s1 + $0x4f8] sm:$0xff]
      %v372 = vld [vmem:[%s1 + $0x500] sm:$0xff]
      %v373 = vld [vmem:[%s1 + $0x508] sm:$0xff]
      %v374 = vld [vmem:[%s1 + $0x510] sm:$0xff]
      %v375 = vld [vmem:[%s1 + $0x518] sm:$0xff]
      %v376 = vld [vmem:[%s1 + $0x520] sm:$0xff]
      %v377 = vld [vmem:[%s1 + $0x528] sm:$0xff]
      %v378 = vld [vmem:[%s1 + $0x530] sm:$0xff]
      %v379 = vld [vmem:[%s1 + $0x538] sm:$0xff]
      %v380 = vld [vmem:[%s1 + $0x540] sm:$0xff]
      %v381 = vld [vmem:[%s1 + $0x548] sm:$0xff]
      %v382 = vld [vmem:[%s1 + $0x550] sm:$0xff]
      %v383 = vld [vmem:[%s1 + $0x558] sm:$0xff]
      %v384 = vld [vmem:[%s1 + $0x560] sm:$0xff]
      %v385 = vld [vmem:[%s1 + $0x568] sm:$0xff]
      %v386 = vld [vmem:[%s1 + $0x570] sm:$0xff]
      %v387 = vld [vmem:[%s1 + $0x578] sm:$0xff]
      %v388 = vld [vmem:[%s1 + $0x580] sm:$0xff]
      %v389 = vld [vmem:[%s1 + $0x588] sm:$0xff]
      %v390 = vld [vmem:[%s1 + $0x590] sm:$0xff]
      %v391 = vld [vmem:[%s1 + $0x598] sm:$0xff]
      %v392 = vld [vmem:[%s1 + $0x5a0] sm:$0xff]
      %v393 = vld [vmem:[%s1 + $0x5a8] sm:$0xff]
      %v394 = vld [vmem:[%s1 + $0x5b0] sm:$0xff]
      %v395 = vld [vmem:[%s1 + $0x5b8] sm:$0xff]
      %v396 = vld [vmem:[%s1 + $0x5c0] sm:$0xff]
      %v397 = vld [vmem:[%s1 + $0x5c8] sm:$0xff]
      %v398 = vld [vmem:[%s1 + $0x5d0] sm:$0xff]
      %v399 = vld [vmem:[%s1 + $0x5d8] sm:$0xff]
      %v400 = vld [vmem:[%s1 + $0x5e0] sm:$0xff]
      %v401 = vld [vmem:[%s1 + $0x5e8] sm:$0xff]
      %v402 = vld [vmem:[%s1 + $0x5f0] sm:$0xff]
      %v403 = vld [vmem:[%s1 + $0x5f8] sm:$0xff]
      %v418 = vunpack.c.l.b16 %v198
      %v419 = vunpack.c.h.b16 %v198
      %v420 = vunpack.c.l.b16 %v199
      %v421 = vunpack.c.h.b16 %v199
      %v422 = vunpack.c.l.b16 %v200
      %v423 = vunpack.c.h.b16 %v200
      %v424 = vunpack.c.l.b16 %v201
      %v425 = vunpack.c.h.b16 %v201
      %v426 = vunpack.c.l.b16 %v202
      %v427 = vunpack.c.h.b16 %v202
      %v428 = vunpack.c.l.b16 %v203
      %v429 = vunpack.c.h.b16 %v203
      %v430 = vunpack.c.l.b16 %v204
      %v431 = vunpack.c.h.b16 %v204
      %v432 = vunpack.c.l.b16 %v205
      %v433 = vunpack.c.h.b16 %v205
      %v434 = vunpack.c.l.b16 %v206
      %v435 = vunpack.c.h.b16 %v206
      %v436 = vunpack.c.l.b16 %v207
      %v437 = vunpack.c.h.b16 %v207
      %v438 = vunpack.c.l.b16 %v208
      %v439 = vunpack.c.h.b16 %v208
      %v440 = vunpack.c.l.b16 %v209
      %v441 = vunpack.c.h.b16 %v209
      %v442 = vunpack.c.l.b16 %v210
      %v443 = vunpack.c.h.b16 %v210
      %v444 = vunpack.c.l.b16 %v211
      %v445 = vunpack.c.h.b16 %v211
      %v446 = vpack.c.b16 %v422, %v418
      %v447 = vpack.c.b16 %v423, %v419
      %v448 = vpack.c.b16 %v424, %v420
      %v449 = vpack.c.b16 %v425, %v421
      %v450 = vpack.c.b16 %v430, %v426
      %v451 = vpack.c.b16 %v431, %v427
      %v452 = vpack.c.b16 %v432, %v428
      %v453 = vpack.c.b16 %v433, %v429
      %v454 = vpack.c.b16 %v438, %v434
      %v455 = vpack.c.b16 %v439, %v435
      %v456 = vpack.c.b16 %v440, %v436
      %v457 = vpack.c.b16 %v441, %v437
      %v458 = vpack.c.b16 %v442, %v442
      %v459 = vpack.c.b16 %v443, %v443
      %v460 = vpack.c.b16 %v444, %v444
      %v461 = vpack.c.b16 %v445, %v445
      %v670 = vunpack.c.l.b16 %v212
      %v671 = vunpack.c.h.b16 %v212
      %v672 = vunpack.c.l.b16 %v213
      %v673 = vunpack.c.h.b16 %v213
      %v674 = vunpack.c.l.b16 %v214
      %v675 = vunpack.c.h.b16 %v214
      %v676 = vunpack.c.l.b16 %v215
      %v677 = vunpack.c.h.b16 %v215
      %v678 = vunpack.c.l.b16 %v216
      %v679 = vunpack.c.h.b16 %v216
      %v680 = vunpack.c.l.b16 %v217
      %v681 = vunpack.c.h.b16 %v217
      %v682 = vunpack.c.l.b16 %v218
      %v683 = vunpack.c.h.b16 %v218
      %v684 = vunpack.c.l.b16 %v219
      %v685 = vunpack.c.h.b16 %v219
      %v686 = vunpack.c.l.b16 %v220
      %v687 = vunpack.c.h.b16 %v220
      %v688 = vunpack.c.l.b16 %v221
      %v689 = vunpack.c.h.b16 %v221
      %v690 = vunpack.c.l.b16 %v222
      %v691 = vunpack.c.h.b16 %v222
      %v692 = vunpack.c.l.b16 %v223
      %v693 = vunpack.c.h.b16 %v223
      %v694 = vunpack.c.l.b16 %v224
      %v695 = vunpack.c.h.b16 %v224
      %v696 = vunpack.c.l.b16 %v225
      %v697 = vunpack.c.h.b16 %v225
      %v698 = vunpack.c.l.b16 %v226
      %v699 = vunpack.c.h.b16 %v226
      %v700 = vunpack.c.l.b16 %v227
      %v701 = vunpack.c.h.b16 %v227
      %v702 = vunpack.c.l.b16 %v228
      %v703 = vunpack.c.h.b16 %v228
      %v704 = vunpack.c.l.b16 %v229
      %v705 = vunpack.c.h.b16 %v229
      %v706 = vunpack.c.l.b16 %v230
      %v707 = vunpack.c.h.b16 %v230
      %v708 = vunpack.c.l.b16 %v231
      %v709 = vunpack.c.h.b16 %v231
      %v710 = vunpack.c.l.b16 %v232
      %v711 = vunpack.c.h.b16 %v232
      %v712 = vunpack.c.l.b16 %v233
      %v713 = vunpack.c.h.b16 %v233
      %v714 = vunpack.c.l.b16 %v234
      %v715 = vunpack.c.h.b16 %v234
      %v716 = vunpack.c.l.b16 %v235
      %v717 = vunpack.c.h.b16 %v235
      %v718 = vunpack.c.l.b16 %v236
      %v719 = vunpack.c.h.b16 %v236
      %v720 = vunpack.c.l.b16 %v237
      %v721 = vunpack.c.h.b16 %v237
      %v722 = vunpack.c.l.b16 %v238
      %v723 = vunpack.c.h.b16 %v238
      %v724 = vunpack.c.l.b16 %v239
      %v725 = vunpack.c.h.b16 %v239
      %v726 = vunpack.c.l.b16 %v240
      %v727 = vunpack.c.h.b16 %v240
      %v728 = vunpack.c.l.b16 %v241
      %v729 = vunpack.c.h.b16 %v241
      %v730 = vunpack.c.l.b16 %v242
      %v731 = vunpack.c.h.b16 %v242
      %v732 = vunpack.c.l.b16 %v243
      %v733 = vunpack.c.h.b16 %v243
      %v734 = vunpack.c.l.b16 %v244
      %v735 = vunpack.c.h.b16 %v244
      %v736 = vunpack.c.l.b16 %v245
      %v737 = vunpack.c.h.b16 %v245
      %v738 = vunpack.c.l.b16 %v246
      %v739 = vunpack.c.h.b16 %v246
      %v740 = vunpack.c.l.b16 %v247
      %v741 = vunpack.c.h.b16 %v247
      %v742 = vunpack.c.l.b16 %v248
      %v743 = vunpack.c.h.b16 %v248
      %v744 = vunpack.c.l.b16 %v249
      %v745 = vunpack.c.h.b16 %v249
      %v746 = vunpack.c.l.b16 %v250
      %v747 = vunpack.c.h.b16 %v250
      %v748 = vunpack.c.l.b16 %v251
      %v749 = vunpack.c.h.b16 %v251
      %v750 = vunpack.c.l.b16 %v252
      %v751 = vunpack.c.h.b16 %v252
      %v752 = vunpack.c.l.b16 %v253
      %v753 = vunpack.c.h.b16 %v253
      %v754 = vunpack.c.l.b16 %v254
      %v755 = vunpack.c.h.b16 %v254
      %v756 = vunpack.c.l.b16 %v255
      %v757 = vunpack.c.h.b16 %v255
      %v758 = vunpack.c.l.b16 %v256
      %v759 = vunpack.c.h.b16 %v256
      %v760 = vunpack.c.l.b16 %v257
      %v761 = vunpack.c.h.b16 %v257
      %v762 = vunpack.c.l.b16 %v258
      %v763 = vunpack.c.h.b16 %v258
      %v764 = vunpack.c.l.b16 %v259
      %v765 = vunpack.c.h.b16 %v259
      %v766 = vunpack.c.l.b16 %v260
      %v767 = vunpack.c.h.b16 %v260
      %v768 = vunpack.c.l.b16 %v261
      %v769 = vunpack.c.h.b16 %v261
      %v770 = vunpack.c.l.b16 %v262
      %v771 = vunpack.c.h.b16 %v262
      %v772 = vunpack.c.l.b16 %v263
      %v773 = vunpack.c.h.b16 %v263
      %v774 = vunpack.c.l.b16 %v264
      %v775 = vunpack.c.h.b16 %v264
      %v776 = vunpack.c.l.b16 %v265
      %v777 = vunpack.c.h.b16 %v265
      %v778 = vunpack.c.l.b16 %v266
      %v779 = vunpack.c.h.b16 %v266
      %v780 = vunpack.c.l.b16 %v267
      %v781 = vunpack.c.h.b16 %v267
      %v782 = vunpack.c.l.b16 %v268
      %v783 = vunpack.c.h.b16 %v268
      %v784 = vunpack.c.l.b16 %v269
      %v785 = vunpack.c.h.b16 %v269
      %v786 = vunpack.c.l.b16 %v270
      %v787 = vunpack.c.h.b16 %v270
      %v788 = vunpack.c.l.b16 %v271
      %v789 = vunpack.c.h.b16 %v271
      %v790 = vunpack.c.l.b16 %v272
      %v791 = vunpack.c.h.b16 %v272
      %v792 = vunpack.c.l.b16 %v273
      %v793 = vunpack.c.h.b16 %v273
      %v794 = vunpack.c.l.b16 %v274
      %v795 = vunpack.c.h.b16 %v274
      %v796 = vunpack.c.l.b16 %v275
      %v797 = vunpack.c.h.b16 %v275
      %v798 = vunpack.c.l.b16 %v276
      %v799 = vunpack.c.h.b16 %v276
      %v800 = vunpack.c.l.b16 %v277
      %v801 = vunpack.c.h.b16 %v277
      %v802 = vunpack.c.l.b16 %v278
      %v803 = vunpack.c.h.b16 %v278
      %v804 = vunpack.c.l.b16 %v279
      %v805 = vunpack.c.h.b16 %v279
      %v806 = vunpack.c.l.b16 %v280
      %v807 = vunpack.c.h.b16 %v280
      %v808 = vunpack.c.l.b16 %v281
      %v809 = vunpack.c.h.b16 %v281
      %v810 = vunpack.c.l.b16 %v282
      %v811 = vunpack.c.h.b16 %v282
      %v812 = vunpack.c.l.b16 %v283
      %v813 = vunpack.c.h.b16 %v283
      %v814 = vunpack.c.l.b16 %v284
      %v815 = vunpack.c.h.b16 %v284
      %v816 = vunpack.c.l.b16 %v285
      %v817 = vunpack.c.h.b16 %v285
      %v818 = vunpack.c.l.b16 %v286
      %v819 = vunpack.c.h.b16 %v286
      %v820 = vunpack.c.l.b16 %v287
      %v821 = vunpack.c.h.b16 %v287
      %v822 = vunpack.c.l.b16 %v288
      %v823 = vunpack.c.h.b16 %v288
      %v824 = vunpack.c.l.b16 %v289
      %v825 = vunpack.c.h.b16 %v289
      %v826 = vunpack.c.l.b16 %v290
      %v827 = vunpack.c.h.b16 %v290
      %v828 = vunpack.c.l.b16 %v291
      %v829 = vunpack.c.h.b16 %v291
      %v830 = vunpack.c.l.b16 %v292
      %v831 = vunpack.c.h.b16 %v292
      %v832 = vunpack.c.l.b16 %v293
      %v833 = vunpack.c.h.b16 %v293
      %v834 = vunpack.c.l.b16 %v294
      %v835 = vunpack.c.h.b16 %v294
      %v836 = vunpack.c.l.b16 %v295
      %v837 = vunpack.c.h.b16 %v295
      %v838 = vunpack.c.l.b16 %v296
      %v839 = vunpack.c.h.b16 %v296
      %v840 = vunpack.c.l.b16 %v297
      %v841 = vunpack.c.h.b16 %v297
      %v842 = vunpack.c.l.b16 %v298
      %v843 = vunpack.c.h.b16 %v298
      %v844 = vunpack.c.l.b16 %v299
      %v845 = vunpack.c.h.b16 %v299
      %v846 = vunpack.c.l.b16 %v300
      %v847 = vunpack.c.h.b16 %v300
      %v848 = vunpack.c.l.b16 %v301
      %v849 = vunpack.c.h.b16 %v301
      %v850 = vunpack.c.l.b16 %v302
      %v851 = vunpack.c.h.b16 %v302
      %v852 = vunpack.c.l.b16 %v303
      %v853 = vunpack.c.h.b16 %v303
      %v854 = vunpack.c.l.b16 %v304
      %v855 = vunpack.c.h.b16 %v304
      %v856 = vunpack.c.l.b16 %v305
      %v857 = vunpack.c.h.b16 %v305
      %v858 = vunpack.c.l.b16 %v306
      %v859 = vunpack.c.h.b16 %v306
      %v860 = vunpack.c.l.b16 %v307
      %v861 = vunpack.c.h.b16 %v307
      %v862 = vunpack.c.l.b16 %v308
      %v863 = vunpack.c.h.b16 %v308
      %v864 = vunpack.c.l.b16 %v309
      %v865 = vunpack.c.h.b16 %v309
      %v866 = vunpack.c.l.b16 %v310
      %v867 = vunpack.c.h.b16 %v310
      %v868 = vunpack.c.l.b16 %v311
      %v869 = vunpack.c.h.b16 %v311
      %v870 = vunpack.c.l.b16 %v312
      %v871 = vunpack.c.h.b16 %v312
      %v872 = vunpack.c.l.b16 %v313
      %v873 = vunpack.c.h.b16 %v313
      %v874 = vunpack.c.l.b16 %v314
      %v875 = vunpack.c.h.b16 %v314
      %v876 = vunpack.c.l.b16 %v315
      %v877 = vunpack.c.h.b16 %v315
      %v878 = vunpack.c.l.b16 %v316
      %v879 = vunpack.c.h.b16 %v316
      %v880 = vunpack.c.l.b16 %v317
      %v881 = vunpack.c.h.b16 %v317
      %v882 = vunpack.c.l.b16 %v318
      %v883 = vunpack.c.h.b16 %v318
      %v884 = vunpack.c.l.b16 %v319
      %v885 = vunpack.c.h.b16 %v319
      %v886 = vunpack.c.l.b16 %v320
      %v887 = vunpack.c.h.b16 %v320
      %v888 = vunpack.c.l.b16 %v321
      %v889 = vunpack.c.h.b16 %v321
      %v890 = vunpack.c.l.b16 %v322
      %v891 = vunpack.c.h.b16 %v322
      %v892 = vunpack.c.l.b16 %v323
      %v893 = vunpack.c.h.b16 %v323
      %v894 = vunpack.c.l.b16 %v324
      %v895 = vunpack.c.h.b16 %v324
      %v896 = vunpack.c.l.b16 %v325
      %v897 = vunpack.c.h.b16 %v325
      %v898 = vunpack.c.l.b16 %v326
      %v899 = vunpack.c.h.b16 %v326
      %v900 = vunpack.c.l.b16 %v327
      %v901 = vunpack.c.h.b16 %v327
      %v902 = vunpack.c.l.b16 %v328
      %v903 = vunpack.c.h.b16 %v328
      %v904 = vunpack.c.l.b16 %v329
      %v905 = vunpack.c.h.b16 %v329
      %v906 = vunpack.c.l.b16 %v330
      %v907 = vunpack.c.h.b16 %v330
      %v908 = vunpack.c.l.b16 %v331
      %v909 = vunpack.c.h.b16 %v331
      %v910 = vunpack.c.l.b16 %v332
      %v911 = vunpack.c.h.b16 %v332
      %v912 = vunpack.c.l.b16 %v333
      %v913 = vunpack.c.h.b16 %v333
      %v914 = vunpack.c.l.b16 %v334
      %v915 = vunpack.c.h.b16 %v334
      %v916 = vunpack.c.l.b16 %v335
      %v917 = vunpack.c.h.b16 %v335
      %v918 = vunpack.c.l.b16 %v336
      %v919 = vunpack.c.h.b16 %v336
      %v920 = vunpack.c.l.b16 %v337
      %v921 = vunpack.c.h.b16 %v337
      %v922 = vunpack.c.l.b16 %v338
      %v923 = vunpack.c.h.b16 %v338
      %v924 = vunpack.c.l.b16 %v339
      %v925 = vunpack.c.h.b16 %v339
      %v926 = vunpack.c.l.b16 %v340
      %v927 = vunpack.c.h.b16 %v340
      %v928 = vunpack.c.l.b16 %v341
      %v929 = vunpack.c.h.b16 %v341
      %v930 = vunpack.c.l.b16 %v342
      %v931 = vunpack.c.h.b16 %v342
      %v932 = vunpack.c.l.b16 %v343
      %v933 = vunpack.c.h.b16 %v343
      %v934 = vunpack.c.l.b16 %v344
      %v935 = vunpack.c.h.b16 %v344
      %v936 = vunpack.c.l.b16 %v345
      %v937 = vunpack.c.h.b16 %v345
      %v938 = vunpack.c.l.b16 %v346
      %v939 = vunpack.c.h.b16 %v346
      %v940 = vunpack.c.l.b16 %v347
      %v941 = vunpack.c.h.b16 %v347
      %v942 = vunpack.c.l.b16 %v348
      %v943 = vunpack.c.h.b16 %v348
      %v944 = vunpack.c.l.b16 %v349
      %v945 = vunpack.c.h.b16 %v349
      %v946 = vunpack.c.l.b16 %v350
      %v947 = vunpack.c.h.b16 %v350
      %v948 = vunpack.c.l.b16 %v351
      %v949 = vunpack.c.h.b16 %v351
      %v950 = vunpack.c.l.b16 %v352
      %v951 = vunpack.c.h.b16 %v352
      %v952 = vunpack.c.l.b16 %v353
      %v953 = vunpack.c.h.b16 %v353
      %v954 = vunpack.c.l.b16 %v354
      %v955 = vunpack.c.h.b16 %v354
      %v956 = vunpack.c.l.b16 %v355
      %v957 = vunpack.c.h.b16 %v355
      %v958 = vunpack.c.l.b16 %v356
      %v959 = vunpack.c.h.b16 %v356
      %v960 = vunpack.c.l.b16 %v357
      %v961 = vunpack.c.h.b16 %v357
      %v962 = vunpack.c.l.b16 %v358
      %v963 = vunpack.c.h.b16 %v358
      %v964 = vunpack.c.l.b16 %v359
      %v965 = vunpack.c.h.b16 %v359
      %v966 = vunpack.c.l.b16 %v360
      %v967 = vunpack.c.h.b16 %v360
      %v968 = vunpack.c.l.b16 %v361
      %v969 = vunpack.c.h.b16 %v361
      %v970 = vunpack.c.l.b16 %v362
      %v971 = vunpack.c.h.b16 %v362
      %v972 = vunpack.c.l.b16 %v363
      %v973 = vunpack.c.h.b16 %v363
      %v974 = vunpack.c.l.b16 %v364
      %v975 = vunpack.c.h.b16 %v364
      %v976 = vunpack.c.l.b16 %v365
      %v977 = vunpack.c.h.b16 %v365
      %v978 = vunpack.c.l.b16 %v366
      %v979 = vunpack.c.h.b16 %v366
      %v980 = vunpack.c.l.b16 %v367
      %v981 = vunpack.c.h.b16 %v367
      %v982 = vunpack.c.l.b16 %v368
      %v983 = vunpack.c.h.b16 %v368
      %v984 = vunpack.c.l.b16 %v369
      %v985 = vunpack.c.h.b16 %v369
      %v986 = vunpack.c.l.b16 %v370
      %v987 = vunpack.c.h.b16 %v370
      %v988 = vunpack.c.l.b16 %v371
      %v989 = vunpack.c.h.b16 %v371
      %v990 = vunpack.c.l.b16 %v372
      %v991 = vunpack.c.h.b16 %v372
      %v992 = vunpack.c.l.b16 %v373
      %v993 = vunpack.c.h.b16 %v373
      %v994 = vunpack.c.l.b16 %v374
      %v995 = vunpack.c.h.b16 %v374
      %v996 = vunpack.c.l.b16 %v375
      %v997 = vunpack.c.h.b16 %v375
      %v998 = vunpack.c.l.b16 %v376
      %v999 = vunpack.c.h.b16 %v376
      %v1000 = vunpack.c.l.b16 %v377
      %v1001 = vunpack.c.h.b16 %v377
      %v1002 = vunpack.c.l.b16 %v378
      %v1003 = vunpack.c.h.b16 %v378
      %v1004 = vunpack.c.l.b16 %v379
      %v1005 = vunpack.c.h.b16 %v379
      %v1006 = vunpack.c.l.b16 %v380
      %v1007 = vunpack.c.h.b16 %v380
      %v1008 = vunpack.c.l.b16 %v381
      %v1009 = vunpack.c.h.b16 %v381
      %v1010 = vunpack.c.l.b16 %v382
      %v1011 = vunpack.c.h.b16 %v382
      %v1012 = vunpack.c.l.b16 %v383
      %v1013 = vunpack.c.h.b16 %v383
      %v1014 = vunpack.c.l.b16 %v384
      %v1015 = vunpack.c.h.b16 %v384
      %v1016 = vunpack.c.l.b16 %v385
      %v1017 = vunpack.c.h.b16 %v385
      %v1018 = vunpack.c.l.b16 %v386
      %v1019 = vunpack.c.h.b16 %v386
      %v1020 = vunpack.c.l.b16 %v387
      %v1021 = vunpack.c.h.b16 %v387
      %v1022 = vunpack.c.l.b16 %v388
      %v1023 = vunpack.c.h.b16 %v388
      %v1024 = vunpack.c.l.b16 %v389
      %v1025 = vunpack.c.h.b16 %v389
      %v1026 = vunpack.c.l.b16 %v390
      %v1027 = vunpack.c.h.b16 %v390
      %v1028 = vunpack.c.l.b16 %v391
      %v1029 = vunpack.c.h.b16 %v391
      %v1030 = vunpack.c.l.b16 %v392
      %v1031 = vunpack.c.h.b16 %v392
      %v1032 = vunpack.c.l.b16 %v393
      %v1033 = vunpack.c.h.b16 %v393
      %v1034 = vunpack.c.l.b16 %v394
      %v1035 = vunpack.c.h.b16 %v394
      %v1036 = vunpack.c.l.b16 %v395
      %v1037 = vunpack.c.h.b16 %v395
      %v1038 = vunpack.c.l.b16 %v396
      %v1039 = vunpack.c.h.b16 %v396
      %v1040 = vunpack.c.l.b16 %v397
      %v1041 = vunpack.c.h.b16 %v397
      %v1042 = vunpack.c.l.b16 %v398
      %v1043 = vunpack.c.h.b16 %v398
      %v1044 = vunpack.c.l.b16 %v399
      %v1045 = vunpack.c.h.b16 %v399
      %v1046 = vunpack.c.l.b16 %v400
      %v1047 = vunpack.c.h.b16 %v400
      %v1048 = vunpack.c.l.b16 %v401
      %v1049 = vunpack.c.h.b16 %v401
      %v1050 = vunpack.c.l.b16 %v402
      %v1051 = vunpack.c.h.b16 %v402
      %v1052 = vunpack.c.l.b16 %v403
      %v1053 = vunpack.c.h.b16 %v403
      %v1054 = vpack.c.b16 %v676, %v670
      %v1055 = vpack.c.b16 %v677, %v671
      %v1056 = vpack.c.b16 %v678, %v672
      %v1057 = vpack.c.b16 %v679, %v673
      %v1058 = vpack.c.b16 %v680, %v674
      %v1059 = vpack.c.b16 %v681, %v675
      %v1060 = vpack.c.b16 %v688, %v682
      %v1061 = vpack.c.b16 %v689, %v683
      %v1062 = vpack.c.b16 %v690, %v684
      %v1063 = vpack.c.b16 %v691, %v685
      %v1064 = vpack.c.b16 %v692, %v686
      %v1065 = vpack.c.b16 %v693, %v687
      %v1066 = vpack.c.b16 %v700, %v694
      %v1067 = vpack.c.b16 %v701, %v695
      %v1068 = vpack.c.b16 %v702, %v696
      %v1069 = vpack.c.b16 %v703, %v697
      %v1070 = vpack.c.b16 %v704, %v698
      %v1071 = vpack.c.b16 %v705, %v699
      %v1072 = vpack.c.b16 %v712, %v706
      %v1073 = vpack.c.b16 %v713, %v707
      %v1074 = vpack.c.b16 %v714, %v708
      %v1075 = vpack.c.b16 %v715, %v709
      %v1076 = vpack.c.b16 %v716, %v710
      %v1077 = vpack.c.b16 %v717, %v711
      %v1078 = vpack.c.b16 %v724, %v718
      %v1079 = vpack.c.b16 %v725, %v719
      %v1080 = vpack.c.b16 %v726, %v720
      %v1081 = vpack.c.b16 %v727, %v721
      %v1082 = vpack.c.b16 %v728, %v722
      %v1083 = vpack.c.b16 %v729, %v723
      %v1084 = vpack.c.b16 %v736, %v730
      %v1085 = vpack.c.b16 %v737, %v731
      %v1086 = vpack.c.b16 %v738, %v732
      %v1087 = vpack.c.b16 %v739, %v733
      %v1088 = vpack.c.b16 %v740, %v734
      %v1089 = vpack.c.b16 %v741, %v735
      %v1090 = vpack.c.b16 %v748, %v742
      %v1091 = vpack.c.b16 %v749, %v743
      %v1092 = vpack.c.b16 %v750, %v744
      %v1093 = vpack.c.b16 %v751, %v745
      %v1094 = vpack.c.b16 %v752, %v746
      %v1095 = vpack.c.b16 %v753, %v747
      %v1096 = vpack.c.b16 %v760, %v754
      %v1097 = vpack.c.b16 %v761, %v755
      %v1098 = vpack.c.b16 %v762, %v756
      %v1099 = vpack.c.b16 %v763, %v757
      %v1100 = vpack.c.b16 %v764, %v758
      %v1101 = vpack.c.b16 %v765, %v759
      %v1102 = vpack.c.b16 %v772, %v766
      %v1103 = vpack.c.b16 %v773, %v767
      %v1104 = vpack.c.b16 %v774, %v768
      %v1105 = vpack.c.b16 %v775, %v769
      %v1106 = vpack.c.b16 %v776, %v770
      %v1107 = vpack.c.b16 %v777, %v771
      %v1108 = vpack.c.b16 %v784, %v778
      %v1109 = vpack.c.b16 %v785, %v779
      %v1110 = vpack.c.b16 %v786, %v780
      %v1111 = vpack.c.b16 %v787, %v781
      %v1112 = vpack.c.b16 %v788, %v782
      %v1113 = vpack.c.b16 %v789, %v783
      %v1114 = vpack.c.b16 %v796, %v790
      %v1115 = vpack.c.b16 %v797, %v791
      %v1116 = vpack.c.b16 %v798, %v792
      %v1117 = vpack.c.b16 %v799, %v793
      %v1118 = vpack.c.b16 %v800, %v794
      %v1119 = vpack.c.b16 %v801, %v795
      %v1120 = vpack.c.b16 %v808, %v802
      %v1121 = vpack.c.b16 %v809, %v803
      %v1122 = vpack.c.b16 %v810, %v804
      %v1123 = vpack.c.b16 %v811, %v805
      %v1124 = vpack.c.b16 %v812, %v806
      %v1125 = vpack.c.b16 %v813, %v807
      %v1126 = vpack.c.b16 %v820, %v814
      %v1127 = vpack.c.b16 %v821, %v815
      %v1128 = vpack.c.b16 %v822, %v816
      %v1129 = vpack.c.b16 %v823, %v817
      %v1130 = vpack.c.b16 %v824, %v818
      %v1131 = vpack.c.b16 %v825, %v819
      %v1132 = vpack.c.b16 %v832, %v826
      %v1133 = vpack.c.b16 %v833, %v827
      %v1134 = vpack.c.b16 %v834, %v828
      %v1135 = vpack.c.b16 %v835, %v829
      %v1136 = vpack.c.b16 %v836, %v830
      %v1137 = vpack.c.b16 %v837, %v831
      %v1138 = vpack.c.b16 %v844, %v838
      %v1139 = vpack.c.b16 %v845, %v839
      %v1140 = vpack.c.b16 %v846, %v840
      %v1141 = vpack.c.b16 %v847, %v841
      %v1142 = vpack.c.b16 %v848, %v842
      %v1143 = vpack.c.b16 %v849, %v843
      %v1144 = vpack.c.b16 %v856, %v850
      %v1145 = vpack.c.b16 %v857, %v851
      %v1146 = vpack.c.b16 %v858, %v852
      %v1147 = vpack.c.b16 %v859, %v853
      %v1148 = vpack.c.b16 %v860, %v854
      %v1149 = vpack.c.b16 %v861, %v855
      %v1150 = vpack.c.b16 %v868, %v862
      %v1151 = vpack.c.b16 %v869, %v863
      %v1152 = vpack.c.b16 %v870, %v864
      %v1153 = vpack.c.b16 %v871, %v865
      %v1154 = vpack.c.b16 %v872, %v866
      %v1155 = vpack.c.b16 %v873, %v867
      %v1156 = vpack.c.b16 %v880, %v874
      %v1157 = vpack.c.b16 %v881, %v875
      %v1158 = vpack.c.b16 %v882, %v876
      %v1159 = vpack.c.b16 %v883, %v877
      %v1160 = vpack.c.b16 %v884, %v878
      %v1161 = vpack.c.b16 %v885, %v879
      %v1162 = vpack.c.b16 %v892, %v886
      %v1163 = vpack.c.b16 %v893, %v887
      %v1164 = vpack.c.b16 %v894, %v888
      %v1165 = vpack.c.b16 %v895, %v889
      %v1166 = vpack.c.b16 %v896, %v890
      %v1167 = vpack.c.b16 %v897, %v891
      %v1168 = vpack.c.b16 %v904, %v898
      %v1169 = vpack.c.b16 %v905, %v899
      %v1170 = vpack.c.b16 %v906, %v900
      %v1171 = vpack.c.b16 %v907, %v901
      %v1172 = vpack.c.b16 %v908, %v902
      %v1173 = vpack.c.b16 %v909, %v903
      %v1174 = vpack.c.b16 %v916, %v910
      %v1175 = vpack.c.b16 %v917, %v911
      %v1176 = vpack.c.b16 %v918, %v912
      %v1177 = vpack.c.b16 %v919, %v913
      %v1178 = vpack.c.b16 %v920, %v914
      %v1179 = vpack.c.b16 %v921, %v915
      %v1180 = vpack.c.b16 %v928, %v922
      %v1181 = vpack.c.b16 %v929, %v923
      %v1182 = vpack.c.b16 %v930, %v924
      %v1183 = vpack.c.b16 %v931, %v925
      %v1184 = vpack.c.b16 %v932, %v926
      %v1185 = vpack.c.b16 %v933, %v927
      %v1186 = vpack.c.b16 %v940, %v934
      %v1187 = vpack.c.b16 %v941, %v935
      %v1188 = vpack.c.b16 %v942, %v936
      %v1189 = vpack.c.b16 %v943, %v937
      %v1190 = vpack.c.b16 %v944, %v938
      %v1191 = vpack.c.b16 %v945, %v939
      %v1192 = vpack.c.b16 %v952, %v946
      %v1193 = vpack.c.b16 %v953, %v947
      %v1194 = vpack.c.b16 %v954, %v948
      %v1195 = vpack.c.b16 %v955, %v949
      %v1196 = vpack.c.b16 %v956, %v950
      %v1197 = vpack.c.b16 %v957, %v951
      %v1198 = vpack.c.b16 %v964, %v958
      %v1199 = vpack.c.b16 %v965, %v959
      %v1200 = vpack.c.b16 %v966, %v960
      %v1201 = vpack.c.b16 %v967, %v961
      %v1202 = vpack.c.b16 %v968, %v962
      %v1203 = vpack.c.b16 %v969, %v963
      %v1204 = vpack.c.b16 %v976, %v970
      %v1205 = vpack.c.b16 %v977, %v971
      %v1206 = vpack.c.b16 %v978, %v972
      %v1207 = vpack.c.b16 %v979, %v973
      %v1208 = vpack.c.b16 %v980, %v974
      %v1209 = vpack.c.b16 %v981, %v975
      %v1210 = vpack.c.b16 %v988, %v982
      %v1211 = vpack.c.b16 %v989, %v983
      %v1212 = vpack.c.b16 %v990, %v984
      %v1213 = vpack.c.b16 %v991, %v985
      %v1214 = vpack.c.b16 %v992, %v986
      %v1215 = vpack.c.b16 %v993, %v987
      %v1216 = vpack.c.b16 %v1000, %v994
      %v1217 = vpack.c.b16 %v1001, %v995
      %v1218 = vpack.c.b16 %v1002, %v996
      %v1219 = vpack.c.b16 %v1003, %v997
      %v1220 = vpack.c.b16 %v1004, %v998
      %v1221 = vpack.c.b16 %v1005, %v999
      %v1222 = vpack.c.b16 %v1012, %v1006
      %v1223 = vpack.c.b16 %v1013, %v1007
      %v1224 = vpack.c.b16 %v1014, %v1008
      %v1225 = vpack.c.b16 %v1015, %v1009
      %v1226 = vpack.c.b16 %v1016, %v1010
      %v1227 = vpack.c.b16 %v1017, %v1011
      %v1228 = vpack.c.b16 %v1024, %v1018
      %v1229 = vpack.c.b16 %v1025, %v1019
      %v1230 = vpack.c.b16 %v1026, %v1020
      %v1231 = vpack.c.b16 %v1027, %v1021
      %v1232 = vpack.c.b16 %v1028, %v1022
      %v1233 = vpack.c.b16 %v1029, %v1023
      %v1234 = vpack.c.b16 %v1036, %v1030
      %v1235 = vpack.c.b16 %v1037, %v1031
      %v1236 = vpack.c.b16 %v1038, %v1032
      %v1237 = vpack.c.b16 %v1039, %v1033
      %v1238 = vpack.c.b16 %v1040, %v1034
      %v1239 = vpack.c.b16 %v1041, %v1035
      %v1240 = vpack.c.b16 %v1048, %v1042
      %v1241 = vpack.c.b16 %v1049, %v1043
      %v1242 = vpack.c.b16 %v1050, %v1044
      %v1243 = vpack.c.b16 %v1051, %v1045
      %v1244 = vpack.c.b16 %v1052, %v1046
      %v1245 = vpack.c.b16 %v1053, %v1047
      %1438 = vmatprep.subr.bf16.mxu0 %v1055
      %1439 = vmatpush1.bf16.msra.mxu0 %v1054
      %1440 = vmatprep.subr.bf16.mxu0 %v1061
      %1441 = vmatpush1.bf16.msra.mxu0 %v1060
      %1442 = vmatprep.subr.bf16.mxu0 %v1067
      %1443 = vmatpush1.bf16.msra.mxu0 %v1066
      %1444 = vmatprep.subr.bf16.mxu0 %v1073
      %1445 = vmatpush1.bf16.msra.mxu0 %v1072
      %1446 = vmatprep.subr.bf16.mxu0 %v1079
      %1447 = vmatpush1.bf16.msra.mxu0 %v1078
      %1448 = vmatprep.subr.bf16.mxu0 %v1085
      %1449 = vmatpush1.bf16.msra.mxu0 %v1084
      %1450 = vmatprep.subr.bf16.mxu0 %v1091
      %1451 = vmatpush1.bf16.msra.mxu0 %v1090
      %1452 = vmatprep.subr.bf16.mxu0 %v1097
      %1453 = vmatpush1.bf16.msra.mxu0 %v1096
      %1454 = vmatprep.subr.bf16.mxu0 %v1103
      %1455 = vmatpush1.bf16.msra.mxu0 %v1102
      %1456 = vmatprep.subr.bf16.mxu0 %v1109
      %1457 = vmatpush1.bf16.msra.mxu0 %v1108
      %1458 = vmatprep.subr.bf16.mxu0 %v1115
      %1459 = vmatpush1.bf16.msra.mxu0 %v1114
      %1460 = vmatprep.subr.bf16.mxu0 %v1121
      %1461 = vmatpush1.bf16.msra.mxu0 %v1120
      %1462 = vmatprep.subr.bf16.mxu0 %v1127
      %1463 = vmatpush1.bf16.msra.mxu0 %v1126
      %1464 = vmatprep.subr.bf16.mxu0 %v1133
      %1465 = vmatpush1.bf16.msra.mxu0 %v1132
      %1466 = vmatprep.subr.bf16.mxu0 %v1139
      %1467 = vmatpush1.bf16.msra.mxu0 %v1138
      %1468 = vmatprep.subr.bf16.mxu0 %v1145
      %1469 = vmatpush1.bf16.msra.mxu0 %v1144
      %1470 = vmatprep.mubr.bf16.mxu0 %v447
      %1471 = vmatmul.mubr.bf16.gmra.mrb[0].mxu0 %v446
      %v1472 = vpop.f32.mrb[0].mxu0
      %v1473 = vadd.f32 0.0, %v1472
      %v1474 = vpop.f32.mrb[0].mxu0
      %v1475 = vadd.f32 0.0, %v1474
      %v1476 = vpop.f32.mrb[0].mxu0
      %v1477 = vadd.f32 0.0, %v1476
      %v1478 = vpop.f32.mrb[0].mxu0
      %v1479 = vadd.f32 0.0, %v1478
      %1480 = vmatprep.mubr.bf16.mxu0 %v451
      %1481 = vmatmul.mubr.bf16.gmra.mrb[0].mxu0 %v450
      %v1482 = vpop.f32.mrb[0].mxu0
      %v1483 = vadd.f32 0.0, %v1482
      %v1484 = vpop.f32.mrb[0].mxu0
      %v1485 = vadd.f32 0.0, %v1484
      %v1486 = vpop.f32.mrb[0].mxu0
      %v1487 = vadd.f32 0.0, %v1486
      %v1488 = vpop.f32.mrb[0].mxu0
      %v1489 = vadd.f32 0.0, %v1488
      %1490 = vmatprep.mubr.bf16.mxu0 %v455
      %1491 = vmatmul.mubr.bf16.gmra.mrb[0].mxu0 %v454
      %v1492 = vpop.f32.mrb[0].mxu0
      %v1493 = vadd.f32 0.0, %v1492
      %v1494 = vpop.f32.mrb[0].mxu0
      %v1495 = vadd.f32 0.0, %v1494
      %v1496 = vpop.f32.mrb[0].mxu0
      %v1497 = vadd.f32 0.0, %v1496
      %v1498 = vpop.f32.mrb[0].mxu0
      %v1499 = vadd.f32 0.0, %v1498
      %1500 = vmatprep.mubr.bf16.mxu0 %v459
      %1501 = vmatmul.mubr.bf16.gmra.mrb[0].mxu0 %v458
      %v1502 = vpop.f32.mrb[0].mxu0
      %v1503 = vadd.f32 0.0, %v1502
      %v1504 = vpop.f32.mrb[0].mxu0
      %v1505 = vadd.f32 0.0, %v1504
      %v1506 = vpop.f32.mrb[0].mxu0
      %v1507 = vpop.f32.mrb[0].mxu0
      %1508 = vdwg.mxu0
      %1509 = vmatprep.subr.bf16.mxu0 %v1151
      %1510 = vmatpush1.bf16.msra.mxu0 %v1150
      %1511 = vmatprep.subr.bf16.mxu0 %v1157
      %1512 = vmatpush1.bf16.msra.mxu0 %v1156
      %1513 = vmatprep.subr.bf16.mxu0 %v1163
      %1514 = vmatpush1.bf16.msra.mxu0 %v1162
      %1515 = vmatprep.subr.bf16.mxu0 %v1169
      %1516 = vmatpush1.bf16.msra.mxu0 %v1168
      %1517 = vmatprep.subr.bf16.mxu0 %v1175
      %1518 = vmatpush1.bf16.msra.mxu0 %v1174
      %1519 = vmatprep.subr.bf16.mxu0 %v1181
      %1520 = vmatpush1.bf16.msra.mxu0 %v1180
      %1521 = vmatprep.subr.bf16.mxu0 %v1187
      %1522 = vmatpush1.bf16.msra.mxu0 %v1186
      %1523 = vmatprep.subr.bf16.mxu0 %v1193
      %1524 = vmatpush1.bf16.msra.mxu0 %v1192
      %1525 = vmatprep.subr.bf16.mxu0 %v1199
      %1526 = vmatpush1.bf16.msra.mxu0 %v1198
      %1527 = vmatprep.subr.bf16.mxu0 %v1205
      %1528 = vmatpush1.bf16.msra.mxu0 %v1204
      %1529 = vmatprep.subr.bf16.mxu0 %v1211
      %1530 = vmatpush1.bf16.msra.mxu0 %v1210
      %1531 = vmatprep.subr.bf16.mxu0 %v1217
      %1532 = vmatpush1.bf16.msra.mxu0 %v1216
      %1533 = vmatprep.subr.bf16.mxu0 %v1223
      %1534 = vmatpush1.bf16.msra.mxu0 %v1222
      %1535 = vmatprep.subr.bf16.mxu0 %v1229
      %1536 = vmatpush1.bf16.msra.mxu0 %v1228
      %1537 = vmatprep.subr.bf16.mxu0 %v1235
      %1538 = vmatpush1.bf16.msra.mxu0 %v1234
      %1539 = vmatprep.subr.bf16.mxu0 %v1241
      %1540 = vmatpush1.bf16.msra.mxu0 %v1240
      %1541 = vmatprep.mubr.bf16.mxu0 %v449
      %1542 = vmatmul.mubr.bf16.gmra.mrb[0].mxu0 %v448
      %v1543 = vpop.f32.mrb[0].mxu0
      %v1544 = vadd.f32 %v1473, %v1543
      %v1545 = vpop.f32.mrb[0].mxu0
      %v1546 = vadd.f32 %v1475, %v1545
      %v1547 = vpop.f32.mrb[0].mxu0
      %v1548 = vadd.f32 %v1477, %v1547
      %v1549 = vpop.f32.mrb[0].mxu0
      %v1550 = vadd.f32 %v1479, %v1549
      %1551 = vmatprep.mubr.bf16.mxu0 %v453
      %1552 = vmatmul.mubr.bf16.gmra.mrb[0].mxu0 %v452
      %v1553 = vpop.f32.mrb[0].mxu0
      %v1554 = vadd.f32 %v1483, %v1553
      %v1555 = vpop.f32.mrb[0].mxu0
      %v1556 = vadd.f32 %v1485, %v1555
      %v1557 = vpop.f32.mrb[0].mxu0
      %v1558 = vadd.f32 %v1487, %v1557
      %v1559 = vpop.f32.mrb[0].mxu0
      %v1560 = vadd.f32 %v1489, %v1559
      %1561 = vmatprep.mubr.bf16.mxu0 %v457
      %1562 = vmatmul.mubr.bf16.gmra.mrb[0].mxu0 %v456
      %v1563 = vpop.f32.mrb[0].mxu0
      %v1564 = vadd.f32 %v1493, %v1563
      %v1565 = vpop.f32.mrb[0].mxu0
      %v1566 = vadd.f32 %v1495, %v1565
      %v1567 = vpop.f32.mrb[0].mxu0
      %v1568 = vadd.f32 %v1497, %v1567
      %v1569 = vpop.f32.mrb[0].mxu0
      %v1570 = vadd.f32 %v1499, %v1569
      %1571 = vmatprep.mubr.bf16.mxu0 %v461
      %1572 = vmatmul.mubr.bf16.gmra.mrb[0].mxu0 %v460
      %v1573 = vpop.f32.mrb[0].mxu0
      %v1574 = vadd.f32 %v1503, %v1573
      %v1575 = vpop.f32.mrb[0].mxu0
      %v1576 = vadd.f32 %v1505, %v1575
      %v1577 = vpop.f32.mrb[0].mxu0
      %v1578 = vpop.f32.mrb[0].mxu0
      %1579 = vdwg.mxu0
      %1580 = vmatprep.subr.bf16.mxu0 %v1057
      %1581 = vmatpush1.bf16.msra.mxu0 %v1056
      %1582 = vmatprep.subr.bf16.mxu0 %v1063
      %1583 = vmatpush1.bf16.msra.mxu0 %v1062
      %1584 = vmatprep.subr.bf16.mxu0 %v1069
      %1585 = vmatpush1.bf16.msra.mxu0 %v1068
      %1586 = vmatprep.subr.bf16.mxu0 %v1075
      %1587 = vmatpush1.bf16.msra.mxu0 %v1074
      %1588 = vmatprep.subr.bf16.mxu0 %v1081
      %1589 = vmatpush1.bf16.msra.mxu0 %v1080
      %1590 = vmatprep.subr.bf16.mxu0 %v1087
      %1591 = vmatpush1.bf16.msra.mxu0 %v1086
      %1592 = vmatprep.subr.bf16.mxu0 %v1093
      %1593 = vmatpush1.bf16.msra.mxu0 %v1092
      %1594 = vmatprep.subr.bf16.mxu0 %v1099
      %1595 = vmatpush1.bf16.msra.mxu0 %v1098
      %1596 = vmatprep.subr.bf16.mxu0 %v1105
      %1597 = vmatpush1.bf16.msra.mxu0 %v1104
      %1598 = vmatprep.subr.bf16.mxu0 %v1111
      %1599 = vmatpush1.bf16.msra.mxu0 %v1110
      %1600 = vmatprep.subr.bf16.mxu0 %v1117
      %1601 = vmatpush1.bf16.msra.mxu0 %v1116
      %1602 = vmatprep.subr.bf16.mxu0 %v1123
      %1603 = vmatpush1.bf16.msra.mxu0 %v1122
      %1604 = vmatprep.subr.bf16.mxu0 %v1129
      %1605 = vmatpush1.bf16.msra.mxu0 %v1128
      %1606 = vmatprep.subr.bf16.mxu0 %v1135
      %1607 = vmatpush1.bf16.msra.mxu0 %v1134
      %1608 = vmatprep.subr.bf16.mxu0 %v1141
      %1609 = vmatpush1.bf16.msra.mxu0 %v1140
      %1610 = vmatprep.subr.bf16.mxu0 %v1147
      %1611 = vmatpush1.bf16.msra.mxu0 %v1146
      %1612 = vmatprep.mubr.bf16.mxu0 %v447
      %1613 = vmatmul.mubr.bf16.gmra.mrb[0].mxu0 %v446
      %v1614 = vpop.f32.mrb[0].mxu0
      %v1615 = vadd.f32 0.0, %v1614
      %v1616 = vpop.f32.mrb[0].mxu0
      %v1617 = vadd.f32 0.0, %v1616
      %v1618 = vpop.f32.mrb[0].mxu0
      %v1619 = vadd.f32 0.0, %v1618
      %v1620 = vpop.f32.mrb[0].mxu0
      %v1621 = vadd.f32 0.0, %v1620
      %1622 = vmatprep.mubr.bf16.mxu0 %v451
      %1623 = vmatmul.mubr.bf16.gmra.mrb[0].mxu0 %v450
      %v1624 = vpop.f32.mrb[0].mxu0
      %v1625 = vadd.f32 0.0, %v1624
      %v1626 = vpop.f32.mrb[0].mxu0
      %v1627 = vadd.f32 0.0, %v1626
      %v1628 = vpop.f32.mrb[0].mxu0
      %v1629 = vadd.f32 0.0, %v1628
      %v1630 = vpop.f32.mrb[0].mxu0
      %v1631 = vadd.f32 0.0, %v1630
      %1632 = vmatprep.mubr.bf16.mxu0 %v455
      %1633 = vmatmul.mubr.bf16.gmra.mrb[0].mxu0 %v454
      %v1634 = vpop.f32.mrb[0].mxu0
      %v1635 = vadd.f32 0.0, %v1634
      %v1636 = vpop.f32.mrb[0].mxu0
      %v1637 = vadd.f32 0.0, %v1636
      %v1638 = vpop.f32.mrb[0].mxu0
      %v1639 = vadd.f32 0.0, %v1638
      %v1640 = vpop.f32.mrb[0].mxu0
      %v1641 = vadd.f32 0.0, %v1640
      %1642 = vmatprep.mubr.bf16.mxu0 %v459
      %1643 = vmatmul.mubr.bf16.gmra.mrb[0].mxu0 %v458
      %v1644 = vpop.f32.mrb[0].mxu0
      %v1645 = vadd.f32 0.0, %v1644
      %v1646 = vpop.f32.mrb[0].mxu0
      %v1647 = vadd.f32 0.0, %v1646
      %v1648 = vpop.f32.mrb[0].mxu0
      %v1649 = vpop.f32.mrb[0].mxu0
      %1650 = vdwg.mxu0
      %1651 = vmatprep.subr.bf16.mxu0 %v1153
      %1652 = vmatpush1.bf16.msra.mxu0 %v1152
      %1653 = vmatprep.subr.bf16.mxu0 %v1159
      %1654 = vmatpush1.bf16.msra.mxu0 %v1158
      %1655 = vmatprep.subr.bf16.mxu0 %v1165
      %1656 = vmatpush1.bf16.msra.mxu0 %v1164
      %1657 = vmatprep.subr.bf16.mxu0 %v1171
      %1658 = vmatpush1.bf16.msra.mxu0 %v1170
      %1659 = vmatprep.subr.bf16.mxu0 %v1177
      %1660 = vmatpush1.bf16.msra.mxu0 %v1176
      %1661 = vmatprep.subr.bf16.mxu0 %v1183
      %1662 = vmatpush1.bf16.msra.mxu0 %v1182
      %1663 = vmatprep.subr.bf16.mxu0 %v1189
      %1664 = vmatpush1.bf16.msra.mxu0 %v1188
      %1665 = vmatprep.subr.bf16.mxu0 %v1195
      %1666 = vmatpush1.bf16.msra.mxu0 %v1194
      %1667 = vmatprep.subr.bf16.mxu0 %v1201
      %1668 = vmatpush1.bf16.msra.mxu0 %v1200
      %1669 = vmatprep.subr.bf16.mxu0 %v1207
      %1670 = vmatpush1.bf16.msra.mxu0 %v1206
      %1671 = vmatprep.subr.bf16.mxu0 %v1213
      %1672 = vmatpush1.bf16.msra.mxu0 %v1212
      %1673 = vmatprep.subr.bf16.mxu0 %v1219
      %1674 = vmatpush1.bf16.msra.mxu0 %v1218
      %1675 = vmatprep.subr.bf16.mxu0 %v1225
      %1676 = vmatpush1.bf16.msra.mxu0 %v1224
      %1677 = vmatprep.subr.bf16.mxu0 %v1231
      %1678 = vmatpush1.bf16.msra.mxu0 %v1230
      %1679 = vmatprep.subr.bf16.mxu0 %v1237
      %1680 = vmatpush1.bf16.msra.mxu0 %v1236
      %1681 = vmatprep.subr.bf16.mxu0 %v1243
      %1682 = vmatpush1.bf16.msra.mxu0 %v1242
      %1683 = vmatprep.mubr.bf16.mxu0 %v449
      %1684 = vmatmul.mubr.bf16.gmra.mrb[0].mxu0 %v448
      %v1685 = vpop.f32.mrb[0].mxu0
      %v1686 = vadd.f32 %v1615, %v1685
      %v1687 = vpop.f32.mrb[0].mxu0
      %v1688 = vadd.f32 %v1617, %v1687
      %v1689 = vpop.f32.mrb[0].mxu0
      %v1690 = vadd.f32 %v1619, %v1689
      %v1691 = vpop.f32.mrb[0].mxu0
      %v1692 = vadd.f32 %v1621, %v1691
      %1693 = vmatprep.mubr.bf16.mxu0 %v453
      %1694 = vmatmul.mubr.bf16.gmra.mrb[0].mxu0 %v452
      %v1695 = vpop.f32.mrb[0].mxu0
      %v1696 = vadd.f32 %v1625, %v1695
      %v1697 = vpop.f32.mrb[0].mxu0
      %v1698 = vadd.f32 %v1627, %v1697
      %v1699 = vpop.f32.mrb[0].mxu0
      %v1700 = vadd.f32 %v1629, %v1699
      %v1701 = vpop.f32.mrb[0].mxu0
      %v1702 = vadd.f32 %v1631, %v1701
      %1703 = vmatprep.mubr.bf16.mxu0 %v457
      %1704 = vmatmul.mubr.bf16.gmra.mrb[0].mxu0 %v456
      %v1705 = vpop.f32.mrb[0].mxu0
      %v1706 = vadd.f32 %v1635, %v1705
      %v1707 = vpop.f32.mrb[0].mxu0
      %v1708 = vadd.f32 %v1637, %v1707
      %v1709 = vpop.f32.mrb[0].mxu0
      %v1710 = vadd.f32 %v1639, %v1709
      %v1711 = vpop.f32.mrb[0].mxu0
      %v1712 = vadd.f32 %v1641, %v1711
      %1713 = vmatprep.mubr.bf16.mxu0 %v461
      %1714 = vmatmul.mubr.bf16.gmra.mrb[0].mxu0 %v460
      %v1715 = vpop.f32.mrb[0].mxu0
      %v1716 = vadd.f32 %v1645, %v1715
      %v1717 = vpop.f32.mrb[0].mxu0
      %v1718 = vadd.f32 %v1647, %v1717
      %v1719 = vpop.f32.mrb[0].mxu0
      %v1720 = vpop.f32.mrb[0].mxu0
      %1721 = vdwg.mxu0
      %1722 = vmatprep.subr.bf16.mxu0 %v1059
      %1723 = vmatpush1.bf16.msra.mxu0 %v1058
      %1724 = vmatprep.subr.bf16.mxu0 %v1065
      %1725 = vmatpush1.bf16.msra.mxu0 %v1064
      %1726 = vmatprep.subr.bf16.mxu0 %v1071
      %1727 = vmatpush1.bf16.msra.mxu0 %v1070
      %1728 = vmatprep.subr.bf16.mxu0 %v1077
      %1729 = vmatpush1.bf16.msra.mxu0 %v1076
      %1730 = vmatprep.subr.bf16.mxu0 %v1083
      %1731 = vmatpush1.bf16.msra.mxu0 %v1082
      %1732 = vmatprep.subr.bf16.mxu0 %v1089
      %1733 = vmatpush1.bf16.msra.mxu0 %v1088
      %1734 = vmatprep.subr.bf16.mxu0 %v1095
      %1735 = vmatpush1.bf16.msra.mxu0 %v1094
      %1736 = vmatprep.subr.bf16.mxu0 %v1101
      %1737 = vmatpush1.bf16.msra.mxu0 %v1100
      %1738 = vmatprep.subr.bf16.mxu0 %v1107
      %1739 = vmatpush1.bf16.msra.mxu0 %v1106
      %1740 = vmatprep.subr.bf16.mxu0 %v1113
      %1741 = vmatpush1.bf16.msra.mxu0 %v1112
      %1742 = vmatprep.subr.bf16.mxu0 %v1119
      %1743 = vmatpush1.bf16.msra.mxu0 %v1118
      %1744 = vmatprep.subr.bf16.mxu0 %v1125
      %1745 = vmatpush1.bf16.msra.mxu0 %v1124
      %1746 = vmatprep.subr.bf16.mxu0 %v1131
      %1747 = vmatpush1.bf16.msra.mxu0 %v1130
      %1748 = vmatprep.subr.bf16.mxu0 %v1137
      %1749 = vmatpush1.bf16.msra.mxu0 %v1136
      %1750 = vmatprep.subr.bf16.mxu0 %v1143
      %1751 = vmatpush1.bf16.msra.mxu0 %v1142
      %1752 = vmatprep.subr.bf16.mxu0 %v1149
      %1753 = vmatpush1.bf16.msra.mxu0 %v1148
      %1754 = vmatprep.mubr.bf16.mxu0 %v447
      %1755 = vmatmul.mubr.bf16.gmra.mrb[0].mxu0 %v446
      %v1756 = vpop.f32.mrb[0].mxu0
      %v1757 = vadd.f32 0.0, %v1756
      %v1758 = vpop.f32.mrb[0].mxu0
      %v1759 = vadd.f32 0.0, %v1758
      %v1760 = vpop.f32.mrb[0].mxu0
      %v1761 = vadd.f32 0.0, %v1760
      %v1762 = vpop.f32.mrb[0].mxu0
      %v1763 = vadd.f32 0.0, %v1762
      %1764 = vmatprep.mubr.bf16.mxu0 %v451
      %1765 = vmatmul.mubr.bf16.gmra.mrb[0].mxu0 %v450
      %v1766 = vpop.f32.mrb[0].mxu0
      %v1767 = vadd.f32 0.0, %v1766
      %v1768 = vpop.f32.mrb[0].mxu0
      %v1769 = vadd.f32 0.0, %v1768
      %v1770 = vpop.f32.mrb[0].mxu0
      %v1771 = vadd.f32 0.0, %v1770
      %v1772 = vpop.f32.mrb[0].mxu0
      %v1773 = vadd.f32 0.0, %v1772
      %1774 = vmatprep.mubr.bf16.mxu0 %v455
      %1775 = vmatmul.mubr.bf16.gmra.mrb[0].mxu0 %v454
      %v1776 = vpop.f32.mrb[0].mxu0
      %v1777 = vadd.f32 0.0, %v1776
      %v1778 = vpop.f32.mrb[0].mxu0
      %v1779 = vadd.f32 0.0, %v1778
      %v1780 = vpop.f32.mrb[0].mxu0
      %v1781 = vadd.f32 0.0, %v1780
      %v1782 = vpop.f32.mrb[0].mxu0
      %v1783 = vadd.f32 0.0, %v1782
      %1784 = vmatprep.mubr.bf16.mxu0 %v459
      %1785 = vmatmul.mubr.bf16.gmra.mrb[0].mxu0 %v458
      %v1786 = vpop.f32.mrb[0].mxu0
      %v1787 = vadd.f32 0.0, %v1786
      %v1788 = vpop.f32.mrb[0].mxu0
      %v1789 = vadd.f32 0.0, %v1788
      %v1790 = vpop.f32.mrb[0].mxu0
      %v1791 = vpop.f32.mrb[0].mxu0
      %1792 = vdwg.mxu0
      %1793 = vmatprep.subr.bf16.mxu0 %v1155
      %1794 = vmatpush1.bf16.msra.mxu0 %v1154
      %1795 = vmatprep.subr.bf16.mxu0 %v1161
      %1796 = vmatpush1.bf16.msra.mxu0 %v1160
      %1797 = vmatprep.subr.bf16.mxu0 %v1167
      %1798 = vmatpush1.bf16.msra.mxu0 %v1166
      %1799 = vmatprep.subr.bf16.mxu0 %v1173
      %1800 = vmatpush1.bf16.msra.mxu0 %v1172
      %1801 = vmatprep.subr.bf16.mxu0 %v1179
      %1802 = vmatpush1.bf16.msra.mxu0 %v1178
      %1803 = vmatprep.subr.bf16.mxu0 %v1185
      %1804 = vmatpush1.bf16.msra.mxu0 %v1184
      %1805 = vmatprep.subr.bf16.mxu0 %v1191
      %1806 = vmatpush1.bf16.msra.mxu0 %v1190
      %1807 = vmatprep.subr.bf16.mxu0 %v1197
      %1808 = vmatpush1.bf16.msra.mxu0 %v1196
      %1809 = vmatprep.subr.bf16.mxu0 %v1203
      %1810 = vmatpush1.bf16.msra.mxu0 %v1202
      %1811 = vmatprep.subr.bf16.mxu0 %v1209
      %1812 = vmatpush1.bf16.msra.mxu0 %v1208
      %1813 = vmatprep.subr.bf16.mxu0 %v1215
      %1814 = vmatpush1.bf16.msra.mxu0 %v1214
      %1815 = vmatprep.subr.bf16.mxu0 %v1221
      %1816 = vmatpush1.bf16.msra.mxu0 %v1220
      %1817 = vmatprep.subr.bf16.mxu0 %v1227
      %1818 = vmatpush1.bf16.msra.mxu0 %v1226
      %1819 = vmatprep.subr.bf16.mxu0 %v1233
      %1820 = vmatpush1.bf16.msra.mxu0 %v1232
      %1821 = vmatprep.subr.bf16.mxu0 %v1239
      %1822 = vmatpush1.bf16.msra.mxu0 %v1238
      %1823 = vmatprep.subr.bf16.mxu0 %v1245
      %1824 = vmatpush1.bf16.msra.mxu0 %v1244
      %1825 = vmatprep.mubr.bf16.mxu0 %v449
      %1826 = vmatmul.mubr.bf16.gmra.mrb[0].mxu0 %v448
      %v1827 = vpop.f32.mrb[0].mxu0
      %v1828 = vadd.f32 %v1757, %v1827
      %v1829 = vpop.f32.mrb[0].mxu0
      %v1830 = vadd.f32 %v1759, %v1829
      %v1831 = vpop.f32.mrb[0].mxu0
      %v1832 = vadd.f32 %v1761, %v1831
      %v1833 = vpop.f32.mrb[0].mxu0
      %v1834 = vadd.f32 %v1763, %v1833
      %1835 = vmatprep.mubr.bf16.mxu0 %v453
      %1836 = vmatmul.mubr.bf16.gmra.mrb[0].mxu0 %v452
      %v1837 = vpop.f32.mrb[0].mxu0
      %v1838 = vadd.f32 %v1767, %v1837
      %v1839 = vpop.f32.mrb[0].mxu0
      %v1840 = vadd.f32 %v1769, %v1839
      %v1841 = vpop.f32.mrb[0].mxu0
      %v1842 = vadd.f32 %v1771, %v1841
      %v1843 = vpop.f32.mrb[0].mxu0
      %v1844 = vadd.f32 %v1773, %v1843
      %1845 = vmatprep.mubr.bf16.mxu0 %v457
      %1846 = vmatmul.mubr.bf16.gmra.mrb[0].mxu0 %v456
      %v1847 = vpop.f32.mrb[0].mxu0
      %v1848 = vadd.f32 %v1777, %v1847
      %v1849 = vpop.f32.mrb[0].mxu0
      %v1850 = vadd.f32 %v1779, %v1849
      %v1851 = vpop.f32.mrb[0].mxu0
      %v1852 = vadd.f32 %v1781, %v1851
      %v1853 = vpop.f32.mrb[0].mxu0
      %v1854 = vadd.f32 %v1783, %v1853
      %1855 = vmatprep.mubr.bf16.mxu0 %v461
      %1856 = vmatmul.mubr.bf16.gmra.mrb[0].mxu0 %v460
      %v1857 = vpop.f32.mrb[0].mxu0
      %v1858 = vadd.f32 %v1787, %v1857
      %v1859 = vpop.f32.mrb[0].mxu0
      %v1860 = vadd.f32 %v1789, %v1859
      %v1861 = vpop.f32.mrb[0].mxu0
      %v1862 = vpop.f32.mrb[0].mxu0
      %1863 = vdwg.mxu0
      %v1864 = vmul.f32 %v1544, %v1544
      %v1865 = vmul.f32 %v1546, %v1546
      %v1866 = vmul.f32 %v1686, %v1686
      %v1867 = vmul.f32 %v1548, %v1548
      %v1868 = vmul.f32 %v1550, %v1550
      %v1869 = vmul.f32 %v1690, %v1690
      %v1870 = vmul.f32 %v1554, %v1554
      %v1871 = vmul.f32 %v1556, %v1556
      %v1872 = vmul.f32 %v1696, %v1696
      %v1873 = vmul.f32 %v1558, %v1558
      %v1874 = vmul.f32 %v1560, %v1560
      %v1875 = vmul.f32 %v1700, %v1700
      %v1876 = vmul.f32 %v1564, %v1564
      %v1877 = vmul.f32 %v1566, %v1566
      %v1878 = vmul.f32 %v1706, %v1706
      %v1879 = vmul.f32 %v1568, %v1568
      %v1880 = vmul.f32 %v1570, %v1570
      %v1881 = vmul.f32 %v1710, %v1710
      %v1882 = vmul.f32 %v1574, %v1574
      %v1883 = vmul.f32 %v1576, %v1576
      %v1884 = vmul.f32 %v1716, %v1716
      %v1885 = vmul.f32 %v1688, %v1688
      %v1886 = vmul.f32 %v1828, %v1828
      %v1887 = vmul.f32 %v1830, %v1830
      %v1888 = vmul.f32 %v1692, %v1692
      %v1889 = vmul.f32 %v1832, %v1832
      %v1890 = vmul.f32 %v1834, %v1834
      %v1891 = vmul.f32 %v1698, %v1698
      %v1892 = vmul.f32 %v1838, %v1838
      %v1893 = vmul.f32 %v1840, %v1840
      %v1894 = vmul.f32 %v1702, %v1702
      %v1895 = vmul.f32 %v1842, %v1842
      %v1896 = vmul.f32 %v1844, %v1844
      %v1897 = vmul.f32 %v1708, %v1708
      %v1898 = vmul.f32 %v1848, %v1848
      %v1899 = vmul.f32 %v1850, %v1850
      %v1900 = vmul.f32 %v1712, %v1712
      %v1901 = vmul.f32 %v1852, %v1852
      %v1902 = vmul.f32 %v1854, %v1854
      %v1903 = vmul.f32 %v1718, %v1718
      %v1904 = vmul.f32 %v1858, %v1858
      %v1905 = vmul.f32 %v1860, %v1860
      %v1906 = vadd.f32 %v1864, %v1885
      %v1907 = vadd.f32 %v1865, %v1886
      %v1908 = vadd.f32 %v1866, %v1887
      %v1909 = vadd.f32 %v1867, %v1888
      %v1910 = vadd.f32 %v1868, %v1889
      %v1911 = vadd.f32 %v1869, %v1890
      %v1912 = vadd.f32 %v1870, %v1891
      %v1913 = vadd.f32 %v1871, %v1892
      %v1914 = vadd.f32 %v1872, %v1893
      %v1915 = vadd.f32 %v1873, %v1894
      %v1916 = vadd.f32 %v1874, %v1895
      %v1917 = vadd.f32 %v1875, %v1896
      %v1918 = vadd.f32 %v1876, %v1897
      %v1919 = vadd.f32 %v1877, %v1898
      %v1920 = vadd.f32 %v1878, %v1899
      %v1921 = vadd.f32 %v1879, %v1900
      %v1922 = vadd.f32 %v1880, %v1901
      %v1923 = vadd.f32 %v1881, %v1902
      %v1924 = vadd.f32 %v1882, %v1903
      %v1925 = vadd.f32 %v1883, %v1904
      %v1926 = vadd.f32 %v1884, %v1905
      %v1927 = vld [vmem:[%s2] sm:$0xff]
      %v1928 = vld [vmem:[%s2 + $0x8] sm:$0xff]
      %v1929 = vld [vmem:[%s2 + $0x10] sm:$0xff]
      %v1930 = vld [vmem:[%s2 + $0x18] sm:$0xff]
      %v1931 = vld [vmem:[%s2 + $0x20] sm:$0xff]
      %v1932 = vld [vmem:[%s2 + $0x28] sm:$0xff]
      %v1933 = vld [vmem:[%s2 + $0x30] sm:$0xff]
      %v1934 = vld [vmem:[%s2 + $0x38] sm:$0xff]
      %v1935 = vld [vmem:[%s2 + $0x40] sm:$0xff]
      %v1936 = vld [vmem:[%s2 + $0x48] sm:$0xff]
      %v1937 = vld [vmem:[%s2 + $0x50] sm:$0xff]
      %v1938 = vld [vmem:[%s2 + $0x58] sm:$0xff]
      %v1939 = vld [vmem:[%s2 + $0x60] sm:$0xff]
      %v1940 = vld [vmem:[%s2 + $0x68] sm:$0xff]
      %v1941 = vld [vmem:[%s2 + $0x70] sm:$0xff]
      %v1942 = vld [vmem:[%s2 + $0x78] sm:$0xff]
      %v1943 = vld [vmem:[%s2 + $0x80] sm:$0xff]
      %v1944 = vld [vmem:[%s2 + $0x88] sm:$0xff]
      %v1945 = vld [vmem:[%s2 + $0x90] sm:$0xff]
      %v1946 = vld [vmem:[%s2 + $0x98] sm:$0xff]
      %v1947 = vld [vmem:[%s2 + $0xa0] sm:$0xff]
      %v1948 = vld [vmem:[%s2 + $0xa8] sm:$0xff]
      %v1949 = vld [vmem:[%s2 + $0xb0] sm:$0xff]
      %v1950 = vld [vmem:[%s2 + $0xb8] sm:$0xff]
      %v1951 = vld [vmem:[%s2 + $0xc0] sm:$0xff]
      %v1952 = vld [vmem:[%s2 + $0xc8] sm:$0xff]
      %v1953 = vld [vmem:[%s2 + $0xd0] sm:$0xff]
      %v1954 = vld [vmem:[%s2 + $0xd8] sm:$0xff]
      %v1955 = vld [vmem:[%s2 + $0xe0] sm:$0xff]
      %v1956 = vld [vmem:[%s2 + $0xe8] sm:$0xff]
      %v1957 = vld [vmem:[%s2 + $0xf0] sm:$0xff]
      %v1958 = vld [vmem:[%s2 + $0xf8] sm:$0xff]
      %v1959 = vld [vmem:[%s2 + $0x100] sm:$0xff]
      %v1960 = vld [vmem:[%s2 + $0x108] sm:$0xff]
      %v1961 = vld [vmem:[%s2 + $0x110] sm:$0xff]
      %v1962 = vld [vmem:[%s2 + $0x118] sm:$0xff]
      %v1963 = vld [vmem:[%s2 + $0x120] sm:$0xff]
      %v1964 = vld [vmem:[%s2 + $0x128] sm:$0xff]
      %v1965 = vld [vmem:[%s2 + $0x130] sm:$0xff]
      %v1966 = vld [vmem:[%s2 + $0x138] sm:$0xff]
      %v1967 = vld [vmem:[%s2 + $0x140] sm:$0xff]
      %v1968 = vld [vmem:[%s2 + $0x148] sm:$0xff]
      %v1969 = vld [vmem:[%s2 + $0x150] sm:$0xff]
      %v1970 = vld [vmem:[%s2 + $0x158] sm:$0xff]
      %v1971 = vld [vmem:[%s2 + $0x160] sm:$0xff]
      %v1972 = vld [vmem:[%s2 + $0x168] sm:$0xff]
      %v1973 = vld [vmem:[%s2 + $0x170] sm:$0xff]
      %v1974 = vld [vmem:[%s2 + $0x178] sm:$0xff]
      %1975 = vmatprep.subr.mxu0 0.0
      %1976 = vmatpush1.msra.mxu0 %v1927
      %1977 = vmatprep.subr.mxu0 0.0
      %1978 = vmatpush1.msra.mxu0 %v1928
      %1979 = vmatprep.subr.mxu0 0.0
      %1980 = vmatpush1.msra.mxu0 %v1929
      %1981 = vmatprep.subr.mxu0 0.0
      %1982 = vmatpush1.msra.mxu0 %v1930
      %1983 = vmatprep.subr.mxu0 0.0
      %1984 = vmatpush1.msra.mxu0 %v1931
      %1985 = vmatprep.subr.mxu0 0.0
      %1986 = vmatpush1.msra.mxu0 %v1932
      %1987 = vmatprep.subr.mxu0 0.0
      %1988 = vmatpush1.msra.mxu0 %v1933
      %1989 = vmatprep.subr.mxu0 0.0
      %1990 = vmatpush1.msra.mxu0 %v1934
      %1991 = vmatprep.subr.mxu0 0.0
      %1992 = vmatpush1.msra.mxu0 %v1935
      %1993 = vmatprep.subr.mxu0 0.0
      %1994 = vmatpush1.msra.mxu0 %v1936
      %1995 = vmatprep.subr.mxu0 0.0
      %1996 = vmatpush1.msra.mxu0 %v1937
      %1997 = vmatprep.subr.mxu0 0.0
      %1998 = vmatpush1.msra.mxu0 %v1938
      %1999 = vmatprep.subr.mxu0 0.0
      %2000 = vmatpush1.msra.mxu0 %v1939
      %2001 = vmatprep.subr.mxu0 0.0
      %2002 = vmatpush1.msra.mxu0 %v1940
      %2003 = vmatprep.subr.mxu0 0.0
      %2004 = vmatpush1.msra.mxu0 %v1941
      %2005 = vmatprep.subr.mxu0 0.0
      %2006 = vmatpush1.msra.mxu0 %v1942
      %2007 = vmatprep.subr.mxu0 0.0
      %2008 = vmatpush1.msra.mxu0 %v1943
      %2009 = vmatprep.subr.mxu0 0.0
      %2010 = vmatpush1.msra.mxu0 %v1944
      %2011 = vmatprep.subr.mxu0 0.0
      %2012 = vmatpush1.msra.mxu0 %v1945
      %2013 = vmatprep.subr.mxu0 0.0
      %2014 = vmatpush1.msra.mxu0 %v1946
      %2015 = vmatprep.subr.mxu0 0.0
      %2016 = vmatpush1.msra.mxu0 %v1947
      %2017 = vmatprep.subr.mxu0 0.0
      %2018 = vmatpush1.msra.mxu0 %v1948
      %2019 = vmatprep.subr.mxu0 0.0
      %2020 = vmatpush1.msra.mxu0 %v1949
      %2021 = vmatprep.subr.mxu0 0.0
      %2022 = vmatpush1.msra.mxu0 %v1950
      %2023 = vmatprep.subr.mxu0 0.0
      %2024 = vmatpush1.msra.mxu0 %v1951
      %2025 = vmatprep.subr.mxu0 0.0
      %2026 = vmatpush1.msra.mxu0 %v1952
      %2027 = vmatprep.subr.mxu0 0.0
      %2028 = vmatpush1.msra.mxu0 %v1953
      %2029 = vmatprep.subr.mxu0 0.0
      %2030 = vmatpush1.msra.mxu0 %v1954
      %2031 = vmatprep.subr.mxu0 0.0
      %2032 = vmatpush1.msra.mxu0 %v1955
      %2033 = vmatprep.subr.mxu0 0.0
      %2034 = vmatpush1.msra.mxu0 %v1956
      %2035 = vmatprep.subr.mxu0 0.0
      %2036 = vmatpush1.msra.mxu0 %v1957
      %2037 = vmatprep.subr.mxu0 0.0
      %2038 = vmatpush1.msra.mxu0 %v1958
      %2039 = vmatprep.mubr.f32.mxu0 %v1907
      %2040 = vmatmul.mubr.f32.gmra.mrb[0].mxu0 %v1906
      %v2041 = vpop.f32.mrb[0].mxu0
      %v2042 = vadd.f32 0.0, %v2041
      %v2043 = vpop.f32.mrb[0].mxu0
      %2044 = vmatprep.mubr.f32.mxu0 %v1910
      %2045 = vmatmul.mubr.f32.gmra.mrb[0].mxu0 %v1909
      %v2046 = vpop.f32.mrb[0].mxu0
      %v2047 = vadd.f32 0.0, %v2046
      %v2048 = vpop.f32.mrb[0].mxu0
      %2049 = vmatprep.mubr.f32.mxu0 %v1913
      %2050 = vmatmul.mubr.f32.gmra.mrb[0].mxu0 %v1912
      %v2051 = vpop.f32.mrb[0].mxu0
      %v2052 = vadd.f32 0.0, %v2051
      %v2053 = vpop.f32.mrb[0].mxu0
      %2054 = vmatprep.mubr.f32.mxu0 %v1916
      %2055 = vmatmul.mubr.f32.gmra.mrb[0].mxu0 %v1915
      %v2056 = vpop.f32.mrb[0].mxu0
      %v2057 = vadd.f32 0.0, %v2056
      %v2058 = vpop.f32.mrb[0].mxu0
      %2059 = vmatprep.mubr.f32.mxu0 %v1919
      %2060 = vmatmul.mubr.f32.gmra.mrb[0].mxu0 %v1918
      %v2061 = vpop.f32.mrb[0].mxu0
      %v2062 = vadd.f32 0.0, %v2061
      %v2063 = vpop.f32.mrb[0].mxu0
      %2064 = vmatprep.mubr.f32.mxu0 %v1922
      %2065 = vmatmul.mubr.f32.gmra.mrb[0].mxu0 %v1921
      %v2066 = vpop.f32.mrb[0].mxu0
      %v2067 = vadd.f32 0.0, %v2066
      %v2068 = vpop.f32.mrb[0].mxu0
      %2069 = vmatprep.mubr.f32.mxu0 %v1925
      %2070 = vmatmul.mubr.f32.gmra.mrb[0].mxu0 %v1924
      %v2071 = vpop.f32.mrb[0].mxu0
      %v2072 = vadd.f32 0.0, %v2071
      %v2073 = vpop.f32.mrb[0].mxu0
      %2074 = vdwg.mxu0
      %2075 = vmatprep.subr.mxu0 0.0
      %2076 = vmatpush1.msra.mxu0 %v1959
      %2077 = vmatprep.subr.mxu0 0.0
      %2078 = vmatpush1.msra.mxu0 %v1960
      %2079 = vmatprep.subr.mxu0 0.0
      %2080 = vmatpush1.msra.mxu0 %v1961
      %2081 = vmatprep.subr.mxu0 0.0
      %2082 = vmatpush1.msra.mxu0 %v1962
      %2083 = vmatprep.subr.mxu0 0.0
      %2084 = vmatpush1.msra.mxu0 %v1963
      %2085 = vmatprep.subr.mxu0 0.0
      %2086 = vmatpush1.msra.mxu0 %v1964
      %2087 = vmatprep.subr.mxu0 0.0
      %2088 = vmatpush1.msra.mxu0 %v1965
      %2089 = vmatprep.subr.mxu0 0.0
      %2090 = vmatpush1.msra.mxu0 %v1966
      %2091 = vmatprep.subr.mxu0 0.0
      %2092 = vmatpush1.msra.mxu0 %v1967
      %2093 = vmatprep.subr.mxu0 0.0
      %2094 = vmatpush1.msra.mxu0 %v1968
      %2095 = vmatprep.subr.mxu0 0.0
      %2096 = vmatpush1.msra.mxu0 %v1969
      %2097 = vmatprep.subr.mxu0 0.0
      %2098 = vmatpush1.msra.mxu0 %v1970
      %2099 = vmatprep.subr.mxu0 0.0
      %2100 = vmatpush1.msra.mxu0 %v1971
      %2101 = vmatprep.subr.mxu0 0.0
      %2102 = vmatpush1.msra.mxu0 %v1972
      %2103 = vmatprep.subr.mxu0 0.0
      %2104 = vmatpush1.msra.mxu0 %v1973
      %2105 = vmatprep.subr.mxu0 0.0
      %2106 = vmatpush1.msra.mxu0 %v1974
      %2107 = vmatprep.subr.mxu0 0.0
      %2108 = vmatpush1.msra.mxu0 0.0
      %2109 = vmatprep.subr.mxu0 0.0
      %2110 = vmatpush1.msra.mxu0 0.0
      %2111 = vmatprep.subr.mxu0 0.0
      %2112 = vmatpush1.msra.mxu0 0.0
      %2113 = vmatprep.subr.mxu0 0.0
      %2114 = vmatpush1.msra.mxu0 0.0
      %2115 = vmatprep.subr.mxu0 0.0
      %2116 = vmatpush1.msra.mxu0 0.0
      %2117 = vmatprep.subr.mxu0 0.0
      %2118 = vmatpush1.msra.mxu0 0.0
      %2119 = vmatprep.subr.mxu0 0.0
      %2120 = vmatpush1.msra.mxu0 0.0
      %2121 = vmatprep.subr.mxu0 0.0
      %2122 = vmatpush1.msra.mxu0 0.0
      %2123 = vmatprep.subr.mxu0 0.0
      %2124 = vmatpush1.msra.mxu0 0.0
      %2125 = vmatprep.subr.mxu0 0.0
      %2126 = vmatpush1.msra.mxu0 0.0
      %2127 = vmatprep.subr.mxu0 0.0
      %2128 = vmatpush1.msra.mxu0 0.0
      %2129 = vmatprep.subr.mxu0 0.0
      %2130 = vmatpush1.msra.mxu0 0.0
      %2131 = vmatprep.subr.mxu0 0.0
      %2132 = vmatpush1.msra.mxu0 0.0
      %2133 = vmatprep.subr.mxu0 0.0
      %2134 = vmatpush1.msra.mxu0 0.0
      %2135 = vmatprep.subr.mxu0 0.0
      %2136 = vmatpush1.msra.mxu0 0.0
      %2137 = vmatprep.subr.mxu0 0.0
      %2138 = vmatpush1.msra.mxu0 0.0
      %2139 = vmatprep.mubr.f32.mxu0 0.0
      %2140 = vmatmul.mubr.f32.gmra.mrb[0].mxu0 %v1908
      %v2141 = vpop.f32.mrb[0].mxu0
      %v2142 = vadd.f32 %v2042, %v2141
      %v2143 = vpop.f32.mrb[0].mxu0
      %2144 = vmatprep.mubr.f32.mxu0 0.0
      %2145 = vmatmul.mubr.f32.gmra.mrb[0].mxu0 %v1911
      %v2146 = vpop.f32.mrb[0].mxu0
      %v2147 = vadd.f32 %v2047, %v2146
      %v2148 = vpop.f32.mrb[0].mxu0
      %2149 = vmatprep.mubr.f32.mxu0 0.0
      %2150 = vmatmul.mubr.f32.gmra.mrb[0].mxu0 %v1914
      %v2151 = vpop.f32.mrb[0].mxu0
      %v2152 = vadd.f32 %v2052, %v2151
      %v2153 = vpop.f32.mrb[0].mxu0
      %2154 = vmatprep.mubr.f32.mxu0 0.0
      %2155 = vmatmul.mubr.f32.gmra.mrb[0].mxu0 %v1917
      %v2156 = vpop.f32.mrb[0].mxu0
      %v2157 = vadd.f32 %v2057, %v2156
      %v2158 = vpop.f32.mrb[0].mxu0
      %2159 = vmatprep.mubr.f32.mxu0 0.0
      %2160 = vmatmul.mubr.f32.gmra.mrb[0].mxu0 %v1920
      %v2161 = vpop.f32.mrb[0].mxu0
      %v2162 = vadd.f32 %v2062, %v2161
      %v2163 = vpop.f32.mrb[0].mxu0
      %2164 = vmatprep.mubr.f32.mxu0 0.0
      %2165 = vmatmul.mubr.f32.gmra.mrb[0].mxu0 %v1923
      %v2166 = vpop.f32.mrb[0].mxu0
      %v2167 = vadd.f32 %v2067, %v2166
      %v2168 = vpop.f32.mrb[0].mxu0
      %2169 = vmatprep.mubr.f32.mxu0 0.0
      %2170 = vmatmul.mubr.f32.gmra.mrb[0].mxu0 %v1926
      %v2171 = vpop.f32.mrb[0].mxu0
      %v2172 = vadd.f32 %v2072, %v2171
      %v2173 = vpop.f32.mrb[0].mxu0
      %2174 = vdwg.mxu0
      %v2175 = vmax.f32 %v2142, 1e-10
      %v2176 = vmax.f32 %v2147, 1e-10
      %v2177 = vmax.f32 %v2152, 1e-10
      %v2178 = vmax.f32 %v2157, 1e-10
      %v2179 = vmax.f32 %v2162, 1e-10
      %v2180 = vmax.f32 %v2167, 1e-10
      %v2181 = vmax.f32 %v2172, 1e-10
      %v2182 = vlog2.pop %v2175
      %v2183 = vmul.f32 %v2182, 0.6931472
      %v2184 = vlog2.pop %v2176
      %v2185 = vmul.f32 %v2184, 0.6931472
      %v2186 = vlog2.pop %v2177
      %v2187 = vmul.f32 %v2186, 0.6931472
      %v2188 = vlog2.pop %v2178
      %v2189 = vmul.f32 %v2188, 0.6931472
      %v2190 = vlog2.pop %v2179
      %v2191 = vmul.f32 %v2190, 0.6931472
      %v2192 = vlog2.pop %v2180
      %v2193 = vmul.f32 %v2192, 0.6931472
      %v2194 = vlog2.pop %v2181
      %v2195 = vmul.f32 %v2194, 0.6931472
      %v2196 = vmul.f32 %v2183, 0.4342945
      %v2197 = vmul.f32 %v2185, 0.4342945
      %v2198 = vmul.f32 %v2187, 0.4342945
      %v2199 = vmul.f32 %v2189, 0.4342945
      %v2200 = vmul.f32 %v2191, 0.4342945
      %v2201 = vmul.f32 %v2193, 0.4342945
      %v2202 = vmul.f32 %v2195, 0.4342945
      %v2203 = vmul.f32 %v2196, 10.0
      %v2204 = vmul.f32 %v2197, 10.0
      %v2205 = vmul.f32 %v2198, 10.0
      %v2206 = vmul.f32 %v2199, 10.0
      %v2207 = vmul.f32 %v2200, 10.0
      %v2208 = vmul.f32 %v2201, 10.0
      %v2209 = vmul.f32 %v2202, 10.0
      %vm2210 = vcmask 523264
      %v2211 = vsel %vm2210, %v2203, -inf
      %v2212 = vsel %vm2210, %v2204, -inf
      %v2213 = vsel %vm2210, %v2205, -inf
      %v2214 = vsel %vm2210, %v2206, -inf
      %v2215 = vsel %vm2210, %v2207, -inf
      %v2216 = vmax.f32 %v2211, %v2215
      %v2217 = vsel %vm2210, %v2208, -inf
      %v2218 = vmax.f32 %v2212, %v2217
      %vm2219 = vcmask 521216
      %v2220 = vsel %vm2219, %v2209, -inf
      %v2221 = vmax.f32 %v2213, %v2220
      %v2222 = vmax.f32 %v2216, %v2218
      %v2223 = vmax.f32 %v2221, %v2214
      %v2224 = vmax.f32 %v2222, %v2223
      %2225 = vmax.xlane.f32.xlu0 %v2224
      %v2226 = vpop.xlane.xlu0 %2225
      %v2227 = vrot.slane %v2226, 4
      %v2228 = vmax.f32 %v2226, %v2227
      %v2229 = vrot.slane %v2228, 2
      %v2230 = vmax.f32 %v2228, %v2229
      %v2231 = vrot.slane %v2230, 1
      %v2232 = vmax.f32 %v2230, %v2231
      %s2233 = vtos %v2232
      %s2234 = ssub.f32 %s2233, 80.0
      %v2235 = vstv %s2234
      %v2236 = vmax.f32 %v2203, %v2235
      %v2237 = vmax.f32 %v2204, %v2235
      %v2238 = vmax.f32 %v2205, %v2235
      %v2239 = vmax.f32 %v2206, %v2235
      %v2240 = vmax.f32 %v2207, %v2235
      %v2241 = vmax.f32 %v2208, %v2235
      %v2242 = vmax.f32 %v2209, %v2235
      %v2243 = vld [vmem:[%s3] sm:$0xff]
      %v2244 = vld [vmem:[%s3 + $0x8] sm:$0xff]
      %v2245 = vld [vmem:[%s3 + $0x10] sm:$0xff]
      %v2246 = vld [vmem:[%s3 + $0x18] sm:$0xff]
      %v2247 = vld [vmem:[%s3 + $0x20] sm:$0xff]
      %v2248 = vld [vmem:[%s3 + $0x28] sm:$0xff]
      %v2249 = vld [vmem:[%s3 + $0x30] sm:$0xff]
      %v2250 = vld [vmem:[%s3 + $0x38] sm:$0xff]
      %v2251 = vld [vmem:[%s3 + $0x40] sm:$0xff]
      %v2252 = vld [vmem:[%s3 + $0x48] sm:$0xff]
      %v2253 = vld [vmem:[%s3 + $0x50] sm:$0xff]
      %v2254 = vld [vmem:[%s3 + $0x58] sm:$0xff]
      %v2255 = vld [vmem:[%s3 + $0x60] sm:$0xff]
      %v2256 = vld [vmem:[%s3 + $0x68] sm:$0xff]
      %v2257 = vld [vmem:[%s3 + $0x70] sm:$0xff]
      %v2258 = vld [vmem:[%s3 + $0x78] sm:$0xff]
      %2259 = vmatprep.subr.mxu0 0.0
      %2260 = vmatpush1.msra.mxu0 %v2243
      %2261 = vmatprep.subr.mxu0 0.0
      %2262 = vmatpush1.msra.mxu0 %v2244
      %2263 = vmatprep.subr.mxu0 0.0
      %2264 = vmatpush1.msra.mxu0 %v2245
      %2265 = vmatprep.subr.mxu0 0.0
      %2266 = vmatpush1.msra.mxu0 %v2246
      %2267 = vmatprep.subr.mxu0 0.0
      %2268 = vmatpush1.msra.mxu0 %v2247
      %2269 = vmatprep.subr.mxu0 0.0
      %2270 = vmatpush1.msra.mxu0 %v2248
      %2271 = vmatprep.subr.mxu0 0.0
      %2272 = vmatpush1.msra.mxu0 %v2249
      %2273 = vmatprep.subr.mxu0 0.0
      %2274 = vmatpush1.msra.mxu0 %v2250
      %2275 = vmatprep.subr.mxu0 0.0
      %2276 = vmatpush1.msra.mxu0 %v2251
      %2277 = vmatprep.subr.mxu0 0.0
      %2278 = vmatpush1.msra.mxu0 %v2252
      %2279 = vmatprep.subr.mxu0 0.0
      %2280 = vmatpush1.msra.mxu0 %v2253
      %2281 = vmatprep.subr.mxu0 0.0
      %2282 = vmatpush1.msra.mxu0 %v2254
      %2283 = vmatprep.subr.mxu0 0.0
      %2284 = vmatpush1.msra.mxu0 %v2255
      %2285 = vmatprep.subr.mxu0 0.0
      %2286 = vmatpush1.msra.mxu0 %v2256
      %2287 = vmatprep.subr.mxu0 0.0
      %2288 = vmatpush1.msra.mxu0 %v2257
      %2289 = vmatprep.subr.mxu0 0.0
      %2290 = vmatpush1.msra.mxu0 %v2258
      %2291 = vmatprep.subr.mxu0 0.0
      %2292 = vmatpush1.msra.mxu0 0.0
      %2293 = vmatprep.subr.mxu0 0.0
      %2294 = vmatpush1.msra.mxu0 0.0
      %2295 = vmatprep.subr.mxu0 0.0
      %2296 = vmatpush1.msra.mxu0 0.0
      %2297 = vmatprep.subr.mxu0 0.0
      %2298 = vmatpush1.msra.mxu0 0.0
      %2299 = vmatprep.subr.mxu0 0.0
      %2300 = vmatpush1.msra.mxu0 0.0
      %2301 = vmatprep.subr.mxu0 0.0
      %2302 = vmatpush1.msra.mxu0 0.0
      %2303 = vmatprep.subr.mxu0 0.0
      %2304 = vmatpush1.msra.mxu0 0.0
      %2305 = vmatprep.subr.mxu0 0.0
      %2306 = vmatpush1.msra.mxu0 0.0
      %2307 = vmatprep.subr.mxu0 0.0
      %2308 = vmatpush1.msra.mxu0 0.0
      %2309 = vmatprep.subr.mxu0 0.0
      %2310 = vmatpush1.msra.mxu0 0.0
      %2311 = vmatprep.subr.mxu0 0.0
      %2312 = vmatpush1.msra.mxu0 0.0
      %2313 = vmatprep.subr.mxu0 0.0
      %2314 = vmatpush1.msra.mxu0 0.0
      %2315 = vmatprep.subr.mxu0 0.0
      %2316 = vmatpush1.msra.mxu0 0.0
      %2317 = vmatprep.subr.mxu0 0.0
      %2318 = vmatpush1.msra.mxu0 0.0
      %2319 = vmatprep.subr.mxu0 0.0
      %2320 = vmatpush1.msra.mxu0 0.0
      %2321 = vmatprep.subr.mxu0 0.0
      %2322 = vmatpush1.msra.mxu0 0.0
      %2323 = vmatprep.mubr.f32.mxu0 0.0
      %2324 = vmatmul.mubr.f32.gmra.mrb[0].mxu0 %v2236
      %v2325 = vpop.f32.mrb[0].mxu0
      %v2326 = vadd.f32 0.0, %v2325
      %v2327 = vpop.f32.mrb[0].mxu0
      %2328 = vmatprep.mubr.f32.mxu0 0.0
      %2329 = vmatmul.mubr.f32.gmra.mrb[0].mxu0 %v2237
      %v2330 = vpop.f32.mrb[0].mxu0
      %v2331 = vadd.f32 0.0, %v2330
      %v2332 = vpop.f32.mrb[0].mxu0
      %2333 = vmatprep.mubr.f32.mxu0 0.0
      %2334 = vmatmul.mubr.f32.gmra.mrb[0].mxu0 %v2238
      %v2335 = vpop.f32.mrb[0].mxu0
      %v2336 = vadd.f32 0.0, %v2335
      %v2337 = vpop.f32.mrb[0].mxu0
      %2338 = vmatprep.mubr.f32.mxu0 0.0
      %2339 = vmatmul.mubr.f32.gmra.mrb[0].mxu0 %v2239
      %v2340 = vpop.f32.mrb[0].mxu0
      %v2341 = vadd.f32 0.0, %v2340
      %v2342 = vpop.f32.mrb[0].mxu0
      %2343 = vmatprep.mubr.f32.mxu0 0.0
      %2344 = vmatmul.mubr.f32.gmra.mrb[0].mxu0 %v2240
      %v2345 = vpop.f32.mrb[0].mxu0
      %v2346 = vadd.f32 0.0, %v2345
      %v2347 = vpop.f32.mrb[0].mxu0
      %2348 = vmatprep.mubr.f32.mxu0 0.0
      %2349 = vmatmul.mubr.f32.gmra.mrb[0].mxu0 %v2241
      %v2350 = vpop.f32.mrb[0].mxu0
      %v2351 = vadd.f32 0.0, %v2350
      %v2352 = vpop.f32.mrb[0].mxu0
      %2353 = vmatprep.mubr.f32.mxu0 0.0
      %2354 = vmatmul.mubr.f32.gmra.mrb[0].mxu0 %v2242
      %v2355 = vpop.f32.mrb[0].mxu0
      %v2356 = vadd.f32 0.0, %v2355
      %v2357 = vpop.f32.mrb[0].mxu0
      %2358 = vdwg.mxu0
      %2359 = vst [vmem:[%s197] sm:$0xff] %v2326
      %2360 = vst [vmem:[%s197 + $0x8] sm:$0xff] %v2331
      %2361 = vst [vmem:[%s197 + $0x10] sm:$0xff] %v2336
      %2362 = vst [vmem:[%s197 + $0x18] sm:$0xff] %v2341
      %2363 = vst [vmem:[%s197 + $0x20] sm:$0xff] %v2346
      %2364 = vst [vmem:[%s197 + $0x28] sm:$0xff] %v2351
      %2365 = vst [vmem:[%s197 + $0x30] sm:$0x3f] %v2356
      %p2366 = scmp.lt.s32.totalorder %s15, 1
      %s2367 = scalar_select %p2366, %s15, 1
      %s2368 = smul.addr %s2367, 7
      %s2369 = smul.addr %s2368, 8
      %s2370 = scalar_lea.vmem %s4, %s2369
      // Predicated region
      $region37: #{mfcc_crnn_forward.7} parent=35 // pred_check
        %p2371 = pneg %p122
      $region38: #{mfcc_crnn_forward.7} parent=35 // pred_check_branch
        %2373 = sbr.rel (%p2371) target = $region40
      $region39: #{mfcc_crnn_forward.7} parent=35 // pred_region
        _
      $region40: #{mfcc_crnn_forward.7} parent=35 // pred_fallthru
        _
    $region36: #{mfcc_crnn_forward.7} parent=5 // pred_fallthru
      _
    %p2374 = scmp.le.s32.totalorder 2, %s10
    // Predicated region
    $region41: #{mfcc_crnn_forward.7} parent=5 // pred_check
      %p2375 = pneg %p2374
    $region42: #{mfcc_crnn_forward.7} parent=5 // pred_check_branch
      %2377 = sbr.rel (%p2375) target = $region44
    $region43: #{mfcc_crnn_forward.7} parent=5 // pred_region
      %s2378 = ssub.s32 %s10, 2
      // Predicated region
      $region45: #{mfcc_crnn_forward.7} parent=43 // pred_check
        %p2379 = pneg %p128
      $region46: #{mfcc_crnn_forward.7} parent=43 // pred_check_branch
        %2381 = sbr.rel (%p2379) target = $region48
      $region47: #{mfcc_crnn_forward.7} parent=43 // pred_region
        %p2382 = scmp.lt.s32.totalorder %s16, 1
        %s2383 = scalar_select %p2382, %s16, 1
        %s2384 = smul.addr %s2383, 7
        %s2385 = smul.addr %s2384, 8
        %s2386 = scalar_lea.vmem %s4, %s2385
      $region48: #{mfcc_crnn_forward.7} parent=43 // pred_fallthru
        _
    $region44: #{mfcc_crnn_forward.7} parent=5 // pred_fallthru
      _
  $region6: #{mfcc_crnn_forward.7} parent=0 // loop_footer
    %s14 = sadd.s32 1, %s10
  $region7: #{mfcc_crnn_forward.7} parent=0 // loop_footer_branch
    %9 = sbr.rel target = $region3
  $region8: #{mfcc_crnn_forward.7} parent=0 // loop_exit
    _

// kernel: mfcc_crnn_forward.8
$region0: #{mfcc_crnn_forward.8}
  #allocation0 [shape = 'u32[]', space=smem, size = 0x4, offset = 0x4, fixed_abs, tag = 'smem constant byte address 0x4 - core index']
  #allocation1 [shape = 'u32[144,128]{1,0:T(1,128)}', space=vmem, size = 0x12000, scoped, tag = 'internal scratch']
  %s0 = inlined_call_operand.vmem [shape: bf16[16,9], index: 0, kind: input, shape index: {}]
  %s1 = inlined_call_operand.vmem [shape: bf16[9,3848], index: 1, kind: input, shape index: {}]
  %s2 = inlined_call_operand.vmem [shape: f32[16,1], index: 2, kind: input, shape index: {}]
  %s3 = inlined_call_operand.vmem [shape: f32[16,3848], index: 3, kind: output, shape index: {}]
  %s4 = sld [smem:[#allocation0]]
  $region22: #{mfcc_crnn_forward.8} parent=0
    _
  %s6 = ssub.s32 1, %s4
  %s7 = scalar_select 0, %s6, %s4
  // Predicated region
  $region2: #{mfcc_crnn_forward.8} parent=0 // pred_check
    _
  $region3: #{mfcc_crnn_forward.8} parent=0 // pred_check_branch
    %9 = sbr.rel (0) target = $region5
  $region4: #{mfcc_crnn_forward.8} parent=0 // pred_region
    _
  $region5: #{mfcc_crnn_forward.8} parent=0 // pred_fallthru
    _
  // Predicated region
  $region6: #{mfcc_crnn_forward.8} parent=0 // pred_check
    _
  $region7: #{mfcc_crnn_forward.8} parent=0 // pred_check_branch
    %11 = sbr.rel (0) target = $region9
  $region8: #{mfcc_crnn_forward.8} parent=0 // pred_region
    _
  $region9: #{mfcc_crnn_forward.8} parent=0 // pred_fallthru
    _
  // Predicated region
  $region10: #{mfcc_crnn_forward.8} parent=0 // pred_check
    _
  $region11: #{mfcc_crnn_forward.8} parent=0 // pred_check_branch
    %13 = sbr.rel (0) target = $region13
  $region12: #{mfcc_crnn_forward.8} parent=0 // pred_region
    _
  $region13: #{mfcc_crnn_forward.8} parent=0 // pred_fallthru
    _
  %v15 = vld [vmem:[%s0] sm:$0xf]
  %v16 = vld [vmem:[%s0 + $0x4] sm:$0xf]
  %v17 = vld [vmem:[%s1] sm:$0xff]
  %v18 = vld [vmem:[%s1 + $0x8] sm:$0xff]
  %v19 = vld [vmem:[%s1 + $0x10] sm:$0xff]
  %v20 = vld [vmem:[%s1 + $0x18] sm:$0xff]
  %v21 = vld [vmem:[%s1 + $0x20] sm:$0xff]
  %v22 = vld [vmem:[%s1 + $0x28] sm:$0xff]
  %v23 = vld [vmem:[%s1 + $0x30] sm:$0xff]
  %v24 = vld [vmem:[%s1 + $0x38] sm:$0xff]
  %v25 = vld [vmem:[%s1 + $0x40] sm:$0xff]
  %v26 = vld [vmem:[%s1 + $0x48] sm:$0xff]
  %v27 = vld [vmem:[%s1 + $0x50] sm:$0xff]
  %v28 = vld [vmem:[%s1 + $0x58] sm:$0xff]
  %v29 = vld [vmem:[%s1 + $0x60] sm:$0xff]
  %v30 = vld [vmem:[%s1 + $0x68] sm:$0xff]
  %v31 = vld [vmem:[%s1 + $0x70] sm:$0xff]
  %v32 = vld [vmem:[%s1 + $0x78] sm:$0xf]
  %v33 = vld [vmem:[%s1 + $0x7c] sm:$0x11]
  %v34 = vld [vmem:[%s1 + $0x84] sm:$0x11]
  %v35 = vld [vmem:[%s1 + $0x8c] sm:$0x11]
  %v36 = vld [vmem:[%s1 + $0x94] sm:$0x11]
  %v37 = vld [vmem:[%s1 + $0x9c] sm:$0x11]
  %v38 = vld [vmem:[%s1 + $0xa4] sm:$0x11]
  %v39 = vld [vmem:[%s1 + $0xac] sm:$0x11]
  %v40 = vld [vmem:[%s1 + $0xb4] sm:$0x11]
  %v41 = vld [vmem:[%s1 + $0xbc] sm:$0x11]
  %v42 = vld [vmem:[%s1 + $0xc4] sm:$0x11]
  %v43 = vld [vmem:[%s1 + $0xcc] sm:$0x11]
  %v44 = vld [vmem:[%s1 + $0xd4] sm:$0x11]
  %v45 = vld [vmem:[%s1 + $0xdc] sm:$0x11]
  %v46 = vld [vmem:[%s1 + $0xe4] sm:$0x11]
  %v47 = vld [vmem:[%s1 + $0xec] sm:$0x11]
  %v48 = vld [vmem:[%s1 + $0xf4] sm:$0x1]
  %v49 = vld [vmem:[%s2] sm:$0xff]
  %v50 = vld [vmem:[%s2 + $0x8] sm:$0xff]
  %52 = vset.pattern.permute.xlu0 0
  %53 = vperm.xlu0 %52, %v49
  %v54 = vpop.permute.xlu0 %53
  %57 = vset.pattern.permute.xlu0 0
  %58 = vperm.xlu0 %57, %v50
  %v59 = vpop.permute.xlu0 %58
  %v63 = vunpack.c.l.b16 %v15
  %v64 = vunpack.c.l.b16 %v16
  %v65 = vpack.c.b16 %v64, %v63
  %v98 = vunpack.c.l.b16 %v17
  %v99 = vunpack.c.h.b16 %v17
  %v100 = vunpack.c.l.b16 %v18
  %v101 = vunpack.c.h.b16 %v18
  %v102 = vunpack.c.l.b16 %v19
  %v103 = vunpack.c.h.b16 %v19
  %v104 = vunpack.c.l.b16 %v20
  %v105 = vunpack.c.h.b16 %v20
  %v106 = vunpack.c.l.b16 %v21
  %v107 = vunpack.c.h.b16 %v21
  %v108 = vunpack.c.l.b16 %v22
  %v109 = vunpack.c.h.b16 %v22
  %v110 = vunpack.c.l.b16 %v23
  %v111 = vunpack.c.h.b16 %v23
  %v112 = vunpack.c.l.b16 %v24
  %v113 = vunpack.c.h.b16 %v24
  %v114 = vunpack.c.l.b16 %v25
  %v115 = vunpack.c.h.b16 %v25
  %v116 = vunpack.c.l.b16 %v26
  %v117 = vunpack.c.h.b16 %v26
  %v118 = vunpack.c.l.b16 %v27
  %v119 = vunpack.c.h.b16 %v27
  %v120 = vunpack.c.l.b16 %v28
  %v121 = vunpack.c.h.b16 %v28
  %v122 = vunpack.c.l.b16 %v29
  %v123 = vunpack.c.h.b16 %v29
  %v124 = vunpack.c.l.b16 %v30
  %v125 = vunpack.c.h.b16 %v30
  %v126 = vunpack.c.l.b16 %v31
  %v127 = vunpack.c.h.b16 %v31
  %v128 = vunpack.c.l.b16 %v32
  %v129 = vunpack.c.l.b16 %v33
  %v130 = vunpack.c.h.b16 %v33
  %v131 = vunpack.c.l.b16 %v34
  %v132 = vunpack.c.h.b16 %v34
  %v133 = vunpack.c.l.b16 %v35
  %v134 = vunpack.c.h.b16 %v35
  %v135 = vunpack.c.l.b16 %v36
  %v136 = vunpack.c.h.b16 %v36
  %v137 = vunpack.c.l.b16 %v37
  %v138 = vunpack.c.h.b16 %v37
  %v139 = vunpack.c.l.b16 %v38
  %v140 = vunpack.c.h.b16 %v38
  %v141 = vunpack.c.l.b16 %v39
  %v142 = vunpack.c.h.b16 %v39
  %v143 = vunpack.c.l.b16 %v40
  %v144 = vunpack.c.h.b16 %v40
  %v145 = vunpack.c.l.b16 %v41
  %v146 = vunpack.c.h.b16 %v41
  %v147 = vunpack.c.l.b16 %v42
  %v148 = vunpack.c.h.b16 %v42
  %v149 = vunpack.c.l.b16 %v43
  %v150 = vunpack.c.h.b16 %v43
  %v151 = vunpack.c.l.b16 %v44
  %v152 = vunpack.c.h.b16 %v44
  %v153 = vunpack.c.l.b16 %v45
  %v154 = vunpack.c.h.b16 %v45
  %v155 = vunpack.c.l.b16 %v46
  %v156 = vunpack.c.h.b16 %v46
  %v157 = vunpack.c.l.b16 %v47
  %v158 = vunpack.c.h.b16 %v47
  %v159 = vunpack.c.l.b16 %v48
  %v160 = vpack.c.b16 %v129, %v98
  %v161 = vpack.c.b16 %v130, %v99
  %v162 = vpack.c.b16 %v131, %v100
  %v163 = vpack.c.b16 %v132, %v101
  %v164 = vpack.c.b16 %v133, %v102
  %v165 = vpack.c.b16 %v134, %v103
  %v166 = vpack.c.b16 %v135, %v104
  %v167 = vpack.c.b16 %v136, %v105
  %v168 = vpack.c.b16 %v137, %v106
  %v169 = vpack.c.b16 %v138, %v107
  %v170 = vpack.c.b16 %v139, %v108
  %v171 = vpack.c.b16 %v140, %v109
  %v172 = vpack.c.b16 %v141, %v110
  %v173 = vpack.c.b16 %v142, %v111
  %v174 = vpack.c.b16 %v143, %v112
  %v175 = vpack.c.b16 %v144, %v113
  %v176 = vpack.c.b16 %v145, %v114
  %v177 = vpack.c.b16 %v146, %v115
  %v178 = vpack.c.b16 %v147, %v116
  %v179 = vpack.c.b16 %v148, %v117
  %v180 = vpack.c.b16 %v149, %v118
  %v181 = vpack.c.b16 %v150, %v119
  %v182 = vpack.c.b16 %v151, %v120
  %v183 = vpack.c.b16 %v152, %v121
  %v184 = vpack.c.b16 %v153, %v122
  %v185 = vpack.c.b16 %v154, %v123
  %v186 = vpack.c.b16 %v155, %v124
  %v187 = vpack.c.b16 %v156, %v125
  %v188 = vpack.c.b16 %v157, %v126
  %v189 = vpack.c.b16 %v158, %v127
  %v190 = vpack.c.b16 %v159, %v128
  %vm191 = vcmask 72704
  %v193 = vsel %vm191, %v65, 0
  %vm195 = vcmask 1043456
  %vm196 = vcmask 1044480
  %v197 = vsel %vm195, 4294967295, 65535
  %v198 = vsel %vm196, %v197, 0
  %v200 = vand.u32 %v160, %v198
  %v203 = vand.u32 %v161, %v198
  %v206 = vand.u32 %v162, %v198
  %v209 = vand.u32 %v163, %v198
  %v212 = vand.u32 %v164, %v198
  %v215 = vand.u32 %v165, %v198
  %v218 = vand.u32 %v166, %v198
  %v221 = vand.u32 %v167, %v198
  %v224 = vand.u32 %v168, %v198
  %v227 = vand.u32 %v169, %v198
  %v230 = vand.u32 %v170, %v198
  %v233 = vand.u32 %v171, %v198
  %v236 = vand.u32 %v172, %v198
  %v239 = vand.u32 %v173, %v198
  %v242 = vand.u32 %v174, %v198
  %v245 = vand.u32 %v175, %v198
  %v248 = vand.u32 %v176, %v198
  %v251 = vand.u32 %v177, %v198
  %v254 = vand.u32 %v178, %v198
  %v257 = vand.u32 %v179, %v198
  %v260 = vand.u32 %v180, %v198
  %v263 = vand.u32 %v181, %v198
  %v266 = vand.u32 %v182, %v198
  %v269 = vand.u32 %v183, %v198
  %v272 = vand.u32 %v184, %v198
  %v275 = vand.u32 %v185, %v198
  %v278 = vand.u32 %v186, %v198
  %v281 = vand.u32 %v187, %v198
  %v284 = vand.u32 %v188, %v198
  %v287 = vand.u32 %v189, %v198
  %v290 = vand.u32 %v190, %v198
  %292 = vmatprep.subr.bf16.mxu0 %v203
  %293 = vmatpush1.bf16.msra.mxu0 %v200
  %294 = vmatprep.subr.bf16.mxu0 0
  %295 = vmatpush1.bf16.msra.mxu0 0
  %296 = vmatprep.subr.bf16.mxu0 0
  %297 = vmatpush1.bf16.msra.mxu0 0
  %298 = vmatprep.subr.bf16.mxu0 0
  %299 = vmatpush1.bf16.msra.mxu0 0
  %300 = vmatprep.subr.bf16.mxu0 0
  %301 = vmatpush1.bf16.msra.mxu0 0
  %302 = vmatprep.subr.bf16.mxu0 0
  %303 = vmatpush1.bf16.msra.mxu0 0
  %304 = vmatprep.subr.bf16.mxu0 0
  %305 = vmatpush1.bf16.msra.mxu0 0
  %306 = vmatprep.subr.bf16.mxu0 0
  %307 = vmatpush1.bf16.msra.mxu0 0
  %308 = vmatprep.subr.bf16.mxu0 0
  %309 = vmatpush1.bf16.msra.mxu0 0
  %310 = vmatprep.subr.bf16.mxu0 0
  %311 = vmatpush1.bf16.msra.mxu0 0
  %312 = vmatprep.subr.bf16.mxu0 0
  %313 = vmatpush1.bf16.msra.mxu0 0
  %314 = vmatprep.subr.bf16.mxu0 0
  %315 = vmatpush1.bf16.msra.mxu0 0
  %316 = vmatprep.subr.bf16.mxu0 0
  %317 = vmatpush1.bf16.msra.mxu0 0
  %318 = vmatprep.subr.bf16.mxu0 0
  %319 = vmatpush1.bf16.msra.mxu0 0
  %320 = vmatprep.subr.bf16.mxu0 0
  %321 = vmatpush1.bf16.msra.mxu0 0
  %322 = vmatprep.subr.bf16.mxu0 0
  %323 = vmatpush1.bf16.msra.mxu0 0
  %324 = vmatprep.mubr.bf16.mxu0 0
  %325 = vmatmul.mubr.bf16.gmra.mrb[0].mxu0 %v193
  %v326 = vpop.f32.mrb[0].mxu0
  %v327 = vadd.f32 %v54, %v326
  %v328 = vpop.f32.mrb[0].mxu0
  %v329 = vadd.f32 %v54, %v328
  %v330 = vpop.f32.mrb[0].mxu0
  %v331 = vadd.f32 %v59, %v330
  %v332 = vpop.f32.mrb[0].mxu0
  %v333 = vadd.f32 %v59, %v332
  %334 = vdwg.mxu0
  %335 = vmatprep.subr.bf16.mxu0 %v209
  %336 = vmatpush1.bf16.msra.mxu0 %v206
  %337 = vmatprep.subr.bf16.mxu0 0
  %338 = vmatpush1.bf16.msra.mxu0 0
  %339 = vmatprep.subr.bf16.mxu0 0
  %340 = vmatpush1.bf16.msra.mxu0 0
  %341 = vmatprep.subr.bf16.mxu0 0
  %342 = vmatpush1.bf16.msra.mxu0 0
  %343 = vmatprep.subr.bf16.mxu0 0
  %344 = vmatpush1.bf16.msra.mxu0 0
  %345 = vmatprep.subr.bf16.mxu0 0
  %346 = vmatpush1.bf16.msra.mxu0 0
  %347 = vmatprep.subr.bf16.mxu0 0
  %348 = vmatpush1.bf16.msra.mxu0 0
  %349 = vmatprep.subr.bf16.mxu0 0
  %350 = vmatpush1.bf16.msra.mxu0 0
  %351 = vmatprep.subr.bf16.mxu0 0
  %352 = vmatpush1.bf16.msra.mxu0 0
  %353 = vmatprep.subr.bf16.mxu0 0
  %354 = vmatpush1.bf16.msra.mxu0 0
  %355 = vmatprep.subr.bf16.mxu0 0
  %356 = vmatpush1.bf16.msra.mxu0 0
  %357 = vmatprep.subr.bf16.mxu0 0
  %358 = vmatpush1.bf16.msra.mxu0 0
  %359 = vmatprep.subr.bf16.mxu0 0
  %360 = vmatpush1.bf16.msra.mxu0 0
  %361 = vmatprep.subr.bf16.mxu0 0
  %362 = vmatpush1.bf16.msra.mxu0 0
  %363 = vmatprep.subr.bf16.mxu0 0
  %364 = vmatpush1.bf16.msra.mxu0 0
  %365 = vmatprep.subr.bf16.mxu0 0
  %366 = vmatpush1.bf16.msra.mxu0 0
  %367 = vmatprep.mubr.bf16.mxu0 0
  %368 = vmatmul.mubr.bf16.gmra.mrb[0].mxu0 %v193
  %v369 = vpop.f32.mrb[0].mxu0
  %v370 = vadd.f32 %v54, %v369
  %v371 = vpop.f32.mrb[0].mxu0
  %v372 = vadd.f32 %v54, %v371
  %v373 = vpop.f32.mrb[0].mxu0
  %v374 = vadd.f32 %v59, %v373
  %v375 = vpop.f32.mrb[0].mxu0
  %v376 = vadd.f32 %v59, %v375
  %377 = vdwg.mxu0
  %378 = vmatprep.subr.bf16.mxu0 %v215
  %379 = vmatpush1.bf16.msra.mxu0 %v212
  %380 = vmatprep.subr.bf16.mxu0 0
  %381 = vmatpush1.bf16.msra.mxu0 0
  %382 = vmatprep.subr.bf16.mxu0 0
  %383 = vmatpush1.bf16.msra.mxu0 0
  %384 = vmatprep.subr.bf16.mxu0 0
  %385 = vmatpush1.bf16.msra.mxu0 0
  %386 = vmatprep.subr.bf16.mxu0 0
  %387 = vmatpush1.bf16.msra.mxu0 0
  %388 = vmatprep.subr.bf16.mxu0 0
  %389 = vmatpush1.bf16.msra.mxu0 0
  %390 = vmatprep.subr.bf16.mxu0 0
  %391 = vmatpush1.bf16.msra.mxu0 0
  %392 = vmatprep.subr.bf16.mxu0 0
  %393 = vmatpush1.bf16.msra.mxu0 0
  %394 = vmatprep.subr.bf16.mxu0 0
  %395 = vmatpush1.bf16.msra.mxu0 0
  %396 = vmatprep.subr.bf16.mxu0 0
  %397 = vmatpush1.bf16.msra.mxu0 0
  %398 = vmatprep.subr.bf16.mxu0 0
  %399 = vmatpush1.bf16.msra.mxu0 0
  %400 = vmatprep.subr.bf16.mxu0 0
  %401 = vmatpush1.bf16.msra.mxu0 0
  %402 = vmatprep.subr.bf16.mxu0 0
  %403 = vmatpush1.bf16.msra.mxu0 0
  %404 = vmatprep.subr.bf16.mxu0 0
  %405 = vmatpush1.bf16.msra.mxu0 0
  %406 = vmatprep.subr.bf16.mxu0 0
  %407 = vmatpush1.bf16.msra.mxu0 0
  %408 = vmatprep.subr.bf16.mxu0 0
  %409 = vmatpush1.bf16.msra.mxu0 0
  %410 = vmatprep.mubr.bf16.mxu0 0
  %411 = vmatmul.mubr.bf16.gmra.mrb[0].mxu0 %v193
  %v412 = vpop.f32.mrb[0].mxu0
  %v413 = vadd.f32 %v54, %v412
  %v414 = vpop.f32.mrb[0].mxu0
  %v415 = vadd.f32 %v54, %v414
  %v416 = vpop.f32.mrb[0].mxu0
  %v417 = vadd.f32 %v59, %v416
  %v418 = vpop.f32.mrb[0].mxu0
  %v419 = vadd.f32 %v59, %v418
  %420 = vdwg.mxu0
  %421 = vmatprep.subr.bf16.mxu0 %v221
  %422 = vmatpush1.bf16.msra.mxu0 %v218
  %423 = vmatprep.subr.bf16.mxu0 0
  %424 = vmatpush1.bf16.msra.mxu0 0
  %425 = vmatprep.subr.bf16.mxu0 0
  %426 = vmatpush1.bf16.msra.mxu0 0
  %427 = vmatprep.subr.bf16.mxu0 0
  %428 = vmatpush1.bf16.msra.mxu0 0
  %429 = vmatprep.subr.bf16.mxu0 0
  %430 = vmatpush1.bf16.msra.mxu0 0
  %431 = vmatprep.subr.bf16.mxu0 0
  %432 = vmatpush1.bf16.msra.mxu0 0
  %433 = vmatprep.subr.bf16.mxu0 0
  %434 = vmatpush1.bf16.msra.mxu0 0
  %435 = vmatprep.subr.bf16.mxu0 0
  %436 = vmatpush1.bf16.msra.mxu0 0
  %437 = vmatprep.subr.bf16.mxu0 0
  %438 = vmatpush1.bf16.msra.mxu0 0
  %439 = vmatprep.subr.bf16.mxu0 0
  %440 = vmatpush1.bf16.msra.mxu0 0
  %441 = vmatprep.subr.bf16.mxu0 0
  %442 = vmatpush1.bf16.msra.mxu0 0
  %443 = vmatprep.subr.bf16.mxu0 0
  %444 = vmatpush1.bf16.msra.mxu0 0
  %445 = vmatprep.subr.bf16.mxu0 0
  %446 = vmatpush1.bf16.msra.mxu0 0
  %447 = vmatprep.subr.bf16.mxu0 0
  %448 = vmatpush1.bf16.msra.mxu0 0
  %449 = vmatprep.subr.bf16.mxu0 0
  %450 = vmatpush1.bf16.msra.mxu0 0
  %451 = vmatprep.subr.bf16.mxu0 0
  %452 = vmatpush1.bf16.msra.mxu0 0
  %453 = vmatprep.mubr.bf16.mxu0 0
  %454 = vmatmul.mubr.bf16.gmra.mrb[0].mxu0 %v193
  %v455 = vpop.f32.mrb[0].mxu0
  %v456 = vadd.f32 %v54, %v455
  %v457 = vpop.f32.mrb[0].mxu0
  %v458 = vadd.f32 %v54, %v457
  %v459 = vpop.f32.mrb[0].mxu0
  %v460 = vadd.f32 %v59, %v459
  %v461 = vpop.f32.mrb[0].mxu0
  %v462 = vadd.f32 %v59, %v461
  %463 = vdwg.mxu0
  %464 = vmatprep.subr.bf16.mxu0 %v227
  %465 = vmatpush1.bf16.msra.mxu0 %v224
  %466 = vmatprep.subr.bf16.mxu0 0
  %467 = vmatpush1.bf16.msra.mxu0 0
  %468 = vmatprep.subr.bf16.mxu0 0
  %469 = vmatpush1.bf16.msra.mxu0 0
  %470 = vmatprep.subr.bf16.mxu0 0
  %471 = vmatpush1.bf16.msra.mxu0 0
  %472 = vmatprep.subr.bf16.mxu0 0
  %473 = vmatpush1.bf16.msra.mxu0 0
  %474 = vmatprep.subr.bf16.mxu0 0
  %475 = vmatpush1.bf16.msra.mxu0 0
  %476 = vmatprep.subr.bf16.mxu0 0
  %477 = vmatpush1.bf16.msra.mxu0 0
  %478 = vmatprep.subr.bf16.mxu0 0
  %479 = vmatpush1.bf16.msra.mxu0 0
  %480 = vmatprep.subr.bf16.mxu0 0
  %481 = vmatpush1.bf16.msra.mxu0 0
  %482 = vmatprep.subr.bf16.mxu0 0
  %483 = vmatpush1.bf16.msra.mxu0 0
  %484 = vmatprep.subr.bf16.mxu0 0
  %485 = vmatpush1.bf16.msra.mxu0 0
  %486 = vmatprep.subr.bf16.mxu0 0
  %487 = vmatpush1.bf16.msra.mxu0 0
  %488 = vmatprep.subr.bf16.mxu0 0
  %489 = vmatpush1.bf16.msra.mxu0 0
  %490 = vmatprep.subr.bf16.mxu0 0
  %491 = vmatpush1.bf16.msra.mxu0 0
  %492 = vmatprep.subr.bf16.mxu0 0
  %493 = vmatpush1.bf16.msra.mxu0 0
  %494 = vmatprep.subr.bf16.mxu0 0
  %495 = vmatpush1.bf16.msra.mxu0 0
  %496 = vmatprep.mubr.bf16.mxu0 0
  %497 = vmatmul.mubr.bf16.gmra.mrb[0].mxu0 %v193
  %v498 = vpop.f32.mrb[0].mxu0
  %v499 = vadd.f32 %v54, %v498
  %v500 = vpop.f32.mrb[0].mxu0
  %v501 = vadd.f32 %v54, %v500
  %v502 = vpop.f32.mrb[0].mxu0
  %v503 = vadd.f32 %v59, %v502
  %v504 = vpop.f32.mrb[0].mxu0
  %v505 = vadd.f32 %v59, %v504
  %506 = vdwg.mxu0
  %507 = vmatprep.subr.bf16.mxu0 %v233
  %508 = vmatpush1.bf16.msra.mxu0 %v230
  %509 = vmatprep.subr.bf16.mxu0 0
  %510 = vmatpush1.bf16.msra.mxu0 0
  %511 = vmatprep.subr.bf16.mxu0 0
  %512 = vmatpush1.bf16.msra.mxu0 0
  %513 = vmatprep.subr.bf16.mxu0 0
  %514 = vmatpush1.bf16.msra.mxu0 0
  %515 = vmatprep.subr.bf16.mxu0 0
  %516 = vmatpush1.bf16.msra.mxu0 0
  %517 = vmatprep.subr.bf16.mxu0 0
  %518 = vmatpush1.bf16.msra.mxu0 0
  %519 = vmatprep.subr.bf16.mxu0 0
  %520 = vmatpush1.bf16.msra.mxu0 0
  %521 = vmatprep.subr.bf16.mxu0 0
  %522 = vmatpush1.bf16.msra.mxu0 0
  %523 = vmatprep.subr.bf16.mxu0 0
  %524 = vmatpush1.bf16.msra.mxu0 0
  %525 = vmatprep.subr.bf16.mxu0 0
  %526 = vmatpush1.bf16.msra.mxu0 0
  %527 = vmatprep.subr.bf16.mxu0 0
  %528 = vmatpush1.bf16.msra.mxu0 0
  %529 = vmatprep.subr.bf16.mxu0 0
  %530 = vmatpush1.bf16.msra.mxu0 0
  %531 = vmatprep.subr.bf16.mxu0 0
  %532 = vmatpush1.bf16.msra.mxu0 0
  %533 = vmatprep.subr.bf16.mxu0 0
  %534 = vmatpush1.bf16.msra.mxu0 0
  %535 = vmatprep.subr.bf16.mxu0 0
  %536 = vmatpush1.bf16.msra.mxu0 0
  %537 = vmatprep.subr.bf16.mxu0 0
  %538 = vmatpush1.bf16.msra.mxu0 0
  %539 = vmatprep.mubr.bf16.mxu0 0
  %540 = vmatmul.mubr.bf16.gmra.mrb[0].mxu0 %v193
  %v541 = vpop.f32.mrb[0].mxu0
  %v542 = vadd.f32 %v54, %v541
  %v543 = vpop.f32.mrb[0].mxu0
  %v544 = vadd.f32 %v54, %v543
  %v545 = vpop.f32.mrb[0].mxu0
  %v546 = vadd.f32 %v59, %v545
  %v547 = vpop.f32.mrb[0].mxu0
  %v548 = vadd.f32 %v59, %v547
  %549 = vdwg.mxu0
  %550 = vmatprep.subr.bf16.mxu0 %v239
  %551 = vmatpush1.bf16.msra.mxu0 %v236
  %552 = vmatprep.subr.bf16.mxu0 0
  %553 = vmatpush1.bf16.msra.mxu0 0
  %554 = vmatprep.subr.bf16.mxu0 0
  %555 = vmatpush1.bf16.msra.mxu0 0
  %556 = vmatprep.subr.bf16.mxu0 0
  %557 = vmatpush1.bf16.msra.mxu0 0
  %558 = vmatprep.subr.bf16.mxu0 0
  %559 = vmatpush1.bf16.msra.mxu0 0
  %560 = vmatprep.subr.bf16.mxu0 0
  %561 = vmatpush1.bf16.msra.mxu0 0
  %562 = vmatprep.subr.bf16.mxu0 0
  %563 = vmatpush1.bf16.msra.mxu0 0
  %564 = vmatprep.subr.bf16.mxu0 0
  %565 = vmatpush1.bf16.msra.mxu0 0
  %566 = vmatprep.subr.bf16.mxu0 0
  %567 = vmatpush1.bf16.msra.mxu0 0
  %568 = vmatprep.subr.bf16.mxu0 0
  %569 = vmatpush1.bf16.msra.mxu0 0
  %570 = vmatprep.subr.bf16.mxu0 0
  %571 = vmatpush1.bf16.msra.mxu0 0
  %572 = vmatprep.subr.bf16.mxu0 0
  %573 = vmatpush1.bf16.msra.mxu0 0
  %574 = vmatprep.subr.bf16.mxu0 0
  %575 = vmatpush1.bf16.msra.mxu0 0
  %576 = vmatprep.subr.bf16.mxu0 0
  %577 = vmatpush1.bf16.msra.mxu0 0
  %578 = vmatprep.subr.bf16.mxu0 0
  %579 = vmatpush1.bf16.msra.mxu0 0
  %580 = vmatprep.subr.bf16.mxu0 0
  %581 = vmatpush1.bf16.msra.mxu0 0
  %582 = vmatprep.mubr.bf16.mxu0 0
  %583 = vmatmul.mubr.bf16.gmra.mrb[0].mxu0 %v193
  %v584 = vpop.f32.mrb[0].mxu0
  %v585 = vadd.f32 %v54, %v584
  %v586 = vpop.f32.mrb[0].mxu0
  %v587 = vadd.f32 %v54, %v586
  %v588 = vpop.f32.mrb[0].mxu0
  %v589 = vadd.f32 %v59, %v588
  %v590 = vpop.f32.mrb[0].mxu0
  %v591 = vadd.f32 %v59, %v590
  %592 = vdwg.mxu0
  %593 = vmatprep.subr.bf16.mxu0 %v245
  %594 = vmatpush1.bf16.msra.mxu0 %v242
  %595 = vmatprep.subr.bf16.mxu0 0
  %596 = vmatpush1.bf16.msra.mxu0 0
  %597 = vmatprep.subr.bf16.mxu0 0
  %598 = vmatpush1.bf16.msra.mxu0 0
  %599 = vmatprep.subr.bf16.mxu0 0
  %600 = vmatpush1.bf16.msra.mxu0 0
  %601 = vmatprep.subr.bf16.mxu0 0
  %602 = vmatpush1.bf16.msra.mxu0 0
  %603 = vmatprep.subr.bf16.mxu0 0
  %604 = vmatpush1.bf16.msra.mxu0 0
  %605 = vmatprep.subr.bf16.mxu0 0
  %606 = vmatpush1.bf16.msra.mxu0 0
  %607 = vmatprep.subr.bf16.mxu0 0
  %608 = vmatpush1.bf16.msra.mxu0 0
  %609 = vmatprep.subr.bf16.mxu0 0
  %610 = vmatpush1.bf16.msra.mxu0 0
  %611 = vmatprep.subr.bf16.mxu0 0
  %612 = vmatpush1.bf16.msra.mxu0 0
  %613 = vmatprep.subr.bf16.mxu0 0
  %614 = vmatpush1.bf16.msra.mxu0 0
  %615 = vmatprep.subr.bf16.mxu0 0
  %616 = vmatpush1.bf16.msra.mxu0 0
  %617 = vmatprep.subr.bf16.mxu0 0
  %618 = vmatpush1.bf16.msra.mxu0 0
  %619 = vmatprep.subr.bf16.mxu0 0
  %620 = vmatpush1.bf16.msra.mxu0 0
  %621 = vmatprep.subr.bf16.mxu0 0
  %622 = vmatpush1.bf16.msra.mxu0 0
  %623 = vmatprep.subr.bf16.mxu0 0
  %624 = vmatpush1.bf16.msra.mxu0 0
  %625 = vmatprep.mubr.bf16.mxu0 0
  %626 = vmatmul.mubr.bf16.gmra.mrb[0].mxu0 %v193
  %v627 = vpop.f32.mrb[0].mxu0
  %v628 = vadd.f32 %v54, %v627
  %v629 = vpop.f32.mrb[0].mxu0
  %v630 = vadd.f32 %v54, %v629
  %v631 = vpop.f32.mrb[0].mxu0
  %v632 = vadd.f32 %v59, %v631
  %v633 = vpop.f32.mrb[0].mxu0
  %v634 = vadd.f32 %v59, %v633
  %635 = vdwg.mxu0
  %636 = vmatprep.subr.bf16.mxu0 %v251
  %637 = vmatpush1.bf16.msra.mxu0 %v248
  %638 = vmatprep.subr.bf16.mxu0 0
  %639 = vmatpush1.bf16.msra.mxu0 0
  %640 = vmatprep.subr.bf16.mxu0 0
  %641 = vmatpush1.bf16.msra.mxu0 0
  %642 = vmatprep.subr.bf16.mxu0 0
  %643 = vmatpush1.bf16.msra.mxu0 0
  %644 = vmatprep.subr.bf16.mxu0 0
  %645 = vmatpush1.bf16.msra.mxu0 0
  %646 = vmatprep.subr.bf16.mxu0 0
  %647 = vmatpush1.bf16.msra.mxu0 0
  %648 = vmatprep.subr.bf16.mxu0 0
  %649 = vmatpush1.bf16.msra.mxu0 0
  %650 = vmatprep.subr.bf16.mxu0 0
  %651 = vmatpush1.bf16.msra.mxu0 0
  %652 = vmatprep.subr.bf16.mxu0 0
  %653 = vmatpush1.bf16.msra.mxu0 0
  %654 = vmatprep.subr.bf16.mxu0 0
  %655 = vmatpush1.bf16.msra.mxu0 0
  %656 = vmatprep.subr.bf16.mxu0 0
  %657 = vmatpush1.bf16.msra.mxu0 0
  %658 = vmatprep.subr.bf16.mxu0 0
  %659 = vmatpush1.bf16.msra.mxu0 0
  %660 = vmatprep.subr.bf16.mxu0 0
  %661 = vmatpush1.bf16.msra.mxu0 0
  %662 = vmatprep.subr.bf16.mxu0 0
  %663 = vmatpush1.bf16.msra.mxu0 0
  %664 = vmatprep.subr.bf16.mxu0 0
  %665 = vmatpush1.bf16.msra.mxu0 0
  %666 = vmatprep.subr.bf16.mxu0 0
  %667 = vmatpush1.bf16.msra.mxu0 0
  %668 = vmatprep.mubr.bf16.mxu0 0
  %669 = vmatmul.mubr.bf16.gmra.mrb[0].mxu0 %v193
  %v670 = vpop.f32.mrb[0].mxu0
  %v671 = vadd.f32 %v54, %v670
  %v672 = vpop.f32.mrb[0].mxu0
  %v673 = vadd.f32 %v54, %v672
  %v674 = vpop.f32.mrb[0].mxu0
  %v675 = vadd.f32 %v59, %v674
  %v676 = vpop.f32.mrb[0].mxu0
  %v677 = vadd.f32 %v59, %v676
  %678 = vdwg.mxu0
  %679 = vmatprep.subr.bf16.mxu0 %v257
  %680 = vmatpush1.bf16.msra.mxu0 %v254
  %681 = vmatprep.subr.bf16.mxu0 0
  %682 = vmatpush1.bf16.msra.mxu0 0
  %683 = vmatprep.subr.bf16.mxu0 0
  %684 = vmatpush1.bf16.msra.mxu0 0
  %685 = vmatprep.subr.bf16.mxu0 0
  %686 = vmatpush1.bf16.msra.mxu0 0
  %687 = vmatprep.subr.bf16.mxu0 0
  %688 = vmatpush1.bf16.msra.mxu0 0
  %689 = vmatprep.subr.bf16.mxu0 0
  %690 = vmatpush1.bf16.msra.mxu0 0
  %691 = vmatprep.subr.bf16.mxu0 0
  %692 = vmatpush1.bf16.msra.mxu0 0
  %693 = vmatprep.subr.bf16.mxu0 0
  %694 = vmatpush1.bf16.msra.mxu0 0
  %695 = vmatprep.subr.bf16.mxu0 0
  %696 = vmatpush1.bf16.msra.mxu0 0
  %697 = vmatprep.subr.bf16.mxu0 0
  %698 = vmatpush1.bf16.msra.mxu0 0
  %699 = vmatprep.subr.bf16.mxu0 0
  %700 = vmatpush1.bf16.msra.mxu0 0
  %701 = vmatprep.subr.bf16.mxu0 0
  %702 = vmatpush1.bf16.msra.mxu0 0
  %703 = vmatprep.subr.bf16.mxu0 0
  %704 = vmatpush1.bf16.msra.mxu0 0
  %705 = vmatprep.subr.bf16.mxu0 0
  %706 = vmatpush1.bf16.msra.mxu0 0
  %707 = vmatprep.subr.bf16.mxu0 0
  %708 = vmatpush1.bf16.msra.mxu0 0
  %709 = vmatprep.subr.bf16.mxu0 0
  %710 = vmatpush1.bf16.msra.mxu0 0
  %711 = vmatprep.mubr.bf16.mxu0 0
  %712 = vmatmul.mubr.bf16.gmra.mrb[0].mxu0 %v193
  %v713 = vpop.f32.mrb[0].mxu0
  %v714 = vadd.f32 %v54, %v713
  %v715 = vpop.f32.mrb[0].mxu0
  %v716 = vadd.f32 %v54, %v715
  %v717 = vpop.f32.mrb[0].mxu0
  %v718 = vadd.f32 %v59, %v717
  %v719 = vpop.f32.mrb[0].mxu0
  %v720 = vadd.f32 %v59, %v719
  %721 = vdwg.mxu0
  %722 = vmatprep.subr.bf16.mxu0 %v263
  %723 = vmatpush1.bf16.msra.mxu0 %v260
  %724 = vmatprep.subr.bf16.mxu0 0
  %725 = vmatpush1.bf16.msra.mxu0 0
  %726 = vmatprep.subr.bf16.mxu0 0
  %727 = vmatpush1.bf16.msra.mxu0 0
  %728 = vmatprep.subr.bf16.mxu0 0
  %729 = vmatpush1.bf16.msra.mxu0 0
  %730 = vmatprep.subr.bf16.mxu0 0
  %731 = vmatpush1.bf16.msra.mxu0 0
  %732 = vmatprep.subr.bf16.mxu0 0
  %733 = vmatpush1.bf16.msra.mxu0 0
  %734 = vmatprep.subr.bf16.mxu0 0
  %735 = vmatpush1.bf16.msra.mxu0 0
  %736 = vmatprep.subr.bf16.mxu0 0
  %737 = vmatpush1.bf16.msra.mxu0 0
  %738 = vmatprep.subr.bf16.mxu0 0
  %739 = vmatpush1.bf16.msra.mxu0 0
  %740 = vmatprep.subr.bf16.mxu0 0
  %741 = vmatpush1.bf16.msra.mxu0 0
  %742 = vmatprep.subr.bf16.mxu0 0
  %743 = vmatpush1.bf16.msra.mxu0 0
  %744 = vmatprep.subr.bf16.mxu0 0
  %745 = vmatpush1.bf16.msra.mxu0 0
  %746 = vmatprep.subr.bf16.mxu0 0
  %747 = vmatpush1.bf16.msra.mxu0 0
  %748 = vmatprep.subr.bf16.mxu0 0
  %749 = vmatpush1.bf16.msra.mxu0 0
  %750 = vmatprep.subr.bf16.mxu0 0
  %751 = vmatpush1.bf16.msra.mxu0 0
  %752 = vmatprep.subr.bf16.mxu0 0
  %753 = vmatpush1.bf16.msra.mxu0 0
  %754 = vmatprep.mubr.bf16.mxu0 0
  %755 = vmatmul.mubr.bf16.gmra.mrb[0].mxu0 %v193
  %v756 = vpop.f32.mrb[0].mxu0
  %v757 = vadd.f32 %v54, %v756
  %v758 = vpop.f32.mrb[0].mxu0
  %v759 = vadd.f32 %v54, %v758
  %v760 = vpop.f32.mrb[0].mxu0
  %v761 = vadd.f32 %v59, %v760
  %v762 = vpop.f32.mrb[0].mxu0
  %v763 = vadd.f32 %v59, %v762
  %764 = vdwg.mxu0
  %765 = vmatprep.subr.bf16.mxu0 %v269
  %766 = vmatpush1.bf16.msra.mxu0 %v266
  %767 = vmatprep.subr.bf16.mxu0 0
  %768 = vmatpush1.bf16.msra.mxu0 0
  %769 = vmatprep.subr.bf16.mxu0 0
  %770 = vmatpush1.bf16.msra.mxu0 0
  %771 = vmatprep.subr.bf16.mxu0 0
  %772 = vmatpush1.bf16.msra.mxu0 0
  %773 = vmatprep.subr.bf16.mxu0 0
  %774 = vmatpush1.bf16.msra.mxu0 0
  %775 = vmatprep.subr.bf16.mxu0 0
  %776 = vmatpush1.bf16.msra.mxu0 0
  %777 = vmatprep.subr.bf16.mxu0 0
  %778 = vmatpush1.bf16.msra.mxu0 0
  %779 = vmatprep.subr.bf16.mxu0 0
  %780 = vmatpush1.bf16.msra.mxu0 0
  %781 = vmatprep.subr.bf16.mxu0 0
  %782 = vmatpush1.bf16.msra.mxu0 0
  %783 = vmatprep.subr.bf16.mxu0 0
  %784 = vmatpush1.bf16.msra.mxu0 0
  %785 = vmatprep.subr.bf16.mxu0 0
  %786 = vmatpush1.bf16.msra.mxu0 0
  %787 = vmatprep.subr.bf16.mxu0 0
  %788 = vmatpush1.bf16.msra.mxu0 0
  %789 = vmatprep.subr.bf16.mxu0 0
  %790 = vmatpush1.bf16.msra.mxu0 0
  %791 = vmatprep.subr.bf16.mxu0 0
  %792 = vmatpush1.bf16.msra.mxu0 0
  %793 = vmatprep.subr.bf16.mxu0 0
  %794 = vmatpush1.bf16.msra.mxu0 0
  %795 = vmatprep.subr.bf16.mxu0 0
  %796 = vmatpush1.bf16.msra.mxu0 0
  %797 = vmatprep.mubr.bf16.mxu0 0
  %798 = vmatmul.mubr.bf16.gmra.mrb[0].mxu0 %v193
  %v799 = vpop.f32.mrb[0].mxu0
  %v800 = vadd.f32 %v54, %v799
  %v801 = vpop.f32.mrb[0].mxu0
  %v802 = vadd.f32 %v54, %v801
  %v803 = vpop.f32.mrb[0].mxu0
  %v804 = vadd.f32 %v59, %v803
  %v805 = vpop.f32.mrb[0].mxu0
  %v806 = vadd.f32 %v59, %v805
  %807 = vdwg.mxu0
  %808 = vmatprep.subr.bf16.mxu0 %v275
  %809 = vmatpush1.bf16.msra.mxu0 %v272
  %810 = vmatprep.subr.bf16.mxu0 0
  %811 = vmatpush1.bf16.msra.mxu0 0
  %812 = vmatprep.subr.bf16.mxu0 0
  %813 = vmatpush1.bf16.msra.mxu0 0
  %814 = vmatprep.subr.bf16.mxu0 0
  %815 = vmatpush1.bf16.msra.mxu0 0
  %816 = vmatprep.subr.bf16.mxu0 0
  %817 = vmatpush1.bf16.msra.mxu0 0
  %818 = vmatprep.subr.bf16.mxu0 0
  %819 = vmatpush1.bf16.msra.mxu0 0
  %820 = vmatprep.subr.bf16.mxu0 0
  %821 = vmatpush1.bf16.msra.mxu0 0
  %822 = vmatprep.subr.bf16.mxu0 0
  %823 = vmatpush1.bf16.msra.mxu0 0
  %824 = vmatprep.subr.bf16.mxu0 0
  %825 = vmatpush1.bf16.msra.mxu0 0
  %826 = vmatprep.subr.bf16.mxu0 0
  %827 = vmatpush1.bf16.msra.mxu0 0
  %828 = vmatprep.subr.bf16.mxu0 0
  %829 = vmatpush1.bf16.msra.mxu0 0
  %830 = vmatprep.subr.bf16.mxu0 0
  %831 = vmatpush1.bf16.msra.mxu0 0
  %832 = vmatprep.subr.bf16.mxu0 0
  %833 = vmatpush1.bf16.msra.mxu0 0
  %834 = vmatprep.subr.bf16.mxu0 0
  %835 = vmatpush1.bf16.msra.mxu0 0
  %836 = vmatprep.subr.bf16.mxu0 0
  %837 = vmatpush1.bf16.msra.mxu0 0
  %838 = vmatprep.subr.bf16.mxu0 0
  %839 = vmatpush1.bf16.msra.mxu0 0
  %840 = vmatprep.mubr.bf16.mxu0 0
  %841 = vmatmul.mubr.bf16.gmra.mrb[0].mxu0 %v193
  %v842 = vpop.f32.mrb[0].mxu0
  %v843 = vadd.f32 %v54, %v842
  %v844 = vpop.f32.mrb[0].mxu0
  %v845 = vadd.f32 %v54, %v844
  %v846 = vpop.f32.mrb[0].mxu0
  %v847 = vadd.f32 %v59, %v846
  %v848 = vpop.f32.mrb[0].mxu0
  %v849 = vadd.f32 %v59, %v848
  %850 = vdwg.mxu0
  %851 = vmatprep.subr.bf16.mxu0 %v281
  %852 = vmatpush1.bf16.msra.mxu0 %v278
  %853 = vmatprep.subr.bf16.mxu0 0
  %854 = vmatpush1.bf16.msra.mxu0 0
  %855 = vmatprep.subr.bf16.mxu0 0
  %856 = vmatpush1.bf16.msra.mxu0 0
  %857 = vmatprep.subr.bf16.mxu0 0
  %858 = vmatpush1.bf16.msra.mxu0 0
  %859 = vmatprep.subr.bf16.mxu0 0
  %860 = vmatpush1.bf16.msra.mxu0 0
  %861 = vmatprep.subr.bf16.mxu0 0
  %862 = vmatpush1.bf16.msra.mxu0 0
  %863 = vmatprep.subr.bf16.mxu0 0
  %864 = vmatpush1.bf16.msra.mxu0 0
  %865 = vmatprep.subr.bf16.mxu0 0
  %866 = vmatpush1.bf16.msra.mxu0 0
  %867 = vmatprep.subr.bf16.mxu0 0
  %868 = vmatpush1.bf16.msra.mxu0 0
  %869 = vmatprep.subr.bf16.mxu0 0
  %870 = vmatpush1.bf16.msra.mxu0 0
  %871 = vmatprep.subr.bf16.mxu0 0
  %872 = vmatpush1.bf16.msra.mxu0 0
  %873 = vmatprep.subr.bf16.mxu0 0
  %874 = vmatpush1.bf16.msra.mxu0 0
  %875 = vmatprep.subr.bf16.mxu0 0
  %876 = vmatpush1.bf16.msra.mxu0 0
  %877 = vmatprep.subr.bf16.mxu0 0
  %878 = vmatpush1.bf16.msra.mxu0 0
  %879 = vmatprep.subr.bf16.mxu0 0
  %880 = vmatpush1.bf16.msra.mxu0 0
  %881 = vmatprep.subr.bf16.mxu0 0
  %882 = vmatpush1.bf16.msra.mxu0 0
  %883 = vmatprep.mubr.bf16.mxu0 0
  %884 = vmatmul.mubr.bf16.gmra.mrb[0].mxu0 %v193
  %v885 = vpop.f32.mrb[0].mxu0
  %v886 = vadd.f32 %v54, %v885
  %v887 = vpop.f32.mrb[0].mxu0
  %v888 = vadd.f32 %v54, %v887
  %v889 = vpop.f32.mrb[0].mxu0
  %v890 = vadd.f32 %v59, %v889
  %v891 = vpop.f32.mrb[0].mxu0
  %v892 = vadd.f32 %v59, %v891
  %893 = vdwg.mxu0
  %894 = vmatprep.subr.bf16.mxu0 %v287
  %895 = vmatpush1.bf16.msra.mxu0 %v284
  %896 = vmatprep.subr.bf16.mxu0 0
  %897 = vmatpush1.bf16.msra.mxu0 0
  %898 = vmatprep.subr.bf16.mxu0 0
  %899 = vmatpush1.bf16.msra.mxu0 0
  %900 = vmatprep.subr.bf16.mxu0 0
  %901 = vmatpush1.bf16.msra.mxu0 0
  %902 = vmatprep.subr.bf16.mxu0 0
  %903 = vmatpush1.bf16.msra.mxu0 0
  %904 = vmatprep.subr.bf16.mxu0 0
  %905 = vmatpush1.bf16.msra.mxu0 0
  %906 = vmatprep.subr.bf16.mxu0 0
  %907 = vmatpush1.bf16.msra.mxu0 0
  %908 = vmatprep.subr.bf16.mxu0 0
  %909 = vmatpush1.bf16.msra.mxu0 0
  %910 = vmatprep.subr.bf16.mxu0 0
  %911 = vmatpush1.bf16.msra.mxu0 0
  %912 = vmatprep.subr.bf16.mxu0 0
  %913 = vmatpush1.bf16.msra.mxu0 0
  %914 = vmatprep.subr.bf16.mxu0 0
  %915 = vmatpush1.bf16.msra.mxu0 0
  %916 = vmatprep.subr.bf16.mxu0 0
  %917 = vmatpush1.bf16.msra.mxu0 0
  %918 = vmatprep.subr.bf16.mxu0 0
  %919 = vmatpush1.bf16.msra.mxu0 0
  %920 = vmatprep.subr.bf16.mxu0 0
  %921 = vmatpush1.bf16.msra.mxu0 0
  %922 = vmatprep.subr.bf16.mxu0 0
  %923 = vmatpush1.bf16.msra.mxu0 0
  %924 = vmatprep.subr.bf16.mxu0 0
  %925 = vmatpush1.bf16.msra.mxu0 0
  %926 = vmatprep.mubr.bf16.mxu0 0
  %927 = vmatmul.mubr.bf16.gmra.mrb[0].mxu0 %v193
  %v928 = vpop.f32.mrb[0].mxu0
  %v929 = vadd.f32 %v54, %v928
  %v930 = vpop.f32.mrb[0].mxu0
  %v931 = vadd.f32 %v54, %v930
  %v932 = vpop.f32.mrb[0].mxu0
  %v933 = vadd.f32 %v59, %v932
  %v934 = vpop.f32.mrb[0].mxu0
  %v935 = vadd.f32 %v59, %v934
  %936 = vdwg.mxu0
  %937 = vmatprep.subr.bf16.mxu0 0
  %938 = vmatpush1.bf16.msra.mxu0 %v290
  %939 = vmatprep.subr.bf16.mxu0 0
  %940 = vmatpush1.bf16.msra.mxu0 0
  %941 = vmatprep.subr.bf16.mxu0 0
  %942 = vmatpush1.bf16.msra.mxu0 0
  %943 = vmatprep.subr.bf16.mxu0 0
  %944 = vmatpush1.bf16.msra.mxu0 0
  %945 = vmatprep.subr.bf16.mxu0 0
  %946 = vmatpush1.bf16.msra.mxu0 0
  %947 = vmatprep.subr.bf16.mxu0 0
  %948 = vmatpush1.bf16.msra.mxu0 0
  %949 = vmatprep.subr.bf16.mxu0 0
  %950 = vmatpush1.bf16.msra.mxu0 0
  %951 = vmatprep.subr.bf16.mxu0 0
  %952 = vmatpush1.bf16.msra.mxu0 0
  %953 = vmatprep.subr.bf16.mxu0 0
  %954 = vmatpush1.bf16.msra.mxu0 0
  %955 = vmatprep.subr.bf16.mxu0 0
  %956 = vmatpush1.bf16.msra.mxu0 0
  %957 = vmatprep.subr.bf16.mxu0 0
  %958 = vmatpush1.bf16.msra.mxu0 0
  %959 = vmatprep.subr.bf16.mxu0 0
  %960 = vmatpush1.bf16.msra.mxu0 0
  %961 = vmatprep.subr.bf16.mxu0 0
  %962 = vmatpush1.bf16.msra.mxu0 0
  %963 = vmatprep.subr.bf16.mxu0 0
  %964 = vmatpush1.bf16.msra.mxu0 0
  %965 = vmatprep.subr.bf16.mxu0 0
  %966 = vmatpush1.bf16.msra.mxu0 0
  %967 = vmatprep.subr.bf16.mxu0 0
  %968 = vmatpush1.bf16.msra.mxu0 0
  %969 = vmatprep.mubr.bf16.mxu0 0
  %970 = vmatmul.mubr.bf16.gmra.mrb[0].mxu0 %v193
  %v971 = vpop.f32.mrb[0].mxu0
  %v972 = vadd.f32 %v54, %v971
  %v973 = vpop.f32.mrb[0].mxu0
  %v974 = vpop.f32.mrb[0].mxu0
  %v975 = vadd.f32 %v59, %v974
  %v976 = vpop.f32.mrb[0].mxu0
  %977 = vdwg.mxu0
  %v978 = vmax.f32 %v327, 0.0
  %v979 = vmax.f32 %v329, 0.0
  %v980 = vmax.f32 %v370, 0.0
  %v981 = vmax.f32 %v372, 0.0
  %v982 = vmax.f32 %v413, 0.0
  %v983 = vmax.f32 %v415, 0.0
  %v984 = vmax.f32 %v456, 0.0
  %v985 = vmax.f32 %v458, 0.0
  %v986 = vmax.f32 %v499, 0.0
  %v987 = vmax.f32 %v501, 0.0
  %v988 = vmax.f32 %v542, 0.0
  %v989 = vmax.f32 %v544, 0.0
  %v990 = vmax.f32 %v585, 0.0
  %v991 = vmax.f32 %v587, 0.0
  %v992 = vmax.f32 %v628, 0.0
  %v993 = vmax.f32 %v630, 0.0
  %v994 = vmax.f32 %v671, 0.0
  %v995 = vmax.f32 %v673, 0.0
  %v996 = vmax.f32 %v714, 0.0
  %v997 = vmax.f32 %v716, 0.0
  %v998 = vmax.f32 %v757, 0.0
  %v999 = vmax.f32 %v759, 0.0
  %v1000 = vmax.f32 %v800, 0.0
  %v1001 = vmax.f32 %v802, 0.0
  %v1002 = vmax.f32 %v843, 0.0
  %v1003 = vmax.f32 %v845, 0.0
  %v1004 = vmax.f32 %v886, 0.0
  %v1005 = vmax.f32 %v888, 0.0
  %v1006 = vmax.f32 %v929, 0.0
  %v1007 = vmax.f32 %v931, 0.0
  %v1008 = vmax.f32 %v972, 0.0
  %v1009 = vmax.f32 %v331, 0.0
  %v1010 = vmax.f32 %v333, 0.0
  %v1011 = vmax.f32 %v374, 0.0
  %v1012 = vmax.f32 %v376, 0.0
  %v1013 = vmax.f32 %v417, 0.0
  %v1014 = vmax.f32 %v419, 0.0
  %v1015 = vmax.f32 %v460, 0.0
  %v1016 = vmax.f32 %v462, 0.0
  %v1017 = vmax.f32 %v503, 0.0
  %v1018 = vmax.f32 %v505, 0.0
  %v1019 = vmax.f32 %v546, 0.0
  %v1020 = vmax.f32 %v548, 0.0
  %v1021 = vmax.f32 %v589, 0.0
  %v1022 = vmax.f32 %v591, 0.0
  %v1023 = vmax.f32 %v632, 0.0
  %v1024 = vmax.f32 %v634, 0.0
  %v1025 = vmax.f32 %v675, 0.0
  %v1026 = vmax.f32 %v677, 0.0
  %v1027 = vmax.f32 %v718, 0.0
  %v1028 = vmax.f32 %v720, 0.0
  %v1029 = vmax.f32 %v761, 0.0
  %v1030 = vmax.f32 %v763, 0.0
  %v1031 = vmax.f32 %v804, 0.0
  %v1032 = vmax.f32 %v806, 0.0
  %v1033 = vmax.f32 %v847, 0.0
  %v1034 = vmax.f32 %v849, 0.0
  %v1035 = vmax.f32 %v890, 0.0
  %v1036 = vmax.f32 %v892, 0.0
  %v1037 = vmax.f32 %v933, 0.0
  %v1038 = vmax.f32 %v935, 0.0
  %v1039 = vmax.f32 %v975, 0.0
  %1040 = vst [vmem:[%s3] sm:$0xff] %v978
  %1041 = vst [vmem:[%s3 + $0x8] sm:$0xff] %v979
  %1042 = vst [vmem:[%s3 + $0x10] sm:$0xff] %v980
  %1043 = vst [vmem:[%s3 + $0x18] sm:$0xff] %v981
  %1044 = vst [vmem:[%s3 + $0x20] sm:$0xff] %v982
  %1045 = vst [vmem:[%s3 + $0x28] sm:$0xff] %v983
  %1046 = vst [vmem:[%s3 + $0x30] sm:$0xff] %v984
  %1047 = vst [vmem:[%s3 + $0x38] sm:$0xff] %v985
  %1048 = vst [vmem:[%s3 + $0x40] sm:$0xff] %v986
  %1049 = vst [vmem:[%s3 + $0x48] sm:$0xff] %v987
  %1050 = vst [vmem:[%s3 + $0x50] sm:$0xff] %v988
  %1051 = vst [vmem:[%s3 + $0x58] sm:$0xff] %v989
  %1052 = vst [vmem:[%s3 + $0x60] sm:$0xff] %v990
  %1053 = vst [vmem:[%s3 + $0x68] sm:$0xff] %v991
  %1054 = vst [vmem:[%s3 + $0x70] sm:$0xff] %v992
  %1055 = vst [vmem:[%s3 + $0x78] sm:$0xff] %v993
  %1056 = vst [vmem:[%s3 + $0x80] sm:$0xff] %v994
  %1057 = vst [vmem:[%s3 + $0x88] sm:$0xff] %v995
  %1058 = vst [vmem:[%s3 + $0x90] sm:$0xff] %v996
  %1059 = vst [vmem:[%s3 + $0x98] sm:$0xff] %v997
  %1060 = vst [vmem:[%s3 + $0xa0] sm:$0xff] %v998
  %1061 = vst [vmem:[%s3 + $0xa8] sm:$0xff] %v999
  %1062 = vst [vmem:[%s3 + $0xb0] sm:$0xff] %v1000
  %1063 = vst [vmem:[%s3 + $0xb8] sm:$0xff] %v1001
  %1064 = vst [vmem:[%s3 + $0xc0] sm:$0xff] %v1002
  %1065 = vst [vmem:[%s3 + $0xc8] sm:$0xff] %v1003
  %1066 = vst [vmem:[%s3 + $0xd0] sm:$0xff] %v1004
  %1067 = vst [vmem:[%s3 + $0xd8] sm:$0xff] %v1005
  %1068 = vst [vmem:[%s3 + $0xe0] sm:$0xff] %v1006
  %1069 = vst [vmem:[%s3 + $0xe8] sm:$0xff] %v1007
  %vm1070 = vcmask 64512
  %1071 = vst.msk [vmem:[%s3 + $0xf0] sm:$0xff] %vm1070, %v1008
  %1072 = vst [vmem:[%s3 + $0xf8] sm:$0xff] %v1009
  %1073 = vst [vmem:[%s3 + $0x100] sm:$0xff] %v1010
  %1074 = vst [vmem:[%s3 + $0x108] sm:$0xff] %v1011
  %1075 = vst [vmem:[%s3 + $0x110] sm:$0xff] %v1012
  %1076 = vst [vmem:[%s3 + $0x118] sm:$0xff] %v1013
  %1077 = vst [vmem:[%s3 + $0x120] sm:$0xff] %v1014
  %1078 = vst [vmem:[%s3 + $0x128] sm:$0xff] %v1015
  %1079 = vst [vmem:[%s3 + $0x130] sm:$0xff] %v1016
  %1080 = vst [vmem:[%s3 + $0x138] sm:$0xff] %v1017
  %1081 = vst [vmem:[%s3 + $0x140] sm:$0xff] %v1018
  %1082 = vst [vmem:[%s3 + $0x148] sm:$0xff] %v1019
  %1083 = vst [vmem:[%s3 + $0x150] sm:$0xff] %v1020
  %1084 = vst [vmem:[%s3 + $0x158] sm:$0xff] %v1021
  %1085 = vst [vmem:[%s3 + $0x160] sm:$0xff] %v1022
  %1086 = vst [vmem:[%s3 + $0x168] sm:$0xff] %v1023
  %1087 = vst [vmem:[%s3 + $0x170] sm:$0xff] %v1024
  %1088 = vst [vmem:[%s3 + $0x178] sm:$0xff] %v1025
  %1089 = vst [vmem:[%s3 + $0x180] sm:$0xff] %v1026
  %1090 = vst [vmem:[%s3 + $0x188] sm:$0xff] %v1027
  %1091 = vst [vmem:[%s3 + $0x190] sm:$0xff] %v1028
  %1092 = vst [vmem:[%s3 + $0x198] sm:$0xff] %v1029
  %1093 = vst [vmem:[%s3 + $0x1a0] sm:$0xff] %v1030
  %1094 = vst [vmem:[%s3 + $0x1a8] sm:$0xff] %v1031
  %1095 = vst [vmem:[%s3 + $0x1b0] sm:$0xff] %v1032
  %1096 = vst [vmem:[%s3 + $0x1b8] sm:$0xff] %v1033
  %1097 = vst [vmem:[%s3 + $0x1c0] sm:$0xff] %v1034
  %1098 = vst [vmem:[%s3 + $0x1c8] sm:$0xff] %v1035
  %1099 = vst [vmem:[%s3 + $0x1d0] sm:$0xff] %v1036
  %1100 = vst [vmem:[%s3 + $0x1d8] sm:$0xff] %v1037
  %1101 = vst [vmem:[%s3 + $0x1e0] sm:$0xff] %v1038
  %1102 = vst.msk [vmem:[%s3 + $0x1e8] sm:$0xff] %vm1070, %v1039
  // Predicated region
  $region14: #{mfcc_crnn_forward.8} parent=0 // pred_check
    _
  $region15: #{mfcc_crnn_forward.8} parent=0 // pred_check_branch
    %1104 = sbr.rel (0) target = $region17
  $region16: #{mfcc_crnn_forward.8} parent=0 // pred_region
    _
  $region17: #{mfcc_crnn_forward.8} parent=0 // pred_fallthru
    _
  // Predicated region
  $region18: #{mfcc_crnn_forward.8} parent=0 // pred_check
    _
  $region19: #{mfcc_crnn_forward.8} parent=0 // pred_check_branch
    %1106 = sbr.rel (0) target = $region21
  $region20: #{mfcc_crnn_forward.8} parent=0 // pred_region
    _
  $region21: #{mfcc_crnn_forward.8} parent=0 // pred_fallthru
    _

// kernel: mfcc_crnn_forward.9
$region0: #{mfcc_crnn_forward.9}
  #allocation0 [shape = 'u32[]', space=smem, size = 0x4, offset = 0x4, fixed_abs, tag = 'smem constant byte address 0x4 - core index']
  #allocation1 [shape = 'u32[144,128]{1,0:T(1,128)}', space=vmem, size = 0x12000, scoped, tag = 'internal scratch']
  %s0 = inlined_call_operand.vmem [shape: bf16[32,144], index: 0, kind: input, shape index: {}]
  %s1 = inlined_call_operand.vmem [shape: bf16[144,768], index: 1, kind: input, shape index: {}]
  %s2 = inlined_call_operand.vmem [shape: f32[32,1], index: 2, kind: input, shape index: {}]
  %s3 = inlined_call_operand.vmem [shape: f32[32,768], index: 3, kind: output, shape index: {}]
  %s4 = sld [smem:[#allocation0]]
  $region22: #{mfcc_crnn_forward.9} parent=0
    _
  %s6 = ssub.s32 1, %s4
  %s7 = scalar_select 0, %s6, %s4
  // Predicated region
  $region2: #{mfcc_crnn_forward.9} parent=0 // pred_check
    _
  $region3: #{mfcc_crnn_forward.9} parent=0 // pred_check_branch
    %9 = sbr.rel (0) target = $region5
  $region4: #{mfcc_crnn_forward.9} parent=0 // pred_region
    _
  $region5: #{mfcc_crnn_forward.9} parent=0 // pred_fallthru
    _
  // Predicated region
  $region6: #{mfcc_crnn_forward.9} parent=0 // pred_check
    _
  $region7: #{mfcc_crnn_forward.9} parent=0 // pred_check_branch
    %11 = sbr.rel (0) target = $region9
  $region8: #{mfcc_crnn_forward.9} parent=0 // pred_region
    _
  $region9: #{mfcc_crnn_forward.9} parent=0 // pred_fallthru
    _
  // Predicated region
  $region10: #{mfcc_crnn_forward.9} parent=0 // pred_check
    _
  $region11: #{mfcc_crnn_forward.9} parent=0 // pred_check_branch
    %13 = sbr.rel (0) target = $region13
  $region12: #{mfcc_crnn_forward.9} parent=0 // pred_region
    _
  $region13: #{mfcc_crnn_forward.9} parent=0 // pred_fallthru
    _
  %v15 = vld [vmem:[%s0] sm:$0xff]
  %v16 = vld [vmem:[%s0 + $0x8] sm:$0xff]
  %v17 = vld [vmem:[%s0 + $0x10] sm:$0xff]
  %v18 = vld [vmem:[%s0 + $0x18] sm:$0xff]
  %v19 = vld [vmem:[%s1] sm:$0xff]
  %v20 = vld [vmem:[%s1 + $0x8] sm:$0xff]
  %v21 = vld [vmem:[%s1 + $0x10] sm:$0xff]
  %v22 = vld [vmem:[%s1 + $0x18] sm:$0xff]
  %v23 = vld [vmem:[%s1 + $0x20] sm:$0xff]
  %v24 = vld [vmem:[%s1 + $0x28] sm:$0xff]
  %v25 = vld [vmem:[%s1 + $0x30] sm:$0xff]
  %v26 = vld [vmem:[%s1 + $0x38] sm:$0xff]
  %v27 = vld [vmem:[%s1 + $0x40] sm:$0xff]
  %v28 = vld [vmem:[%s1 + $0x48] sm:$0xff]
  %v29 = vld [vmem:[%s1 + $0x50] sm:$0xff]
  %v30 = vld [vmem:[%s1 + $0x58] sm:$0xff]
  %v31 = vld [vmem:[%s1 + $0x60] sm:$0xff]
  %v32 = vld [vmem:[%s1 + $0x68] sm:$0xff]
  %v33 = vld [vmem:[%s1 + $0x70] sm:$0xff]
  %v34 = vld [vmem:[%s1 + $0x78] sm:$0xff]
  %v35 = vld [vmem:[%s1 + $0x80] sm:$0xff]
  %v36 = vld [vmem:[%s1 + $0x88] sm:$0xff]
  %v37 = vld [vmem:[%s1 + $0x90] sm:$0xff]
  %v38 = vld [vmem:[%s1 + $0x98] sm:$0xff]
  %v39 = vld [vmem:[%s1 + $0xa0] sm:$0xff]
  %v40 = vld [vmem:[%s1 + $0xa8] sm:$0xff]
  %v41 = vld [vmem:[%s1 + $0xb0] sm:$0xff]
  %v42 = vld [vmem:[%s1 + $0xb8] sm:$0xff]
  %v43 = vld [vmem:[%s1 + $0xc0] sm:$0xff]
  %v44 = vld [vmem:[%s1 + $0xc8] sm:$0xff]
  %v45 = vld [vmem:[%s1 + $0xd0] sm:$0xff]
  %v46 = vld [vmem:[%s1 + $0xd8] sm:$0xff]
  %v47 = vld [vmem:[%s1 + $0xe0] sm:$0xff]
  %v48 = vld [vmem:[%s1 + $0xe8] sm:$0xff]
  %v49 = vld [vmem:[%s1 + $0xf0] sm:$0xff]
  %v50 = vld [vmem:[%s1 + $0xf8] sm:$0xff]
  %v51 = vld [vmem:[%s1 + $0x100] sm:$0xff]
  %v52 = vld [vmem:[%s1 + $0x108] sm:$0xff]
  %v53 = vld [vmem:[%s1 + $0x110] sm:$0xff]
  %v54 = vld [vmem:[%s1 + $0x118] sm:$0xff]
  %v55 = vld [vmem:[%s1 + $0x120] sm:$0xff]
  %v56 = vld [vmem:[%s1 + $0x128] sm:$0xff]
  %v57 = vld [vmem:[%s1 + $0x130] sm:$0xff]
  %v58 = vld [vmem:[%s1 + $0x138] sm:$0xff]
  %v59 = vld [vmem:[%s1 + $0x140] sm:$0xff]
  %v60 = vld [vmem:[%s1 + $0x148] sm:$0xff]
  %v61 = vld [vmem:[%s1 + $0x150] sm:$0xff]
  %v62 = vld [vmem:[%s1 + $0x158] sm:$0xff]
  %v63 = vld [vmem:[%s1 + $0x160] sm:$0xff]
  %v64 = vld [vmem:[%s1 + $0x168] sm:$0xff]
  %v65 = vld [vmem:[%s1 + $0x170] sm:$0xff]
  %v66 = vld [vmem:[%s1 + $0x178] sm:$0xff]
  %v67 = vld [vmem:[%s1 + $0x180] sm:$0xff]
  %v68 = vld [vmem:[%s1 + $0x188] sm:$0xff]
  %v69 = vld [vmem:[%s1 + $0x190] sm:$0xff]
  %v70 = vld [vmem:[%s1 + $0x198] sm:$0xff]
  %v71 = vld [vmem:[%s1 + $0x1a0] sm:$0xff]
  %v72 = vld [vmem:[%s1 + $0x1a8] sm:$0xff]
  %v73 = vld [vmem:[%s2] sm:$0xff]
  %v74 = vld [vmem:[%s2 + $0x8] sm:$0xff]
  %v75 = vld [vmem:[%s2 + $0x10] sm:$0xff]
  %v76 = vld [vmem:[%s2 + $0x18] sm:$0xff]
  %78 = vset.pattern.permute.xlu0 0
  %79 = vperm.xlu0 %78, %v73
  %v80 = vpop.permute.xlu0 %79
  %83 = vset.pattern.permute.xlu0 0
  %84 = vperm.xlu0 %83, %v74
  %v85 = vpop.permute.xlu0 %84
  %88 = vset.pattern.permute.xlu0 0
  %89 = vperm.xlu0 %88, %v75
  %v90 = vpop.permute.xlu0 %89
  %93 = vset.pattern.permute.xlu0 0
  %94 = vperm.xlu0 %93, %v76
  %v95 = vpop.permute.xlu0 %94
  %v101 = vunpack.c.l.b16 %v15
  %v102 = vunpack.c.h.b16 %v15
  %v103 = vunpack.c.l.b16 %v16
  %v104 = vunpack.c.h.b16 %v16
  %v105 = vunpack.c.l.b16 %v17
  %v106 = vunpack.c.h.b16 %v17
  %v107 = vunpack.c.l.b16 %v18
  %v108 = vunpack.c.h.b16 %v18
  %v109 = vpack.c.b16 %v103, %v101
  %v110 = vpack.c.b16 %v104, %v102
  %v111 = vpack.c.b16 %v107, %v105
  %v112 = vpack.c.b16 %v108, %v106
  %v169 = vunpack.c.l.b16 %v19
  %v170 = vunpack.c.h.b16 %v19
  %v171 = vunpack.c.l.b16 %v20
  %v172 = vunpack.c.h.b16 %v20
  %v173 = vunpack.c.l.b16 %v21
  %v174 = vunpack.c.h.b16 %v21
  %v175 = vunpack.c.l.b16 %v22
  %v176 = vunpack.c.h.b16 %v22
  %v177 = vunpack.c.l.b16 %v23
  %v178 = vunpack.c.h.b16 %v23
  %v179 = vunpack.c.l.b16 %v24
  %v180 = vunpack.c.h.b16 %v24
  %v181 = vunpack.c.l.b16 %v25
  %v182 = vunpack.c.h.b16 %v25
  %v183 = vunpack.c.l.b16 %v26
  %v184 = vunpack.c.h.b16 %v26
  %v185 = vunpack.c.l.b16 %v27
  %v186 = vunpack.c.h.b16 %v27
  %v187 = vunpack.c.l.b16 %v28
  %v188 = vunpack.c.h.b16 %v28
  %v189 = vunpack.c.l.b16 %v29
  %v190 = vunpack.c.h.b16 %v29
  %v191 = vunpack.c.l.b16 %v30
  %v192 = vunpack.c.h.b16 %v30
  %v193 = vunpack.c.l.b16 %v31
  %v194 = vunpack.c.h.b16 %v31
  %v195 = vunpack.c.l.b16 %v32
  %v196 = vunpack.c.h.b16 %v32
  %v197 = vunpack.c.l.b16 %v33
  %v198 = vunpack.c.h.b16 %v33
  %v199 = vunpack.c.l.b16 %v34
  %v200 = vunpack.c.h.b16 %v34
  %v201 = vunpack.c.l.b16 %v35
  %v202 = vunpack.c.h.b16 %v35
  %v203 = vunpack.c.l.b16 %v36
  %v204 = vunpack.c.h.b16 %v36
  %v205 = vunpack.c.l.b16 %v37
  %v206 = vunpack.c.h.b16 %v37
  %v207 = vunpack.c.l.b16 %v38
  %v208 = vunpack.c.h.b16 %v38
  %v209 = vunpack.c.l.b16 %v39
  %v210 = vunpack.c.h.b16 %v39
  %v211 = vunpack.c.l.b16 %v40
  %v212 = vunpack.c.h.b16 %v40
  %v213 = vunpack.c.l.b16 %v41
  %v214 = vunpack.c.h.b16 %v41
  %v215 = vunpack.c.l.b16 %v42
  %v216 = vunpack.c.h.b16 %v42
  %v217 = vunpack.c.l.b16 %v43
  %v218 = vunpack.c.h.b16 %v43
  %v219 = vunpack.c.l.b16 %v44
  %v220 = vunpack.c.h.b16 %v44
  %v221 = vunpack.c.l.b16 %v45
  %v222 = vunpack.c.h.b16 %v45
  %v223 = vunpack.c.l.b16 %v46
  %v224 = vunpack.c.h.b16 %v46
  %v225 = vunpack.c.l.b16 %v47
  %v226 = vunpack.c.h.b16 %v47
  %v227 = vunpack.c.l.b16 %v48
  %v228 = vunpack.c.h.b16 %v48
  %v229 = vunpack.c.l.b16 %v49
  %v230 = vunpack.c.h.b16 %v49
  %v231 = vunpack.c.l.b16 %v50
  %v232 = vunpack.c.h.b16 %v50
  %v233 = vunpack.c.l.b16 %v51
  %v234 = vunpack.c.h.b16 %v51
  %v235 = vunpack.c.l.b16 %v52
  %v236 = vunpack.c.h.b16 %v52
  %v237 = vunpack.c.l.b16 %v53
  %v238 = vunpack.c.h.b16 %v53
  %v239 = vunpack.c.l.b16 %v54
  %v240 = vunpack.c.h.b16 %v54
  %v241 = vunpack.c.l.b16 %v55
  %v242 = vunpack.c.h.b16 %v55
  %v243 = vunpack.c.l.b16 %v56
  %v244 = vunpack.c.h.b16 %v56
  %v245 = vunpack.c.l.b16 %v57
  %v246 = vunpack.c.h.b16 %v57
  %v247 = vunpack.c.l.b16 %v58
  %v248 = vunpack.c.h.b16 %v58
  %v249 = vunpack.c.l.b16 %v59
  %v250 = vunpack.c.h.b16 %v59
  %v251 = vunpack.c.l.b16 %v60
  %v252 = vunpack.c.h.b16 %v60
  %v253 = vunpack.c.l.b16 %v61
  %v254 = vunpack.c.h.b16 %v61
  %v255 = vunpack.c.l.b16 %v62
  %v256 = vunpack.c.h.b16 %v62
  %v257 = vunpack.c.l.b16 %v63
  %v258 = vunpack.c.h.b16 %v63
  %v259 = vunpack.c.l.b16 %v64
  %v260 = vunpack.c.h.b16 %v64
  %v261 = vunpack.c.l.b16 %v65
  %v262 = vunpack.c.h.b16 %v65
  %v263 = vunpack.c.l.b16 %v66
  %v264 = vunpack.c.h.b16 %v66
  %v265 = vunpack.c.l.b16 %v67
  %v266 = vunpack.c.h.b16 %v67
  %v267 = vunpack.c.l.b16 %v68
  %v268 = vunpack.c.h.b16 %v68
  %v269 = vunpack.c.l.b16 %v69
  %v270 = vunpack.c.h.b16 %v69
  %v271 = vunpack.c.l.b16 %v70
  %v272 = vunpack.c.h.b16 %v70
  %v273 = vunpack.c.l.b16 %v71
  %v274 = vunpack.c.h.b16 %v71
  %v275 = vunpack.c.l.b16 %v72
  %v276 = vunpack.c.h.b16 %v72
  %v277 = vpack.c.b16 %v175, %v169
  %v278 = vpack.c.b16 %v176, %v170
  %v279 = vpack.c.b16 %v177, %v171
  %v280 = vpack.c.b16 %v178, %v172
  %v281 = vpack.c.b16 %v179, %v173
  %v282 = vpack.c.b16 %v180, %v174
  %v283 = vpack.c.b16 %v187, %v181
  %v284 = vpack.c.b16 %v188, %v182
  %v285 = vpack.c.b16 %v189, %v183
  %v286 = vpack.c.b16 %v190, %v184
  %v287 = vpack.c.b16 %v191, %v185
  %v288 = vpack.c.b16 %v192, %v186
  %v289 = vpack.c.b16 %v199, %v193
  %v290 = vpack.c.b16 %v200, %v194
  %v291 = vpack.c.b16 %v201, %v195
  %v292 = vpack.c.b16 %v202, %v196
  %v293 = vpack.c.b16 %v203, %v197
  %v294 = vpack.c.b16 %v204, %v198
  %v295 = vpack.c.b16 %v211, %v205
  %v296 = vpack.c.b16 %v212, %v206
  %v297 = vpack.c.b16 %v213, %v207
  %v298 = vpack.c.b16 %v214, %v208
  %v299 = vpack.c.b16 %v215, %v209
  %v300 = vpack.c.b16 %v216, %v210
  %v301 = vpack.c.b16 %v223, %v217
  %v302 = vpack.c.b16 %v224, %v218
  %v303 = vpack.c.b16 %v225, %v219
  %v304 = vpack.c.b16 %v226, %v220
  %v305 = vpack.c.b16 %v227, %v221
  %v306 = vpack.c.b16 %v228, %v222
  %v307 = vpack.c.b16 %v235, %v229
  %v308 = vpack.c.b16 %v236, %v230
  %v309 = vpack.c.b16 %v237, %v231
  %v310 = vpack.c.b16 %v238, %v232
  %v311 = vpack.c.b16 %v239, %v233
  %v312 = vpack.c.b16 %v240, %v234
  %v313 = vpack.c.b16 %v247, %v241
  %v314 = vpack.c.b16 %v248, %v242
  %v315 = vpack.c.b16 %v249, %v243
  %v316 = vpack.c.b16 %v250, %v244
  %v317 = vpack.c.b16 %v251, %v245
  %v318 = vpack.c.b16 %v252, %v246
  %v319 = vpack.c.b16 %v259, %v253
  %v320 = vpack.c.b16 %v260, %v254
  %v321 = vpack.c.b16 %v261, %v255
  %v322 = vpack.c.b16 %v262, %v256
  %v323 = vpack.c.b16 %v263, %v257
  %v324 = vpack.c.b16 %v264, %v258
  %v325 = vpack.c.b16 %v271, %v265
  %v326 = vpack.c.b16 %v272, %v266
  %v327 = vpack.c.b16 %v273, %v267
  %v328 = vpack.c.b16 %v274, %v268
  %v329 = vpack.c.b16 %v275, %v269
  %v330 = vpack.c.b16 %v276, %v270
  %vm385 = vcmask 130048
  %v387 = vsel %vm385, %v110, 0
  %v390 = vsel %vm385, %v112, 0
  %392 = vmatprep.subr.bf16.mxu0 %v278
  %393 = vmatpush1.bf16.msra.mxu0 %v277
  %394 = vmatprep.subr.bf16.mxu0 %v284
  %395 = vmatpush1.bf16.msra.mxu0 %v283
  %396 = vmatprep.subr.bf16.mxu0 %v290
  %397 = vmatpush1.bf16.msra.mxu0 %v289
  %398 = vmatprep.subr.bf16.mxu0 %v296
  %399 = vmatpush1.bf16.msra.mxu0 %v295
  %400 = vmatprep.subr.bf16.mxu0 %v302
  %401 = vmatpush1.bf16.msra.mxu0 %v301
  %402 = vmatprep.subr.bf16.mxu0 %v308
  %403 = vmatpush1.bf16.msra.mxu0 %v307
  %404 = vmatprep.subr.bf16.mxu0 %v314
  %405 = vmatpush1.bf16.msra.mxu0 %v313
  %406 = vmatprep.subr.bf16.mxu0 %v320
  %407 = vmatpush1.bf16.msra.mxu0 %v319
  %408 = vmatprep.subr.bf16.mxu0 %v326
  %409 = vmatpush1.bf16.msra.mxu0 %v325
  %410 = vmatprep.subr.bf16.mxu0 0
  %411 = vmatpush1.bf16.msra.mxu0 0
  %412 = vmatprep.subr.bf16.mxu0 0
  %413 = vmatpush1.bf16.msra.mxu0 0
  %414 = vmatprep.subr.bf16.mxu0 0
  %415 = vmatpush1.bf16.msra.mxu0 0
  %416 = vmatprep.subr.bf16.mxu0 0
  %417 = vmatpush1.bf16.msra.mxu0 0
  %418 = vmatprep.subr.bf16.mxu0 0
  %419 = vmatpush1.bf16.msra.mxu0 0
  %420 = vmatprep.subr.bf16.mxu0 0
  %421 = vmatpush1.bf16.msra.mxu0 0
  %422 = vmatprep.subr.bf16.mxu0 0
  %423 = vmatpush1.bf16.msra.mxu0 0
  %424 = vmatprep.mubr.bf16.mxu0 %v387
  %425 = vmatmul.mubr.bf16.gmra.mrb[0].mxu0 %v109
  %v426 = vpop.f32.mrb[0].mxu0
  %v427 = vadd.f32 %v80, %v426
  %v428 = vpop.f32.mrb[0].mxu0
  %v429 = vadd.f32 %v80, %v428
  %v430 = vpop.f32.mrb[0].mxu0
  %v431 = vadd.f32 %v85, %v430
  %v432 = vpop.f32.mrb[0].mxu0
  %v433 = vadd.f32 %v85, %v432
  %434 = vmatprep.mubr.bf16.mxu0 %v390
  %435 = vmatmul.mubr.bf16.gmra.mrb[0].mxu0 %v111
  %v436 = vpop.f32.mrb[0].mxu0
  %v437 = vadd.f32 %v90, %v436
  %v438 = vpop.f32.mrb[0].mxu0
  %v439 = vadd.f32 %v90, %v438
  %v440 = vpop.f32.mrb[0].mxu0
  %v441 = vadd.f32 %v95, %v440
  %v442 = vpop.f32.mrb[0].mxu0
  %v443 = vadd.f32 %v95, %v442
  %444 = vdwg.mxu0
  %445 = vmatprep.subr.bf16.mxu0 %v280
  %446 = vmatpush1.bf16.msra.mxu0 %v279
  %447 = vmatprep.subr.bf16.mxu0 %v286
  %448 = vmatpush1.bf16.msra.mxu0 %v285
  %449 = vmatprep.subr.bf16.mxu0 %v292
  %450 = vmatpush1.bf16.msra.mxu0 %v291
  %451 = vmatprep.subr.bf16.mxu0 %v298
  %452 = vmatpush1.bf16.msra.mxu0 %v297
  %453 = vmatprep.subr.bf16.mxu0 %v304
  %454 = vmatpush1.bf16.msra.mxu0 %v303
  %455 = vmatprep.subr.bf16.mxu0 %v310
  %456 = vmatpush1.bf16.msra.mxu0 %v309
  %457 = vmatprep.subr.bf16.mxu0 %v316
  %458 = vmatpush1.bf16.msra.mxu0 %v315
  %459 = vmatprep.subr.bf16.mxu0 %v322
  %460 = vmatpush1.bf16.msra.mxu0 %v321
  %461 = vmatprep.subr.bf16.mxu0 %v328
  %462 = vmatpush1.bf16.msra.mxu0 %v327
  %463 = vmatprep.subr.bf16.mxu0 0
  %464 = vmatpush1.bf16.msra.mxu0 0
  %465 = vmatprep.subr.bf16.mxu0 0
  %466 = vmatpush1.bf16.msra.mxu0 0
  %467 = vmatprep.subr.bf16.mxu0 0
  %468 = vmatpush1.bf16.msra.mxu0 0
  %469 = vmatprep.subr.bf16.mxu0 0
  %470 = vmatpush1.bf16.msra.mxu0 0
  %471 = vmatprep.subr.bf16.mxu0 0
  %472 = vmatpush1.bf16.msra.mxu0 0
  %473 = vmatprep.subr.bf16.mxu0 0
  %474 = vmatpush1.bf16.msra.mxu0 0
  %475 = vmatprep.subr.bf16.mxu0 0
  %476 = vmatpush1.bf16.msra.mxu0 0
  %477 = vmatprep.mubr.bf16.mxu0 %v387
  %478 = vmatmul.mubr.bf16.gmra.mrb[0].mxu0 %v109
  %v479 = vpop.f32.mrb[0].mxu0
  %v480 = vadd.f32 %v80, %v479
  %v481 = vpop.f32.mrb[0].mxu0
  %v482 = vadd.f32 %v80, %v481
  %v483 = vpop.f32.mrb[0].mxu0
  %v484 = vadd.f32 %v85, %v483
  %v485 = vpop.f32.mrb[0].mxu0
  %v486 = vadd.f32 %v85, %v485
  %487 = vmatprep.mubr.bf16.mxu0 %v390
  %488 = vmatmul.mubr.bf16.gmra.mrb[0].mxu0 %v111
  %v489 = vpop.f32.mrb[0].mxu0
  %v490 = vadd.f32 %v90, %v489
  %v491 = vpop.f32.mrb[0].mxu0
  %v492 = vadd.f32 %v90, %v491
  %v493 = vpop.f32.mrb[0].mxu0
  %v494 = vadd.f32 %v95, %v493
  %v495 = vpop.f32.mrb[0].mxu0
  %v496 = vadd.f32 %v95, %v495
  %497 = vdwg.mxu0
  %498 = vmatprep.subr.bf16.mxu0 %v282
  %499 = vmatpush1.bf16.msra.mxu0 %v281
  %500 = vmatprep.subr.bf16.mxu0 %v288
  %501 = vmatpush1.bf16.msra.mxu0 %v287
  %502 = vmatprep.subr.bf16.mxu0 %v294
  %503 = vmatpush1.bf16.msra.mxu0 %v293
  %504 = vmatprep.subr.bf16.mxu0 %v300
  %505 = vmatpush1.bf16.msra.mxu0 %v299
  %506 = vmatprep.subr.bf16.mxu0 %v306
  %507 = vmatpush1.bf16.msra.mxu0 %v305
  %508 = vmatprep.subr.bf16.mxu0 %v312
  %509 = vmatpush1.bf16.msra.mxu0 %v311
  %510 = vmatprep.subr.bf16.mxu0 %v318
  %511 = vmatpush1.bf16.msra.mxu0 %v317
  %512 = vmatprep.subr.bf16.mxu0 %v324
  %513 = vmatpush1.bf16.msra.mxu0 %v323
  %514 = vmatprep.subr.bf16.mxu0 %v330
  %515 = vmatpush1.bf16.msra.mxu0 %v329
  %516 = vmatprep.subr.bf16.mxu0 0
  %517 = vmatpush1.bf16.msra.mxu0 0
  %518 = vmatprep.subr.bf16.mxu0 0
  %519 = vmatpush1.bf16.msra.mxu0 0
  %520 = vmatprep.subr.bf16.mxu0 0
  %521 = vmatpush1.bf16.msra.mxu0 0
  %522 = vmatprep.subr.bf16.mxu0 0
  %523 = vmatpush1.bf16.msra.mxu0 0
  %524 = vmatprep.subr.bf16.mxu0 0
  %525 = vmatpush1.bf16.msra.mxu0 0
  %526 = vmatprep.subr.bf16.mxu0 0
  %527 = vmatpush1.bf16.msra.mxu0 0
  %528 = vmatprep.subr.bf16.mxu0 0
  %529 = vmatpush1.bf16.msra.mxu0 0
  %530 = vmatprep.mubr.bf16.mxu0 %v387
  %531 = vmatmul.mubr.bf16.gmra.mrb[0].mxu0 %v109
  %v532 = vpop.f32.mrb[0].mxu0
  %v533 = vadd.f32 %v80, %v532
  %v534 = vpop.f32.mrb[0].mxu0
  %v535 = vadd.f32 %v80, %v534
  %v536 = vpop.f32.mrb[0].mxu0
  %v537 = vadd.f32 %v85, %v536
  %v538 = vpop.f32.mrb[0].mxu0
  %v539 = vadd.f32 %v85, %v538
  %540 = vmatprep.mubr.bf16.mxu0 %v390
  %541 = vmatmul.mubr.bf16.gmra.mrb[0].mxu0 %v111
  %v542 = vpop.f32.mrb[0].mxu0
  %v543 = vadd.f32 %v90, %v542
  %v544 = vpop.f32.mrb[0].mxu0
  %v545 = vadd.f32 %v90, %v544
  %v546 = vpop.f32.mrb[0].mxu0
  %v547 = vadd.f32 %v95, %v546
  %v548 = vpop.f32.mrb[0].mxu0
  %v549 = vadd.f32 %v95, %v548
  %550 = vdwg.mxu0
  %v551 = vmax.f32 %v427, 0.0
  %v552 = vmax.f32 %v429, 0.0
  %v553 = vmax.f32 %v480, 0.0
  %v554 = vmax.f32 %v482, 0.0
  %v555 = vmax.f32 %v533, 0.0
  %v556 = vmax.f32 %v535, 0.0
  %v557 = vmax.f32 %v431, 0.0
  %v558 = vmax.f32 %v433, 0.0
  %v559 = vmax.f32 %v484, 0.0
  %v560 = vmax.f32 %v486, 0.0
  %v561 = vmax.f32 %v537, 0.0
  %v562 = vmax.f32 %v539, 0.0
  %v563 = vmax.f32 %v437, 0.0
  %v564 = vmax.f32 %v439, 0.0
  %v565 = vmax.f32 %v490, 0.0
  %v566 = vmax.f32 %v492, 0.0
  %v567 = vmax.f32 %v543, 0.0
  %v568 = vmax.f32 %v545, 0.0
  %v569 = vmax.f32 %v441, 0.0
  %v570 = vmax.f32 %v443, 0.0
  %v571 = vmax.f32 %v494, 0.0
  %v572 = vmax.f32 %v496, 0.0
  %v573 = vmax.f32 %v547, 0.0
  %v574 = vmax.f32 %v549, 0.0
  %575 = vst [vmem:[%s3] sm:$0xff] %v551
  %576 = vst [vmem:[%s3 + $0x8] sm:$0xff] %v552
  %577 = vst [vmem:[%s3 + $0x10] sm:$0xff] %v553
  %578 = vst [vmem:[%s3 + $0x18] sm:$0xff] %v554
  %579 = vst [vmem:[%s3 + $0x20] sm:$0xff] %v555
  %580 = vst [vmem:[%s3 + $0x28] sm:$0xff] %v556
  %581 = vst [vmem:[%s3 + $0x30] sm:$0xff] %v557
  %582 = vst [vmem:[%s3 + $0x38] sm:$0xff] %v558
  %583 = vst [vmem:[%s3 + $0x40] sm:$0xff] %v559
  %584 = vst [vmem:[%s3 + $0x48] sm:$0xff] %v560
  %585 = vst [vmem:[%s3 + $0x50] sm:$0xff] %v561
  %586 = vst [vmem:[%s3 + $0x58] sm:$0xff] %v562
  %587 = vst [vmem:[%s3 + $0x60] sm:$0xff] %v563
  %588 = vst [vmem:[%s3 + $0x68] sm:$0xff] %v564
  %589 = vst [vmem:[%s3 + $0x70] sm:$0xff] %v565
  %590 = vst [vmem:[%s3 + $0x78] sm:$0xff] %v566
  %591 = vst [vmem:[%s3 + $0x80] sm:$0xff] %v567
  %592 = vst [vmem:[%s3 + $0x88] sm:$0xff] %v568
  %593 = vst [vmem:[%s3 + $0x90] sm:$0xff] %v569
  %594 = vst [vmem:[%s3 + $0x98] sm:$0xff] %v570
  %595 = vst [vmem:[%s3 + $0xa0] sm:$0xff] %v571
  %596 = vst [vmem:[%s3 + $0xa8] sm:$0xff] %v572
  %597 = vst [vmem:[%s3 + $0xb0] sm:$0xff] %v573
  %598 = vst [vmem:[%s3 + $0xb8] sm:$0xff] %v574
  // Predicated region
  $region14: #{mfcc_crnn_forward.9} parent=0 // pred_check
    _
  $region15: #{mfcc_crnn_forward.9} parent=0 // pred_check_branch
    %600 = sbr.rel (0) target = $region17
  $region16: #{mfcc_crnn_forward.9} parent=0 // pred_region
    _
  $region17: #{mfcc_crnn_forward.9} parent=0 // pred_fallthru
    _
  // Predicated region
  $region18: #{mfcc_crnn_forward.9} parent=0 // pred_check
    _
  $region19: #{mfcc_crnn_forward.9} parent=0 // pred_check_branch
    %602 = sbr.rel (0) target = $region21
  $region20: #{mfcc_crnn_forward.9} parent=0 // pred_region
    _
  $region21: #{mfcc_crnn_forward.9} parent=0 // pred_fallthru
    _

// kernel: mfcc_crnn_forward.10
$region0: #{mfcc_crnn_forward.10}
  #allocation0 [shape = 'u32[]', space=smem, size = 0x4, offset = 0x4, fixed_abs, tag = 'smem constant byte address 0x4 - core index']
  #allocation1 [shape = 'u32[144,128]{1,0:T(1,128)}', space=vmem, size = 0x12000, scoped, tag = 'internal scratch']
  %s0 = inlined_call_operand.vmem [shape: bf16[64,288], index: 0, kind: input, shape index: {}]
  %s1 = inlined_call_operand.vmem [shape: bf16[288,120], index: 1, kind: input, shape index: {}]
  %s2 = inlined_call_operand.vmem [shape: f32[64,1], index: 2, kind: input, shape index: {}]
  %s3 = inlined_call_operand.vmem [shape: f32[64,120], index: 3, kind: output, shape index: {}]
  %s4 = sld [smem:[#allocation0]]
  $region22: #{mfcc_crnn_forward.10} parent=0
    _
  %s6 = ssub.s32 1, %s4
  %s7 = scalar_select 0, %s6, %s4
  // Predicated region
  $region2: #{mfcc_crnn_forward.10} parent=0 // pred_check
    _
  $region3: #{mfcc_crnn_forward.10} parent=0 // pred_check_branch
    %9 = sbr.rel (0) target = $region5
  $region4: #{mfcc_crnn_forward.10} parent=0 // pred_region
    _
  $region5: #{mfcc_crnn_forward.10} parent=0 // pred_fallthru
    _
  // Predicated region
  $region6: #{mfcc_crnn_forward.10} parent=0 // pred_check
    _
  $region7: #{mfcc_crnn_forward.10} parent=0 // pred_check_branch
    %11 = sbr.rel (0) target = $region9
  $region8: #{mfcc_crnn_forward.10} parent=0 // pred_region
    _
  $region9: #{mfcc_crnn_forward.10} parent=0 // pred_fallthru
    _
  // Predicated region
  $region10: #{mfcc_crnn_forward.10} parent=0 // pred_check
    _
  $region11: #{mfcc_crnn_forward.10} parent=0 // pred_check_branch
    %13 = sbr.rel (0) target = $region13
  $region12: #{mfcc_crnn_forward.10} parent=0 // pred_region
    _
  $region13: #{mfcc_crnn_forward.10} parent=0 // pred_fallthru
    _
  %v15 = vld [vmem:[%s0] sm:$0xff]
  %v16 = vld [vmem:[%s0 + $0x8] sm:$0xf]
  %v17 = vld [vmem:[%s0 + $0xc] sm:$0xff]
  %v18 = vld [vmem:[%s0 + $0x14] sm:$0xf]
  %v19 = vld [vmem:[%s0 + $0x18] sm:$0xff]
  %v20 = vld [vmem:[%s0 + $0x20] sm:$0xf]
  %v21 = vld [vmem:[%s0 + $0x24] sm:$0xff]
  %v22 = vld [vmem:[%s0 + $0x2c] sm:$0xf]
  %v23 = vld [vmem:[%s0 + $0x30] sm:$0xff]
  %v24 = vld [vmem:[%s0 + $0x38] sm:$0xf]
  %v25 = vld [vmem:[%s0 + $0x3c] sm:$0xff]
  %v26 = vld [vmem:[%s0 + $0x44] sm:$0xf]
  %v27 = vld [vmem:[%s0 + $0x48] sm:$0xff]
  %v28 = vld [vmem:[%s0 + $0x50] sm:$0xf]
  %v29 = vld [vmem:[%s0 + $0x54] sm:$0xff]
  %v30 = vld [vmem:[%s0 + $0x5c] sm:$0xf]
  %v31 = vld [vmem:[%s1] sm:$0xf]
  %v32 = vld [vmem:[%s1 + $0x4] sm:$0xf]
  %v33 = vld [vmem:[%s1 + $0x8] sm:$0xf]
  %v34 = vld [vmem:[%s1 + $0xc] sm:$0xf]
  %v35 = vld [vmem:[%s1 + $0x10] sm:$0xf]
  %v36 = vld [vmem:[%s1 + $0x14] sm:$0xf]
  %v37 = vld [vmem:[%s1 + $0x18] sm:$0xf]
  %v38 = vld [vmem:[%s1 + $0x1c] sm:$0xf]
  %v39 = vld [vmem:[%s1 + $0x20] sm:$0xf]
  %v40 = vld [vmem:[%s1 + $0x24] sm:$0xf]
  %v41 = vld [vmem:[%s1 + $0x28] sm:$0xf]
  %v42 = vld [vmem:[%s1 + $0x2c] sm:$0xf]
  %v43 = vld [vmem:[%s1 + $0x30] sm:$0xf]
  %v44 = vld [vmem:[%s1 + $0x34] sm:$0xf]
  %v45 = vld [vmem:[%s1 + $0x38] sm:$0xf]
  %v46 = vld [vmem:[%s1 + $0x3c] sm:$0xf]
  %v47 = vld [vmem:[%s1 + $0x40] sm:$0xf]
  %v48 = vld [vmem:[%s1 + $0x44] sm:$0xf]
  %v49 = vld [vmem:[%s1 + $0x48] sm:$0xf]
  %v50 = vld [vmem:[%s1 + $0x4c] sm:$0xf]
  %v51 = vld [vmem:[%s1 + $0x50] sm:$0xf]
  %v52 = vld [vmem:[%s1 + $0x54] sm:$0xf]
  %v53 = vld [vmem:[%s1 + $0x58] sm:$0xf]
  %v54 = vld [vmem:[%s1 + $0x5c] sm:$0xf]
  %v55 = vld [vmem:[%s1 + $0x60] sm:$0xf]
  %v56 = vld [vmem:[%s1 + $0x64] sm:$0xf]
  %v57 = vld [vmem:[%s1 + $0x68] sm:$0xf]
  %v58 = vld [vmem:[%s1 + $0x6c] sm:$0xf]
  %v59 = vld [vmem:[%s1 + $0x70] sm:$0xf]
  %v60 = vld [vmem:[%s1 + $0x74] sm:$0xf]
  %v61 = vld [vmem:[%s1 + $0x78] sm:$0xf]
  %v62 = vld [vmem:[%s1 + $0x7c] sm:$0xf]
  %v63 = vld [vmem:[%s1 + $0x80] sm:$0xf]
  %v64 = vld [vmem:[%s1 + $0x84] sm:$0xf]
  %v65 = vld [vmem:[%s1 + $0x88] sm:$0xf]
  %v66 = vld [vmem:[%s1 + $0x8c] sm:$0xf]
  %v67 = vld [vmem:[%s2] sm:$0xff]
  %v68 = vld [vmem:[%s2 + $0x8] sm:$0xff]
  %v69 = vld [vmem:[%s2 + $0x10] sm:$0xff]
  %v70 = vld [vmem:[%s2 + $0x18] sm:$0xff]
  %v71 = vld [vmem:[%s2 + $0x20] sm:$0xff]
  %v72 = vld [vmem:[%s2 + $0x28] sm:$0xff]
  %v73 = vld [vmem:[%s2 + $0x30] sm:$0xff]
  %v74 = vld [vmem:[%s2 + $0x38] sm:$0xff]
  %76 = vset.pattern.permute.xlu0 0
  %77 = vperm.xlu0 %76, %v67
  %v78 = vpop.permute.xlu0 %77
  %81 = vset.pattern.permute.xlu0 0
  %82 = vperm.xlu0 %81, %v68
  %v83 = vpop.permute.xlu0 %82
  %86 = vset.pattern.permute.xlu0 0
  %87 = vperm.xlu0 %86, %v69
  %v88 = vpop.permute.xlu0 %87
  %91 = vset.pattern.permute.xlu0 0
  %92 = vperm.xlu0 %91, %v70
  %v93 = vpop.permute.xlu0 %92
  %96 = vset.pattern.permute.xlu0 0
  %97 = vperm.xlu0 %96, %v71
  %v98 = vpop.permute.xlu0 %97
  %101 = vset.pattern.permute.xlu0 0
  %102 = vperm.xlu0 %101, %v72
  %v103 = vpop.permute.xlu0 %102
  %106 = vset.pattern.permute.xlu0 0
  %107 = vperm.xlu0 %106, %v73
  %v108 = vpop.permute.xlu0 %107
  %111 = vset.pattern.permute.xlu0 0
  %112 = vperm.xlu0 %111, %v74
  %v113 = vpop.permute.xlu0 %112
  %v131 = vunpack.c.l.b16 %v15
  %v132 = vunpack.c.h.b16 %v15
  %v133 = vunpack.c.l.b16 %v16
  %v134 = vunpack.c.l.b16 %v17
  %v135 = vunpack.c.h.b16 %v17
  %v136 = vunpack.c.l.b16 %v18
  %v137 = vunpack.c.l.b16 %v19
  %v138 = vunpack.c.h.b16 %v19
  %v139 = vunpack.c.l.b16 %v20
  %v140 = vunpack.c.l.b16 %v21
  %v141 = vunpack.c.h.b16 %v21
  %v142 = vunpack.c.l.b16 %v22
  %v143 = vunpack.c.l.b16 %v23
  %v144 = vunpack.c.h.b16 %v23
  %v145 = vunpack.c.l.b16 %v24
  %v146 = vunpack.c.l.b16 %v25
  %v147 = vunpack.c.h.b16 %v25
  %v148 = vunpack.c.l.b16 %v26
  %v149 = vunpack.c.l.b16 %v27
  %v150 = vunpack.c.h.b16 %v27
  %v151 = vunpack.c.l.b16 %v28
  %v152 = vunpack.c.l.b16 %v29
  %v153 = vunpack.c.h.b16 %v29
  %v154 = vunpack.c.l.b16 %v30
  %v155 = vpack.c.b16 %v134, %v131
  %v156 = vpack.c.b16 %v135, %v132
  %v157 = vpack.c.b16 %v136, %v133
  %v158 = vpack.c.b16 %v140, %v137
  %v159 = vpack.c.b16 %v141, %v138
  %v160 = vpack.c.b16 %v142, %v139
  %v161 = vpack.c.b16 %v146, %v143
  %v162 = vpack.c.b16 %v147, %v144
  %v163 = vpack.c.b16 %v148, %v145
  %v164 = vpack.c.b16 %v152, %v149
  %v165 = vpack.c.b16 %v153, %v150
  %v166 = vpack.c.b16 %v154, %v151
  %v211 = vunpack.c.l.b16 %v31
  %v212 = vunpack.c.l.b16 %v32
  %v213 = vunpack.c.l.b16 %v33
  %v214 = vunpack.c.l.b16 %v34
  %v215 = vunpack.c.l.b16 %v35
  %v216 = vunpack.c.l.b16 %v36
  %v217 = vunpack.c.l.b16 %v37
  %v218 = vunpack.c.l.b16 %v38
  %v219 = vunpack.c.l.b16 %v39
  %v220 = vunpack.c.l.b16 %v40
  %v221 = vunpack.c.l.b16 %v41
  %v222 = vunpack.c.l.b16 %v42
  %v223 = vunpack.c.l.b16 %v43
  %v224 = vunpack.c.l.b16 %v44
  %v225 = vunpack.c.l.b16 %v45
  %v226 = vunpack.c.l.b16 %v46
  %v227 = vunpack.c.l.b16 %v47
  %v228 = vunpack.c.l.b16 %v48
  %v229 = vunpack.c.l.b16 %v49
  %v230 = vunpack.c.l.b16 %v50
  %v231 = vunpack.c.l.b16 %v51
  %v232 = vunpack.c.l.b16 %v52
  %v233 = vunpack.c.l.b16 %v53
  %v234 = vunpack.c.l.b16 %v54
  %v235 = vunpack.c.l.b16 %v55
  %v236 = vunpack.c.l.b16 %v56
  %v237 = vunpack.c.l.b16 %v57
  %v238 = vunpack.c.l.b16 %v58
  %v239 = vunpack.c.l.b16 %v59
  %v240 = vunpack.c.l.b16 %v60
  %v241 = vunpack.c.l.b16 %v61
  %v242 = vunpack.c.l.b16 %v62
  %v243 = vunpack.c.l.b16 %v63
  %v244 = vunpack.c.l.b16 %v64
  %v245 = vunpack.c.l.b16 %v65
  %v246 = vunpack.c.l.b16 %v66
  %v247 = vpack.c.b16 %v212, %v211
  %v248 = vpack.c.b16 %v214, %v213
  %v249 = vpack.c.b16 %v216, %v215
  %v250 = vpack.c.b16 %v218, %v217
  %v251 = vpack.c.b16 %v220, %v219
  %v252 = vpack.c.b16 %v222, %v221
  %v253 = vpack.c.b16 %v224, %v223
  %v254 = vpack.c.b16 %v226, %v225
  %v255 = vpack.c.b16 %v228, %v227
  %v256 = vpack.c.b16 %v230, %v229
  %v257 = vpack.c.b16 %v232, %v231
  %v258 = vpack.c.b16 %v234, %v233
  %v259 = vpack.c.b16 %v236, %v235
  %v260 = vpack.c.b16 %v238, %v237
  %v261 = vpack.c.b16 %v240, %v239
  %v262 = vpack.c.b16 %v242, %v241
  %v263 = vpack.c.b16 %v244, %v243
  %v264 = vpack.c.b16 %v246, %v245
  %vm283 = vcmask 261120
  %v285 = vsel %vm283, %v157, 0
  %v288 = vsel %vm283, %v160, 0
  %v291 = vsel %vm283, %v163, 0
  %v294 = vsel %vm283, %v166, 0
  %296 = vmatprep.subr.bf16.mxu0 0
  %297 = vmatpush1.bf16.msra.mxu0 %v247
  %298 = vmatprep.subr.bf16.mxu0 0
  %299 = vmatpush1.bf16.msra.mxu0 %v248
  %300 = vmatprep.subr.bf16.mxu0 0
  %301 = vmatpush1.bf16.msra.mxu0 %v249
  %302 = vmatprep.subr.bf16.mxu0 0
  %303 = vmatpush1.bf16.msra.mxu0 %v250
  %304 = vmatprep.subr.bf16.mxu0 0
  %305 = vmatpush1.bf16.msra.mxu0 %v251
  %306 = vmatprep.subr.bf16.mxu0 0
  %307 = vmatpush1.bf16.msra.mxu0 %v252
  %308 = vmatprep.subr.bf16.mxu0 0
  %309 = vmatpush1.bf16.msra.mxu0 %v253
  %310 = vmatprep.subr.bf16.mxu0 0
  %311 = vmatpush1.bf16.msra.mxu0 %v254
  %312 = vmatprep.subr.bf16.mxu0 0
  %313 = vmatpush1.bf16.msra.mxu0 %v255
  %314 = vmatprep.subr.bf16.mxu0 0
  %315 = vmatpush1.bf16.msra.mxu0 %v256
  %316 = vmatprep.subr.bf16.mxu0 0
  %317 = vmatpush1.bf16.msra.mxu0 %v257
  %318 = vmatprep.subr.bf16.mxu0 0
  %319 = vmatpush1.bf16.msra.mxu0 %v258
  %320 = vmatprep.subr.bf16.mxu0 0
  %321 = vmatpush1.bf16.msra.mxu0 %v259
  %322 = vmatprep.subr.bf16.mxu0 0
  %323 = vmatpush1.bf16.msra.mxu0 %v260
  %324 = vmatprep.subr.bf16.mxu0 0
  %325 = vmatpush1.bf16.msra.mxu0 %v261
  %326 = vmatprep.subr.bf16.mxu0 0
  %327 = vmatpush1.bf16.msra.mxu0 %v262
  %328 = vmatprep.mubr.bf16.mxu0 %v156
  %329 = vmatmul.mubr.bf16.gmra.mrb[0].mxu0 %v155
  %v330 = vpop.f32.mrb[0].mxu0
  %v331 = vadd.f32 %v78, %v330
  %v332 = vpop.f32.mrb[0].mxu0
  %v333 = vpop.f32.mrb[0].mxu0
  %v334 = vadd.f32 %v83, %v333
  %v335 = vpop.f32.mrb[0].mxu0
  %336 = vmatprep.mubr.bf16.mxu0 %v159
  %337 = vmatmul.mubr.bf16.gmra.mrb[0].mxu0 %v158
  %v338 = vpop.f32.mrb[0].mxu0
  %v339 = vadd.f32 %v88, %v338
  %v340 = vpop.f32.mrb[0].mxu0
  %v341 = vpop.f32.mrb[0].mxu0
  %v342 = vadd.f32 %v93, %v341
  %v343 = vpop.f32.mrb[0].mxu0
  %344 = vmatprep.mubr.bf16.mxu0 %v162
  %345 = vmatmul.mubr.bf16.gmra.mrb[0].mxu0 %v161
  %v346 = vpop.f32.mrb[0].mxu0
  %v347 = vadd.f32 %v98, %v346
  %v348 = vpop.f32.mrb[0].mxu0
  %v349 = vpop.f32.mrb[0].mxu0
  %v350 = vadd.f32 %v103, %v349
  %v351 = vpop.f32.mrb[0].mxu0
  %352 = vmatprep.mubr.bf16.mxu0 %v165
  %353 = vmatmul.mubr.bf16.gmra.mrb[0].mxu0 %v164
  %v354 = vpop.f32.mrb[0].mxu0
  %v355 = vadd.f32 %v108, %v354
  %v356 = vpop.f32.mrb[0].mxu0
  %v357 = vpop.f32.mrb[0].mxu0
  %v358 = vadd.f32 %v113, %v357
  %v359 = vpop.f32.mrb[0].mxu0
  %360 = vdwg.mxu0
  %361 = vmatprep.subr.bf16.mxu0 0
  %362 = vmatpush1.bf16.msra.mxu0 %v263
  %363 = vmatprep.subr.bf16.mxu0 0
  %364 = vmatpush1.bf16.msra.mxu0 %v264
  %365 = vmatprep.subr.bf16.mxu0 0
  %366 = vmatpush1.bf16.msra.mxu0 0
  %367 = vmatprep.subr.bf16.mxu0 0
  %368 = vmatpush1.bf16.msra.mxu0 0
  %369 = vmatprep.subr.bf16.mxu0 0
  %370 = vmatpush1.bf16.msra.mxu0 0
  %371 = vmatprep.subr.bf16.mxu0 0
  %372 = vmatpush1.bf16.msra.mxu0 0
  %373 = vmatprep.subr.bf16.mxu0 0
  %374 = vmatpush1.bf16.msra.mxu0 0
  %375 = vmatprep.subr.bf16.mxu0 0
  %376 = vmatpush1.bf16.msra.mxu0 0
  %377 = vmatprep.subr.bf16.mxu0 0
  %378 = vmatpush1.bf16.msra.mxu0 0
  %379 = vmatprep.subr.bf16.mxu0 0
  %380 = vmatpush1.bf16.msra.mxu0 0
  %381 = vmatprep.subr.bf16.mxu0 0
  %382 = vmatpush1.bf16.msra.mxu0 0
  %383 = vmatprep.subr.bf16.mxu0 0
  %384 = vmatpush1.bf16.msra.mxu0 0
  %385 = vmatprep.subr.bf16.mxu0 0
  %386 = vmatpush1.bf16.msra.mxu0 0
  %387 = vmatprep.subr.bf16.mxu0 0
  %388 = vmatpush1.bf16.msra.mxu0 0
  %389 = vmatprep.subr.bf16.mxu0 0
  %390 = vmatpush1.bf16.msra.mxu0 0
  %391 = vmatprep.subr.bf16.mxu0 0
  %392 = vmatpush1.bf16.msra.mxu0 0
  %393 = vmatprep.mubr.bf16.mxu0 0
  %394 = vmatmul.mubr.bf16.gmra.mrb[0].mxu0 %v285
  %v395 = vpop.f32.mrb[0].mxu0
  %v396 = vadd.f32 %v331, %v395
  %v397 = vpop.f32.mrb[0].mxu0
  %v398 = vpop.f32.mrb[0].mxu0
  %v399 = vadd.f32 %v334, %v398
  %v400 = vpop.f32.mrb[0].mxu0
  %401 = vmatprep.mubr.bf16.mxu0 0
  %402 = vmatmul.mubr.bf16.gmra.mrb[0].mxu0 %v288
  %v403 = vpop.f32.mrb[0].mxu0
  %v404 = vadd.f32 %v339, %v403
  %v405 = vpop.f32.mrb[0].mxu0
  %v406 = vpop.f32.mrb[0].mxu0
  %v407 = vadd.f32 %v342, %v406
  %v408 = vpop.f32.mrb[0].mxu0
  %409 = vmatprep.mubr.bf16.mxu0 0
  %410 = vmatmul.mubr.bf16.gmra.mrb[0].mxu0 %v291
  %v411 = vpop.f32.mrb[0].mxu0
  %v412 = vadd.f32 %v347, %v411
  %v413 = vpop.f32.mrb[0].mxu0
  %v414 = vpop.f32.mrb[0].mxu0
  %v415 = vadd.f32 %v350, %v414
  %v416 = vpop.f32.mrb[0].mxu0
  %417 = vmatprep.mubr.bf16.mxu0 0
  %418 = vmatmul.mubr.bf16.gmra.mrb[0].mxu0 %v294
  %v419 = vpop.f32.mrb[0].mxu0
  %v420 = vadd.f32 %v355, %v419
  %v421 = vpop.f32.mrb[0].mxu0
  %v422 = vpop.f32.mrb[0].mxu0
  %v423 = vadd.f32 %v358, %v422
  %v424 = vpop.f32.mrb[0].mxu0
  %425 = vdwg.mxu0
  %v426 = vmax.f32 %v396, 0.0
  %v427 = vmax.f32 %v399, 0.0
  %v428 = vmax.f32 %v404, 0.0
  %v429 = vmax.f32 %v407, 0.0
  %v430 = vmax.f32 %v412, 0.0
  %v431 = vmax.f32 %v415, 0.0
  %v432 = vmax.f32 %v420, 0.0
  %v433 = vmax.f32 %v423, 0.0
  %vm434 = vcmask 982016
  %435 = vst.msk [vmem:[%s3] sm:$0xff] %vm434, %v426
  %436 = vst.msk [vmem:[%s3 + $0x8] sm:$0xff] %vm434, %v427
  %437 = vst.msk [vmem:[%s3 + $0x10] sm:$0xff] %vm434, %v428
  %438 = vst.msk [vmem:[%s3 + $0x18] sm:$0xff] %vm434, %v429
  %439 = vst.msk [vmem:[%s3 + $0x20] sm:$0xff] %vm434, %v430
  %440 = vst.msk [vmem:[%s3 + $0x28] sm:$0xff] %vm434, %v431
  %441 = vst.msk [vmem:[%s3 + $0x30] sm:$0xff] %vm434, %v432
  %442 = vst.msk [vmem:[%s3 + $0x38] sm:$0xff] %vm434, %v433
  // Predicated region
  $region14: #{mfcc_crnn_forward.10} parent=0 // pred_check
    _
  $region15: #{mfcc_crnn_forward.10} parent=0 // pred_check_branch
    %444 = sbr.rel (0) target = $region17
  $region16: #{mfcc_crnn_forward.10} parent=0 // pred_region
    _
  $region17: #{mfcc_crnn_forward.10} parent=0 // pred_fallthru
    _
  // Predicated region
  $region18: #{mfcc_crnn_forward.10} parent=0 // pred_check
    _
  $region19: #{mfcc_crnn_forward.10} parent=0 // pred_check_branch
    %446 = sbr.rel (0) target = $region21
  $region20: #{mfcc_crnn_forward.10} parent=0 // pred_region
    _
  $region21: #{mfcc_crnn_forward.10} parent=0 // pred_fallthru
    _

// kernel: tile.13
$region0: #{tile.13}
  #allocation0 [shape = 's32[1]{0}', space=sflag, size = 0x4, scoped, tag = 'scoped memory for tile.13']
  %s0 = inlined_call_operand.vmem [shape: f32[64], index: 0, kind: input, shape index: {}]
  %s1 = inlined_call_operand.vmem [shape: f32[2,64], index: 1, kind: output, shape index: {}]
  // Predicated region
  $region2: #{tile.13} parent=0 // pred_check
    _
  $region3: #{tile.13} parent=0 // pred_check_branch
    %3 = sbr.rel (0) target = $region5
  $region4: #{tile.13} parent=0 // pred_region
    _
  $region5: #{tile.13} parent=0 // pred_fallthru
    _
  %v4 = vld [vmem:[%s0] ss:$0 sm:$0xff]
  %5 = vst [vmem:[%s1] sm:$0x3] %v4

// kernel: mul.55
$region0: #{mul.55}
  %s0 = inlined_call_operand.vmem [shape: f32[2,64], index: 0, kind: input, shape index: {}]
  %s1 = inlined_call_operand.vmem [shape: f32[128], index: 1, kind: output, shape index: {}]
  $region1: #{mul.55} parent=0
    #allocation0 [shape = 'u8[4096]{0}', space=vmem, size = 0x1000, scoped, tag = 'scoped mem for output reshape']
    #allocation1 [shape = 'u8[4096]{0}', space=vmem, size = 0x1000, scoped, tag = 'scoped mem for input reshape']
    %s3 = sshllo.u32 0, 2
    %v4 = vld [vmem:[%s0] sm:%s3]
    %5 = vst [vmem:[#allocation1] sm:%s3] %v4
    %v6 = vld [vmem:[#allocation1] sm:$0x1]
    %vm7 = vcmask 523264
    %8 = vst.msk [vmem:[#allocation0] sm:$0x1] %vm7, %v6
    %s9 = scalar_lea.vmem [#allocation1], 1
    %v10 = vld [vmem:[%s9] sm:$0x1]
    %11 = vrot.lane.b32.xlu0 %v10, 64
    %v12 = vpop.permute.xlu0 %11
    %vm13 = vcmask 1048064
    %14 = vst.msk [vmem:[#allocation0] sm:$0x1] %vm13, %v12
    %s16 = sshllo.u32 0, 1
    %v18 = vld [vmem:[#allocation0] sm:%s16]
    %s19 = sshllo.u32 0, 1
    %20 = vst [vmem:[%s1] sm:%s19] %v18

// kernel: mfcc_crnn_forward.11
$region0: #{mfcc_crnn_forward.11}
  #allocation0 [shape = 'u32[]', space=smem, size = 0x4, offset = 0x4, fixed_abs, tag = 'smem constant byte address 0x4 - core index']
  #allocation1 [shape = 'u32[144,128]{1,0:T(1,128)}', space=vmem, size = 0x12000, scoped, tag = 'internal scratch']
  %s0 = inlined_call_operand.vmem [shape: f32[4,2,128], index: 0, kind: input, shape index: {}]
  %s1 = inlined_call_operand.vmem [shape: f32[192,256], index: 1, kind: input, shape index: {}]
  %s2 = inlined_call_operand.vmem [shape: f32[1,256], index: 2, kind: input, shape index: {}]
  %s3 = inlined_call_operand.vmem [shape: f32[128,256], index: 3, kind: input, shape index: {}]
  %s4 = inlined_call_operand.vmem [shape: f32[1,256], index: 4, kind: input, shape index: {}]
  %s5 = inlined_call_operand.vmem [shape: f32[64,32], index: 5, kind: input, shape index: {}]
  %s6 = inlined_call_operand.vmem [shape: f32[1,32], index: 6, kind: input, shape index: {}]
  %s7 = inlined_call_operand.vmem [shape: f32[32,2], index: 7, kind: input, shape index: {}]
  %s8 = inlined_call_operand.vmem [shape: f32[1,2], index: 8, kind: input, shape index: {}]
  %s9 = inlined_call_operand.hbm [shape: f32[2,2], index: 9, kind: output, shape index: {}]
  %s10 = sld [smem:[#allocation0]]
  $region46: #{mfcc_crnn_forward.11} parent=0
    _
  %s12 = ssub.s32 1, %s10
  %s13 = scalar_select 0, %s12, %s10
  $region1: #{mfcc_crnn_forward.11} parent=0
    #allocation2 [shape = 'u8[1024]{0}', space=vmem, size = 0x400, scoped, tag = 'output window, operand 0, single buffered']
    #allocation3 [shape = 's32[1]{0}', space=sflag, size = 0x4, scoped, tag = 'scoped memory for mfcc_crnn_forward.11']
    %14 = vsyncpa [#allocation3], 0
    // Predicated region
    $region2: #{mfcc_crnn_forward.11} parent=1 // pred_check
      _
    $region3: #{mfcc_crnn_forward.11} parent=1 // pred_check_branch
      %16 = sbr.rel (0) target = $region5
    $region4: #{mfcc_crnn_forward.11} parent=1 // pred_region
      _
    $region5: #{mfcc_crnn_forward.11} parent=1 // pred_fallthru
      _
    // Predicated region
    $region6: #{mfcc_crnn_forward.11} parent=1 // pred_check
      _
    $region7: #{mfcc_crnn_forward.11} parent=1 // pred_check_branch
      %18 = sbr.rel (0) target = $region9
    $region8: #{mfcc_crnn_forward.11} parent=1 // pred_region
      _
    $region9: #{mfcc_crnn_forward.11} parent=1 // pred_fallthru
      _
    // Predicated region
    $region10: #{mfcc_crnn_forward.11} parent=1 // pred_check
      _
    $region11: #{mfcc_crnn_forward.11} parent=1 // pred_check_branch
      %20 = sbr.rel (0) target = $region13
    $region12: #{mfcc_crnn_forward.11} parent=1 // pred_region
      _
    $region13: #{mfcc_crnn_forward.11} parent=1 // pred_fallthru
      _
    // Predicated region
    $region14: #{mfcc_crnn_forward.11} parent=1 // pred_check
      _
    $region15: #{mfcc_crnn_forward.11} parent=1 // pred_check_branch
      %22 = sbr.rel (0) target = $region17
    $region16: #{mfcc_crnn_forward.11} parent=1 // pred_region
      _
    $region17: #{mfcc_crnn_forward.11} parent=1 // pred_fallthru
      _
    // Predicated region
    $region18: #{mfcc_crnn_forward.11} parent=1 // pred_check
      _
    $region19: #{mfcc_crnn_forward.11} parent=1 // pred_check_branch
      %24 = sbr.rel (0) target = $region21
    $region20: #{mfcc_crnn_forward.11} parent=1 // pred_region
      _
    $region21: #{mfcc_crnn_forward.11} parent=1 // pred_fallthru
      _
    // Predicated region
    $region22: #{mfcc_crnn_forward.11} parent=1 // pred_check
      _
    $region23: #{mfcc_crnn_forward.11} parent=1 // pred_check_branch
      %26 = sbr.rel (0) target = $region25
    $region24: #{mfcc_crnn_forward.11} parent=1 // pred_region
      _
    $region25: #{mfcc_crnn_forward.11} parent=1 // pred_fallthru
      _
    // Predicated region
    $region26: #{mfcc_crnn_forward.11} parent=1 // pred_check
      _
    $region27: #{mfcc_crnn_forward.11} parent=1 // pred_check_branch
      %28 = sbr.rel (0) target = $region29
    $region28: #{mfcc_crnn_forward.11} parent=1 // pred_region
      _
    $region29: #{mfcc_crnn_forward.11} parent=1 // pred_fallthru
      _
    // Predicated region
    $region30: #{mfcc_crnn_forward.11} parent=1 // pred_check
      _
    $region31: #{mfcc_crnn_forward.11} parent=1 // pred_check_branch
      %30 = sbr.rel (0) target = $region33
    $region32: #{mfcc_crnn_forward.11} parent=1 // pred_region
      _
    $region33: #{mfcc_crnn_forward.11} parent=1 // pred_fallthru
      _
    // Predicated region
    $region34: #{mfcc_crnn_forward.11} parent=1 // pred_check
      _
    $region35: #{mfcc_crnn_forward.11} parent=1 // pred_check_branch
      %32 = sbr.rel (0) target = $region37
    $region36: #{mfcc_crnn_forward.11} parent=1 // pred_region
      _
    $region37: #{mfcc_crnn_forward.11} parent=1 // pred_fallthru
      _
    %v33 = vld [vmem:[%s1] sm:$0xff]
    %v34 = vld [vmem:[%s1 + $0x8] sm:$0xff]
    %v35 = vld [vmem:[%s1 + $0x10] sm:$0xff]
    %v36 = vld [vmem:[%s1 + $0x18] sm:$0xff]
    %v37 = vld [vmem:[%s1 + $0x20] sm:$0xff]
    %v38 = vld [vmem:[%s1 + $0x28] sm:$0xff]
    %v39 = vld [vmem:[%s1 + $0x30] sm:$0xff]
    %v40 = vld [vmem:[%s1 + $0x38] sm:$0xff]
    %v41 = vld [vmem:[%s1 + $0x40] sm:$0xff]
    %v42 = vld [vmem:[%s1 + $0x48] sm:$0xff]
    %v43 = vld [vmem:[%s1 + $0x50] sm:$0xff]
    %v44 = vld [vmem:[%s1 + $0x58] sm:$0xff]
    %v45 = vld [vmem:[%s1 + $0x60] sm:$0xff]
    %v46 = vld [vmem:[%s1 + $0x68] sm:$0xff]
    %v47 = vld [vmem:[%s1 + $0x70] sm:$0xff]
    %v48 = vld [vmem:[%s1 + $0x78] sm:$0xff]
    %v49 = vld [vmem:[%s1 + $0x80] sm:$0xff]
    %v50 = vld [vmem:[%s1 + $0x88] sm:$0xff]
    %v51 = vld [vmem:[%s1 + $0x90] sm:$0xff]
    %v52 = vld [vmem:[%s1 + $0x98] sm:$0xff]
    %v53 = vld [vmem:[%s1 + $0xa0] sm:$0xff]
    %v54 = vld [vmem:[%s1 + $0xa8] sm:$0xff]
    %v55 = vld [vmem:[%s1 + $0xb0] sm:$0xff]
    %v56 = vld [vmem:[%s1 + $0xb8] sm:$0xff]
    %v57 = vld [vmem:[%s1 + $0xc0] sm:$0xff]
    %v58 = vld [vmem:[%s1 + $0xc8] sm:$0xff]
    %v59 = vld [vmem:[%s1 + $0xd0] sm:$0xff]
    %v60 = vld [vmem:[%s1 + $0xd8] sm:$0xff]
    %v61 = vld [vmem:[%s1 + $0xe0] sm:$0xff]
    %v62 = vld [vmem:[%s1 + $0xe8] sm:$0xff]
    %v63 = vld [vmem:[%s1 + $0xf0] sm:$0xff]
    %v64 = vld [vmem:[%s1 + $0xf8] sm:$0xff]
    %v65 = vld [vmem:[%s1 + $0x100] sm:$0xff]
    %v66 = vld [vmem:[%s1 + $0x108] sm:$0xff]
    %v67 = vld [vmem:[%s1 + $0x110] sm:$0xff]
    %v68 = vld [vmem:[%s1 + $0x118] sm:$0xff]
    %v69 = vld [vmem:[%s1 + $0x120] sm:$0xff]
    %v70 = vld [vmem:[%s1 + $0x128] sm:$0xff]
    %v71 = vld [vmem:[%s1 + $0x130] sm:$0xff]
    %v72 = vld [vmem:[%s1 + $0x138] sm:$0xff]
    %v73 = vld [vmem:[%s1 + $0x140] sm:$0xff]
    %v74 = vld [vmem:[%s1 + $0x148] sm:$0xff]
    %v75 = vld [vmem:[%s1 + $0x150] sm:$0xff]
    %v76 = vld [vmem:[%s1 + $0x158] sm:$0xff]
    %v77 = vld [vmem:[%s1 + $0x160] sm:$0xff]
    %v78 = vld [vmem:[%s1 + $0x168] sm:$0xff]
    %v79 = vld [vmem:[%s1 + $0x170] sm:$0xff]
    %v80 = vld [vmem:[%s1 + $0x178] sm:$0xff]
    %v81 = vld [vmem:[%s2] sm:$0x3]
    %v82 = vld [vmem:[%s3] sm:$0xff]
    %v83 = vld [vmem:[%s3 + $0x8] sm:$0xff]
    %v84 = vld [vmem:[%s3 + $0x10] sm:$0xff]
    %v85 = vld [vmem:[%s3 + $0x18] sm:$0xff]
    %v86 = vld [vmem:[%s3 + $0x20] sm:$0xff]
    %v87 = vld [vmem:[%s3 + $0x28] sm:$0xff]
    %v88 = vld [vmem:[%s3 + $0x30] sm:$0xff]
    %v89 = vld [vmem:[%s3 + $0x38] sm:$0xff]
    %v90 = vld [vmem:[%s3 + $0x40] sm:$0xff]
    %v91 = vld [vmem:[%s3 + $0x48] sm:$0xff]
    %v92 = vld [vmem:[%s3 + $0x50] sm:$0xff]
    %v93 = vld [vmem:[%s3 + $0x58] sm:$0xff]
    %v94 = vld [vmem:[%s3 + $0x60] sm:$0xff]
    %v95 = vld [vmem:[%s3 + $0x68] sm:$0xff]
    %v96 = vld [vmem:[%s3 + $0x70] sm:$0xff]
    %v97 = vld [vmem:[%s3 + $0x78] sm:$0xff]
    %v98 = vld [vmem:[%s3 + $0x80] sm:$0xff]
    %v99 = vld [vmem:[%s3 + $0x88] sm:$0xff]
    %v100 = vld [vmem:[%s3 + $0x90] sm:$0xff]
    %v101 = vld [vmem:[%s3 + $0x98] sm:$0xff]
    %v102 = vld [vmem:[%s3 + $0xa0] sm:$0xff]
    %v103 = vld [vmem:[%s3 + $0xa8] sm:$0xff]
    %v104 = vld [vmem:[%s3 + $0xb0] sm:$0xff]
    %v105 = vld [vmem:[%s3 + $0xb8] sm:$0xff]
    %v106 = vld [vmem:[%s3 + $0xc0] sm:$0xff]
    %v107 = vld [vmem:[%s3 + $0xc8] sm:$0xff]
    %v108 = vld [vmem:[%s3 + $0xd0] sm:$0xff]
    %v109 = vld [vmem:[%s3 + $0xd8] sm:$0xff]
    %v110 = vld [vmem:[%s3 + $0xe0] sm:$0xff]
    %v111 = vld [vmem:[%s3 + $0xe8] sm:$0xff]
    %v112 = vld [vmem:[%s3 + $0xf0] sm:$0xff]
    %v113 = vld [vmem:[%s3 + $0xf8] sm:$0xff]
    %v114 = vld [vmem:[%s4] sm:$0x3]
    %v115 = vld [vmem:[%s0] sm:$0x3]
    %v117 = vlaneseq
    %v118 = vshrl.u32 %v117, 7
    %v119 = vsub.s32 0, %v118
    %v120 = vrot.slane %v81, %v119
    %v121 = vlaneseq
    %v122 = vshrl.u32 %v121, 7
    %v123 = vsub.s32 1, %v122
    %v124 = vrot.slane %v81, %v123
    %vm127 = vcmask 523264
    %v129 = vsel %vm127, 0.0, 0
    %131 = vmatprep.subr.mxu0 %v34
    %132 = vmatpush1.msra.mxu0 %v33
    %133 = vmatprep.subr.mxu0 %v36
    %134 = vmatpush1.msra.mxu0 %v35
    %135 = vmatprep.subr.mxu0 %v38
    %136 = vmatpush1.msra.mxu0 %v37
    %137 = vmatprep.subr.mxu0 %v40
    %138 = vmatpush1.msra.mxu0 %v39
    %139 = vmatprep.subr.mxu0 %v42
    %140 = vmatpush1.msra.mxu0 %v41
    %141 = vmatprep.subr.mxu0 %v44
    %142 = vmatpush1.msra.mxu0 %v43
    %143 = vmatprep.subr.mxu0 %v46
    %144 = vmatpush1.msra.mxu0 %v45
    %145 = vmatprep.subr.mxu0 %v48
    %146 = vmatpush1.msra.mxu0 %v47
    %147 = vmatprep.subr.mxu0 %v50
    %148 = vmatpush1.msra.mxu0 %v49
    %149 = vmatprep.subr.mxu0 %v52
    %150 = vmatpush1.msra.mxu0 %v51
    %151 = vmatprep.subr.mxu0 %v54
    %152 = vmatpush1.msra.mxu0 %v53
    %153 = vmatprep.subr.mxu0 %v56
    %154 = vmatpush1.msra.mxu0 %v55
    %155 = vmatprep.subr.mxu0 %v58
    %156 = vmatpush1.msra.mxu0 %v57
    %157 = vmatprep.subr.mxu0 %v60
    %158 = vmatpush1.msra.mxu0 %v59
    %159 = vmatprep.subr.mxu0 %v62
    %160 = vmatpush1.msra.mxu0 %v61
    %161 = vmatprep.subr.mxu0 %v64
    %162 = vmatpush1.msra.mxu0 %v63
    %163 = vmatprep.subr.mxu0 %v66
    %164 = vmatpush1.msra.mxu0 %v65
    %165 = vmatprep.subr.mxu0 %v68
    %166 = vmatpush1.msra.mxu0 %v67
    %167 = vmatprep.subr.mxu0 %v70
    %168 = vmatpush1.msra.mxu0 %v69
    %169 = vmatprep.subr.mxu0 %v72
    %170 = vmatpush1.msra.mxu0 %v71
    %171 = vmatprep.subr.mxu0 %v74
    %172 = vmatpush1.msra.mxu0 %v73
    %173 = vmatprep.subr.mxu0 %v76
    %174 = vmatpush1.msra.mxu0 %v75
    %175 = vmatprep.subr.mxu0 %v78
    %176 = vmatpush1.msra.mxu0 %v77
    %177 = vmatprep.subr.mxu0 %v80
    %178 = vmatpush1.msra.mxu0 %v79
    %179 = vmatprep.subr.mxu0 0.0
    %180 = vmatpush1.msra.mxu0 0.0
    %181 = vmatprep.subr.mxu0 0.0
    %182 = vmatpush1.msra.mxu0 0.0
    %183 = vmatprep.subr.mxu0 0.0
    %184 = vmatpush1.msra.mxu0 0.0
    %185 = vmatprep.subr.mxu0 0.0
    %186 = vmatpush1.msra.mxu0 0.0
    %187 = vmatprep.subr.mxu0 0.0
    %188 = vmatpush1.msra.mxu0 0.0
    %189 = vmatprep.subr.mxu0 0.0
    %190 = vmatpush1.msra.mxu0 0.0
    %191 = vmatprep.subr.mxu0 0.0
    %192 = vmatpush1.msra.mxu0 0.0
    %193 = vmatprep.subr.mxu0 0.0
    %194 = vmatpush1.msra.mxu0 0.0
    %195 = vmatprep.mubr.f32.mxu0 %v129
    %196 = vmatmul.mubr.f32.gmra.mrb[0].mxu0 %v115
    %v197 = vpop.f32.mrb[0].mxu0
    %v198 = vadd.f32 %v120, %v197
    %v199 = vpop.f32.mrb[0].mxu0
    %v200 = vadd.f32 %v124, %v199
    %201 = vdwg.mxu0
    %v202 = vxor.u32 %v198, 2147483648
    %v203 = vmul.f32 %v202, 1.442695
    %v204 = vpow.pop %v203
    %v205 = vadd.f32 %v204, 1.0
    %v206 = vrcp.pop %v205
    %v207 = vmul.f32 1.0, %v206
    %v208 = vtanh.pop %v200
    %v209 = vxor.u32 %v200, 2147483648
    %v210 = vmul.f32 %v209, 1.442695
    %v211 = vpow.pop %v210
    %v212 = vadd.f32 %v211, 1.0
    %v213 = vrcp.pop %v212
    %v214 = vmul.f32 1.0, %v213
    %v215 = vmul.f32 %v207, 0.0
    %v216 = vmul.f32 %v207, %v208
    %218 = vrot.lane.b32.xlu0 %v216, 64
    %v219 = vpop.permute.xlu0 %218
    %v221 = vadd.f32 %v215, %v219
    %v222 = vtanh.pop %v221
    %v223 = vmul.f32 %v214, %v222
    %225 = vrot.lane.b32.xlu0 %v223, 64
    %v226 = vpop.permute.xlu0 %225
    %v228 = vsel %vm127, %v226, 0.0
    %v230 = vlaneseq
    %v231 = vshrl.u32 %v230, 7
    %v232 = vsub.s32 0, %v231
    %v233 = vrot.slane %v114, %v232
    %v234 = vlaneseq
    %v235 = vshrl.u32 %v234, 7
    %v236 = vsub.s32 1, %v235
    %v237 = vrot.slane %v114, %v236
    %240 = vmatprep.subr.mxu0 %v83
    %241 = vmatpush1.msra.mxu0 %v82
    %242 = vmatprep.subr.mxu0 %v85
    %243 = vmatpush1.msra.mxu0 %v84
    %244 = vmatprep.subr.mxu0 %v87
    %245 = vmatpush1.msra.mxu0 %v86
    %246 = vmatprep.subr.mxu0 %v89
    %247 = vmatpush1.msra.mxu0 %v88
    %248 = vmatprep.subr.mxu0 %v91
    %249 = vmatpush1.msra.mxu0 %v90
    %250 = vmatprep.subr.mxu0 %v93
    %251 = vmatpush1.msra.mxu0 %v92
    %252 = vmatprep.subr.mxu0 %v95
    %253 = vmatpush1.msra.mxu0 %v94
    %254 = vmatprep.subr.mxu0 %v97
    %255 = vmatpush1.msra.mxu0 %v96
    %256 = vmatprep.subr.mxu0 %v99
    %257 = vmatpush1.msra.mxu0 %v98
    %258 = vmatprep.subr.mxu0 %v101
    %259 = vmatpush1.msra.mxu0 %v100
    %260 = vmatprep.subr.mxu0 %v103
    %261 = vmatpush1.msra.mxu0 %v102
    %262 = vmatprep.subr.mxu0 %v105
    %263 = vmatpush1.msra.mxu0 %v104
    %264 = vmatprep.subr.mxu0 %v107
    %265 = vmatpush1.msra.mxu0 %v106
    %266 = vmatprep.subr.mxu0 %v109
    %267 = vmatpush1.msra.mxu0 %v108
    %268 = vmatprep.subr.mxu0 %v111
    %269 = vmatpush1.msra.mxu0 %v110
    %270 = vmatprep.subr.mxu0 %v113
    %271 = vmatpush1.msra.mxu0 %v112
    %272 = vmatprep.subr.mxu0 0.0
    %273 = vmatpush1.msra.mxu0 0.0
    %274 = vmatprep.subr.mxu0 0.0
    %275 = vmatpush1.msra.mxu0 0.0
    %276 = vmatprep.subr.mxu0 0.0
    %277 = vmatpush1.msra.mxu0 0.0
    %278 = vmatprep.subr.mxu0 0.0
    %279 = vmatpush1.msra.mxu0 0.0
    %280 = vmatprep.subr.mxu0 0.0
    %281 = vmatpush1.msra.mxu0 0.0
    %282 = vmatprep.subr.mxu0 0.0
    %283 = vmatpush1.msra.mxu0 0.0
    %284 = vmatprep.subr.mxu0 0.0
    %285 = vmatpush1.msra.mxu0 0.0
    %286 = vmatprep.subr.mxu0 0.0
    %287 = vmatpush1.msra.mxu0 0.0
    %288 = vmatprep.subr.mxu0 0.0
    %289 = vmatpush1.msra.mxu0 0.0
    %290 = vmatprep.subr.mxu0 0.0
    %291 = vmatpush1.msra.mxu0 0.0
    %292 = vmatprep.subr.mxu0 0.0
    %293 = vmatpush1.msra.mxu0 0.0
    %294 = vmatprep.subr.mxu0 0.0
    %295 = vmatpush1.msra.mxu0 0.0
    %296 = vmatprep.subr.mxu0 0.0
    %297 = vmatpush1.msra.mxu0 0.0
    %298 = vmatprep.subr.mxu0 0.0
    %299 = vmatpush1.msra.mxu0 0.0
    %300 = vmatprep.subr.mxu0 0.0
    %301 = vmatpush1.msra.mxu0 0.0
    %302 = vmatprep.subr.mxu0 0.0
    %303 = vmatpush1.msra.mxu0 0.0
    %304 = vmatprep.mubr.f32.mxu0 0.0
    %305 = vmatmul.mubr.f32.gmra.mrb[0].mxu0 %v228
    %v306 = vpop.f32.mrb[0].mxu0
    %v307 = vadd.f32 %v233, %v306
    %v308 = vpop.f32.mrb[0].mxu0
    %v309 = vadd.f32 %v237, %v308
    %310 = vdwg.mxu0
    %v311 = vxor.u32 %v307, 2147483648
    %v312 = vmul.f32 %v311, 1.442695
    %v313 = vpow.pop %v312
    %v314 = vadd.f32 %v313, 1.0
    %v315 = vrcp.pop %v314
    %v316 = vmul.f32 1.0, %v315
    %v317 = vtanh.pop %v309
    %v318 = vxor.u32 %v309, 2147483648
    %v319 = vmul.f32 %v318, 1.442695
    %v320 = vpow.pop %v319
    %v321 = vadd.f32 %v320, 1.0
    %v322 = vrcp.pop %v321
    %v323 = vmul.f32 1.0, %v322
    %v324 = vmul.f32 %v316, 0.0
    %v325 = vmul.f32 %v316, %v317
    %327 = vrot.lane.b32.xlu0 %v325, 64
    %v328 = vpop.permute.xlu0 %327
    %v330 = vadd.f32 %v324, %v328
    %v331 = vtanh.pop %v330
    %v332 = vmul.f32 %v323, %v331
    %v333 = vadd.f32 %v332, 0.0
    %s334 = scalar_lea.vmem %s0, 2
    %v335 = vld [vmem:[%s334] sm:$0x3]
    %v336 = vsel %vm127, %v226, 0
    %338 = vmatprep.subr.mxu0 %v34
    %339 = vmatpush1.msra.mxu0 %v33
    %340 = vmatprep.subr.mxu0 %v36
    %341 = vmatpush1.msra.mxu0 %v35
    %342 = vmatprep.subr.mxu0 %v38
    %343 = vmatpush1.msra.mxu0 %v37
    %344 = vmatprep.subr.mxu0 %v40
    %345 = vmatpush1.msra.mxu0 %v39
    %346 = vmatprep.subr.mxu0 %v42
    %347 = vmatpush1.msra.mxu0 %v41
    %348 = vmatprep.subr.mxu0 %v44
    %349 = vmatpush1.msra.mxu0 %v43
    %350 = vmatprep.subr.mxu0 %v46
    %351 = vmatpush1.msra.mxu0 %v45
    %352 = vmatprep.subr.mxu0 %v48
    %353 = vmatpush1.msra.mxu0 %v47
    %354 = vmatprep.subr.mxu0 %v50
    %355 = vmatpush1.msra.mxu0 %v49
    %356 = vmatprep.subr.mxu0 %v52
    %357 = vmatpush1.msra.mxu0 %v51
    %358 = vmatprep.subr.mxu0 %v54
    %359 = vmatpush1.msra.mxu0 %v53
    %360 = vmatprep.subr.mxu0 %v56
    %361 = vmatpush1.msra.mxu0 %v55
    %362 = vmatprep.subr.mxu0 %v58
    %363 = vmatpush1.msra.mxu0 %v57
    %364 = vmatprep.subr.mxu0 %v60
    %365 = vmatpush1.msra.mxu0 %v59
    %366 = vmatprep.subr.mxu0 %v62
    %367 = vmatpush1.msra.mxu0 %v61
    %368 = vmatprep.subr.mxu0 %v64
    %369 = vmatpush1.msra.mxu0 %v63
    %370 = vmatprep.subr.mxu0 %v66
    %371 = vmatpush1.msra.mxu0 %v65
    %372 = vmatprep.subr.mxu0 %v68
    %373 = vmatpush1.msra.mxu0 %v67
    %374 = vmatprep.subr.mxu0 %v70
    %375 = vmatpush1.msra.mxu0 %v69
    %376 = vmatprep.subr.mxu0 %v72
    %377 = vmatpush1.msra.mxu0 %v71
    %378 = vmatprep.subr.mxu0 %v74
    %379 = vmatpush1.msra.mxu0 %v73
    %380 = vmatprep.subr.mxu0 %v76
    %381 = vmatpush1.msra.mxu0 %v75
    %382 = vmatprep.subr.mxu0 %v78
    %383 = vmatpush1.msra.mxu0 %v77
    %384 = vmatprep.subr.mxu0 %v80
    %385 = vmatpush1.msra.mxu0 %v79
    %386 = vmatprep.subr.mxu0 0.0
    %387 = vmatpush1.msra.mxu0 0.0
    %388 = vmatprep.subr.mxu0 0.0
    %389 = vmatpush1.msra.mxu0 0.0
    %390 = vmatprep.subr.mxu0 0.0
    %391 = vmatpush1.msra.mxu0 0.0
    %392 = vmatprep.subr.mxu0 0.0
    %393 = vmatpush1.msra.mxu0 0.0
    %394 = vmatprep.subr.mxu0 0.0
    %395 = vmatpush1.msra.mxu0 0.0
    %396 = vmatprep.subr.mxu0 0.0
    %397 = vmatpush1.msra.mxu0 0.0
    %398 = vmatprep.subr.mxu0 0.0
    %399 = vmatpush1.msra.mxu0 0.0
    %400 = vmatprep.subr.mxu0 0.0
    %401 = vmatpush1.msra.mxu0 0.0
    %402 = vmatprep.mubr.f32.mxu0 %v336
    %403 = vmatmul.mubr.f32.gmra.mrb[0].mxu0 %v335
    %v404 = vpop.f32.mrb[0].mxu0
    %v405 = vadd.f32 %v120, %v404
    %v406 = vpop.f32.mrb[0].mxu0
    %v407 = vadd.f32 %v124, %v406
    %408 = vdwg.mxu0
    %v409 = vxor.u32 %v405, 2147483648
    %v410 = vmul.f32 %v409, 1.442695
    %v411 = vpow.pop %v410
    %v412 = vadd.f32 %v411, 1.0
    %v413 = vrcp.pop %v412
    %v414 = vmul.f32 1.0, %v413
    %v415 = vtanh.pop %v407
    %v416 = vxor.u32 %v407, 2147483648
    %v417 = vmul.f32 %v416, 1.442695
    %v418 = vpow.pop %v417
    %v419 = vadd.f32 %v418, 1.0
    %v420 = vrcp.pop %v419
    %v421 = vmul.f32 1.0, %v420
    %v422 = vmul.f32 %v414, %v221
    %v423 = vmul.f32 %v414, %v415
    %425 = vrot.lane.b32.xlu0 %v423, 64
    %v426 = vpop.permute.xlu0 %425
    %v428 = vadd.f32 %v422, %v426
    %v429 = vtanh.pop %v428
    %v430 = vmul.f32 %v421, %v429
    %432 = vrot.lane.b32.xlu0 %v430, 64
    %v433 = vpop.permute.xlu0 %432
    %v435 = vsel %vm127, %v433, %v332
    %436 = vmatprep.subr.mxu0 %v83
    %437 = vmatpush1.msra.mxu0 %v82
    %438 = vmatprep.subr.mxu0 %v85
    %439 = vmatpush1.msra.mxu0 %v84
    %440 = vmatprep.subr.mxu0 %v87
    %441 = vmatpush1.msra.mxu0 %v86
    %442 = vmatprep.subr.mxu0 %v89
    %443 = vmatpush1.msra.mxu0 %v88
    %444 = vmatprep.subr.mxu0 %v91
    %445 = vmatpush1.msra.mxu0 %v90
    %446 = vmatprep.subr.mxu0 %v93
    %447 = vmatpush1.msra.mxu0 %v92
    %448 = vmatprep.subr.mxu0 %v95
    %449 = vmatpush1.msra.mxu0 %v94
    %450 = vmatprep.subr.mxu0 %v97
    %451 = vmatpush1.msra.mxu0 %v96
    %452 = vmatprep.subr.mxu0 %v99
    %453 = vmatpush1.msra.mxu0 %v98
    %454 = vmatprep.subr.mxu0 %v101
    %455 = vmatpush1.msra.mxu0 %v100
    %456 = vmatprep.subr.mxu0 %v103
    %457 = vmatpush1.msra.mxu0 %v102
    %458 = vmatprep.subr.mxu0 %v105
    %459 = vmatpush1.msra.mxu0 %v104
    %460 = vmatprep.subr.mxu0 %v107
    %461 = vmatpush1.msra.mxu0 %v106
    %462 = vmatprep.subr.mxu0 %v109
    %463 = vmatpush1.msra.mxu0 %v108
    %464 = vmatprep.subr.mxu0 %v111
    %465 = vmatpush1.msra.mxu0 %v110
    %466 = vmatprep.subr.mxu0 %v113
    %467 = vmatpush1.msra.mxu0 %v112
    %468 = vmatprep.subr.mxu0 0.0
    %469 = vmatpush1.msra.mxu0 0.0
    %470 = vmatprep.subr.mxu0 0.0
    %471 = vmatpush1.msra.mxu0 0.0
    %472 = vmatprep.subr.mxu0 0.0
    %473 = vmatpush1.msra.mxu0 0.0
    %474 = vmatprep.subr.mxu0 0.0
    %475 = vmatpush1.msra.mxu0 0.0
    %476 = vmatprep.subr.mxu0 0.0
    %477 = vmatpush1.msra.mxu0 0.0
    %478 = vmatprep.subr.mxu0 0.0
    %479 = vmatpush1.msra.mxu0 0.0
    %480 = vmatprep.subr.mxu0 0.0
    %481 = vmatpush1.msra.mxu0 0.0
    %482 = vmatprep.subr.mxu0 0.0
    %483 = vmatpush1.msra.mxu0 0.0
    %484 = vmatprep.subr.mxu0 0.0
    %485 = vmatpush1.msra.mxu0 0.0
    %486 = vmatprep.subr.mxu0 0.0
    %487 = vmatpush1.msra.mxu0 0.0
    %488 = vmatprep.subr.mxu0 0.0
    %489 = vmatpush1.msra.mxu0 0.0
    %490 = vmatprep.subr.mxu0 0.0
    %491 = vmatpush1.msra.mxu0 0.0
    %492 = vmatprep.subr.mxu0 0.0
    %493 = vmatpush1.msra.mxu0 0.0
    %494 = vmatprep.subr.mxu0 0.0
    %495 = vmatpush1.msra.mxu0 0.0
    %496 = vmatprep.subr.mxu0 0.0
    %497 = vmatpush1.msra.mxu0 0.0
    %498 = vmatprep.subr.mxu0 0.0
    %499 = vmatpush1.msra.mxu0 0.0
    %500 = vmatprep.mubr.f32.mxu0 0.0
    %501 = vmatmul.mubr.f32.gmra.mrb[0].mxu0 %v435
    %v502 = vpop.f32.mrb[0].mxu0
    %v503 = vadd.f32 %v233, %v502
    %v504 = vpop.f32.mrb[0].mxu0
    %v505 = vadd.f32 %v237, %v504
    %506 = vdwg.mxu0
    %v507 = vxor.u32 %v503, 2147483648
    %v508 = vmul.f32 %v507, 1.442695
    %v509 = vpow.pop %v508
    %v510 = vadd.f32 %v509, 1.0
    %v511 = vrcp.pop %v510
    %v512 = vmul.f32 1.0, %v511
    %v513 = vtanh.pop %v505
    %v514 = vxor.u32 %v505, 2147483648
    %v515 = vmul.f32 %v514, 1.442695
    %v516 = vpow.pop %v515
    %v517 = vadd.f32 %v516, 1.0
    %v518 = vrcp.pop %v517
    %v519 = vmul.f32 1.0, %v518
    %v520 = vmul.f32 %v512, %v330
    %v521 = vmul.f32 %v512, %v513
    %523 = vrot.lane.b32.xlu0 %v521, 64
    %v524 = vpop.permute.xlu0 %523
    %v526 = vadd.f32 %v520, %v524
    %v527 = vtanh.pop %v526
    %v528 = vmul.f32 %v519, %v527
    %v529 = vadd.f32 %v333, %v528
    %s530 = scalar_lea.vmem %s0, 4
    %v531 = vld [vmem:[%s530] sm:$0x3]
    %v532 = vsel %vm127, %v433, 0
    %534 = vmatprep.subr.mxu0 %v34
    %535 = vmatpush1.msra.mxu0 %v33
    %536 = vmatprep.subr.mxu0 %v36
    %537 = vmatpush1.msra.mxu0 %v35
    %538 = vmatprep.subr.mxu0 %v38
    %539 = vmatpush1.msra.mxu0 %v37
    %540 = vmatprep.subr.mxu0 %v40
    %541 = vmatpush1.msra.mxu0 %v39
    %542 = vmatprep.subr.mxu0 %v42
    %543 = vmatpush1.msra.mxu0 %v41
    %544 = vmatprep.subr.mxu0 %v44
    %545 = vmatpush1.msra.mxu0 %v43
    %546 = vmatprep.subr.mxu0 %v46
    %547 = vmatpush1.msra.mxu0 %v45
    %548 = vmatprep.subr.mxu0 %v48
    %549 = vmatpush1.msra.mxu0 %v47
    %550 = vmatprep.subr.mxu0 %v50
    %551 = vmatpush1.msra.mxu0 %v49
    %552 = vmatprep.subr.mxu0 %v52
    %553 = vmatpush1.msra.mxu0 %v51
    %554 = vmatprep.subr.mxu0 %v54
    %555 = vmatpush1.msra.mxu0 %v53
    %556 = vmatprep.subr.mxu0 %v56
    %557 = vmatpush1.msra.mxu0 %v55
    %558 = vmatprep.subr.mxu0 %v58
    %559 = vmatpush1.msra.mxu0 %v57
    %560 = vmatprep.subr.mxu0 %v60
    %561 = vmatpush1.msra.mxu0 %v59
    %562 = vmatprep.subr.mxu0 %v62
    %563 = vmatpush1.msra.mxu0 %v61
    %564 = vmatprep.subr.mxu0 %v64
    %565 = vmatpush1.msra.mxu0 %v63
    %566 = vmatprep.subr.mxu0 %v66
    %567 = vmatpush1.msra.mxu0 %v65
    %568 = vmatprep.subr.mxu0 %v68
    %569 = vmatpush1.msra.mxu0 %v67
    %570 = vmatprep.subr.mxu0 %v70
    %571 = vmatpush1.msra.mxu0 %v69
    %572 = vmatprep.subr.mxu0 %v72
    %573 = vmatpush1.msra.mxu0 %v71
    %574 = vmatprep.subr.mxu0 %v74
    %575 = vmatpush1.msra.mxu0 %v73
    %576 = vmatprep.subr.mxu0 %v76
    %577 = vmatpush1.msra.mxu0 %v75
    %578 = vmatprep.subr.mxu0 %v78
    %579 = vmatpush1.msra.mxu0 %v77
    %580 = vmatprep.subr.mxu0 %v80
    %581 = vmatpush1.msra.mxu0 %v79
    %582 = vmatprep.subr.mxu0 0.0
    %583 = vmatpush1.msra.mxu0 0.0
    %584 = vmatprep.subr.mxu0 0.0
    %585 = vmatpush1.msra.mxu0 0.0
    %586 = vmatprep.subr.mxu0 0.0
    %587 = vmatpush1.msra.mxu0 0.0
    %588 = vmatprep.subr.mxu0 0.0
    %589 = vmatpush1.msra.mxu0 0.0
    %590 = vmatprep.subr.mxu0 0.0
    %591 = vmatpush1.msra.mxu0 0.0
    %592 = vmatprep.subr.mxu0 0.0
    %593 = vmatpush1.msra.mxu0 0.0
    %594 = vmatprep.subr.mxu0 0.0
    %595 = vmatpush1.msra.mxu0 0.0
    %596 = vmatprep.subr.mxu0 0.0
    %597 = vmatpush1.msra.mxu0 0.0
    %598 = vmatprep.mubr.f32.mxu0 %v532
    %599 = vmatmul.mubr.f32.gmra.mrb[0].mxu0 %v531
    %v600 = vpop.f32.mrb[0].mxu0
    %v601 = vadd.f32 %v120, %v600
    %v602 = vpop.f32.mrb[0].mxu0
    %v603 = vadd.f32 %v124, %v602
    %604 = vdwg.mxu0
    %v605 = vxor.u32 %v601, 2147483648
    %v606 = vmul.f32 %v605, 1.442695
    %v607 = vpow.pop %v606
    %v608 = vadd.f32 %v607, 1.0
    %v609 = vrcp.pop %v608
    %v610 = vmul.f32 1.0, %v609
    %v611 = vtanh.pop %v603
    %v612 = vxor.u32 %v603, 2147483648
    %v613 = vmul.f32 %v612, 1.442695
    %v614 = vpow.pop %v613
    %v615 = vadd.f32 %v614, 1.0
    %v616 = vrcp.pop %v615
    %v617 = vmul.f32 1.0, %v616
    %v618 = vmul.f32 %v610, %v428
    %v619 = vmul.f32 %v610, %v611
    %621 = vrot.lane.b32.xlu0 %v619, 64
    %v622 = vpop.permute.xlu0 %621
    %v624 = vadd.f32 %v618, %v622
    %v625 = vtanh.pop %v624
    %v626 = vmul.f32 %v617, %v625
    %628 = vrot.lane.b32.xlu0 %v626, 64
    %v629 = vpop.permute.xlu0 %628
    %v631 = vsel %vm127, %v629, %v528
    %632 = vmatprep.subr.mxu0 %v83
    %633 = vmatpush1.msra.mxu0 %v82
    %634 = vmatprep.subr.mxu0 %v85
    %635 = vmatpush1.msra.mxu0 %v84
    %636 = vmatprep.subr.mxu0 %v87
    %637 = vmatpush1.msra.mxu0 %v86
    %638 = vmatprep.subr.mxu0 %v89
    %639 = vmatpush1.msra.mxu0 %v88
    %640 = vmatprep.subr.mxu0 %v91
    %641 = vmatpush1.msra.mxu0 %v90
    %642 = vmatprep.subr.mxu0 %v93
    %643 = vmatpush1.msra.mxu0 %v92
    %644 = vmatprep.subr.mxu0 %v95
    %645 = vmatpush1.msra.mxu0 %v94
    %646 = vmatprep.subr.mxu0 %v97
    %647 = vmatpush1.msra.mxu0 %v96
    %648 = vmatprep.subr.mxu0 %v99
    %649 = vmatpush1.msra.mxu0 %v98
    %650 = vmatprep.subr.mxu0 %v101
    %651 = vmatpush1.msra.mxu0 %v100
    %652 = vmatprep.subr.mxu0 %v103
    %653 = vmatpush1.msra.mxu0 %v102
    %654 = vmatprep.subr.mxu0 %v105
    %655 = vmatpush1.msra.mxu0 %v104
    %656 = vmatprep.subr.mxu0 %v107
    %657 = vmatpush1.msra.mxu0 %v106
    %658 = vmatprep.subr.mxu0 %v109
    %659 = vmatpush1.msra.mxu0 %v108
    %660 = vmatprep.subr.mxu0 %v111
    %661 = vmatpush1.msra.mxu0 %v110
    %662 = vmatprep.subr.mxu0 %v113
    %663 = vmatpush1.msra.mxu0 %v112
    %664 = vmatprep.subr.mxu0 0.0
    %665 = vmatpush1.msra.mxu0 0.0
    %666 = vmatprep.subr.mxu0 0.0
    %667 = vmatpush1.msra.mxu0 0.0
    %668 = vmatprep.subr.mxu0 0.0
    %669 = vmatpush1.msra.mxu0 0.0
    %670 = vmatprep.subr.mxu0 0.0
    %671 = vmatpush1.msra.mxu0 0.0
    %672 = vmatprep.subr.mxu0 0.0
    %673 = vmatpush1.msra.mxu0 0.0
    %674 = vmatprep.subr.mxu0 0.0
    %675 = vmatpush1.msra.mxu0 0.0
    %676 = vmatprep.subr.mxu0 0.0
    %677 = vmatpush1.msra.mxu0 0.0
    %678 = vmatprep.subr.mxu0 0.0
    %679 = vmatpush1.msra.mxu0 0.0
    %680 = vmatprep.subr.mxu0 0.0
    %681 = vmatpush1.msra.mxu0 0.0
    %682 = vmatprep.subr.mxu0 0.0
    %683 = vmatpush1.msra.mxu0 0.0
    %684 = vmatprep.subr.mxu0 0.0
    %685 = vmatpush1.msra.mxu0 0.0
    %686 = vmatprep.subr.mxu0 0.0
    %687 = vmatpush1.msra.mxu0 0.0
    %688 = vmatprep.subr.mxu0 0.0
    %689 = vmatpush1.msra.mxu0 0.0
    %690 = vmatprep.subr.mxu0 0.0
    %691 = vmatpush1.msra.mxu0 0.0
    %692 = vmatprep.subr.mxu0 0.0
    %693 = vmatpush1.msra.mxu0 0.0
    %694 = vmatprep.subr.mxu0 0.0
    %695 = vmatpush1.msra.mxu0 0.0
    %696 = vmatprep.mubr.f32.mxu0 0.0
    %697 = vmatmul.mubr.f32.gmra.mrb[0].mxu0 %v631
    %v698 = vpop.f32.mrb[0].mxu0
    %v699 = vadd.f32 %v233, %v698
    %v700 = vpop.f32.mrb[0].mxu0
    %v701 = vadd.f32 %v237, %v700
    %702 = vdwg.mxu0
    %v703 = vxor.u32 %v699, 2147483648
    %v704 = vmul.f32 %v703, 1.442695
    %v705 = vpow.pop %v704
    %v706 = vadd.f32 %v705, 1.0
    %v707 = vrcp.pop %v706
    %v708 = vmul.f32 1.0, %v707
    %v709 = vtanh.pop %v701
    %v710 = vxor.u32 %v701, 2147483648
    %v711 = vmul.f32 %v710, 1.442695
    %v712 = vpow.pop %v711
    %v713 = vadd.f32 %v712, 1.0
    %v714 = vrcp.pop %v713
    %v715 = vmul.f32 1.0, %v714
    %v716 = vmul.f32 %v708, %v526
    %v717 = vmul.f32 %v708, %v709
    %719 = vrot.lane.b32.xlu0 %v717, 64
    %v720 = vpop.permute.xlu0 %719
    %v722 = vadd.f32 %v716, %v720
    %v723 = vtanh.pop %v722
    %v724 = vmul.f32 %v715, %v723
    %v725 = vadd.f32 %v529, %v724
    %s726 = scalar_lea.vmem %s0, 6
    %v727 = vld [vmem:[%s726] sm:$0x3]
    %v728 = vsel %vm127, %v629, 0
    %730 = vmatprep.subr.mxu0 %v34
    %731 = vmatpush1.msra.mxu0 %v33
    %732 = vmatprep.subr.mxu0 %v36
    %733 = vmatpush1.msra.mxu0 %v35
    %734 = vmatprep.subr.mxu0 %v38
    %735 = vmatpush1.msra.mxu0 %v37
    %736 = vmatprep.subr.mxu0 %v40
    %737 = vmatpush1.msra.mxu0 %v39
    %738 = vmatprep.subr.mxu0 %v42
    %739 = vmatpush1.msra.mxu0 %v41
    %740 = vmatprep.subr.mxu0 %v44
    %741 = vmatpush1.msra.mxu0 %v43
    %742 = vmatprep.subr.mxu0 %v46
    %743 = vmatpush1.msra.mxu0 %v45
    %744 = vmatprep.subr.mxu0 %v48
    %745 = vmatpush1.msra.mxu0 %v47
    %746 = vmatprep.subr.mxu0 %v50
    %747 = vmatpush1.msra.mxu0 %v49
    %748 = vmatprep.subr.mxu0 %v52
    %749 = vmatpush1.msra.mxu0 %v51
    %750 = vmatprep.subr.mxu0 %v54
    %751 = vmatpush1.msra.mxu0 %v53
    %752 = vmatprep.subr.mxu0 %v56
    %753 = vmatpush1.msra.mxu0 %v55
    %754 = vmatprep.subr.mxu0 %v58
    %755 = vmatpush1.msra.mxu0 %v57
    %756 = vmatprep.subr.mxu0 %v60
    %757 = vmatpush1.msra.mxu0 %v59
    %758 = vmatprep.subr.mxu0 %v62
    %759 = vmatpush1.msra.mxu0 %v61
    %760 = vmatprep.subr.mxu0 %v64
    %761 = vmatpush1.msra.mxu0 %v63
    %762 = vmatprep.subr.mxu0 %v66
    %763 = vmatpush1.msra.mxu0 %v65
    %764 = vmatprep.subr.mxu0 %v68
    %765 = vmatpush1.msra.mxu0 %v67
    %766 = vmatprep.subr.mxu0 %v70
    %767 = vmatpush1.msra.mxu0 %v69
    %768 = vmatprep.subr.mxu0 %v72
    %769 = vmatpush1.msra.mxu0 %v71
    %770 = vmatprep.subr.mxu0 %v74
    %771 = vmatpush1.msra.mxu0 %v73
    %772 = vmatprep.subr.mxu0 %v76
    %773 = vmatpush1.msra.mxu0 %v75
    %774 = vmatprep.subr.mxu0 %v78
    %775 = vmatpush1.msra.mxu0 %v77
    %776 = vmatprep.subr.mxu0 %v80
    %777 = vmatpush1.msra.mxu0 %v79
    %778 = vmatprep.subr.mxu0 0.0
    %779 = vmatpush1.msra.mxu0 0.0
    %780 = vmatprep.subr.mxu0 0.0
    %781 = vmatpush1.msra.mxu0 0.0
    %782 = vmatprep.subr.mxu0 0.0
    %783 = vmatpush1.msra.mxu0 0.0
    %784 = vmatprep.subr.mxu0 0.0
    %785 = vmatpush1.msra.mxu0 0.0
    %786 = vmatprep.subr.mxu0 0.0
    %787 = vmatpush1.msra.mxu0 0.0
    %788 = vmatprep.subr.mxu0 0.0
    %789 = vmatpush1.msra.mxu0 0.0
    %790 = vmatprep.subr.mxu0 0.0
    %791 = vmatpush1.msra.mxu0 0.0
    %792 = vmatprep.subr.mxu0 0.0
    %793 = vmatpush1.msra.mxu0 0.0
    %794 = vmatprep.mubr.f32.mxu0 %v728
    %795 = vmatmul.mubr.f32.gmra.mrb[0].mxu0 %v727
    %v796 = vpop.f32.mrb[0].mxu0
    %v797 = vadd.f32 %v120, %v796
    %v798 = vpop.f32.mrb[0].mxu0
    %v799 = vadd.f32 %v124, %v798
    %800 = vdwg.mxu0
    %v801 = vxor.u32 %v797, 2147483648
    %v802 = vmul.f32 %v801, 1.442695
    %v803 = vpow.pop %v802
    %v804 = vadd.f32 %v803, 1.0
    %v805 = vrcp.pop %v804
    %v806 = vmul.f32 1.0, %v805
    %v807 = vtanh.pop %v799
    %v808 = vxor.u32 %v799, 2147483648
    %v809 = vmul.f32 %v808, 1.442695
    %v810 = vpow.pop %v809
    %v811 = vadd.f32 %v810, 1.0
    %v812 = vrcp.pop %v811
    %v813 = vmul.f32 1.0, %v812
    %v814 = vmul.f32 %v806, %v624
    %v815 = vmul.f32 %v806, %v807
    %817 = vrot.lane.b32.xlu0 %v815, 64
    %v818 = vpop.permute.xlu0 %817
    %v820 = vadd.f32 %v814, %v818
    %v821 = vtanh.pop %v820
    %v822 = vmul.f32 %v813, %v821
    %824 = vrot.lane.b32.xlu0 %v822, 64
    %v825 = vpop.permute.xlu0 %824
    %v827 = vsel %vm127, %v825, %v724
    %828 = vmatprep.subr.mxu0 %v83
    %829 = vmatpush1.msra.mxu0 %v82
    %830 = vmatprep.subr.mxu0 %v85
    %831 = vmatpush1.msra.mxu0 %v84
    %832 = vmatprep.subr.mxu0 %v87
    %833 = vmatpush1.msra.mxu0 %v86
    %834 = vmatprep.subr.mxu0 %v89
    %835 = vmatpush1.msra.mxu0 %v88
    %836 = vmatprep.subr.mxu0 %v91
    %837 = vmatpush1.msra.mxu0 %v90
    %838 = vmatprep.subr.mxu0 %v93
    %839 = vmatpush1.msra.mxu0 %v92
    %840 = vmatprep.subr.mxu0 %v95
    %841 = vmatpush1.msra.mxu0 %v94
    %842 = vmatprep.subr.mxu0 %v97
    %843 = vmatpush1.msra.mxu0 %v96
    %844 = vmatprep.subr.mxu0 %v99
    %845 = vmatpush1.msra.mxu0 %v98
    %846 = vmatprep.subr.mxu0 %v101
    %847 = vmatpush1.msra.mxu0 %v100
    %848 = vmatprep.subr.mxu0 %v103
    %849 = vmatpush1.msra.mxu0 %v102
    %850 = vmatprep.subr.mxu0 %v105
    %851 = vmatpush1.msra.mxu0 %v104
    %852 = vmatprep.subr.mxu0 %v107
    %853 = vmatpush1.msra.mxu0 %v106
    %854 = vmatprep.subr.mxu0 %v109
    %855 = vmatpush1.msra.mxu0 %v108
    %856 = vmatprep.subr.mxu0 %v111
    %857 = vmatpush1.msra.mxu0 %v110
    %858 = vmatprep.subr.mxu0 %v113
    %859 = vmatpush1.msra.mxu0 %v112
    %860 = vmatprep.subr.mxu0 0.0
    %861 = vmatpush1.msra.mxu0 0.0
    %862 = vmatprep.subr.mxu0 0.0
    %863 = vmatpush1.msra.mxu0 0.0
    %864 = vmatprep.subr.mxu0 0.0
    %865 = vmatpush1.msra.mxu0 0.0
    %866 = vmatprep.subr.mxu0 0.0
    %867 = vmatpush1.msra.mxu0 0.0
    %868 = vmatprep.subr.mxu0 0.0
    %869 = vmatpush1.msra.mxu0 0.0
    %870 = vmatprep.subr.mxu0 0.0
    %871 = vmatpush1.msra.mxu0 0.0
    %872 = vmatprep.subr.mxu0 0.0
    %873 = vmatpush1.msra.mxu0 0.0
    %874 = vmatprep.subr.mxu0 0.0
    %875 = vmatpush1.msra.mxu0 0.0
    %876 = vmatprep.subr.mxu0 0.0
    %877 = vmatpush1.msra.mxu0 0.0
    %878 = vmatprep.subr.mxu0 0.0
    %879 = vmatpush1.msra.mxu0 0.0
    %880 = vmatprep.subr.mxu0 0.0
    %881 = vmatpush1.msra.mxu0 0.0
    %882 = vmatprep.subr.mxu0 0.0
    %883 = vmatpush1.msra.mxu0 0.0
    %884 = vmatprep.subr.mxu0 0.0
    %885 = vmatpush1.msra.mxu0 0.0
    %886 = vmatprep.subr.mxu0 0.0
    %887 = vmatpush1.msra.mxu0 0.0
    %888 = vmatprep.subr.mxu0 0.0
    %889 = vmatpush1.msra.mxu0 0.0
    %890 = vmatprep.subr.mxu0 0.0
    %891 = vmatpush1.msra.mxu0 0.0
    %892 = vmatprep.mubr.f32.mxu0 0.0
    %893 = vmatmul.mubr.f32.gmra.mrb[0].mxu0 %v827
    %v894 = vpop.f32.mrb[0].mxu0
    %v895 = vadd.f32 %v233, %v894
    %v896 = vpop.f32.mrb[0].mxu0
    %v897 = vadd.f32 %v237, %v896
    %898 = vdwg.mxu0
    %v899 = vxor.u32 %v895, 2147483648
    %v900 = vmul.f32 %v899, 1.442695
    %v901 = vpow.pop %v900
    %v902 = vadd.f32 %v901, 1.0
    %v903 = vrcp.pop %v902
    %v904 = vmul.f32 1.0, %v903
    %v905 = vtanh.pop %v897
    %v906 = vxor.u32 %v897, 2147483648
    %v907 = vmul.f32 %v906, 1.442695
    %v908 = vpow.pop %v907
    %v909 = vadd.f32 %v908, 1.0
    %v910 = vrcp.pop %v909
    %v911 = vmul.f32 1.0, %v910
    %v912 = vmul.f32 %v904, %v722
    %v913 = vmul.f32 %v904, %v905
    %915 = vrot.lane.b32.xlu0 %v913, 64
    %v916 = vpop.permute.xlu0 %915
    %v918 = vadd.f32 %v912, %v916
    %v919 = vtanh.pop %v918
    %v920 = vmul.f32 %v911, %v919
    %v921 = vadd.f32 %v725, %v920
    %v922 = vmul.f32 %v921, 0.25
    %v923 = vld [vmem:[%s5] sm:$0xff]
    %v924 = vld [vmem:[%s5 + $0x8] sm:$0xff]
    %v925 = vld [vmem:[%s5 + $0x10] sm:$0xff]
    %v926 = vld [vmem:[%s5 + $0x18] sm:$0xff]
    %v927 = vld [vmem:[%s5 + $0x20] sm:$0xff]
    %v928 = vld [vmem:[%s5 + $0x28] sm:$0xff]
    %v929 = vld [vmem:[%s5 + $0x30] sm:$0xff]
    %v930 = vld [vmem:[%s5 + $0x38] sm:$0xff]
    %v931 = vld [vmem:[%s6] sm:$0x1]
    %v933 = vlaneseq
    %v934 = vshrl.u32 %v933, 7
    %v935 = vsub.s32 0, %v934
    %v936 = vrot.slane %v931, %v935
    %939 = vrot.lane.b32.xlu0 %v922, 64
    %v940 = vpop.permute.xlu0 %939
    %v941 = vsel %vm127, %v940, 0
    %943 = vmatprep.subr.mxu0 0.0
    %944 = vmatpush1.msra.mxu0 %v923
    %945 = vmatprep.subr.mxu0 0.0
    %946 = vmatpush1.msra.mxu0 %v924
    %947 = vmatprep.subr.mxu0 0.0
    %948 = vmatpush1.msra.mxu0 %v925
    %949 = vmatprep.subr.mxu0 0.0
    %950 = vmatpush1.msra.mxu0 %v926
    %951 = vmatprep.subr.mxu0 0.0
    %952 = vmatpush1.msra.mxu0 %v927
    %953 = vmatprep.subr.mxu0 0.0
    %954 = vmatpush1.msra.mxu0 %v928
    %955 = vmatprep.subr.mxu0 0.0
    %956 = vmatpush1.msra.mxu0 %v929
    %957 = vmatprep.subr.mxu0 0.0
    %958 = vmatpush1.msra.mxu0 %v930
    %959 = vmatprep.subr.mxu0 0.0
    %960 = vmatpush1.msra.mxu0 0.0
    %961 = vmatprep.subr.mxu0 0.0
    %962 = vmatpush1.msra.mxu0 0.0
    %963 = vmatprep.subr.mxu0 0.0
    %964 = vmatpush1.msra.mxu0 0.0
    %965 = vmatprep.subr.mxu0 0.0
    %966 = vmatpush1.msra.mxu0 0.0
    %967 = vmatprep.subr.mxu0 0.0
    %968 = vmatpush1.msra.mxu0 0.0
    %969 = vmatprep.subr.mxu0 0.0
    %970 = vmatpush1.msra.mxu0 0.0
    %971 = vmatprep.subr.mxu0 0.0
    %972 = vmatpush1.msra.mxu0 0.0
    %973 = vmatprep.subr.mxu0 0.0
    %974 = vmatpush1.msra.mxu0 0.0
    %975 = vmatprep.subr.mxu0 0.0
    %976 = vmatpush1.msra.mxu0 0.0
    %977 = vmatprep.subr.mxu0 0.0
    %978 = vmatpush1.msra.mxu0 0.0
    %979 = vmatprep.subr.mxu0 0.0
    %980 = vmatpush1.msra.mxu0 0.0
    %981 = vmatprep.subr.mxu0 0.0
    %982 = vmatpush1.msra.mxu0 0.0
    %983 = vmatprep.subr.mxu0 0.0
    %984 = vmatpush1.msra.mxu0 0.0
    %985 = vmatprep.subr.mxu0 0.0
    %986 = vmatpush1.msra.mxu0 0.0
    %987 = vmatprep.subr.mxu0 0.0
    %988 = vmatpush1.msra.mxu0 0.0
    %989 = vmatprep.subr.mxu0 0.0
    %990 = vmatpush1.msra.mxu0 0.0
    %991 = vmatprep.subr.mxu0 0.0
    %992 = vmatpush1.msra.mxu0 0.0
    %993 = vmatprep.subr.mxu0 0.0
    %994 = vmatpush1.msra.mxu0 0.0
    %995 = vmatprep.subr.mxu0 0.0
    %996 = vmatpush1.msra.mxu0 0.0
    %997 = vmatprep.subr.mxu0 0.0
    %998 = vmatpush1.msra.mxu0 0.0
    %999 = vmatprep.subr.mxu0 0.0
    %1000 = vmatpush1.msra.mxu0 0.0
    %1001 = vmatprep.subr.mxu0 0.0
    %1002 = vmatpush1.msra.mxu0 0.0
    %1003 = vmatprep.subr.mxu0 0.0
    %1004 = vmatpush1.msra.mxu0 0.0
    %1005 = vmatprep.subr.mxu0 0.0
    %1006 = vmatpush1.msra.mxu0 0.0
    %1007 = vmatprep.mubr.f32.mxu0 0.0
    %1008 = vmatmul.mubr.f32.gmra.mrb[0].mxu0 %v941
    %v1009 = vpop.f32.mrb[0].mxu0
    %v1010 = vadd.f32 %v936, %v1009
    %v1011 = vpop.f32.mrb[0].mxu0
    %1012 = vdwg.mxu0
    %v1013 = vld [vmem:[%s7] sm:$0xff]
    %v1014 = vld [vmem:[%s7 + $0x8] sm:$0xff]
    %v1015 = vld [vmem:[%s7 + $0x10] sm:$0xff]
    %v1016 = vld [vmem:[%s7 + $0x18] sm:$0xff]
    %v1017 = vld [vmem:[%s8] sm:$0x1]
    %v1019 = vlaneseq
    %v1020 = vshrl.u32 %v1019, 7
    %v1021 = vsub.s32 0, %v1020
    %v1022 = vrot.slane %v1017, %v1021
    %vm1024 = vcmask 261120
    %v1026 = vsel %vm1024, %v1010, 0
    %1028 = vmatprep.subr.mxu0 0.0
    %1029 = vmatpush1.msra.mxu0 %v1013
    %1030 = vmatprep.subr.mxu0 0.0
    %1031 = vmatpush1.msra.mxu0 %v1014
    %1032 = vmatprep.subr.mxu0 0.0
    %1033 = vmatpush1.msra.mxu0 %v1015
    %1034 = vmatprep.subr.mxu0 0.0
    %1035 = vmatpush1.msra.mxu0 %v1016
    %1036 = vmatprep.subr.mxu0 0.0
    %1037 = vmatpush1.msra.mxu0 0.0
    %1038 = vmatprep.subr.mxu0 0.0
    %1039 = vmatpush1.msra.mxu0 0.0
    %1040 = vmatprep.subr.mxu0 0.0
    %1041 = vmatpush1.msra.mxu0 0.0
    %1042 = vmatprep.subr.mxu0 0.0
    %1043 = vmatpush1.msra.mxu0 0.0
    %1044 = vmatprep.subr.mxu0 0.0
    %1045 = vmatpush1.msra.mxu0 0.0
    %1046 = vmatprep.subr.mxu0 0.0
    %1047 = vmatpush1.msra.mxu0 0.0
    %1048 = vmatprep.subr.mxu0 0.0
    %1049 = vmatpush1.msra.mxu0 0.0
    %1050 = vmatprep.subr.mxu0 0.0
    %1051 = vmatpush1.msra.mxu0 0.0
    %1052 = vmatprep.subr.mxu0 0.0
    %1053 = vmatpush1.msra.mxu0 0.0
    %1054 = vmatprep.subr.mxu0 0.0
    %1055 = vmatpush1.msra.mxu0 0.0
    %1056 = vmatprep.subr.mxu0 0.0
    %1057 = vmatpush1.msra.mxu0 0.0
    %1058 = vmatprep.subr.mxu0 0.0
    %1059 = vmatpush1.msra.mxu0 0.0
    %1060 = vmatprep.subr.mxu0 0.0
    %1061 = vmatpush1.msra.mxu0 0.0
    %1062 = vmatprep.subr.mxu0 0.0
    %1063 = vmatpush1.msra.mxu0 0.0
    %1064 = vmatprep.subr.mxu0 0.0
    %1065 = vmatpush1.msra.mxu0 0.0
    %1066 = vmatprep.subr.mxu0 0.0
    %1067 = vmatpush1.msra.mxu0 0.0
    %1068 = vmatprep.subr.mxu0 0.0
    %1069 = vmatpush1.msra.mxu0 0.0
    %1070 = vmatprep.subr.mxu0 0.0
    %1071 = vmatpush1.msra.mxu0 0.0
    %1072 = vmatprep.subr.mxu0 0.0
    %1073 = vmatpush1.msra.mxu0 0.0
    %1074 = vmatprep.subr.mxu0 0.0
    %1075 = vmatpush1.msra.mxu0 0.0
    %1076 = vmatprep.subr.mxu0 0.0
    %1077 = vmatpush1.msra.mxu0 0.0
    %1078 = vmatprep.subr.mxu0 0.0
    %1079 = vmatpush1.msra.mxu0 0.0
    %1080 = vmatprep.subr.mxu0 0.0
    %1081 = vmatpush1.msra.mxu0 0.0
    %1082 = vmatprep.subr.mxu0 0.0
    %1083 = vmatpush1.msra.mxu0 0.0
    %1084 = vmatprep.subr.mxu0 0.0
    %1085 = vmatpush1.msra.mxu0 0.0
    %1086 = vmatprep.subr.mxu0 0.0
    %1087 = vmatpush1.msra.mxu0 0.0
    %1088 = vmatprep.subr.mxu0 0.0
    %1089 = vmatpush1.msra.mxu0 0.0
    %1090 = vmatprep.subr.mxu0 0.0
    %1091 = vmatpush1.msra.mxu0 0.0
    %1092 = vmatprep.mubr.f32.mxu0 0.0
    %1093 = vmatmul.mubr.f32.gmra.mrb[0].mxu0 %v1026
    %v1094 = vpop.f32.mrb[0].mxu0
    %v1095 = vadd.f32 %v1022, %v1094
    %v1096 = vpop.f32.mrb[0].mxu0
    %1097 = vdwg.mxu0
    %vm1098 = vcmask 9216
    %1099 = vst.msk [vmem:[#allocation2] sm:$0x3] %vm1098, %v1095
    // Predicated region
    $region38: #{mfcc_crnn_forward.11} parent=1 // pred_check
      _
    $region39: #{mfcc_crnn_forward.11} parent=1 // pred_check_branch
      %1101 = sbr.rel (0) target = $region41
    $region40: #{mfcc_crnn_forward.11} parent=1 // pred_region
      %s1103 = ssub.s32 32, 32
      %1104 = vsyncadd [#allocation3], %s1103
      %s1106 = sshll.u32 [#allocation2], 4
      %s1107 = int_to_ptr.vmem [resolvable:$true] %s1106
      %1109 = dma.vmem_to_hbm [thread:$0]  %s1107, 32, %s9, [#allocation3]
    $region41: #{mfcc_crnn_forward.11} parent=1 // pred_fallthru
      _
    // Predicated region
    $region42: #{mfcc_crnn_forward.11} parent=1 // pred_check
      _
    $region43: #{mfcc_crnn_forward.11} parent=1 // pred_check_branch
      %1111 = sbr.rel (0) target = $region45
    $region44: #{mfcc_crnn_forward.11} parent=1 // pred_region
      %1112 = dma.done [#allocation3], 32
    $region45: #{mfcc_crnn_forward.11} parent=1 // pred_fallthru
      _
    %1113 = vsyncpa [#allocation3], 1

</llo_original>
